<compile_context>
chip_gen: v7x
topology: tpu7x:2x2x1
jax: 0.10.0
libtpu: 0.0.40
codegen_flags: <defaults>
</compile_context>

<pallas_src>
import jax
import jax.numpy as jnp
from jax.experimental import pallas as pl
from jax.experimental.pallas import tpu as pltpu

CLS_DIM = (37, 10, 4)
TOTAL_DIM = 37 * 10 * 4          # 1480
N_PAD = 1536                     # lane-padded output width (12 * 128)
C_FEAT = 512                     # backbone output channels (resnet18/34)
H_FEAT, W_FEAT = 9, 25           # backbone output spatial dims (8*9*25 == 1800)
SPATIAL = H_FEAT * W_FEAT        # 225
POOL_C = 8
FLAT = POOL_C * SPATIAL          # 1800
HIDDEN = 2048
TK = 512                         # hidden-dim chunk per grid step


def _detect_n_cores() -> int:
    """2-way K-split only on multi-TensorCore chips (v7x); 1 elsewhere (v5e/v6e)."""
    try:
        kind = jax.devices()[0].device_kind.lower().replace(" ", "")
        if "v7" in kind or "tpu7" in kind:
            return 2
    except Exception:
        pass
    return 1


N_CORES = _detect_n_cores()
NKC = HIDDEN // (TK * N_CORES)   # hidden-dim chunks per core (4 single-TC, 2 on v7x)


# ------------- fused: 1x1 pool conv + Linear -> ReLU -> Linear (int8 weights) -------------
def _fused_kernel(x_ref, pw_ref, pb_ref, w1q_ref, s1_ref, b1_ref,
                  w2q_ref, s2_ref, b2_ref, o_ref, pool_sc):
    # x_ref  : (B, 512, 225) bf16   (resident: constant block index)
    # pw_ref : (8, 512) bf16, pb_ref: (8, 1) f32
    # w1q_ref: (8, 225, TK) int8    (= W1^T rows split by pool channel, hidden chunk)
    # s1_ref : (1, TK) f32 per-output-column scale, b1_ref: (1, TK) f32
    # w2q_ref: (TK, N_PAD) int8, s2_ref: (1, N_PAD) f32, b2_ref: (1, N_PAD) f32
    # o_ref  : (B, N_PAD) f32       (resident across the k axis; per-core partial)
    # pool_sc: (8, B, 225) bf16 VMEM scratch holding the flattened pool activation
    core = pl.program_id(0)
    k = pl.program_id(1)
    B = o_ref.shape[0]

    @pl.when(k == 0)
    def _():
        o_ref[...] = jnp.zeros_like(o_ref)
        # 1x1 pool conv (512 -> 8), computed once per core, hidden under weight DMA.
        pw = pw_ref[...]                                                   # (8, 512) bf16
        pb = pb_ref[...]                                                   # (8, 1)   f32
        pooled = [jnp.dot(pw, x_ref[b], preferred_element_type=jnp.float32) + pb
                  for b in range(B)]                                       # B x (8, 225) f32
        # torch .view(-1, 1800) flat ordering is channel-major (flat = c*225 + s):
        # keep the activation channel-sliced so each chunk feeds one MXU dot below.
        for c in range(POOL_C):
            lhs_c = jnp.concatenate([p[c:c + 1, :] for p in pooled], axis=0)   # (B, 225)
            pool_sc[c] = lhs_c.astype(jnp.bfloat16)

    # First linear layer, hidden chunk:
    #   hpre = flatten(pooled) @ (q1 * s1)[:, chunk] == (sum_c pool_c @ q1_c) * s1  (exact)
    hpre = None
    for c in range(POOL_C):
        w1c = w1q_ref[c].astype(jnp.bfloat16)                              # int8 -> bf16 exact
        t = jnp.dot(pool_sc[c], w1c, preferred_element_type=jnp.float32)   # (B, TK) f32
        hpre = t if hpre is None else hpre + t
    hpre = hpre * s1_ref[...] + b1_ref[...]
    h = jnp.maximum(hpre, 0.0).astype(jnp.bfloat16)                        # (B, TK)

    # Second linear layer: accumulate into the resident, lane-dense output block.
    w2 = w2q_ref[...].astype(jnp.bfloat16)                                 # (TK, N_PAD)
    o_ref[...] += jnp.dot(h, w2, preferred_element_type=jnp.float32) * s2_ref[...]

    # Fold the final bias in-kernel (once: core 0 only, so the 2-core partial sum stays exact).
    @pl.when((k == pl.num_programs(1) - 1) & (core == 0))
    def _():
        o_ref[...] += b2_ref[...]


def _fused_pool_classifier(x_bf16, pool_w, pool_b, w1q, s1, b1, w2q, s2, b2p):
    """x_bf16 (B, 512, 225) bf16 -> per-core partial logits (N_CORES, B, N_PAD) f32."""
    B = x_bf16.shape[0]
    flops = 2 * B * (POOL_C * C_FEAT * SPATIAL + FLAT * HIDDEN + HIDDEN * TOTAL_DIM)
    bytes_accessed = (x_bf16.size * 2 + pool_w.size * 2 + pool_b.size * 4
                      + w1q.size + s1.size * 4 + b1.size * 4
                      + w2q.size + s2.size * 4 + b2p.size * 4
                      + N_CORES * B * N_PAD * 4)
    return pl.pallas_call(
        _fused_kernel,
        out_shape=jax.ShapeDtypeStruct((N_CORES, B, N_PAD), jnp.float32),
        grid_spec=pltpu.PrefetchScalarGridSpec(
            num_scalar_prefetch=0,
            grid=(N_CORES, NKC),
            in_specs=[
                pl.BlockSpec((B, C_FEAT, SPATIAL), lambda c, k: (0, 0, 0)),
                pl.BlockSpec((POOL_C, C_FEAT), lambda c, k: (0, 0)),
                pl.BlockSpec((POOL_C, 1), lambda c, k: (0, 0)),
                pl.BlockSpec((POOL_C, SPATIAL, TK), lambda c, k: (0, 0, c * NKC + k)),
                pl.BlockSpec((1, TK), lambda c, k: (0, c * NKC + k)),
                pl.BlockSpec((1, TK), lambda c, k: (0, c * NKC + k)),
                pl.BlockSpec((TK, N_PAD), lambda c, k: (c * NKC + k, 0)),
                pl.BlockSpec((1, N_PAD), lambda c, k: (0, 0)),
                pl.BlockSpec((1, N_PAD), lambda c, k: (0, 0)),
            ],
            out_specs=pl.BlockSpec((None, B, N_PAD), lambda c, k: (c, 0, 0)),
            scratch_shapes=[pltpu.VMEM((POOL_C, B, SPATIAL), jnp.bfloat16)],
        ),
        compiler_params=pltpu.CompilerParams(
            dimension_semantics=("parallel", "arbitrary")),
        cost_estimate=pl.CostEstimate(
            flops=flops, transcendentals=0, bytes_accessed=bytes_accessed),
    )(x_bf16, pool_w, pool_b, w1q, s1, b1, w2q, s2, b2p)


# ------------------------------------- wrapper ---------------------------------------
def structure_aware_forward(features, kparams):
    """features: NCHW (B, 512, 9, 25) backbone output -> group_cls (B, 37, 10, 4)."""
    B = features.shape[0]
    x = features.reshape(B, C_FEAT, SPATIAL).astype(jnp.bfloat16)
    partial = _fused_pool_classifier(
        x, kparams["pool_w"], kparams["pool_b"],
        kparams["w1q"], kparams["s1"], kparams["b1"],
        kparams["w2q"], kparams["s2"], kparams["b2"])                # (N_CORES, B, N_PAD)
    if N_CORES == 1:
        out = partial[0, :, :TOTAL_DIM]                              # bias already in-kernel
    else:
        out = partial.sum(axis=0)[:, :TOTAL_DIM]                     # tiny v7x-only epilogue
    return out.reshape(B, *CLS_DIM)


def _quantize_cols(w, pad_to=None):
    """Symmetric per-output-column int8 quantization of (K, N) f32 -> (int8, (1, N) f32 scale)."""
    amax = jnp.max(jnp.abs(w), axis=0)
    scale = jnp.maximum(amax, 1e-8) / 127.0
    q = jnp.clip(jnp.round(w / scale), -127.0, 127.0).astype(jnp.int8)
    if pad_to is not None and pad_to > w.shape[1]:
        pad = pad_to - w.shape[1]
        q = jnp.pad(q, ((0, 0), (0, pad)))                           # padded cols exactly zero
        scale = jnp.pad(scale, (0, pad), constant_values=1.0)
    return q, scale.reshape(1, -1).astype(jnp.float32)


def prepare_params(params):
    """Kernel-ready params: int8 weights + per-column scales (halves HBM traffic vs bf16),
    W1 split by pool channel (== torch .view(-1,1800) flat ordering c*225+s),
    W2 / b2 lane-padded to 1536, pool weights bf16."""
    w1q, s1 = _quantize_cols(params["w1"])                           # (1800,2048) i8, (1,2048)
    w1q = w1q.reshape(POOL_C, SPATIAL, HIDDEN)
    w2q, s2 = _quantize_cols(params["w2"], pad_to=N_PAD)             # (2048,1536) i8, (1,1536)
    b2p = jnp.pad(params["b2"].astype(jnp.float32), ((0, 0), (0, N_PAD - TOTAL_DIM)))
    return dict(
        pool_w=params["pool_w"].astype(jnp.bfloat16),
        pool_b=params["pool_b"].astype(jnp.float32),
        w1q=w1q, s1=s1, b1=params["b1"].astype(jnp.float32),
        w2q=w2q, s2=s2, b2=b2p,
    )


def init_params(key):
    k1, k2, k3, k4, k5 = jax.random.split(key, 5)
    # pool conv (synthetic deterministic stand-in for torch Conv2d default init)
    pool_w = jax.random.normal(k1, (POOL_C, C_FEAT), jnp.float32) / jnp.sqrt(C_FEAT)
    pool_b = jnp.zeros((POOL_C, 1), jnp.float32)
    # classifier Linear weights ~ N(0, 0.01) per _init_weights; biases small uniform
    w1 = 0.01 * jax.random.normal(k2, (FLAT, HIDDEN), jnp.float32)          # W1^T (1800, 2048)
    b1 = (jax.random.uniform(k3, (1, HIDDEN), jnp.float32) - 0.5) * 2.0 / jnp.sqrt(FLAT)
    w2 = 0.01 * jax.random.normal(k4, (HIDDEN, TOTAL_DIM), jnp.float32)     # W2^T (2048, 1480)
    b2 = (jax.random.uniform(k5, (1, TOTAL_DIM), jnp.float32) - 0.5) * 2.0 / jnp.sqrt(HIDDEN)
    return dict(pool_w=pool_w, pool_b=pool_b, w1=w1, b1=b1, w2=w2, b2=b2)


if __name__ == "__main__":
    key = jax.random.PRNGKey(0)
    kp, kx = jax.random.split(key)
    params = init_params(kp)
    kparams = prepare_params(params)     # one-time int8-quant / reshape / pad prep

    B = 2                                # weight-DMA bound: larger B is essentially free
    features = jax.random.normal(kx, (B, C_FEAT, H_FEAT, W_FEAT), jnp.float32)

    fwd = jax.jit(structure_aware_forward)
    out = jax.block_until_ready(fwd(features, kparams))
    assert out.shape == (B, *CLS_DIM), out.shape

    # plain-JAX f32 reference (high-precision matmuls) for a loose sanity check;
    # int8 weight streaming + bf16 activations stay well within the 5e-2 tolerance.
    xr = features.reshape(B, C_FEAT, SPATIAL)
    pooled_ref = jnp.einsum("oc,bcs->bos", params["pool_w"], xr,
                            precision=jax.lax.Precision.HIGHEST) + params["pool_b"]
    flat_ref = pooled_ref.reshape(B, FLAT)
    h_ref = jnp.maximum(
        jnp.dot(flat_ref, params["w1"], precision=jax.lax.Precision.HIGHEST) + params["b1"], 0.0)
    ref = (jnp.dot(h_ref, params["w2"], precision=jax.lax.Precision.HIGHEST)
           + params["b2"]).reshape(B, *CLS_DIM)

    assert bool(jnp.all(jnp.isfinite(out)))
    assert bool(jnp.allclose(out, ref, atol=5e-2, rtol=5e-2))
    print("KERNEL_OK")
</pallas_src>

<mosaic_0001>
module attributes {stable_mosaic.version = 11 : i64} {
  func.func @_fused_kernel(%arg0: i32, %arg1: i32, %arg2: memref<2x512x225xbf16, #tpu.memory_space<vmem>>, %arg3: memref<8x512xbf16, #tpu.memory_space<vmem>>, %arg4: memref<8x1xf32, #tpu.memory_space<vmem>>, %arg5: memref<8x225x512xi8, #tpu.memory_space<vmem>>, %arg6: memref<1x512xf32, #tpu.memory_space<vmem>>, %arg7: memref<1x512xf32, #tpu.memory_space<vmem>>, %arg8: memref<512x1536xi8, #tpu.memory_space<vmem>>, %arg9: memref<1x1536xf32, #tpu.memory_space<vmem>>, %arg10: memref<1x1536xf32, #tpu.memory_space<vmem>>, %arg11: memref<1x2x1536xf32, #tpu.memory_space<vmem>>, %arg12: memref<8x2x225xbf16, #tpu.memory_space<vmem>>) attributes {dimension_semantics = [#tpu.dimension_semantics<parallel>, #tpu.dimension_semantics<arbitrary>], iteration_bounds = array<i64: 1, 4>, scalar_prefetch = 0 : i64, scratch_operands = 1 : i64, tpu.core_type = #tpu.core_type<tc>, window_params = [{pipeline_mode = #tpu.pipeline_mode<synchronous>, transform_indices = @transform_0, window_bounds = array<i64: 2, 512, 225>}, {pipeline_mode = #tpu.pipeline_mode<synchronous>, transform_indices = @transform_1, window_bounds = array<i64: 8, 512>}, {pipeline_mode = #tpu.pipeline_mode<synchronous>, transform_indices = @transform_2, window_bounds = array<i64: 8, 1>}, {transform_indices = @transform_3, window_bounds = array<i64: 8, 225, 512>}, {transform_indices = @transform_4, window_bounds = array<i64: 1, 512>}, {transform_indices = @transform_5, window_bounds = array<i64: 1, 512>}, {transform_indices = @transform_6, window_bounds = array<i64: 512, 1536>}, {pipeline_mode = #tpu.pipeline_mode<synchronous>, transform_indices = @transform_7, window_bounds = array<i64: 1, 1536>}, {pipeline_mode = #tpu.pipeline_mode<synchronous>, transform_indices = @transform_8, window_bounds = array<i64: 1, 1536>}, {transform_indices = @transform_9, window_bounds = array<i64: 1, 2, 1536>}]} {
    %c0_i32 = arith.constant 0 : i32
    %0 = arith.cmpi eq, %arg1, %c0_i32 : i32
    %1 = arith.extui %0 : i1 to i32
    %c0_i32_0 = arith.constant 0 : i32
    %2 = arith.cmpi ne, %1, %c0_i32_0 : i32
    scf.if %2 {
      %cst_66 = arith.constant 0.000000e+00 : f32
      %84 = vector.broadcast %cst_66 : f32 to vector<2x1536xf32>
      %c0_67 = arith.constant 0 : index
      %c0_68 = arith.constant 0 : index
      %c0_69 = arith.constant 0 : index
      %85 = vector.load %arg11[%c0_67, %c0_68, %c0_69] : memref<1x2x1536xf32, #tpu.memory_space<vmem>>, vector<1x2x1536xf32>
      %86 = vector.shape_cast %85 : vector<1x2x1536xf32> to vector<2x1536xf32>
      %87 = vector.shape_cast %84 : vector<2x1536xf32> to vector<1x2x1536xf32>
      tpu.vector_store %arg11[%c0_67, %c0_68, %c0_69], %87 {strides = array<i32>} : memref<1x2x1536xf32, #tpu.memory_space<vmem>>, vector<1x2x1536xf32>,
      %c0_70 = arith.constant 0 : index
      %c0_71 = arith.constant 0 : index
      %88 = vector.load %arg3[%c0_70, %c0_71] : memref<8x512xbf16, #tpu.memory_space<vmem>>, vector<8x512xbf16>
      %c0_72 = arith.constant 0 : index
      %c0_73 = arith.constant 0 : index
      %89 = vector.load %arg4[%c0_72, %c0_73] : memref<8x1xf32, #tpu.memory_space<vmem>>, vector<8x1xf32>
      %c0_74 = arith.constant 0 : index
      %c0_75 = arith.constant 0 : index
      %c0_76 = arith.constant 0 : index
      %90 = vector.load %arg2[%c0_74, %c0_75, %c0_76] : memref<2x512x225xbf16, #tpu.memory_space<vmem>>, vector<1x512x225xbf16>
      %91 = vector.shape_cast %90 : vector<1x512x225xbf16> to vector<512x225xbf16>
      %cst_77 = arith.constant dense<0.000000e+00> : vector<8x225xf32>
      %92 = tpu.matmul %88, %91, %cst_77 {dimension_numbers = #tpu.dot_dimension_numbers<[1], [0], [0], [1], [0, 0, 1, 1], [], []>} : vector<8x512xbf16>, vector<512x225xbf16>, vector<8x225xf32> -> vector<8x225xf32>
      %93 = vector.broadcast %89 : vector<8x1xf32> to vector<8x225xf32>
      %94 = arith.addf %92, %93 : vector<8x225xf32>
      %c1_78 = arith.constant 1 : index
      %c0_79 = arith.constant 0 : index
      %c0_80 = arith.constant 0 : index
      %95 = vector.load %arg2[%c1_78, %c0_79, %c0_80] : memref<2x512x225xbf16, #tpu.memory_space<vmem>>, vector<1x512x225xbf16>
      %96 = vector.shape_cast %95 : vector<1x512x225xbf16> to vector<512x225xbf16>
      %cst_81 = arith.constant dense<0.000000e+00> : vector<8x225xf32>
      %97 = tpu.matmul %88, %96, %cst_81 {dimension_numbers = #tpu.dot_dimension_numbers<[1], [0], [0], [1], [0, 0, 1, 1], [], []>} : vector<8x512xbf16>, vector<512x225xbf16>, vector<8x225xf32> -> vector<8x225xf32>
      %98 = vector.broadcast %89 : vector<8x1xf32> to vector<8x225xf32>
      %99 = arith.addf %97, %98 : vector<8x225xf32>
      %100 = vector.extract_strided_slice %94 {offsets = [0, 0], sizes = [1, 225], strides = [1, 1]} : vector<8x225xf32> to vector<1x225xf32>
      %101 = vector.extract_strided_slice %99 {offsets = [0, 0], sizes = [1, 225], strides = [1, 1]} : vector<8x225xf32> to vector<1x225xf32>
      %102 = tpu.concatenate %100, %101 in 0 : vector<1x225xf32>, vector<1x225xf32> -> vector<2x225xf32>
      %103 = arith.truncf %102 : vector<2x225xf32> to vector<2x225xbf16>
      %c0_82 = arith.constant 0 : index
      %c0_83 = arith.constant 0 : index
      %c0_84 = arith.constant 0 : index
      %104 = vector.load %arg12[%c0_82, %c0_83, %c0_84] : memref<8x2x225xbf16, #tpu.memory_space<vmem>>, vector<1x2x225xbf16>
      %105 = vector.shape_cast %104 : vector<1x2x225xbf16> to vector<2x225xbf16>
      %106 = vector.shape_cast %103 : vector<2x225xbf16> to vector<1x2x225xbf16>
      tpu.vector_store %arg12[%c0_82, %c0_83, %c0_84], %106 {strides = array<i32>} : memref<8x2x225xbf16, #tpu.memory_space<vmem>>, vector<1x2x225xbf16>,
      %107 = vector.extract_strided_slice %94 {offsets = [1, 0], sizes = [1, 225], strides = [1, 1]} : vector<8x225xf32> to vector<1x225xf32>
      %108 = vector.extract_strided_slice %99 {offsets = [1, 0], sizes = [1, 225], strides = [1, 1]} : vector<8x225xf32> to vector<1x225xf32>
      %109 = tpu.concatenate %107, %108 in 0 : vector<1x225xf32>, vector<1x225xf32> -> vector<2x225xf32>
      %110 = arith.truncf %109 : vector<2x225xf32> to vector<2x225xbf16>
      %c1_85 = arith.constant 1 : index
      %c0_86 = arith.constant 0 : index
      %c0_87 = arith.constant 0 : index
      %111 = vector.load %arg12[%c1_85, %c0_86, %c0_87] : memref<8x2x225xbf16, #tpu.memory_space<vmem>>, vector<1x2x225xbf16>
      %112 = vector.shape_cast %111 : vector<1x2x225xbf16> to vector<2x225xbf16>
      %113 = vector.shape_cast %110 : vector<2x225xbf16> to vector<1x2x225xbf16>
      tpu.vector_store %arg12[%c1_85, %c0_86, %c0_87], %113 {strides = array<i32>} : memref<8x2x225xbf16, #tpu.memory_space<vmem>>, vector<1x2x225xbf16>,
      %114 = vector.extract_strided_slice %94 {offsets = [2, 0], sizes = [1, 225], strides = [1, 1]} : vector<8x225xf32> to vector<1x225xf32>
      %115 = vector.extract_strided_slice %99 {offsets = [2, 0], sizes = [1, 225], strides = [1, 1]} : vector<8x225xf32> to vector<1x225xf32>
      %116 = tpu.concatenate %114, %115 in 0 : vector<1x225xf32>, vector<1x225xf32> -> vector<2x225xf32>
      %117 = arith.truncf %116 : vector<2x225xf32> to vector<2x225xbf16>
      %c2_88 = arith.constant 2 : index
      %c0_89 = arith.constant 0 : index
      %c0_90 = arith.constant 0 : index
      %118 = vector.load %arg12[%c2_88, %c0_89, %c0_90] : memref<8x2x225xbf16, #tpu.memory_space<vmem>>, vector<1x2x225xbf16>
      %119 = vector.shape_cast %118 : vector<1x2x225xbf16> to vector<2x225xbf16>
      %120 = vector.shape_cast %117 : vector<2x225xbf16> to vector<1x2x225xbf16>
      tpu.vector_store %arg12[%c2_88, %c0_89, %c0_90], %120 {strides = array<i32>} : memref<8x2x225xbf16, #tpu.memory_space<vmem>>, vector<1x2x225xbf16>,
      %121 = vector.extract_strided_slice %94 {offsets = [3, 0], sizes = [1, 225], strides = [1, 1]} : vector<8x225xf32> to vector<1x225xf32>
      %122 = vector.extract_strided_slice %99 {offsets = [3, 0], sizes = [1, 225], strides = [1, 1]} : vector<8x225xf32> to vector<1x225xf32>
      %123 = tpu.concatenate %121, %122 in 0 : vector<1x225xf32>, vector<1x225xf32> -> vector<2x225xf32>
      %124 = arith.truncf %123 : vector<2x225xf32> to vector<2x225xbf16>
      %c3_91 = arith.constant 3 : index
      %c0_92 = arith.constant 0 : index
      %c0_93 = arith.constant 0 : index
      %125 = vector.load %arg12[%c3_91, %c0_92, %c0_93] : memref<8x2x225xbf16, #tpu.memory_space<vmem>>, vector<1x2x225xbf16>
      %126 = vector.shape_cast %125 : vector<1x2x225xbf16> to vector<2x225xbf16>
      %127 = vector.shape_cast %124 : vector<2x225xbf16> to vector<1x2x225xbf16>
      tpu.vector_store %arg12[%c3_91, %c0_92, %c0_93], %127 {strides = array<i32>} : memref<8x2x225xbf16, #tpu.memory_space<vmem>>, vector<1x2x225xbf16>,
      %128 = vector.extract_strided_slice %94 {offsets = [4, 0], sizes = [1, 225], strides = [1, 1]} : vector<8x225xf32> to vector<1x225xf32>
      %129 = vector.extract_strided_slice %99 {offsets = [4, 0], sizes = [1, 225], strides = [1, 1]} : vector<8x225xf32> to vector<1x225xf32>
      %130 = tpu.concatenate %128, %129 in 0 : vector<1x225xf32>, vector<1x225xf32> -> vector<2x225xf32>
      %131 = arith.truncf %130 : vector<2x225xf32> to vector<2x225xbf16>
      %c4_94 = arith.constant 4 : index
      %c0_95 = arith.constant 0 : index
      %c0_96 = arith.constant 0 : index
      %132 = vector.load %arg12[%c4_94, %c0_95, %c0_96] : memref<8x2x225xbf16, #tpu.memory_space<vmem>>, vector<1x2x225xbf16>
      %133 = vector.shape_cast %132 : vector<1x2x225xbf16> to vector<2x225xbf16>
      %134 = vector.shape_cast %131 : vector<2x225xbf16> to vector<1x2x225xbf16>
      tpu.vector_store %arg12[%c4_94, %c0_95, %c0_96], %134 {strides = array<i32>} : memref<8x2x225xbf16, #tpu.memory_space<vmem>>, vector<1x2x225xbf16>,
      %135 = vector.extract_strided_slice %94 {offsets = [5, 0], sizes = [1, 225], strides = [1, 1]} : vector<8x225xf32> to vector<1x225xf32>
      %136 = vector.extract_strided_slice %99 {offsets = [5, 0], sizes = [1, 225], strides = [1, 1]} : vector<8x225xf32> to vector<1x225xf32>
      %137 = tpu.concatenate %135, %136 in 0 : vector<1x225xf32>, vector<1x225xf32> -> vector<2x225xf32>
      %138 = arith.truncf %137 : vector<2x225xf32> to vector<2x225xbf16>
      %c5_97 = arith.constant 5 : index
      %c0_98 = arith.constant 0 : index
      %c0_99 = arith.constant 0 : index
      %139 = vector.load %arg12[%c5_97, %c0_98, %c0_99] : memref<8x2x225xbf16, #tpu.memory_space<vmem>>, vector<1x2x225xbf16>
      %140 = vector.shape_cast %139 : vector<1x2x225xbf16> to vector<2x225xbf16>
      %141 = vector.shape_cast %138 : vector<2x225xbf16> to vector<1x2x225xbf16>
      tpu.vector_store %arg12[%c5_97, %c0_98, %c0_99], %141 {strides = array<i32>} : memref<8x2x225xbf16, #tpu.memory_space<vmem>>, vector<1x2x225xbf16>,
      %142 = vector.extract_strided_slice %94 {offsets = [6, 0], sizes = [1, 225], strides = [1, 1]} : vector<8x225xf32> to vector<1x225xf32>
      %143 = vector.extract_strided_slice %99 {offsets = [6, 0], sizes = [1, 225], strides = [1, 1]} : vector<8x225xf32> to vector<1x225xf32>
      %144 = tpu.concatenate %142, %143 in 0 : vector<1x225xf32>, vector<1x225xf32> -> vector<2x225xf32>
      %145 = arith.truncf %144 : vector<2x225xf32> to vector<2x225xbf16>
      %c6_100 = arith.constant 6 : index
      %c0_101 = arith.constant 0 : index
      %c0_102 = arith.constant 0 : index
      %146 = vector.load %arg12[%c6_100, %c0_101, %c0_102] : memref<8x2x225xbf16, #tpu.memory_space<vmem>>, vector<1x2x225xbf16>
      %147 = vector.shape_cast %146 : vector<1x2x225xbf16> to vector<2x225xbf16>
      %148 = vector.shape_cast %145 : vector<2x225xbf16> to vector<1x2x225xbf16>
      tpu.vector_store %arg12[%c6_100, %c0_101, %c0_102], %148 {strides = array<i32>} : memref<8x2x225xbf16, #tpu.memory_space<vmem>>, vector<1x2x225xbf16>,
      %149 = vector.extract_strided_slice %94 {offsets = [7, 0], sizes = [1, 225], strides = [1, 1]} : vector<8x225xf32> to vector<1x225xf32>
      %150 = vector.extract_strided_slice %99 {offsets = [7, 0], sizes = [1, 225], strides = [1, 1]} : vector<8x225xf32> to vector<1x225xf32>
      %151 = tpu.concatenate %149, %150 in 0 : vector<1x225xf32>, vector<1x225xf32> -> vector<2x225xf32>
      %152 = arith.truncf %151 : vector<2x225xf32> to vector<2x225xbf16>
      %c7_103 = arith.constant 7 : index
      %c0_104 = arith.constant 0 : index
      %c0_105 = arith.constant 0 : index
      %153 = vector.load %arg12[%c7_103, %c0_104, %c0_105] : memref<8x2x225xbf16, #tpu.memory_space<vmem>>, vector<1x2x225xbf16>
      %154 = vector.shape_cast %153 : vector<1x2x225xbf16> to vector<2x225xbf16>
      %155 = vector.shape_cast %152 : vector<2x225xbf16> to vector<1x2x225xbf16>
      tpu.vector_store %arg12[%c7_103, %c0_104, %c0_105], %155 {strides = array<i32>} : memref<8x2x225xbf16, #tpu.memory_space<vmem>>, vector<1x2x225xbf16>,
    } else {
    }
    %c0 = arith.constant 0 : index
    %c0_1 = arith.constant 0 : index
    %c0_2 = arith.constant 0 : index
    %3 = vector.load %arg5[%c0, %c0_1, %c0_2] : memref<8x225x512xi8, #tpu.memory_space<vmem>>, vector<1x225x512xi8>
    %4 = vector.shape_cast %3 : vector<1x225x512xi8> to vector<225x512xi8>
    %5 = arith.sitofp %4 : vector<225x512xi8> to vector<225x512xbf16>
    %c0_3 = arith.constant 0 : index
    %c0_4 = arith.constant 0 : index
    %c0_5 = arith.constant 0 : index
    %6 = vector.load %arg12[%c0_3, %c0_4, %c0_5] : memref<8x2x225xbf16, #tpu.memory_space<vmem>>, vector<1x2x225xbf16>
    %7 = vector.shape_cast %6 : vector<1x2x225xbf16> to vector<2x225xbf16>
    %cst = arith.constant dense<0.000000e+00> : vector<2x512xf32>
    %8 = tpu.matmul %7, %5, %cst {dimension_numbers = #tpu.dot_dimension_numbers<[1], [0], [0], [1], [0, 0, 1, 1], [], []>} : vector<2x225xbf16>, vector<225x512xbf16>, vector<2x512xf32> -> vector<2x512xf32>
    %c1 = arith.constant 1 : index
    %c0_6 = arith.constant 0 : index
    %c0_7 = arith.constant 0 : index
    %9 = vector.load %arg5[%c1, %c0_6, %c0_7] : memref<8x225x512xi8, #tpu.memory_space<vmem>>, vector<1x225x512xi8>
    %10 = vector.shape_cast %9 : vector<1x225x512xi8> to vector<225x512xi8>
    %11 = arith.sitofp %10 : vector<225x512xi8> to vector<225x512xbf16>
    %c1_8 = arith.constant 1 : index
    %c0_9 = arith.constant 0 : index
    %c0_10 = arith.constant 0 : index
    %12 = vector.load %arg12[%c1_8, %c0_9, %c0_10] : memref<8x2x225xbf16, #tpu.memory_space<vmem>>, vector<1x2x225xbf16>
    %13 = vector.shape_cast %12 : vector<1x2x225xbf16> to vector<2x225xbf16>
    %cst_11 = arith.constant dense<0.000000e+00> : vector<2x512xf32>
    %14 = tpu.matmul %13, %11, %cst_11 {dimension_numbers = #tpu.dot_dimension_numbers<[1], [0], [0], [1], [0, 0, 1, 1], [], []>} : vector<2x225xbf16>, vector<225x512xbf16>, vector<2x512xf32> -> vector<2x512xf32>
    %15 = arith.addf %8, %14 : vector<2x512xf32>
    %c2 = arith.constant 2 : index
    %c0_12 = arith.constant 0 : index
    %c0_13 = arith.constant 0 : index
    %16 = vector.load %arg5[%c2, %c0_12, %c0_13] : memref<8x225x512xi8, #tpu.memory_space<vmem>>, vector<1x225x512xi8>
    %17 = vector.shape_cast %16 : vector<1x225x512xi8> to vector<225x512xi8>
    %18 = arith.sitofp %17 : vector<225x512xi8> to vector<225x512xbf16>
    %c2_14 = arith.constant 2 : index
    %c0_15 = arith.constant 0 : index
    %c0_16 = arith.constant 0 : index
    %19 = vector.load %arg12[%c2_14, %c0_15, %c0_16] : memref<8x2x225xbf16, #tpu.memory_space<vmem>>, vector<1x2x225xbf16>
    %20 = vector.shape_cast %19 : vector<1x2x225xbf16> to vector<2x225xbf16>
    %cst_17 = arith.constant dense<0.000000e+00> : vector<2x512xf32>
    %21 = tpu.matmul %20, %18, %cst_17 {dimension_numbers = #tpu.dot_dimension_numbers<[1], [0], [0], [1], [0, 0, 1, 1], [], []>} : vector<2x225xbf16>, vector<225x512xbf16>, vector<2x512xf32> -> vector<2x512xf32>
    %22 = arith.addf %15, %21 : vector<2x512xf32>
    %c3 = arith.constant 3 : index
    %c0_18 = arith.constant 0 : index
    %c0_19 = arith.constant 0 : index
    %23 = vector.load %arg5[%c3, %c0_18, %c0_19] : memref<8x225x512xi8, #tpu.memory_space<vmem>>, vector<1x225x512xi8>
    %24 = vector.shape_cast %23 : vector<1x225x512xi8> to vector<225x512xi8>
    %25 = arith.sitofp %24 : vector<225x512xi8> to vector<225x512xbf16>
    %c3_20 = arith.constant 3 : index
    %c0_21 = arith.constant 0 : index
    %c0_22 = arith.constant 0 : index
    %26 = vector.load %arg12[%c3_20, %c0_21, %c0_22] : memref<8x2x225xbf16, #tpu.memory_space<vmem>>, vector<1x2x225xbf16>
    %27 = vector.shape_cast %26 : vector<1x2x225xbf16> to vector<2x225xbf16>
    %cst_23 = arith.constant dense<0.000000e+00> : vector<2x512xf32>
    %28 = tpu.matmul %27, %25, %cst_23 {dimension_numbers = #tpu.dot_dimension_numbers<[1], [0], [0], [1], [0, 0, 1, 1], [], []>} : vector<2x225xbf16>, vector<225x512xbf16>, vector<2x512xf32> -> vector<2x512xf32>
    %29 = arith.addf %22, %28 : vector<2x512xf32>
    %c4 = arith.constant 4 : index
    %c0_24 = arith.constant 0 : index
    %c0_25 = arith.constant 0 : index
    %30 = vector.load %arg5[%c4, %c0_24, %c0_25] : memref<8x225x512xi8, #tpu.memory_space<vmem>>, vector<1x225x512xi8>
    %31 = vector.shape_cast %30 : vector<1x225x512xi8> to vector<225x512xi8>
    %32 = arith.sitofp %31 : vector<225x512xi8> to vector<225x512xbf16>
    %c4_26 = arith.constant 4 : index
    %c0_27 = arith.constant 0 : index
    %c0_28 = arith.constant 0 : index
    %33 = vector.load %arg12[%c4_26, %c0_27, %c0_28] : memref<8x2x225xbf16, #tpu.memory_space<vmem>>, vector<1x2x225xbf16>
    %34 = vector.shape_cast %33 : vector<1x2x225xbf16> to vector<2x225xbf16>
    %cst_29 = arith.constant dense<0.000000e+00> : vector<2x512xf32>
    %35 = tpu.matmul %34, %32, %cst_29 {dimension_numbers = #tpu.dot_dimension_numbers<[1], [0], [0], [1], [0, 0, 1, 1], [], []>} : vector<2x225xbf16>, vector<225x512xbf16>, vector<2x512xf32> -> vector<2x512xf32>
    %36 = arith.addf %29, %35 : vector<2x512xf32>
    %c5 = arith.constant 5 : index
    %c0_30 = arith.constant 0 : index
    %c0_31 = arith.constant 0 : index
    %37 = vector.load %arg5[%c5, %c0_30, %c0_31] : memref<8x225x512xi8, #tpu.memory_space<vmem>>, vector<1x225x512xi8>
    %38 = vector.shape_cast %37 : vector<1x225x512xi8> to vector<225x512xi8>
    %39 = arith.sitofp %38 : vector<225x512xi8> to vector<225x512xbf16>
    %c5_32 = arith.constant 5 : index
    %c0_33 = arith.constant 0 : index
    %c0_34 = arith.constant 0 : index
    %40 = vector.load %arg12[%c5_32, %c0_33, %c0_34] : memref<8x2x225xbf16, #tpu.memory_space<vmem>>, vector<1x2x225xbf16>
    %41 = vector.shape_cast %40 : vector<1x2x225xbf16> to vector<2x225xbf16>
    %cst_35 = arith.constant dense<0.000000e+00> : vector<2x512xf32>
    %42 = tpu.matmul %41, %39, %cst_35 {dimension_numbers = #tpu.dot_dimension_numbers<[1], [0], [0], [1], [0, 0, 1, 1], [], []>} : vector<2x225xbf16>, vector<225x512xbf16>, vector<2x512xf32> -> vector<2x512xf32>
    %43 = arith.addf %36, %42 : vector<2x512xf32>
    %c6 = arith.constant 6 : index
    %c0_36 = arith.constant 0 : index
    %c0_37 = arith.constant 0 : index
    %44 = vector.load %arg5[%c6, %c0_36, %c0_37] : memref<8x225x512xi8, #tpu.memory_space<vmem>>, vector<1x225x512xi8>
    %45 = vector.shape_cast %44 : vector<1x225x512xi8> to vector<225x512xi8>
    %46 = arith.sitofp %45 : vector<225x512xi8> to vector<225x512xbf16>
    %c6_38 = arith.constant 6 : index
    %c0_39 = arith.constant 0 : index
    %c0_40 = arith.constant 0 : index
    %47 = vector.load %arg12[%c6_38, %c0_39, %c0_40] : memref<8x2x225xbf16, #tpu.memory_space<vmem>>, vector<1x2x225xbf16>
    %48 = vector.shape_cast %47 : vector<1x2x225xbf16> to vector<2x225xbf16>
    %cst_41 = arith.constant dense<0.000000e+00> : vector<2x512xf32>
    %49 = tpu.matmul %48, %46, %cst_41 {dimension_numbers = #tpu.dot_dimension_numbers<[1], [0], [0], [1], [0, 0, 1, 1], [], []>} : vector<2x225xbf16>, vector<225x512xbf16>, vector<2x512xf32> -> vector<2x512xf32>
    %50 = arith.addf %43, %49 : vector<2x512xf32>
    %c7 = arith.constant 7 : index
    %c0_42 = arith.constant 0 : index
    %c0_43 = arith.constant 0 : index
    %51 = vector.load %arg5[%c7, %c0_42, %c0_43] : memref<8x225x512xi8, #tpu.memory_space<vmem>>, vector<1x225x512xi8>
    %52 = vector.shape_cast %51 : vector<1x225x512xi8> to vector<225x512xi8>
    %53 = arith.sitofp %52 : vector<225x512xi8> to vector<225x512xbf16>
    %c7_44 = arith.constant 7 : index
    %c0_45 = arith.constant 0 : index
    %c0_46 = arith.constant 0 : index
    %54 = vector.load %arg12[%c7_44, %c0_45, %c0_46] : memref<8x2x225xbf16, #tpu.memory_space<vmem>>, vector<1x2x225xbf16>
    %55 = vector.shape_cast %54 : vector<1x2x225xbf16> to vector<2x225xbf16>
    %cst_47 = arith.constant dense<0.000000e+00> : vector<2x512xf32>
    %56 = tpu.matmul %55, %53, %cst_47 {dimension_numbers = #tpu.dot_dimension_numbers<[1], [0], [0], [1], [0, 0, 1, 1], [], []>} : vector<2x225xbf16>, vector<225x512xbf16>, vector<2x512xf32> -> vector<2x512xf32>
    %57 = arith.addf %50, %56 : vector<2x512xf32>
    %c0_48 = arith.constant 0 : index
    %c0_49 = arith.constant 0 : index
    %58 = vector.load %arg6[%c0_48, %c0_49] : memref<1x512xf32, #tpu.memory_space<vmem>>, vector<1x512xf32>
    %59 = vector.broadcast %58 : vector<1x512xf32> to vector<2x512xf32>
    %60 = arith.mulf %57, %59 : vector<2x512xf32>
    %c0_50 = arith.constant 0 : index
    %c0_51 = arith.constant 0 : index
    %61 = vector.load %arg7[%c0_50, %c0_51] : memref<1x512xf32, #tpu.memory_space<vmem>>, vector<1x512xf32>
    %62 = vector.broadcast %61 : vector<1x512xf32> to vector<2x512xf32>
    %63 = arith.addf %60, %62 : vector<2x512xf32>
    %cst_52 = arith.constant 0.000000e+00 : f32
    %64 = vector.broadcast %cst_52 : f32 to vector<2x512xf32>
    %65 = arith.maximumf %63, %64 : vector<2x512xf32>
    %66 = arith.truncf %65 : vector<2x512xf32> to vector<2x512xbf16>
    %c0_53 = arith.constant 0 : index
    %c0_54 = arith.constant 0 : index
    %67 = vector.load %arg8[%c0_53, %c0_54] : memref<512x1536xi8, #tpu.memory_space<vmem>>, vector<512x1536xi8>
    %68 = arith.sitofp %67 : vector<512x1536xi8> to vector<512x1536xbf16>
    %c0_55 = arith.constant 0 : index
    %c0_56 = arith.constant 0 : index
    %c0_57 = arith.constant 0 : index
    %69 = vector.load %arg11[%c0_55, %c0_56, %c0_57] : memref<1x2x1536xf32, #tpu.memory_space<vmem>>, vector<1x2x1536xf32>
    %70 = vector.shape_cast %69 : vector<1x2x1536xf32> to vector<2x1536xf32>
    %cst_58 = arith.constant dense<0.000000e+00> : vector<2x1536xf32>
    %71 = tpu.matmul %66, %68, %cst_58 {dimension_numbers = #tpu.dot_dimension_numbers<[1], [0], [0], [1], [0, 0, 1, 1], [], []>} : vector<2x512xbf16>, vector<512x1536xbf16>, vector<2x1536xf32> -> vector<2x1536xf32>
    %c0_59 = arith.constant 0 : index
    %c0_60 = arith.constant 0 : index
    %72 = vector.load %arg9[%c0_59, %c0_60] : memref<1x1536xf32, #tpu.memory_space<vmem>>, vector<1x1536xf32>
    %73 = vector.broadcast %72 : vector<1x1536xf32> to vector<2x1536xf32>
    %74 = arith.mulf %71, %73 : vector<2x1536xf32>
    %75 = arith.addf %70, %74 : vector<2x1536xf32>
    %c0_61 = arith.constant 0 : index
    %c0_62 = arith.constant 0 : index
    %c0_63 = arith.constant 0 : index
    %76 = vector.load %arg11[%c0_61, %c0_62, %c0_63] : memref<1x2x1536xf32, #tpu.memory_space<vmem>>, vector<1x2x1536xf32>
    %77 = vector.shape_cast %76 : vector<1x2x1536xf32> to vector<2x1536xf32>
    %78 = vector.shape_cast %75 : vector<2x1536xf32> to vector<1x2x1536xf32>
    tpu.vector_store %arg11[%c0_61, %c0_62, %c0_63], %78 {strides = array<i32>} : memref<1x2x1536xf32, #tpu.memory_space<vmem>>, vector<1x2x1536xf32>,
    %c3_i32 = arith.constant 3 : i32
    %79 = arith.cmpi eq, %arg1, %c3_i32 : i32
    %c0_i32_64 = arith.constant 0 : i32
    %80 = arith.cmpi eq, %arg0, %c0_i32_64 : i32
    %81 = arith.andi %79, %80 : i1
    %82 = arith.extui %81 : i1 to i32
    %c0_i32_65 = arith.constant 0 : i32
    %83 = arith.cmpi ne, %82, %c0_i32_65 : i32
    scf.if %83 {
      %c0_66 = arith.constant 0 : index
      %c0_67 = arith.constant 0 : index
      %c0_68 = arith.constant 0 : index
      %84 = vector.load %arg11[%c0_66, %c0_67, %c0_68] : memref<1x2x1536xf32, #tpu.memory_space<vmem>>, vector<1x2x1536xf32>
      %85 = vector.shape_cast %84 : vector<1x2x1536xf32> to vector<2x1536xf32>
      %c0_69 = arith.constant 0 : index
      %c0_70 = arith.constant 0 : index
      %86 = vector.load %arg10[%c0_69, %c0_70] : memref<1x1536xf32, #tpu.memory_space<vmem>>, vector<1x1536xf32>
      %87 = vector.broadcast %86 : vector<1x1536xf32> to vector<2x1536xf32>
      %88 = arith.addf %85, %87 : vector<2x1536xf32>
      %c0_71 = arith.constant 0 : index
      %c0_72 = arith.constant 0 : index
      %c0_73 = arith.constant 0 : index
      %89 = vector.load %arg11[%c0_71, %c0_72, %c0_73] : memref<1x2x1536xf32, #tpu.memory_space<vmem>>, vector<1x2x1536xf32>
      %90 = vector.shape_cast %89 : vector<1x2x1536xf32> to vector<2x1536xf32>
      %91 = vector.shape_cast %88 : vector<2x1536xf32> to vector<1x2x1536xf32>
      tpu.vector_store %arg11[%c0_71, %c0_72, %c0_73], %91 {strides = array<i32>} : memref<1x2x1536xf32, #tpu.memory_space<vmem>>, vector<1x2x1536xf32>,
    } else {
    }
    return
  }
  func.func @transform_0(%arg0: i32, %arg1: i32) -> (i32, i32, i32) {
    %c0_i32 = arith.constant 0 : i32
    %c0_i32_0 = arith.constant 0 : i32
    %c0_i32_1 = arith.constant 0 : i32
    %c0_i32_2 = arith.constant 0 : i32
    return %c0_i32, %c0_i32_0, %c0_i32_1 : i32, i32, i32
  }
  func.func @transform_1(%arg0: i32, %arg1: i32) -> (i32, i32) {
    %c0_i32 = arith.constant 0 : i32
    %c0_i32_0 = arith.constant 0 : i32
    %c0_i32_1 = arith.constant 0 : i32
    return %c0_i32, %c0_i32_0 : i32, i32
  }
  func.func @transform_2(%arg0: i32, %arg1: i32) -> (i32, i32) {
    %c0_i32 = arith.constant 0 : i32
    %c0_i32_0 = arith.constant 0 : i32
    %c0_i32_1 = arith.constant 0 : i32
    return %c0_i32, %c0_i32_0 : i32, i32
  }
  func.func @transform_3(%arg0: i32, %arg1: i32) -> (i32, i32, i32) {
    %c4_i32 = arith.constant 4 : i32
    %0 = arith.muli %arg0, %c4_i32 : i32
    %1 = arith.addi %0, %arg1 : i32
    %c0_i32 = arith.constant 0 : i32
    %c0_i32_0 = arith.constant 0 : i32
    %c0_i32_1 = arith.constant 0 : i32
    return %c0_i32, %c0_i32_0, %1 : i32, i32, i32
  }
  func.func @transform_4(%arg0: i32, %arg1: i32) -> (i32, i32) {
    %c4_i32 = arith.constant 4 : i32
    %0 = arith.muli %arg0, %c4_i32 : i32
    %1 = arith.addi %0, %arg1 : i32
    %c0_i32 = arith.constant 0 : i32
    %c0_i32_0 = arith.constant 0 : i32
    return %c0_i32, %1 : i32, i32
  }
  func.func @transform_5(%arg0: i32, %arg1: i32) -> (i32, i32) {
    %c4_i32 = arith.constant 4 : i32
    %0 = arith.muli %arg0, %c4_i32 : i32
    %1 = arith.addi %0, %arg1 : i32
    %c0_i32 = arith.constant 0 : i32
    %c0_i32_0 = arith.constant 0 : i32
    return %c0_i32, %1 : i32, i32
  }
  func.func @transform_6(%arg0: i32, %arg1: i32) -> (i32, i32) {
    %c4_i32 = arith.constant 4 : i32
    %0 = arith.muli %arg0, %c4_i32 : i32
    %1 = arith.addi %0, %arg1 : i32
    %c0_i32 = arith.constant 0 : i32
    %c0_i32_0 = arith.constant 0 : i32
    return %1, %c0_i32 : i32, i32
  }
  func.func @transform_7(%arg0: i32, %arg1: i32) -> (i32, i32) {
    %c0_i32 = arith.constant 0 : i32
    %c0_i32_0 = arith.constant 0 : i32
    %c0_i32_1 = arith.constant 0 : i32
    return %c0_i32, %c0_i32_0 : i32, i32
  }
  func.func @transform_8(%arg0: i32, %arg1: i32) -> (i32, i32) {
    %c0_i32 = arith.constant 0 : i32
    %c0_i32_0 = arith.constant 0 : i32
    %c0_i32_1 = arith.constant 0 : i32
    return %c0_i32, %c0_i32_0 : i32, i32
  }
  func.func @transform_9(%arg0: i32, %arg1: i32) -> (i32, i32, i32) {
    %c0_i32 = arith.constant 0 : i32
    %c0_i32_0 = arith.constant 0 : i32
    %c0_i32_1 = arith.constant 0 : i32
    return %arg0, %c0_i32, %c0_i32_0 : i32, i32, i32
  }
}

</mosaic_0001>

<llo_original>
// kernel: squeeze.1
$region0: #{squeeze.1}
  %s0 = inlined_call_operand.vmem [shape: f32[1,2,1480], index: 0, kind: input, shape index: {}]
  %s1 = inlined_call_operand.vmem [shape: f32[2,37,10,4], index: 1, kind: output, shape index: {}]
  $region1: #{squeeze.1} parent=0
    #allocation0 [shape = 'u8[49152]{0}', space=vmem, size = 0xc000, scoped, tag = 'scoped mem for input reshape']
    %s3 = sshllo.u32 0, 2
    %s4 = smul.addr 2, 11
    %s5 = scalar_lea.vmem %s0, %s4
    %v6 = vld [vmem:[%s5] sm:%s3]
    %s7 = scalar_lea.vmem [#allocation0], 88
    %8 = vst [vmem:[%s7] sm:%s3] %v6
    %s9 = smul.addr 2, 10
    %s10 = scalar_lea.vmem %s0, %s9
    %v11 = vld [vmem:[%s10] sm:%s3]
    %s12 = scalar_lea.vmem [#allocation0], 80
    %13 = vst [vmem:[%s12] sm:%s3] %v11
    %s14 = smul.addr 2, 9
    %s15 = scalar_lea.vmem %s0, %s14
    %v16 = vld [vmem:[%s15] sm:%s3]
    %s17 = scalar_lea.vmem [#allocation0], 72
    %18 = vst [vmem:[%s17] sm:%s3] %v16
    %s19 = smul.addr 2, 8
    %s20 = scalar_lea.vmem %s0, %s19
    %v21 = vld [vmem:[%s20] sm:%s3]
    %s22 = scalar_lea.vmem [#allocation0], 64
    %23 = vst [vmem:[%s22] sm:%s3] %v21
    %s24 = smul.addr 2, 7
    %s25 = scalar_lea.vmem %s0, %s24
    %v26 = vld [vmem:[%s25] sm:%s3]
    %s27 = scalar_lea.vmem [#allocation0], 56
    %28 = vst [vmem:[%s27] sm:%s3] %v26
    %s29 = smul.addr 2, 6
    %s30 = scalar_lea.vmem %s0, %s29
    %v31 = vld [vmem:[%s30] sm:%s3]
    %s32 = scalar_lea.vmem [#allocation0], 48
    %33 = vst [vmem:[%s32] sm:%s3] %v31
    %s34 = smul.addr 2, 5
    %s35 = scalar_lea.vmem %s0, %s34
    %v36 = vld [vmem:[%s35] sm:%s3]
    %s37 = scalar_lea.vmem [#allocation0], 40
    %38 = vst [vmem:[%s37] sm:%s3] %v36
    %s39 = smul.addr 2, 4
    %s40 = scalar_lea.vmem %s0, %s39
    %v41 = vld [vmem:[%s40] sm:%s3]
    %s42 = scalar_lea.vmem [#allocation0], 32
    %43 = vst [vmem:[%s42] sm:%s3] %v41
    %s44 = smul.addr 2, 3
    %s45 = scalar_lea.vmem %s0, %s44
    %v46 = vld [vmem:[%s45] sm:%s3]
    %s47 = scalar_lea.vmem [#allocation0], 24
    %48 = vst [vmem:[%s47] sm:%s3] %v46
    %s49 = smul.addr 2, 2
    %s50 = scalar_lea.vmem %s0, %s49
    %v51 = vld [vmem:[%s50] sm:%s3]
    %s52 = scalar_lea.vmem [#allocation0], 16
    %53 = vst [vmem:[%s52] sm:%s3] %v51
    %s54 = scalar_lea.vmem %s0, 2
    %v55 = vld [vmem:[%s54] sm:%s3]
    %s56 = scalar_lea.vmem [#allocation0], 8
    %57 = vst [vmem:[%s56] sm:%s3] %v55
    %v58 = vld [vmem:[%s0] sm:%s3]
    %59 = vst [vmem:[#allocation0] sm:%s3] %v58
    %v60 = vld [vmem:[#allocation0] sm:$0x3]
    %vm61 = vcmask 31744
    %62 = vst.msk [vmem:[%s1] ss:$592 sm:$0x3] %vm61, %v60
    %s63 = scalar_lea.vmem [#allocation0], 8
    %v64 = vld [vmem:[%s63] sm:$0x3]
    %vm65 = vcmask 31744
    %s66 = scalar_lea.vmem %s1, 50
    %67 = vst.msk [vmem:[%s66] ss:$592 sm:$0x3] %vm65, %v64
    %s68 = scalar_lea.vmem [#allocation0], 16
    %v69 = vld [vmem:[%s68] sm:$0x3]
    %vm70 = vcmask 31744
    %s71 = scalar_lea.vmem %s1, 100
    %72 = vst.msk [vmem:[%s71] ss:$592 sm:$0x3] %vm70, %v69
    %s73 = scalar_lea.vmem [#allocation0], 24
    %v74 = vld [vmem:[%s73] sm:$0x3]
    %vm75 = vcmask 31744
    %s76 = scalar_lea.vmem %s1, 150
    %77 = vst.msk [vmem:[%s76] ss:$592 sm:$0x3] %vm75, %v74
    %s78 = scalar_lea.vmem [#allocation0], 32
    %v79 = vld [vmem:[%s78] sm:$0x3]
    %vm80 = vcmask 31744
    %s81 = scalar_lea.vmem %s1, 200
    %82 = vst.msk [vmem:[%s81] ss:$592 sm:$0x3] %vm80, %v79
    %s83 = scalar_lea.vmem [#allocation0], 40
    %v84 = vld [vmem:[%s83] sm:$0x3]
    %vm85 = vcmask 31744
    %s86 = scalar_lea.vmem %s1, 256
    %87 = vst.msk [vmem:[%s86] ss:$592 sm:$0x3] %vm85, %v84
    %s88 = scalar_lea.vmem [#allocation0], 48
    %v89 = vld [vmem:[%s88] sm:$0x3]
    %vm90 = vcmask 31744
    %s91 = scalar_lea.vmem %s1, 306
    %92 = vst.msk [vmem:[%s91] ss:$592 sm:$0x3] %vm90, %v89
    %s93 = scalar_lea.vmem [#allocation0], 56
    %v94 = vld [vmem:[%s93] sm:$0x3]
    %vm95 = vcmask 31744
    %s96 = scalar_lea.vmem %s1, 356
    %97 = vst.msk [vmem:[%s96] ss:$592 sm:$0x3] %vm95, %v94
    %s98 = scalar_lea.vmem [#allocation0], 64
    %v99 = vld [vmem:[%s98] sm:$0x3]
    %vm100 = vcmask 31744
    %s101 = scalar_lea.vmem %s1, 406
    %102 = vst.msk [vmem:[%s101] ss:$592 sm:$0x3] %vm100, %v99
    %s103 = scalar_lea.vmem [#allocation0], 72
    %v104 = vld [vmem:[%s103] sm:$0x3]
    %vm105 = vcmask 31744
    %s106 = scalar_lea.vmem %s1, 456
    %107 = vst.msk [vmem:[%s106] ss:$592 sm:$0x3] %vm105, %v104
    %s108 = scalar_lea.vmem [#allocation0], 80
    %v109 = vld [vmem:[%s108] sm:$0x3]
    %vm110 = vcmask 31744
    %s111 = scalar_lea.vmem %s1, 512
    %112 = vst.msk [vmem:[%s111] ss:$592 sm:$0x3] %vm110, %v109
    %s113 = scalar_lea.vmem [#allocation0], 88
    %v114 = vld [vmem:[%s113] sm:$0x3]
    %vm115 = vcmask 31744
    %s116 = scalar_lea.vmem %s1, 562
    %117 = vst.msk [vmem:[%s116] ss:$592 sm:$0x3] %vm115, %v114
    %s118 = smov 3
    %v119 = vld [vmem:[#allocation0] ss:$9 sm:%s118]
    %s120 = scalar_lea.vmem [#allocation0], 4294967294
    %s121 = smov 12
    %v122 = vld [vmem:[%s120] ss:$9 sm:%s121]
    %vm123 = vcmask 1043458
    %v124 = vsel %vm123, %v122, %v119
    %s125 = scalar_lea.vmem [#allocation0], 156
    %s126 = smov 48
    %v127 = vld [vmem:[%s125] ss:$-31 sm:%s126]
    %vm128 = vcmask 1045508
    %v129 = vsel %vm128, %v127, %v124
    %s130 = scalar_lea.vmem [#allocation0], 4294967250
    %s131 = smov 192
    %v132 = vld [vmem:[%s130] ss:$9 sm:%s131]
    %vm133 = vcmask 1047558
    %v134 = vsel %vm133, %v132, %v129
    %135 = vrot.lane.b32.xlu0 %v134, 124
    %v136 = vpop.permute.xlu0 %135
    %vm137 = vcmask 31744
    %s138 = scalar_lea.vmem %s1, 1
    %139 = vst.msk [vmem:[%s138] ss:$642 sm:$0x3] %vm137, %v136
    %s140 = scalar_lea.vmem %s1, 4294966113
    %141 = vst.msk [vmem:[%s140] ss:$642 sm:$0xc] %vm137, %v136
    %s142 = scalar_lea.vmem %s1, 4294965929
    %143 = vst.msk [vmem:[%s142] ss:$392 sm:$0x30] %vm137, %v136
    %s144 = scalar_lea.vmem %s1, 4294963495
    %145 = vst.msk [vmem:[%s144] ss:$642 sm:$0xc0] %vm137, %v136
    %s146 = scalar_lea.vmem [#allocation0], 40
    %s147 = smov 3
    %v148 = vld [vmem:[%s146] ss:$9 sm:%s147]
    %s149 = scalar_lea.vmem [#allocation0], 38
    %s150 = smov 12
    %v151 = vld [vmem:[%s149] ss:$9 sm:%s150]
    %vm152 = vcmask 1043458
    %v153 = vsel %vm152, %v151, %v148
    %s154 = scalar_lea.vmem [#allocation0], 196
    %s155 = smov 48
    %v156 = vld [vmem:[%s154] ss:$-31 sm:%s155]
    %vm157 = vcmask 1045508
    %v158 = vsel %vm157, %v156, %v153
    %s159 = scalar_lea.vmem [#allocation0], 4294967290
    %s160 = smov 192
    %v161 = vld [vmem:[%s159] ss:$9 sm:%s160]
    %vm162 = vcmask 1047558
    %v163 = vsel %vm162, %v161, %v158
    %164 = vrot.lane.b32.xlu0 %v163, 124
    %v165 = vpop.permute.xlu0 %164
    %vm166 = vcmask 31744
    %s167 = scalar_lea.vmem %s1, 257
    %168 = vst.msk [vmem:[%s167] ss:$642 sm:$0x3] %vm166, %v165
    %s169 = scalar_lea.vmem %s1, 4294966369
    %170 = vst.msk [vmem:[%s169] ss:$642 sm:$0xc] %vm166, %v165
    %s171 = scalar_lea.vmem %s1, 4294966185
    %172 = vst.msk [vmem:[%s171] ss:$392 sm:$0x30] %vm166, %v165
    %s173 = scalar_lea.vmem %s1, 4294963751
    %174 = vst.msk [vmem:[%s173] ss:$642 sm:$0xc0] %vm166, %v165
    %s175 = scalar_lea.vmem [#allocation0], 80
    %v176 = vld.sshfl [vmem:[%s175] sm:$0xff pattern:$0x88888190]
    %s177 = scalar_lea.vmem [#allocation0], 4294967284
    %s178 = smov 48
    %v179 = vld [vmem:[%s177] ss:$9 sm:%s178]
    %vm180 = vcmask 1045508
    %v181 = vsel %vm180, %v179, %v176
    %s182 = scalar_lea.vmem [#allocation0], 10
    %s183 = smov 192
    %v184 = vld [vmem:[%s182] ss:$9 sm:%s183]
    %vm185 = vcmask 1047558
    %v186 = vsel %vm185, %v184, %v181
    %187 = vrot.lane.b32.xlu0 %v186, 124
    %v188 = vpop.permute.xlu0 %187
    %vm189 = vcmask 31744
    %s190 = scalar_lea.vmem %s1, 513
    %191 = vst.msk [vmem:[%s190] ss:$642 sm:$0x3] %vm189, %v188
    %s192 = scalar_lea.vmem %s1, 2189
    %193 = vst.msk [vmem:[%s192] ss:$-542 sm:$0xc] %vm189, %v188
    %s194 = scalar_lea.vmem %s1, 4294964879
    %195 = vst.msk [vmem:[%s194] ss:$642 sm:$0x30] %vm189, %v188
    %s196 = scalar_lea.vmem %s1, 4294963851
    %197 = vst.msk [vmem:[%s196] ss:$642 sm:$0xc0] %vm189, %v188
    %s198 = scalar_lea.vmem [#allocation0], 33
    %s199 = smov 3
    %v200 = vld [vmem:[%s198] ss:$-33 sm:%s199]
    %s201 = scalar_lea.vmem [#allocation0], 4294967291
    %s202 = smov 12
    %v203 = vld [vmem:[%s201] ss:$7 sm:%s202]
    %vm204 = vcmask 1043458
    %v205 = vsel %vm204, %v203, %v200
    %s206 = scalar_lea.vmem [#allocation0], 4294967293
    %s207 = smov 48
    %v208 = vld [vmem:[%s206] ss:$7 sm:%s207]
    %vm209 = vcmask 1045508
    %v210 = vsel %vm209, %v208, %v205
    %s211 = scalar_lea.vmem [#allocation0], 4294967255
    %s212 = smov 192
    %v213 = vld [vmem:[%s211] ss:$7 sm:%s212]
    %vm214 = vcmask 1047558
    %v215 = vsel %vm214, %v213, %v210
    %216 = vrot.lane.b32.xlu0 %v215, 120
    %v217 = vpop.permute.xlu0 %216
    %vm218 = vcmask 31744
    %s219 = scalar_lea.vmem %s1, 800
    %220 = vst.msk [vmem:[%s219] ss:$-798 sm:$0x3] %vm218, %v217
    %s221 = scalar_lea.vmem %s1, 1728
    %222 = vst.msk [vmem:[%s221] ss:$-542 sm:$0xc] %vm218, %v217
    %s223 = scalar_lea.vmem %s1, 2888
    %224 = vst.msk [vmem:[%s223] ss:$-536 sm:$0x30] %vm218, %v217
    %s225 = scalar_lea.vmem %s1, 3846
    %226 = vst.msk [vmem:[%s225] ss:$-542 sm:$0xc0] %vm218, %v217
    %s227 = scalar_lea.vmem [#allocation0], 73
    %s228 = smov 3
    %v229 = vld [vmem:[%s227] ss:$-33 sm:%s228]
    %s230 = scalar_lea.vmem [#allocation0], 35
    %s231 = smov 12
    %v232 = vld [vmem:[%s230] ss:$7 sm:%s231]
    %vm233 = vcmask 1043458
    %v234 = vsel %vm233, %v232, %v229
    %s235 = scalar_lea.vmem [#allocation0], 37
    %s236 = smov 48
    %v237 = vld [vmem:[%s235] ss:$7 sm:%s236]
    %vm238 = vcmask 1045508
    %v239 = vsel %vm238, %v237, %v234
    %s240 = scalar_lea.vmem [#allocation0], 4294967295
    %s241 = smov 192
    %v242 = vld [vmem:[%s240] ss:$7 sm:%s241]
    %vm243 = vcmask 1047558
    %v244 = vsel %vm243, %v242, %v239
    %245 = vrot.lane.b32.xlu0 %v244, 120
    %v246 = vpop.permute.xlu0 %245
    %vm247 = vcmask 31744
    %s248 = scalar_lea.vmem %s1, 1056
    %249 = vst.msk [vmem:[%s248] ss:$-798 sm:$0x3] %vm247, %v246
    %s250 = scalar_lea.vmem %s1, 1984
    %251 = vst.msk [vmem:[%s250] ss:$-542 sm:$0xc] %vm247, %v246
    %s252 = scalar_lea.vmem %s1, 3144
    %253 = vst.msk [vmem:[%s252] ss:$-536 sm:$0x30] %vm247, %v246
    %s254 = scalar_lea.vmem %s1, 4102
    %255 = vst.msk [vmem:[%s254] ss:$-542 sm:$0xc0] %vm247, %v246
    %s256 = scalar_lea.vmem [#allocation0], 80
    %v257 = vld.sshfl [vmem:[%s256] sm:$0xff pattern:$0x88888190]
    %s258 = scalar_lea.vmem [#allocation0], 4294967285
    %s259 = smov 48
    %v260 = vld [vmem:[%s258] ss:$7 sm:%s259]
    %vm261 = vcmask 1045508
    %v262 = vsel %vm261, %v260, %v257
    %s263 = scalar_lea.vmem [#allocation0], 15
    %s264 = smov 192
    %v265 = vld [vmem:[%s263] ss:$7 sm:%s264]
    %vm266 = vcmask 1047558
    %v267 = vsel %vm266, %v265, %v262
    %268 = vrot.lane.b32.xlu0 %v267, 120
    %v269 = vpop.permute.xlu0 %268
    %vm270 = vcmask 31744
    %s271 = scalar_lea.vmem %s1, 514
    %272 = vst.msk [vmem:[%s271] ss:$642 sm:$0x3] %vm270, %v269
    %s273 = scalar_lea.vmem %s1, 2190
    %274 = vst.msk [vmem:[%s273] ss:$-542 sm:$0xc] %vm270, %v269
    %s275 = scalar_lea.vmem %s1, 2862
    %276 = vst.msk [vmem:[%s275] ss:$-542 sm:$0x30] %vm270, %v269
    %s277 = scalar_lea.vmem %s1, 4202
    %278 = vst.msk [vmem:[%s277] ss:$-542 sm:$0xc0] %vm270, %v269
    %s279 = scalar_lea.vmem [#allocation0], 33
    %s280 = smov 3
    %v281 = vld [vmem:[%s279] ss:$-33 sm:%s280]
    %s282 = scalar_lea.vmem [#allocation0], 4294967291
    %s283 = smov 12
    %v284 = vld [vmem:[%s282] ss:$7 sm:%s283]
    %vm285 = vcmask 1043458
    %v286 = vsel %vm285, %v284, %v281
    %s287 = scalar_lea.vmem [#allocation0], 4294967293
    %s288 = smov 48
    %v289 = vld [vmem:[%s287] ss:$7 sm:%s288]
    %vm290 = vcmask 1045508
    %v291 = vsel %vm290, %v289, %v286
    %s292 = scalar_lea.vmem [#allocation0], 4294967255
    %s293 = smov 192
    %v294 = vld [vmem:[%s292] ss:$7 sm:%s293]
    %vm295 = vcmask 1047558
    %v296 = vsel %vm295, %v294, %v291
    %297 = vrot.lane.b32.xlu0 %v296, 116
    %v298 = vpop.permute.xlu0 %297
    %vm299 = vcmask 31744
    %s300 = scalar_lea.vmem %s1, 801
    %301 = vst.msk [vmem:[%s300] ss:$-798 sm:$0x3] %vm299, %v298
    %s302 = scalar_lea.vmem %s1, 1729
    %303 = vst.msk [vmem:[%s302] ss:$-542 sm:$0xc] %vm299, %v298
    %s304 = scalar_lea.vmem %s1, 2889
    %305 = vst.msk [vmem:[%s304] ss:$-536 sm:$0x30] %vm299, %v298
    %s306 = scalar_lea.vmem %s1, 3847
    %307 = vst.msk [vmem:[%s306] ss:$-542 sm:$0xc0] %vm299, %v298
    %s308 = scalar_lea.vmem [#allocation0], 73
    %s309 = smov 3
    %v310 = vld [vmem:[%s308] ss:$-33 sm:%s309]
    %s311 = scalar_lea.vmem [#allocation0], 35
    %s312 = smov 12
    %v313 = vld [vmem:[%s311] ss:$7 sm:%s312]
    %vm314 = vcmask 1043458
    %v315 = vsel %vm314, %v313, %v310
    %s316 = scalar_lea.vmem [#allocation0], 37
    %s317 = smov 48
    %v318 = vld [vmem:[%s316] ss:$7 sm:%s317]
    %vm319 = vcmask 1045508
    %v320 = vsel %vm319, %v318, %v315
    %s321 = scalar_lea.vmem [#allocation0], 4294967295
    %s322 = smov 192
    %v323 = vld [vmem:[%s321] ss:$7 sm:%s322]
    %vm324 = vcmask 1047558
    %v325 = vsel %vm324, %v323, %v320
    %326 = vrot.lane.b32.xlu0 %v325, 116
    %v327 = vpop.permute.xlu0 %326
    %vm328 = vcmask 31744
    %s329 = scalar_lea.vmem %s1, 1057
    %330 = vst.msk [vmem:[%s329] ss:$-798 sm:$0x3] %vm328, %v327
    %s331 = scalar_lea.vmem %s1, 1985
    %332 = vst.msk [vmem:[%s331] ss:$-542 sm:$0xc] %vm328, %v327
    %s333 = scalar_lea.vmem %s1, 3145
    %334 = vst.msk [vmem:[%s333] ss:$-536 sm:$0x30] %vm328, %v327
    %s335 = scalar_lea.vmem %s1, 4103
    %336 = vst.msk [vmem:[%s335] ss:$-542 sm:$0xc0] %vm328, %v327
    %s337 = scalar_lea.vmem [#allocation0], 80
    %v338 = vld.sshfl [vmem:[%s337] sm:$0xff pattern:$0x88888190]
    %s339 = scalar_lea.vmem [#allocation0], 4294967285
    %s340 = smov 48
    %v341 = vld [vmem:[%s339] ss:$7 sm:%s340]
    %vm342 = vcmask 1045508
    %v343 = vsel %vm342, %v341, %v338
    %s344 = scalar_lea.vmem [#allocation0], 15
    %s345 = smov 192
    %v346 = vld [vmem:[%s344] ss:$7 sm:%s345]
    %vm347 = vcmask 1047558
    %v348 = vsel %vm347, %v346, %v343
    %349 = vrot.lane.b32.xlu0 %v348, 116
    %v350 = vpop.permute.xlu0 %349
    %vm351 = vcmask 31744
    %s352 = scalar_lea.vmem %s1, 515
    %353 = vst.msk [vmem:[%s352] ss:$642 sm:$0x3] %vm351, %v350
    %s354 = scalar_lea.vmem %s1, 2191
    %355 = vst.msk [vmem:[%s354] ss:$-542 sm:$0xc] %vm351, %v350
    %s356 = scalar_lea.vmem %s1, 2863
    %357 = vst.msk [vmem:[%s356] ss:$-542 sm:$0x30] %vm351, %v350
    %s358 = scalar_lea.vmem %s1, 4203
    %359 = vst.msk [vmem:[%s358] ss:$-542 sm:$0xc0] %vm351, %v350
    %s360 = scalar_lea.vmem [#allocation0], 24
    %s361 = smov 3
    %v362 = vld [vmem:[%s360] ss:$9 sm:%s361]
    %s363 = scalar_lea.vmem [#allocation0], 4294967278
    %s364 = smov 12
    %v365 = vld [vmem:[%s363] ss:$9 sm:%s364]
    %vm366 = vcmask 1043458
    %v367 = vsel %vm366, %v365, %v362
    %s368 = scalar_lea.vmem [#allocation0], 4294967276
    %s369 = smov 48
    %v370 = vld [vmem:[%s368] ss:$9 sm:%s369]
    %vm371 = vcmask 1045508
    %v372 = vsel %vm371, %v370, %v367
    %s373 = scalar_lea.vmem [#allocation0], 218
    %s374 = smov 192
    %v375 = vld [vmem:[%s373] ss:$-31 sm:%s374]
    %vm376 = vcmask 1047558
    %v377 = vsel %vm376, %v375, %v372
    %378 = vrot.lane.b32.xlu0 %v377, 112
    %v379 = vpop.permute.xlu0 %378
    %vm380 = vcmask 31744
    %s381 = scalar_lea.vmem %s1, 160
    %382 = vst.msk [vmem:[%s381] ss:$642 sm:$0x3] %vm380, %v379
    %s383 = scalar_lea.vmem %s1, 4294966016
    %384 = vst.msk [vmem:[%s383] ss:$642 sm:$0xc] %vm380, %v379
    %s385 = scalar_lea.vmem %s1, 4294964808
    %386 = vst.msk [vmem:[%s385] ss:$648 sm:$0x30] %vm380, %v379
    %s387 = scalar_lea.vmem %s1, 4294965190
    %388 = vst.msk [vmem:[%s387] ss:$386 sm:$0xc0] %vm380, %v379
    %s389 = scalar_lea.vmem [#allocation0], 64
    %s390 = smov 3
    %v391 = vld [vmem:[%s389] ss:$9 sm:%s390]
    %s392 = scalar_lea.vmem [#allocation0], 22
    %s393 = smov 12
    %v394 = vld [vmem:[%s392] ss:$9 sm:%s393]
    %vm395 = vcmask 1043458
    %v396 = vsel %vm395, %v394, %v391
    %s397 = scalar_lea.vmem [#allocation0], 20
    %s398 = smov 48
    %v399 = vld [vmem:[%s397] ss:$9 sm:%s398]
    %vm400 = vcmask 1045508
    %v401 = vsel %vm400, %v399, %v396
    %s402 = scalar_lea.vmem [#allocation0], 258
    %s403 = smov 192
    %v404 = vld [vmem:[%s402] ss:$-31 sm:%s403]
    %vm405 = vcmask 1047558
    %v406 = vsel %vm405, %v404, %v401
    %407 = vrot.lane.b32.xlu0 %v406, 112
    %v408 = vpop.permute.xlu0 %407
    %vm409 = vcmask 31744
    %s410 = scalar_lea.vmem %s1, 416
    %411 = vst.msk [vmem:[%s410] ss:$642 sm:$0x3] %vm409, %v408
    %s412 = scalar_lea.vmem %s1, 4294966272
    %413 = vst.msk [vmem:[%s412] ss:$642 sm:$0xc] %vm409, %v408
    %s414 = scalar_lea.vmem %s1, 4294965064
    %415 = vst.msk [vmem:[%s414] ss:$648 sm:$0x30] %vm409, %v408
    %s416 = scalar_lea.vmem %s1, 4294965446
    %417 = vst.msk [vmem:[%s416] ss:$386 sm:$0xc0] %vm409, %v408
    %s418 = scalar_lea.vmem [#allocation0], 80
    %v419 = vld.sshfl [vmem:[%s418] sm:$0xff pattern:$0x11111190]
    %s420 = scalar_lea.vmem [#allocation0], 4294967277
    %s421 = smov 24
    %v422 = vld [vmem:[%s420] ss:$9 sm:%s421]
    %vm423 = vcmask 1044483
    %v424 = vsel %vm423, %v422, %v419
    %s425 = scalar_lea.vmem [#allocation0], 3
    %s426 = smov 96
    %v427 = vld [vmem:[%s425] ss:$9 sm:%s426]
    %vm428 = vcmask 1046533
    %v429 = vsel %vm428, %v427, %v424
    %s430 = scalar_lea.vmem [#allocation0], 81
    %v431 = vld [vmem:[%s430] sm:$0x80]
    %vm432 = vcmask 1047559
    %v433 = vsel %vm432, %v431, %v429
    %434 = vrot.lane.b32.xlu0 %v433, 112
    %v435 = vpop.permute.xlu0 %434
    %vm436 = vcmask 31744
    %s437 = scalar_lea.vmem %s1, 516
    %438 = vst.msk [vmem:[%s437] ss:$642 sm:$0x3] %vm436, %v435
    %s439 = scalar_lea.vmem %s1, 3216
    %440 = vst.msk [vmem:[%s439] ss:$-1054 sm:$0xc] %vm436, %v435
    %s441 = scalar_lea.vmem %s1, 2240
    %442 = vst.msk [vmem:[%s441] ss:$-386 sm:$0x30] %vm436, %v435
    %s443 = scalar_lea.vmem %s1, 3268
    %444 = vst.msk [vmem:[%s443] ss:$-386 sm:$0xc0] %vm436, %v435
    %s445 = scalar_lea.vmem [#allocation0], 24
    %s446 = smov 3
    %v447 = vld [vmem:[%s445] ss:$9 sm:%s446]
    %s448 = scalar_lea.vmem [#allocation0], 4294967278
    %s449 = smov 12
    %v450 = vld [vmem:[%s448] ss:$9 sm:%s449]
    %vm451 = vcmask 1043458
    %v452 = vsel %vm451, %v450, %v447
    %s453 = scalar_lea.vmem [#allocation0], 4294967276
    %s454 = smov 48
    %v455 = vld [vmem:[%s453] ss:$9 sm:%s454]
    %vm456 = vcmask 1045508
    %v457 = vsel %vm456, %v455, %v452
    %s458 = scalar_lea.vmem [#allocation0], 218
    %s459 = smov 192
    %v460 = vld [vmem:[%s458] ss:$-31 sm:%s459]
    %vm461 = vcmask 1047558
    %v462 = vsel %vm461, %v460, %v457
    %463 = vrot.lane.b32.xlu0 %v462, 108
    %v464 = vpop.permute.xlu0 %463
    %vm465 = vcmask 31744
    %s466 = scalar_lea.vmem %s1, 161
    %467 = vst.msk [vmem:[%s466] ss:$642 sm:$0x3] %vm465, %v464
    %s468 = scalar_lea.vmem %s1, 4294966017
    %469 = vst.msk [vmem:[%s468] ss:$642 sm:$0xc] %vm465, %v464
    %s470 = scalar_lea.vmem %s1, 4294964809
    %471 = vst.msk [vmem:[%s470] ss:$648 sm:$0x30] %vm465, %v464
    %s472 = scalar_lea.vmem %s1, 4294965191
    %473 = vst.msk [vmem:[%s472] ss:$386 sm:$0xc0] %vm465, %v464
    %s474 = scalar_lea.vmem [#allocation0], 64
    %s475 = smov 3
    %v476 = vld [vmem:[%s474] ss:$9 sm:%s475]
    %s477 = scalar_lea.vmem [#allocation0], 22
    %s478 = smov 12
    %v479 = vld [vmem:[%s477] ss:$9 sm:%s478]
    %vm480 = vcmask 1043458
    %v481 = vsel %vm480, %v479, %v476
    %s482 = scalar_lea.vmem [#allocation0], 20
    %s483 = smov 48
    %v484 = vld [vmem:[%s482] ss:$9 sm:%s483]
    %vm485 = vcmask 1045508
    %v486 = vsel %vm485, %v484, %v481
    %s487 = scalar_lea.vmem [#allocation0], 258
    %s488 = smov 192
    %v489 = vld [vmem:[%s487] ss:$-31 sm:%s488]
    %vm490 = vcmask 1047558
    %v491 = vsel %vm490, %v489, %v486
    %492 = vrot.lane.b32.xlu0 %v491, 108
    %v493 = vpop.permute.xlu0 %492
    %vm494 = vcmask 31744
    %s495 = scalar_lea.vmem %s1, 417
    %496 = vst.msk [vmem:[%s495] ss:$642 sm:$0x3] %vm494, %v493
    %s497 = scalar_lea.vmem %s1, 4294966273
    %498 = vst.msk [vmem:[%s497] ss:$642 sm:$0xc] %vm494, %v493
    %s499 = scalar_lea.vmem %s1, 4294965065
    %500 = vst.msk [vmem:[%s499] ss:$648 sm:$0x30] %vm494, %v493
    %s501 = scalar_lea.vmem %s1, 4294965447
    %502 = vst.msk [vmem:[%s501] ss:$386 sm:$0xc0] %vm494, %v493
    %s503 = scalar_lea.vmem [#allocation0], 80
    %v504 = vld.sshfl [vmem:[%s503] sm:$0xff pattern:$0x11111190]
    %s505 = scalar_lea.vmem [#allocation0], 4294967277
    %s506 = smov 24
    %v507 = vld [vmem:[%s505] ss:$9 sm:%s506]
    %vm508 = vcmask 1044483
    %v509 = vsel %vm508, %v507, %v504
    %s510 = scalar_lea.vmem [#allocation0], 3
    %s511 = smov 96
    %v512 = vld [vmem:[%s510] ss:$9 sm:%s511]
    %vm513 = vcmask 1046533
    %v514 = vsel %vm513, %v512, %v509
    %s515 = scalar_lea.vmem [#allocation0], 81
    %v516 = vld [vmem:[%s515] sm:$0x80]
    %vm517 = vcmask 1047559
    %v518 = vsel %vm517, %v516, %v514
    %519 = vrot.lane.b32.xlu0 %v518, 108
    %v520 = vpop.permute.xlu0 %519
    %vm521 = vcmask 31744
    %s522 = scalar_lea.vmem %s1, 517
    %523 = vst.msk [vmem:[%s522] ss:$642 sm:$0x3] %vm521, %v520
    %s524 = scalar_lea.vmem %s1, 3217
    %525 = vst.msk [vmem:[%s524] ss:$-1054 sm:$0xc] %vm521, %v520
    %s526 = scalar_lea.vmem %s1, 2241
    %527 = vst.msk [vmem:[%s526] ss:$-386 sm:$0x30] %vm521, %v520
    %s528 = scalar_lea.vmem %s1, 3269
    %529 = vst.msk [vmem:[%s528] ss:$-386 sm:$0xc0] %vm521, %v520
    %s530 = scalar_lea.vmem [#allocation0], 17
    %s531 = smov 3
    %v532 = vld [vmem:[%s530] ss:$7 sm:%s531]
    %s533 = scalar_lea.vmem [#allocation0], 99
    %s534 = smov 12
    %v535 = vld [vmem:[%s533] ss:$-33 sm:%s534]
    %vm536 = vcmask 1043458
    %v537 = vsel %vm536, %v535, %v532
    %s538 = scalar_lea.vmem [#allocation0], 4294967277
    %s539 = smov 48
    %v540 = vld [vmem:[%s538] ss:$7 sm:%s539]
    %vm541 = vcmask 1045508
    %v542 = vsel %vm541, %v540, %v537
    %s543 = scalar_lea.vmem [#allocation0], 4294967279
    %s544 = smov 192
    %v545 = vld [vmem:[%s543] ss:$7 sm:%s544]
    %vm546 = vcmask 1047558
    %v547 = vsel %vm546, %v545, %v542
    %548 = vrot.lane.b32.xlu0 %v547, 104
    %v549 = vpop.permute.xlu0 %548
    %vm550 = vcmask 31744
    %s551 = scalar_lea.vmem %s1, 704
    %552 = vst.msk [vmem:[%s551] ss:$-542 sm:$0x3] %vm550, %v549
    %s553 = scalar_lea.vmem %s1, 2400
    %554 = vst.msk [vmem:[%s553] ss:$-798 sm:$0xc] %vm550, %v549
    %s555 = scalar_lea.vmem %s1, 2792
    %556 = vst.msk [vmem:[%s555] ss:$-536 sm:$0x30] %vm550, %v549
    %s557 = scalar_lea.vmem %s1, 4006
    %558 = vst.msk [vmem:[%s557] ss:$-542 sm:$0xc0] %vm550, %v549
    %s559 = scalar_lea.vmem [#allocation0], 57
    %s560 = smov 3
    %v561 = vld [vmem:[%s559] ss:$7 sm:%s560]
    %s562 = scalar_lea.vmem [#allocation0], 139
    %s563 = smov 12
    %v564 = vld [vmem:[%s562] ss:$-33 sm:%s563]
    %vm565 = vcmask 1043458
    %v566 = vsel %vm565, %v564, %v561
    %s567 = scalar_lea.vmem [#allocation0], 21
    %s568 = smov 48
    %v569 = vld [vmem:[%s567] ss:$7 sm:%s568]
    %vm570 = vcmask 1045508
    %v571 = vsel %vm570, %v569, %v566
    %s572 = scalar_lea.vmem [#allocation0], 23
    %s573 = smov 192
    %v574 = vld [vmem:[%s572] ss:$7 sm:%s573]
    %vm575 = vcmask 1047558
    %v576 = vsel %vm575, %v574, %v571
    %577 = vrot.lane.b32.xlu0 %v576, 104
    %v578 = vpop.permute.xlu0 %577
    %vm579 = vcmask 31744
    %s580 = scalar_lea.vmem %s1, 960
    %581 = vst.msk [vmem:[%s580] ss:$-542 sm:$0x3] %vm579, %v578
    %s582 = scalar_lea.vmem %s1, 2656
    %583 = vst.msk [vmem:[%s582] ss:$-798 sm:$0xc] %vm579, %v578
    %s584 = scalar_lea.vmem %s1, 3048
    %585 = vst.msk [vmem:[%s584] ss:$-536 sm:$0x30] %vm579, %v578
    %s586 = scalar_lea.vmem %s1, 4262
    %587 = vst.msk [vmem:[%s586] ss:$-542 sm:$0xc0] %vm579, %v578
    %s588 = scalar_lea.vmem [#allocation0], 80
    %s589 = smov 3
    %v590 = vld [vmem:[%s588] ss:$9 sm:%s589]
    %s591 = scalar_lea.vmem [#allocation0], 4294967283
    %s592 = smov 12
    %v593 = vld [vmem:[%s591] ss:$7 sm:%s592]
    %vm594 = vcmask 1043458
    %v595 = vsel %vm594, %v593, %v590
    %s596 = scalar_lea.vmem [#allocation0], 13
    %s597 = smov 48
    %v598 = vld [vmem:[%s596] ss:$7 sm:%s597]
    %vm599 = vcmask 1045508
    %v600 = vsel %vm599, %v598, %v595
    %s601 = scalar_lea.vmem [#allocation0], 39
    %s602 = smov 192
    %v603 = vld [vmem:[%s601] ss:$7 sm:%s602]
    %vm604 = vcmask 1047558
    %v605 = vsel %vm604, %v603, %v600
    %606 = vrot.lane.b32.xlu0 %v605, 104
    %v607 = vpop.permute.xlu0 %606
    %vm608 = vcmask 31744
    %s609 = scalar_lea.vmem %s1, 518
    %610 = vst.msk [vmem:[%s609] ss:$642 sm:$0x3] %vm608, %v607
    %s611 = scalar_lea.vmem %s1, 1682
    %612 = vst.msk [vmem:[%s611] ss:$-542 sm:$0xc] %vm608, %v607
    %s613 = scalar_lea.vmem %s1, 3022
    %614 = vst.msk [vmem:[%s613] ss:$-542 sm:$0x30] %vm608, %v607
    %s615 = scalar_lea.vmem %s1, 4362
    %616 = vst.msk [vmem:[%s615] ss:$-542 sm:$0xc0] %vm608, %v607
    %s617 = scalar_lea.vmem [#allocation0], 17
    %s618 = smov 3
    %v619 = vld [vmem:[%s617] ss:$7 sm:%s618]
    %s620 = scalar_lea.vmem [#allocation0], 99
    %s621 = smov 12
    %v622 = vld [vmem:[%s620] ss:$-33 sm:%s621]
    %vm623 = vcmask 1043458
    %v624 = vsel %vm623, %v622, %v619
    %s625 = scalar_lea.vmem [#allocation0], 4294967277
    %s626 = smov 48
    %v627 = vld [vmem:[%s625] ss:$7 sm:%s626]
    %vm628 = vcmask 1045508
    %v629 = vsel %vm628, %v627, %v624
    %s630 = scalar_lea.vmem [#allocation0], 4294967279
    %s631 = smov 192
    %v632 = vld [vmem:[%s630] ss:$7 sm:%s631]
    %vm633 = vcmask 1047558
    %v634 = vsel %vm633, %v632, %v629
    %635 = vrot.lane.b32.xlu0 %v634, 100
    %v636 = vpop.permute.xlu0 %635
    %vm637 = vcmask 31744
    %s638 = scalar_lea.vmem %s1, 705
    %639 = vst.msk [vmem:[%s638] ss:$-542 sm:$0x3] %vm637, %v636
    %s640 = scalar_lea.vmem %s1, 2401
    %641 = vst.msk [vmem:[%s640] ss:$-798 sm:$0xc] %vm637, %v636
    %s642 = scalar_lea.vmem %s1, 2793
    %643 = vst.msk [vmem:[%s642] ss:$-536 sm:$0x30] %vm637, %v636
    %s644 = scalar_lea.vmem %s1, 4007
    %645 = vst.msk [vmem:[%s644] ss:$-542 sm:$0xc0] %vm637, %v636
    %s646 = scalar_lea.vmem [#allocation0], 57
    %s647 = smov 3
    %v648 = vld [vmem:[%s646] ss:$7 sm:%s647]
    %s649 = scalar_lea.vmem [#allocation0], 139
    %s650 = smov 12
    %v651 = vld [vmem:[%s649] ss:$-33 sm:%s650]
    %vm652 = vcmask 1043458
    %v653 = vsel %vm652, %v651, %v648
    %s654 = scalar_lea.vmem [#allocation0], 21
    %s655 = smov 48
    %v656 = vld [vmem:[%s654] ss:$7 sm:%s655]
    %vm657 = vcmask 1045508
    %v658 = vsel %vm657, %v656, %v653
    %s659 = scalar_lea.vmem [#allocation0], 23
    %s660 = smov 192
    %v661 = vld [vmem:[%s659] ss:$7 sm:%s660]
    %vm662 = vcmask 1047558
    %v663 = vsel %vm662, %v661, %v658
    %664 = vrot.lane.b32.xlu0 %v663, 100
    %v665 = vpop.permute.xlu0 %664
    %vm666 = vcmask 31744
    %s667 = scalar_lea.vmem %s1, 961
    %668 = vst.msk [vmem:[%s667] ss:$-542 sm:$0x3] %vm666, %v665
    %s669 = scalar_lea.vmem %s1, 2657
    %670 = vst.msk [vmem:[%s669] ss:$-798 sm:$0xc] %vm666, %v665
    %s671 = scalar_lea.vmem %s1, 3049
    %672 = vst.msk [vmem:[%s671] ss:$-536 sm:$0x30] %vm666, %v665
    %s673 = scalar_lea.vmem %s1, 4263
    %674 = vst.msk [vmem:[%s673] ss:$-542 sm:$0xc0] %vm666, %v665
    %s675 = scalar_lea.vmem [#allocation0], 80
    %s676 = smov 3
    %v677 = vld [vmem:[%s675] ss:$9 sm:%s676]
    %s678 = scalar_lea.vmem [#allocation0], 4294967283
    %s679 = smov 12
    %v680 = vld [vmem:[%s678] ss:$7 sm:%s679]
    %vm681 = vcmask 1043458
    %v682 = vsel %vm681, %v680, %v677
    %s683 = scalar_lea.vmem [#allocation0], 13
    %s684 = smov 48
    %v685 = vld [vmem:[%s683] ss:$7 sm:%s684]
    %vm686 = vcmask 1045508
    %v687 = vsel %vm686, %v685, %v682
    %s688 = scalar_lea.vmem [#allocation0], 39
    %s689 = smov 192
    %v690 = vld [vmem:[%s688] ss:$7 sm:%s689]
    %vm691 = vcmask 1047558
    %v692 = vsel %vm691, %v690, %v687
    %693 = vrot.lane.b32.xlu0 %v692, 100
    %v694 = vpop.permute.xlu0 %693
    %vm695 = vcmask 31744
    %s696 = scalar_lea.vmem %s1, 519
    %697 = vst.msk [vmem:[%s696] ss:$642 sm:$0x3] %vm695, %v694
    %s698 = scalar_lea.vmem %s1, 1683
    %699 = vst.msk [vmem:[%s698] ss:$-542 sm:$0xc] %vm695, %v694
    %s700 = scalar_lea.vmem %s1, 3023
    %701 = vst.msk [vmem:[%s700] ss:$-542 sm:$0x30] %vm695, %v694
    %s702 = scalar_lea.vmem %s1, 4363
    %703 = vst.msk [vmem:[%s702] ss:$-542 sm:$0xc0] %vm695, %v694
    %s704 = scalar_lea.vmem [#allocation0], 8
    %s705 = smov 3
    %v706 = vld [vmem:[%s704] ss:$9 sm:%s705]
    %s707 = scalar_lea.vmem [#allocation0], 6
    %s708 = smov 12
    %v709 = vld [vmem:[%s707] ss:$9 sm:%s708]
    %vm710 = vcmask 1043458
    %v711 = vsel %vm710, %v709, %v706
    %s712 = scalar_lea.vmem [#allocation0], 4294967260
    %s713 = smov 48
    %v714 = vld [vmem:[%s712] ss:$9 sm:%s713]
    %vm715 = vcmask 1045508
    %v716 = vsel %vm715, %v714, %v711
    %s717 = scalar_lea.vmem [#allocation0], 4294967258
    %s718 = smov 192
    %v719 = vld [vmem:[%s717] ss:$9 sm:%s718]
    %vm720 = vcmask 1047558
    %v721 = vsel %vm720, %v719, %v716
    %722 = vrot.lane.b32.xlu0 %v721, 96
    %v723 = vpop.permute.xlu0 %722
    %vm724 = vcmask 31744
    %s725 = scalar_lea.vmem %s1, 64
    %726 = vst.msk [vmem:[%s725] ss:$642 sm:$0x3] %vm724, %v723
    %s727 = scalar_lea.vmem %s1, 4294966176
    %728 = vst.msk [vmem:[%s727] ss:$642 sm:$0xc] %vm724, %v723
    %s729 = scalar_lea.vmem %s1, 4294964712
    %730 = vst.msk [vmem:[%s729] ss:$648 sm:$0x30] %vm724, %v723
    %s731 = scalar_lea.vmem %s1, 4294963558
    %732 = vst.msk [vmem:[%s731] ss:$642 sm:$0xc0] %vm724, %v723
    %s733 = scalar_lea.vmem [#allocation0], 48
    %s734 = smov 3
    %v735 = vld [vmem:[%s733] ss:$9 sm:%s734]
    %s736 = scalar_lea.vmem [#allocation0], 46
    %s737 = smov 12
    %v738 = vld [vmem:[%s736] ss:$9 sm:%s737]
    %vm739 = vcmask 1043458
    %v740 = vsel %vm739, %v738, %v735
    %s741 = scalar_lea.vmem [#allocation0], 4
    %s742 = smov 48
    %v743 = vld [vmem:[%s741] ss:$9 sm:%s742]
    %vm744 = vcmask 1045508
    %v745 = vsel %vm744, %v743, %v740
    %s746 = scalar_lea.vmem [#allocation0], 2
    %s747 = smov 192
    %v748 = vld [vmem:[%s746] ss:$9 sm:%s747]
    %vm749 = vcmask 1047558
    %v750 = vsel %vm749, %v748, %v745
    %751 = vrot.lane.b32.xlu0 %v750, 96
    %v752 = vpop.permute.xlu0 %751
    %vm753 = vcmask 31744
    %s754 = scalar_lea.vmem %s1, 320
    %755 = vst.msk [vmem:[%s754] ss:$642 sm:$0x3] %vm753, %v752
    %s756 = scalar_lea.vmem %s1, 4294966432
    %757 = vst.msk [vmem:[%s756] ss:$642 sm:$0xc] %vm753, %v752
    %s758 = scalar_lea.vmem %s1, 4294964968
    %759 = vst.msk [vmem:[%s758] ss:$648 sm:$0x30] %vm753, %v752
    %s760 = scalar_lea.vmem %s1, 4294963814
    %761 = vst.msk [vmem:[%s760] ss:$642 sm:$0xc0] %vm753, %v752
    %s762 = scalar_lea.vmem [#allocation0], 80
    %v763 = vld.sshfl [vmem:[%s762] sm:$0xff pattern:$0x99999908]
    %s764 = scalar_lea.vmem [#allocation0], 125
    %s765 = smov 24
    %v766 = vld [vmem:[%s764] ss:$-31 sm:%s765]
    %vm767 = vcmask 1044483
    %v768 = vsel %vm767, %v766, %v763
    %s769 = scalar_lea.vmem [#allocation0], 227
    %s770 = smov 96
    %v771 = vld [vmem:[%s769] ss:$-31 sm:%s770]
    %vm772 = vcmask 1046533
    %v773 = vsel %vm772, %v771, %v768
    %s774 = scalar_lea.vmem [#allocation0], 74
    %v775 = vld [vmem:[%s774] sm:$0x80]
    %vm776 = vcmask 1047559
    %v777 = vsel %vm776, %v775, %v773
    %778 = vrot.lane.b32.xlu0 %v777, 96
    %v779 = vpop.permute.xlu0 %778
    %vm780 = vcmask 31744
    %s781 = scalar_lea.vmem %s1, 576
    %782 = vst.msk [vmem:[%s781] ss:$-56 sm:$0x3] %vm780, %v779
    %s783 = scalar_lea.vmem %s1, 3076
    %784 = vst.msk [vmem:[%s783] ss:$-954 sm:$0xc] %vm780, %v779
    %s785 = scalar_lea.vmem %s1, 1120
    %786 = vst.msk [vmem:[%s785] ss:$-130 sm:$0x30] %vm780, %v779
    %s787 = scalar_lea.vmem %s1, 850
    %788 = vst.msk [vmem:[%s787] sm:$0x40] %vm780, %v779
    %s789 = scalar_lea.vmem %s1, 1105
    %790 = vst.msk [vmem:[%s789] sm:$0x80] %vm780, %v779
    %s791 = scalar_lea.vmem [#allocation0], 8
    %s792 = smov 3
    %v793 = vld [vmem:[%s791] ss:$9 sm:%s792]
    %s794 = scalar_lea.vmem [#allocation0], 6
    %s795 = smov 12
    %v796 = vld [vmem:[%s794] ss:$9 sm:%s795]
    %vm797 = vcmask 1043458
    %v798 = vsel %vm797, %v796, %v793
    %s799 = scalar_lea.vmem [#allocation0], 4294967260
    %s800 = smov 48
    %v801 = vld [vmem:[%s799] ss:$9 sm:%s800]
    %vm802 = vcmask 1045508
    %v803 = vsel %vm802, %v801, %v798
    %s804 = scalar_lea.vmem [#allocation0], 4294967258
    %s805 = smov 192
    %v806 = vld [vmem:[%s804] ss:$9 sm:%s805]
    %vm807 = vcmask 1047558
    %v808 = vsel %vm807, %v806, %v803
    %809 = vrot.lane.b32.xlu0 %v808, 92
    %v810 = vpop.permute.xlu0 %809
    %vm811 = vcmask 31744
    %s812 = scalar_lea.vmem %s1, 65
    %813 = vst.msk [vmem:[%s812] ss:$642 sm:$0x3] %vm811, %v810
    %s814 = scalar_lea.vmem %s1, 4294966177
    %815 = vst.msk [vmem:[%s814] ss:$642 sm:$0xc] %vm811, %v810
    %s816 = scalar_lea.vmem %s1, 4294964713
    %817 = vst.msk [vmem:[%s816] ss:$648 sm:$0x30] %vm811, %v810
    %s818 = scalar_lea.vmem %s1, 4294963559
    %819 = vst.msk [vmem:[%s818] ss:$642 sm:$0xc0] %vm811, %v810
    %s820 = scalar_lea.vmem [#allocation0], 48
    %s821 = smov 3
    %v822 = vld [vmem:[%s820] ss:$9 sm:%s821]
    %s823 = scalar_lea.vmem [#allocation0], 46
    %s824 = smov 12
    %v825 = vld [vmem:[%s823] ss:$9 sm:%s824]
    %vm826 = vcmask 1043458
    %v827 = vsel %vm826, %v825, %v822
    %s828 = scalar_lea.vmem [#allocation0], 4
    %s829 = smov 48
    %v830 = vld [vmem:[%s828] ss:$9 sm:%s829]
    %vm831 = vcmask 1045508
    %v832 = vsel %vm831, %v830, %v827
    %s833 = scalar_lea.vmem [#allocation0], 2
    %s834 = smov 192
    %v835 = vld [vmem:[%s833] ss:$9 sm:%s834]
    %vm836 = vcmask 1047558
    %v837 = vsel %vm836, %v835, %v832
    %838 = vrot.lane.b32.xlu0 %v837, 92
    %v839 = vpop.permute.xlu0 %838
    %vm840 = vcmask 31744
    %s841 = scalar_lea.vmem %s1, 321
    %842 = vst.msk [vmem:[%s841] ss:$642 sm:$0x3] %vm840, %v839
    %s843 = scalar_lea.vmem %s1, 4294966433
    %844 = vst.msk [vmem:[%s843] ss:$642 sm:$0xc] %vm840, %v839
    %s845 = scalar_lea.vmem %s1, 4294964969
    %846 = vst.msk [vmem:[%s845] ss:$648 sm:$0x30] %vm840, %v839
    %s847 = scalar_lea.vmem %s1, 4294963815
    %848 = vst.msk [vmem:[%s847] ss:$642 sm:$0xc0] %vm840, %v839
    %s849 = scalar_lea.vmem [#allocation0], 80
    %v850 = vld.sshfl [vmem:[%s849] sm:$0xff pattern:$0x99999908]
    %s851 = scalar_lea.vmem [#allocation0], 125
    %s852 = smov 24
    %v853 = vld [vmem:[%s851] ss:$-31 sm:%s852]
    %vm854 = vcmask 1044483
    %v855 = vsel %vm854, %v853, %v850
    %s856 = scalar_lea.vmem [#allocation0], 227
    %s857 = smov 96
    %v858 = vld [vmem:[%s856] ss:$-31 sm:%s857]
    %vm859 = vcmask 1046533
    %v860 = vsel %vm859, %v858, %v855
    %s861 = scalar_lea.vmem [#allocation0], 74
    %v862 = vld [vmem:[%s861] sm:$0x80]
    %vm863 = vcmask 1047559
    %v864 = vsel %vm863, %v862, %v860
    %865 = vrot.lane.b32.xlu0 %v864, 92
    %v866 = vpop.permute.xlu0 %865
    %vm867 = vcmask 31744
    %s868 = scalar_lea.vmem %s1, 577
    %869 = vst.msk [vmem:[%s868] ss:$-56 sm:$0x3] %vm867, %v866
    %s870 = scalar_lea.vmem %s1, 3077
    %871 = vst.msk [vmem:[%s870] ss:$-954 sm:$0xc] %vm867, %v866
    %s872 = scalar_lea.vmem %s1, 1121
    %873 = vst.msk [vmem:[%s872] ss:$-130 sm:$0x30] %vm867, %v866
    %s874 = scalar_lea.vmem %s1, 851
    %875 = vst.msk [vmem:[%s874] sm:$0x40] %vm867, %v866
    %s876 = scalar_lea.vmem %s1, 1106
    %877 = vst.msk [vmem:[%s876] sm:$0x80] %vm867, %v866
    %s878 = scalar_lea.vmem [#allocation0], 1
    %s879 = smov 3
    %v880 = vld [vmem:[%s878] ss:$7 sm:%s879]
    %s881 = scalar_lea.vmem [#allocation0], 3
    %s882 = smov 12
    %v883 = vld [vmem:[%s881] ss:$7 sm:%s882]
    %vm884 = vcmask 1043458
    %v885 = vsel %vm884, %v883, %v880
    %s886 = scalar_lea.vmem [#allocation0], 165
    %s887 = smov 48
    %v888 = vld [vmem:[%s886] ss:$-33 sm:%s887]
    %vm889 = vcmask 1045508
    %v890 = vsel %vm889, %v888, %v885
    %s891 = scalar_lea.vmem [#allocation0], 4294967263
    %s892 = smov 192
    %v893 = vld [vmem:[%s891] ss:$7 sm:%s892]
    %vm894 = vcmask 1047558
    %v895 = vsel %vm894, %v893, %v890
    %896 = vrot.lane.b32.xlu0 %v895, 88
    %v897 = vpop.permute.xlu0 %896
    %vm898 = vcmask 31744
    %s899 = scalar_lea.vmem %s1, 608
    %900 = vst.msk [vmem:[%s899] ss:$-542 sm:$0x3] %vm898, %v897
    %s901 = scalar_lea.vmem %s1, 1792
    %902 = vst.msk [vmem:[%s901] ss:$-542 sm:$0xc] %vm898, %v897
    %s903 = scalar_lea.vmem %s1, 3976
    %904 = vst.msk [vmem:[%s903] ss:$-792 sm:$0x30] %vm898, %v897
    %s905 = scalar_lea.vmem %s1, 3910
    %906 = vst.msk [vmem:[%s905] ss:$-542 sm:$0xc0] %vm898, %v897
    %s907 = scalar_lea.vmem [#allocation0], 41
    %s908 = smov 3
    %v909 = vld [vmem:[%s907] ss:$7 sm:%s908]
    %s910 = scalar_lea.vmem [#allocation0], 43
    %s911 = smov 12
    %v912 = vld [vmem:[%s910] ss:$7 sm:%s911]
    %vm913 = vcmask 1043458
    %v914 = vsel %vm913, %v912, %v909
    %s915 = scalar_lea.vmem [#allocation0], 205
    %s916 = smov 48
    %v917 = vld [vmem:[%s915] ss:$-33 sm:%s916]
    %vm918 = vcmask 1045508
    %v919 = vsel %vm918, %v917, %v914
    %s920 = scalar_lea.vmem [#allocation0], 7
    %s921 = smov 192
    %v922 = vld [vmem:[%s920] ss:$7 sm:%s921]
    %vm923 = vcmask 1047558
    %v924 = vsel %vm923, %v922, %v919
    %925 = vrot.lane.b32.xlu0 %v924, 88
    %v926 = vpop.permute.xlu0 %925
    %vm927 = vcmask 31744
    %s928 = scalar_lea.vmem %s1, 864
    %929 = vst.msk [vmem:[%s928] ss:$-542 sm:$0x3] %vm927, %v926
    %s930 = scalar_lea.vmem %s1, 2048
    %931 = vst.msk [vmem:[%s930] ss:$-542 sm:$0xc] %vm927, %v926
    %s932 = scalar_lea.vmem %s1, 4232
    %933 = vst.msk [vmem:[%s932] ss:$-792 sm:$0x30] %vm927, %v926
    %s934 = scalar_lea.vmem %s1, 4166
    %935 = vst.msk [vmem:[%s934] ss:$-542 sm:$0xc0] %vm927, %v926
    %s936 = scalar_lea.vmem [#allocation0], 80
    %v937 = vld.sshfl [vmem:[%s936] sm:$0xff pattern:$0x99999081]
    %s938 = scalar_lea.vmem [#allocation0], 4294967293
    %s939 = smov 48
    %v940 = vld [vmem:[%s938] ss:$7 sm:%s939]
    %vm941 = vcmask 1045508
    %v942 = vsel %vm941, %v940, %v937
    %s943 = scalar_lea.vmem [#allocation0], 23
    %s944 = smov 192
    %v945 = vld [vmem:[%s943] ss:$7 sm:%s944]
    %vm946 = vcmask 1047558
    %v947 = vsel %vm946, %v945, %v942
    %948 = vrot.lane.b32.xlu0 %v947, 88
    %v949 = vpop.permute.xlu0 %948
    %vm950 = vcmask 31744
    %s951 = scalar_lea.vmem %s1, 1120
    %952 = vst.msk [vmem:[%s951] ss:$-542 sm:$0x3] %vm950, %v949
    %s953 = scalar_lea.vmem %s1, 4294966540
    %954 = vst.msk [vmem:[%s953] ss:$642 sm:$0xc] %vm950, %v949
    %s955 = scalar_lea.vmem %s1, 2926
    %956 = vst.msk [vmem:[%s955] ss:$-542 sm:$0x30] %vm950, %v949
    %s957 = scalar_lea.vmem %s1, 4266
    %958 = vst.msk [vmem:[%s957] ss:$-542 sm:$0xc0] %vm950, %v949
    %s959 = scalar_lea.vmem [#allocation0], 1
    %s960 = smov 3
    %v961 = vld [vmem:[%s959] ss:$7 sm:%s960]
    %s962 = scalar_lea.vmem [#allocation0], 3
    %s963 = smov 12
    %v964 = vld [vmem:[%s962] ss:$7 sm:%s963]
    %vm965 = vcmask 1043458
    %v966 = vsel %vm965, %v964, %v961
    %s967 = scalar_lea.vmem [#allocation0], 165
    %s968 = smov 48
    %v969 = vld [vmem:[%s967] ss:$-33 sm:%s968]
    %vm970 = vcmask 1045508
    %v971 = vsel %vm970, %v969, %v966
    %s972 = scalar_lea.vmem [#allocation0], 4294967263
    %s973 = smov 192
    %v974 = vld [vmem:[%s972] ss:$7 sm:%s973]
    %vm975 = vcmask 1047558
    %v976 = vsel %vm975, %v974, %v971
    %977 = vrot.lane.b32.xlu0 %v976, 84
    %v978 = vpop.permute.xlu0 %977
    %vm979 = vcmask 31744
    %s980 = scalar_lea.vmem %s1, 609
    %981 = vst.msk [vmem:[%s980] ss:$-542 sm:$0x3] %vm979, %v978
    %s982 = scalar_lea.vmem %s1, 1793
    %983 = vst.msk [vmem:[%s982] ss:$-542 sm:$0xc] %vm979, %v978
    %s984 = scalar_lea.vmem %s1, 3977
    %985 = vst.msk [vmem:[%s984] ss:$-792 sm:$0x30] %vm979, %v978
    %s986 = scalar_lea.vmem %s1, 3911
    %987 = vst.msk [vmem:[%s986] ss:$-542 sm:$0xc0] %vm979, %v978
    %s988 = scalar_lea.vmem [#allocation0], 41
    %s989 = smov 3
    %v990 = vld [vmem:[%s988] ss:$7 sm:%s989]
    %s991 = scalar_lea.vmem [#allocation0], 43
    %s992 = smov 12
    %v993 = vld [vmem:[%s991] ss:$7 sm:%s992]
    %vm994 = vcmask 1043458
    %v995 = vsel %vm994, %v993, %v990
    %s996 = scalar_lea.vmem [#allocation0], 205
    %s997 = smov 48
    %v998 = vld [vmem:[%s996] ss:$-33 sm:%s997]
    %vm999 = vcmask 1045508
    %v1000 = vsel %vm999, %v998, %v995
    %s1001 = scalar_lea.vmem [#allocation0], 7
    %s1002 = smov 192
    %v1003 = vld [vmem:[%s1001] ss:$7 sm:%s1002]
    %vm1004 = vcmask 1047558
    %v1005 = vsel %vm1004, %v1003, %v1000
    %1006 = vrot.lane.b32.xlu0 %v1005, 84
    %v1007 = vpop.permute.xlu0 %1006
    %vm1008 = vcmask 31744
    %s1009 = scalar_lea.vmem %s1, 865
    %1010 = vst.msk [vmem:[%s1009] ss:$-542 sm:$0x3] %vm1008, %v1007
    %s1011 = scalar_lea.vmem %s1, 2049
    %1012 = vst.msk [vmem:[%s1011] ss:$-542 sm:$0xc] %vm1008, %v1007
    %s1013 = scalar_lea.vmem %s1, 4233
    %1014 = vst.msk [vmem:[%s1013] ss:$-792 sm:$0x30] %vm1008, %v1007
    %s1015 = scalar_lea.vmem %s1, 4167
    %1016 = vst.msk [vmem:[%s1015] ss:$-542 sm:$0xc0] %vm1008, %v1007
    %s1017 = scalar_lea.vmem [#allocation0], 80
    %v1018 = vld.sshfl [vmem:[%s1017] sm:$0xff pattern:$0x99999081]
    %s1019 = scalar_lea.vmem [#allocation0], 4294967293
    %s1020 = smov 48
    %v1021 = vld [vmem:[%s1019] ss:$7 sm:%s1020]
    %vm1022 = vcmask 1045508
    %v1023 = vsel %vm1022, %v1021, %v1018
    %s1024 = scalar_lea.vmem [#allocation0], 23
    %s1025 = smov 192
    %v1026 = vld [vmem:[%s1024] ss:$7 sm:%s1025]
    %vm1027 = vcmask 1047558
    %v1028 = vsel %vm1027, %v1026, %v1023
    %1029 = vrot.lane.b32.xlu0 %v1028, 84
    %v1030 = vpop.permute.xlu0 %1029
    %vm1031 = vcmask 31744
    %s1032 = scalar_lea.vmem %s1, 1121
    %1033 = vst.msk [vmem:[%s1032] ss:$-542 sm:$0x3] %vm1031, %v1030
    %s1034 = scalar_lea.vmem %s1, 4294966541
    %1035 = vst.msk [vmem:[%s1034] ss:$642 sm:$0xc] %vm1031, %v1030
    %s1036 = scalar_lea.vmem %s1, 2927
    %1037 = vst.msk [vmem:[%s1036] ss:$-542 sm:$0x30] %vm1031, %v1030
    %s1038 = scalar_lea.vmem %s1, 4267
    %1039 = vst.msk [vmem:[%s1038] ss:$-542 sm:$0xc0] %vm1031, %v1030
    %s1040 = scalar_lea.vmem [#allocation0], 32
    %s1041 = smov 3
    %v1042 = vld [vmem:[%s1040] ss:$-31 sm:%s1041]
    %s1043 = scalar_lea.vmem [#allocation0], 4294967286
    %s1044 = smov 12
    %v1045 = vld [vmem:[%s1043] ss:$9 sm:%s1044]
    %vm1046 = vcmask 1043458
    %v1047 = vsel %vm1046, %v1045, %v1042
    %s1048 = scalar_lea.vmem [#allocation0], 4294967284
    %s1049 = smov 48
    %v1050 = vld [vmem:[%s1048] ss:$9 sm:%s1049]
    %vm1051 = vcmask 1045508
    %v1052 = vsel %vm1051, %v1050, %v1047
    %s1053 = scalar_lea.vmem [#allocation0], 4294967242
    %s1054 = smov 192
    %v1055 = vld [vmem:[%s1053] ss:$9 sm:%s1054]
    %vm1056 = vcmask 1047558
    %v1057 = vsel %vm1056, %v1055, %v1052
    %1058 = vrot.lane.b32.xlu0 %v1057, 80
    %v1059 = vpop.permute.xlu0 %1058
    %vm1060 = vcmask 31744
    %s1061 = scalar_lea.vmem %s1, 224
    %1062 = vst.msk [vmem:[%s1061] ss:$386 sm:$0x3] %vm1060, %v1059
    %s1063 = scalar_lea.vmem %s1, 4294966080
    %1064 = vst.msk [vmem:[%s1063] ss:$642 sm:$0xc] %vm1060, %v1059
    %s1065 = scalar_lea.vmem %s1, 4294964872
    %1066 = vst.msk [vmem:[%s1065] ss:$648 sm:$0x30] %vm1060, %v1059
    %s1067 = scalar_lea.vmem %s1, 4294963462
    %1068 = vst.msk [vmem:[%s1067] ss:$642 sm:$0xc0] %vm1060, %v1059
    %s1069 = scalar_lea.vmem [#allocation0], 72
    %s1070 = smov 3
    %v1071 = vld [vmem:[%s1069] ss:$-31 sm:%s1070]
    %s1072 = scalar_lea.vmem [#allocation0], 30
    %s1073 = smov 12
    %v1074 = vld [vmem:[%s1072] ss:$9 sm:%s1073]
    %vm1075 = vcmask 1043458
    %v1076 = vsel %vm1075, %v1074, %v1071
    %s1077 = scalar_lea.vmem [#allocation0], 28
    %s1078 = smov 48
    %v1079 = vld [vmem:[%s1077] ss:$9 sm:%s1078]
    %vm1080 = vcmask 1045508
    %v1081 = vsel %vm1080, %v1079, %v1076
    %s1082 = scalar_lea.vmem [#allocation0], 4294967282
    %s1083 = smov 192
    %v1084 = vld [vmem:[%s1082] ss:$9 sm:%s1083]
    %vm1085 = vcmask 1047558
    %v1086 = vsel %vm1085, %v1084, %v1081
    %1087 = vrot.lane.b32.xlu0 %v1086, 80
    %v1088 = vpop.permute.xlu0 %1087
    %vm1089 = vcmask 31744
    %s1090 = scalar_lea.vmem %s1, 480
    %1091 = vst.msk [vmem:[%s1090] ss:$386 sm:$0x3] %vm1089, %v1088
    %s1092 = scalar_lea.vmem %s1, 4294966336
    %1093 = vst.msk [vmem:[%s1092] ss:$642 sm:$0xc] %vm1089, %v1088
    %s1094 = scalar_lea.vmem %s1, 4294965128
    %1095 = vst.msk [vmem:[%s1094] ss:$648 sm:$0x30] %vm1089, %v1088
    %s1096 = scalar_lea.vmem %s1, 4294963718
    %1097 = vst.msk [vmem:[%s1096] ss:$642 sm:$0xc0] %vm1089, %v1088
    %s1098 = scalar_lea.vmem [#allocation0], 80
    %v1099 = vld.sshfl [vmem:[%s1098] sm:$0xff pattern:$0x99999081]
    %s1100 = scalar_lea.vmem [#allocation0], 4294967276
    %s1101 = smov 48
    %v1102 = vld [vmem:[%s1100] ss:$9 sm:%s1101]
    %vm1103 = vcmask 1045508
    %v1104 = vsel %vm1103, %v1102, %v1099
    %s1105 = scalar_lea.vmem [#allocation0], 2
    %s1106 = smov 192
    %v1107 = vld [vmem:[%s1105] ss:$9 sm:%s1106]
    %vm1108 = vcmask 1047558
    %v1109 = vsel %vm1108, %v1107, %v1104
    %1110 = vrot.lane.b32.xlu0 %v1109, 80
    %v1111 = vpop.permute.xlu0 %1110
    %vm1112 = vcmask 31744
    %s1113 = scalar_lea.vmem %s1, 1122
    %1114 = vst.msk [vmem:[%s1113] ss:$-542 sm:$0x3] %vm1112, %v1111
    %s1115 = scalar_lea.vmem %s1, 4294966542
    %1116 = vst.msk [vmem:[%s1115] ss:$642 sm:$0xc] %vm1112, %v1111
    %s1117 = scalar_lea.vmem %s1, 4294964846
    %1118 = vst.msk [vmem:[%s1117] ss:$642 sm:$0x30] %vm1112, %v1111
    %s1119 = scalar_lea.vmem %s1, 4294963818
    %1120 = vst.msk [vmem:[%s1119] ss:$642 sm:$0xc0] %vm1112, %v1111
    %s1121 = scalar_lea.vmem [#allocation0], 32
    %s1122 = smov 3
    %v1123 = vld [vmem:[%s1121] ss:$-31 sm:%s1122]
    %s1124 = scalar_lea.vmem [#allocation0], 4294967286
    %s1125 = smov 12
    %v1126 = vld [vmem:[%s1124] ss:$9 sm:%s1125]
    %vm1127 = vcmask 1043458
    %v1128 = vsel %vm1127, %v1126, %v1123
    %s1129 = scalar_lea.vmem [#allocation0], 4294967284
    %s1130 = smov 48
    %v1131 = vld [vmem:[%s1129] ss:$9 sm:%s1130]
    %vm1132 = vcmask 1045508
    %v1133 = vsel %vm1132, %v1131, %v1128
    %s1134 = scalar_lea.vmem [#allocation0], 4294967242
    %s1135 = smov 192
    %v1136 = vld [vmem:[%s1134] ss:$9 sm:%s1135]
    %vm1137 = vcmask 1047558
    %v1138 = vsel %vm1137, %v1136, %v1133
    %1139 = vrot.lane.b32.xlu0 %v1138, 76
    %v1140 = vpop.permute.xlu0 %1139
    %vm1141 = vcmask 31744
    %s1142 = scalar_lea.vmem %s1, 225
    %1143 = vst.msk [vmem:[%s1142] ss:$386 sm:$0x3] %vm1141, %v1140
    %s1144 = scalar_lea.vmem %s1, 4294966081
    %1145 = vst.msk [vmem:[%s1144] ss:$642 sm:$0xc] %vm1141, %v1140
    %s1146 = scalar_lea.vmem %s1, 4294964873
    %1147 = vst.msk [vmem:[%s1146] ss:$648 sm:$0x30] %vm1141, %v1140
    %s1148 = scalar_lea.vmem %s1, 4294963463
    %1149 = vst.msk [vmem:[%s1148] ss:$642 sm:$0xc0] %vm1141, %v1140
    %s1150 = scalar_lea.vmem [#allocation0], 72
    %s1151 = smov 3
    %v1152 = vld [vmem:[%s1150] ss:$-31 sm:%s1151]
    %s1153 = scalar_lea.vmem [#allocation0], 30
    %s1154 = smov 12
    %v1155 = vld [vmem:[%s1153] ss:$9 sm:%s1154]
    %vm1156 = vcmask 1043458
    %v1157 = vsel %vm1156, %v1155, %v1152
    %s1158 = scalar_lea.vmem [#allocation0], 28
    %s1159 = smov 48
    %v1160 = vld [vmem:[%s1158] ss:$9 sm:%s1159]
    %vm1161 = vcmask 1045508
    %v1162 = vsel %vm1161, %v1160, %v1157
    %s1163 = scalar_lea.vmem [#allocation0], 4294967282
    %s1164 = smov 192
    %v1165 = vld [vmem:[%s1163] ss:$9 sm:%s1164]
    %vm1166 = vcmask 1047558
    %v1167 = vsel %vm1166, %v1165, %v1162
    %1168 = vrot.lane.b32.xlu0 %v1167, 76
    %v1169 = vpop.permute.xlu0 %1168
    %vm1170 = vcmask 31744
    %s1171 = scalar_lea.vmem %s1, 481
    %1172 = vst.msk [vmem:[%s1171] ss:$386 sm:$0x3] %vm1170, %v1169
    %s1173 = scalar_lea.vmem %s1, 4294966337
    %1174 = vst.msk [vmem:[%s1173] ss:$642 sm:$0xc] %vm1170, %v1169
    %s1175 = scalar_lea.vmem %s1, 4294965129
    %1176 = vst.msk [vmem:[%s1175] ss:$648 sm:$0x30] %vm1170, %v1169
    %s1177 = scalar_lea.vmem %s1, 4294963719
    %1178 = vst.msk [vmem:[%s1177] ss:$642 sm:$0xc0] %vm1170, %v1169
    %s1179 = scalar_lea.vmem [#allocation0], 80
    %v1180 = vld.sshfl [vmem:[%s1179] sm:$0xff pattern:$0x99999081]
    %s1181 = scalar_lea.vmem [#allocation0], 4294967276
    %s1182 = smov 48
    %v1183 = vld [vmem:[%s1181] ss:$9 sm:%s1182]
    %vm1184 = vcmask 1045508
    %v1185 = vsel %vm1184, %v1183, %v1180
    %s1186 = scalar_lea.vmem [#allocation0], 2
    %s1187 = smov 192
    %v1188 = vld [vmem:[%s1186] ss:$9 sm:%s1187]
    %vm1189 = vcmask 1047558
    %v1190 = vsel %vm1189, %v1188, %v1185
    %1191 = vrot.lane.b32.xlu0 %v1190, 76
    %v1192 = vpop.permute.xlu0 %1191
    %vm1193 = vcmask 31744
    %s1194 = scalar_lea.vmem %s1, 1123
    %1195 = vst.msk [vmem:[%s1194] ss:$-542 sm:$0x3] %vm1193, %v1192
    %s1196 = scalar_lea.vmem %s1, 4294966543
    %1197 = vst.msk [vmem:[%s1196] ss:$642 sm:$0xc] %vm1193, %v1192
    %s1198 = scalar_lea.vmem %s1, 4294964847
    %1199 = vst.msk [vmem:[%s1198] ss:$642 sm:$0x30] %vm1193, %v1192
    %s1200 = scalar_lea.vmem %s1, 4294963819
    %1201 = vst.msk [vmem:[%s1200] ss:$642 sm:$0xc0] %vm1193, %v1192
    %s1202 = scalar_lea.vmem [#allocation0], 25
    %s1203 = smov 3
    %v1204 = vld [vmem:[%s1202] ss:$7 sm:%s1203]
    %s1205 = scalar_lea.vmem [#allocation0], 4294967283
    %s1206 = smov 12
    %v1207 = vld [vmem:[%s1205] ss:$7 sm:%s1206]
    %vm1208 = vcmask 1043458
    %v1209 = vsel %vm1208, %v1207, %v1204
    %s1210 = scalar_lea.vmem [#allocation0], 4294967285
    %s1211 = smov 48
    %v1212 = vld [vmem:[%s1210] ss:$7 sm:%s1211]
    %vm1213 = vcmask 1045508
    %v1214 = vsel %vm1213, %v1212, %v1209
    %s1215 = scalar_lea.vmem [#allocation0], 231
    %s1216 = smov 192
    %v1217 = vld [vmem:[%s1215] ss:$-33 sm:%s1216]
    %vm1218 = vcmask 1047558
    %v1219 = vsel %vm1218, %v1217, %v1214
    %1220 = vrot.lane.b32.xlu0 %v1219, 72
    %v1221 = vpop.permute.xlu0 %1220
    %vm1222 = vcmask 31744
    %s1223 = scalar_lea.vmem %s1, 768
    %1224 = vst.msk [vmem:[%s1223] ss:$-542 sm:$0x3] %vm1222, %v1221
    %s1225 = scalar_lea.vmem %s1, 1696
    %1226 = vst.msk [vmem:[%s1225] ss:$-542 sm:$0xc] %vm1222, %v1221
    %s1227 = scalar_lea.vmem %s1, 2856
    %1228 = vst.msk [vmem:[%s1227] ss:$-536 sm:$0x30] %vm1222, %v1221
    %s1229 = scalar_lea.vmem %s1, 5606
    %1230 = vst.msk [vmem:[%s1229] ss:$-798 sm:$0xc0] %vm1222, %v1221
    %s1231 = scalar_lea.vmem [#allocation0], 65
    %s1232 = smov 3
    %v1233 = vld [vmem:[%s1231] ss:$7 sm:%s1232]
    %s1234 = scalar_lea.vmem [#allocation0], 27
    %s1235 = smov 12
    %v1236 = vld [vmem:[%s1234] ss:$7 sm:%s1235]
    %vm1237 = vcmask 1043458
    %v1238 = vsel %vm1237, %v1236, %v1233
    %s1239 = scalar_lea.vmem [#allocation0], 29
    %s1240 = smov 48
    %v1241 = vld [vmem:[%s1239] ss:$7 sm:%s1240]
    %vm1242 = vcmask 1045508
    %v1243 = vsel %vm1242, %v1241, %v1238
    %s1244 = scalar_lea.vmem [#allocation0], 271
    %s1245 = smov 192
    %v1246 = vld [vmem:[%s1244] ss:$-33 sm:%s1245]
    %vm1247 = vcmask 1047558
    %v1248 = vsel %vm1247, %v1246, %v1243
    %1249 = vrot.lane.b32.xlu0 %v1248, 72
    %v1250 = vpop.permute.xlu0 %1249
    %vm1251 = vcmask 31744
    %s1252 = scalar_lea.vmem %s1, 1024
    %1253 = vst.msk [vmem:[%s1252] ss:$-542 sm:$0x3] %vm1251, %v1250
    %s1254 = scalar_lea.vmem %s1, 1952
    %1255 = vst.msk [vmem:[%s1254] ss:$-542 sm:$0xc] %vm1251, %v1250
    %s1256 = scalar_lea.vmem %s1, 3112
    %1257 = vst.msk [vmem:[%s1256] ss:$-536 sm:$0x30] %vm1251, %v1250
    %s1258 = scalar_lea.vmem %s1, 5862
    %1259 = vst.msk [vmem:[%s1258] ss:$-798 sm:$0xc0] %vm1251, %v1250
    %s1260 = scalar_lea.vmem [#allocation0], 80
    %v1261 = vld.sshfl [vmem:[%s1260] sm:$0xff pattern:$0x81]
    %s1262 = scalar_lea.vmem [#allocation0], 4294967284
    %s1263 = smov 24
    %v1264 = vld [vmem:[%s1262] ss:$7 sm:%s1263]
    %vm1265 = vcmask 1044483
    %v1266 = vsel %vm1265, %v1264, %v1261
    %s1267 = scalar_lea.vmem [#allocation0], 14
    %s1268 = smov 96
    %v1269 = vld [vmem:[%s1267] ss:$7 sm:%s1268]
    %vm1270 = vcmask 1046533
    %v1271 = vsel %vm1270, %v1269, %v1266
    %s1272 = scalar_lea.vmem [#allocation0], 82
    %v1273 = vld [vmem:[%s1272] sm:$0x80]
    %vm1274 = vcmask 1047559
    %v1275 = vsel %vm1274, %v1273, %v1271
    %1276 = vrot.lane.b32.xlu0 %v1275, 72
    %v1277 = vpop.permute.xlu0 %1276
    %vm1278 = vcmask 31744
    %s1279 = scalar_lea.vmem %s1, 1124
    %1280 = vst.msk [vmem:[%s1279] ss:$-542 sm:$0x3] %vm1278, %v1277
    %s1281 = scalar_lea.vmem %s1, 272
    %1282 = vst.msk [vmem:[%s1281] ss:$130 sm:$0xc] %vm1278, %v1277
    %s1283 = scalar_lea.vmem %s1, 4294964224
    %1284 = vst.msk [vmem:[%s1283] ss:$798 sm:$0x30] %vm1278, %v1277
    %s1285 = scalar_lea.vmem %s1, 4294962884
    %1286 = vst.msk [vmem:[%s1285] ss:$798 sm:$0xc0] %vm1278, %v1277
    %s1287 = scalar_lea.vmem [#allocation0], 25
    %s1288 = smov 3
    %v1289 = vld [vmem:[%s1287] ss:$7 sm:%s1288]
    %s1290 = scalar_lea.vmem [#allocation0], 4294967283
    %s1291 = smov 12
    %v1292 = vld [vmem:[%s1290] ss:$7 sm:%s1291]
    %vm1293 = vcmask 1043458
    %v1294 = vsel %vm1293, %v1292, %v1289
    %s1295 = scalar_lea.vmem [#allocation0], 4294967285
    %s1296 = smov 48
    %v1297 = vld [vmem:[%s1295] ss:$7 sm:%s1296]
    %vm1298 = vcmask 1045508
    %v1299 = vsel %vm1298, %v1297, %v1294
    %s1300 = scalar_lea.vmem [#allocation0], 231
    %s1301 = smov 192
    %v1302 = vld [vmem:[%s1300] ss:$-33 sm:%s1301]
    %vm1303 = vcmask 1047558
    %v1304 = vsel %vm1303, %v1302, %v1299
    %1305 = vrot.lane.b32.xlu0 %v1304, 68
    %v1306 = vpop.permute.xlu0 %1305
    %vm1307 = vcmask 31744
    %s1308 = scalar_lea.vmem %s1, 769
    %1309 = vst.msk [vmem:[%s1308] ss:$-542 sm:$0x3] %vm1307, %v1306
    %s1310 = scalar_lea.vmem %s1, 1697
    %1311 = vst.msk [vmem:[%s1310] ss:$-542 sm:$0xc] %vm1307, %v1306
    %s1312 = scalar_lea.vmem %s1, 2857
    %1313 = vst.msk [vmem:[%s1312] ss:$-536 sm:$0x30] %vm1307, %v1306
    %s1314 = scalar_lea.vmem %s1, 5607
    %1315 = vst.msk [vmem:[%s1314] ss:$-798 sm:$0xc0] %vm1307, %v1306
    %s1316 = scalar_lea.vmem [#allocation0], 65
    %s1317 = smov 3
    %v1318 = vld [vmem:[%s1316] ss:$7 sm:%s1317]
    %s1319 = scalar_lea.vmem [#allocation0], 27
    %s1320 = smov 12
    %v1321 = vld [vmem:[%s1319] ss:$7 sm:%s1320]
    %vm1322 = vcmask 1043458
    %v1323 = vsel %vm1322, %v1321, %v1318
    %s1324 = scalar_lea.vmem [#allocation0], 29
    %s1325 = smov 48
    %v1326 = vld [vmem:[%s1324] ss:$7 sm:%s1325]
    %vm1327 = vcmask 1045508
    %v1328 = vsel %vm1327, %v1326, %v1323
    %s1329 = scalar_lea.vmem [#allocation0], 271
    %s1330 = smov 192
    %v1331 = vld [vmem:[%s1329] ss:$-33 sm:%s1330]
    %vm1332 = vcmask 1047558
    %v1333 = vsel %vm1332, %v1331, %v1328
    %1334 = vrot.lane.b32.xlu0 %v1333, 68
    %v1335 = vpop.permute.xlu0 %1334
    %vm1336 = vcmask 31744
    %s1337 = scalar_lea.vmem %s1, 1025
    %1338 = vst.msk [vmem:[%s1337] ss:$-542 sm:$0x3] %vm1336, %v1335
    %s1339 = scalar_lea.vmem %s1, 1953
    %1340 = vst.msk [vmem:[%s1339] ss:$-542 sm:$0xc] %vm1336, %v1335
    %s1341 = scalar_lea.vmem %s1, 3113
    %1342 = vst.msk [vmem:[%s1341] ss:$-536 sm:$0x30] %vm1336, %v1335
    %s1343 = scalar_lea.vmem %s1, 5863
    %1344 = vst.msk [vmem:[%s1343] ss:$-798 sm:$0xc0] %vm1336, %v1335
    %s1345 = scalar_lea.vmem [#allocation0], 80
    %v1346 = vld.sshfl [vmem:[%s1345] sm:$0xff pattern:$0x81]
    %s1347 = scalar_lea.vmem [#allocation0], 4294967284
    %s1348 = smov 24
    %v1349 = vld [vmem:[%s1347] ss:$7 sm:%s1348]
    %vm1350 = vcmask 1044483
    %v1351 = vsel %vm1350, %v1349, %v1346
    %s1352 = scalar_lea.vmem [#allocation0], 14
    %s1353 = smov 96
    %v1354 = vld [vmem:[%s1352] ss:$7 sm:%s1353]
    %vm1355 = vcmask 1046533
    %v1356 = vsel %vm1355, %v1354, %v1351
    %s1357 = scalar_lea.vmem [#allocation0], 82
    %v1358 = vld [vmem:[%s1357] sm:$0x80]
    %vm1359 = vcmask 1047559
    %v1360 = vsel %vm1359, %v1358, %v1356
    %1361 = vrot.lane.b32.xlu0 %v1360, 68
    %v1362 = vpop.permute.xlu0 %1361
    %vm1363 = vcmask 31744
    %s1364 = scalar_lea.vmem %s1, 1125
    %1365 = vst.msk [vmem:[%s1364] ss:$-542 sm:$0x3] %vm1363, %v1362
    %s1366 = scalar_lea.vmem %s1, 273
    %1367 = vst.msk [vmem:[%s1366] ss:$130 sm:$0xc] %vm1363, %v1362
    %s1368 = scalar_lea.vmem %s1, 4294964225
    %1369 = vst.msk [vmem:[%s1368] ss:$798 sm:$0x30] %vm1363, %v1362
    %s1370 = scalar_lea.vmem %s1, 4294962885
    %1371 = vst.msk [vmem:[%s1370] ss:$798 sm:$0xc0] %vm1363, %v1362
    %s1372 = scalar_lea.vmem [#allocation0], 16
    %s1373 = smov 3
    %v1374 = vld [vmem:[%s1372] ss:$9 sm:%s1373]
    %s1375 = scalar_lea.vmem [#allocation0], 94
    %s1376 = smov 12
    %v1377 = vld [vmem:[%s1375] ss:$-31 sm:%s1376]
    %vm1378 = vcmask 1043458
    %v1379 = vsel %vm1378, %v1377, %v1374
    %s1380 = scalar_lea.vmem [#allocation0], 4294967268
    %s1381 = smov 48
    %v1382 = vld [vmem:[%s1380] ss:$9 sm:%s1381]
    %vm1383 = vcmask 1045508
    %v1384 = vsel %vm1383, %v1382, %v1379
    %s1385 = scalar_lea.vmem [#allocation0], 4294967266
    %s1386 = smov 192
    %v1387 = vld [vmem:[%s1385] ss:$9 sm:%s1386]
    %vm1388 = vcmask 1047558
    %v1389 = vsel %vm1388, %v1387, %v1384
    %1390 = vrot.lane.b32.xlu0 %v1389, 64
    %v1391 = vpop.permute.xlu0 %1390
    %vm1392 = vcmask 31744
    %s1393 = scalar_lea.vmem %s1, 128
    %1394 = vst.msk [vmem:[%s1393] ss:$642 sm:$0x3] %vm1392, %v1391
    %s1395 = scalar_lea.vmem %s1, 4294966752
    %1396 = vst.msk [vmem:[%s1395] ss:$386 sm:$0xc] %vm1392, %v1391
    %s1397 = scalar_lea.vmem %s1, 4294964776
    %1398 = vst.msk [vmem:[%s1397] ss:$648 sm:$0x30] %vm1392, %v1391
    %s1399 = scalar_lea.vmem %s1, 4294963622
    %1400 = vst.msk [vmem:[%s1399] ss:$642 sm:$0xc0] %vm1392, %v1391
    %s1401 = scalar_lea.vmem [#allocation0], 56
    %s1402 = smov 3
    %v1403 = vld [vmem:[%s1401] ss:$9 sm:%s1402]
    %s1404 = scalar_lea.vmem [#allocation0], 134
    %s1405 = smov 12
    %v1406 = vld [vmem:[%s1404] ss:$-31 sm:%s1405]
    %vm1407 = vcmask 1043458
    %v1408 = vsel %vm1407, %v1406, %v1403
    %s1409 = scalar_lea.vmem [#allocation0], 12
    %s1410 = smov 48
    %v1411 = vld [vmem:[%s1409] ss:$9 sm:%s1410]
    %vm1412 = vcmask 1045508
    %v1413 = vsel %vm1412, %v1411, %v1408
    %s1414 = scalar_lea.vmem [#allocation0], 10
    %s1415 = smov 192
    %v1416 = vld [vmem:[%s1414] ss:$9 sm:%s1415]
    %vm1417 = vcmask 1047558
    %v1418 = vsel %vm1417, %v1416, %v1413
    %1419 = vrot.lane.b32.xlu0 %v1418, 64
    %v1420 = vpop.permute.xlu0 %1419
    %vm1421 = vcmask 31744
    %s1422 = scalar_lea.vmem %s1, 384
    %1423 = vst.msk [vmem:[%s1422] ss:$642 sm:$0x3] %vm1421, %v1420
    %s1424 = scalar_lea.vmem %s1, 4294967008
    %1425 = vst.msk [vmem:[%s1424] ss:$386 sm:$0xc] %vm1421, %v1420
    %s1426 = scalar_lea.vmem %s1, 4294965032
    %1427 = vst.msk [vmem:[%s1426] ss:$648 sm:$0x30] %vm1421, %v1420
    %s1428 = scalar_lea.vmem %s1, 4294963878
    %1429 = vst.msk [vmem:[%s1428] ss:$642 sm:$0xc0] %vm1421, %v1420
    %s1430 = scalar_lea.vmem [#allocation0], 81
    %s1431 = smov 3
    %v1432 = vld [vmem:[%s1430] ss:$7 sm:%s1431]
    %s1433 = scalar_lea.vmem [#allocation0], 4294967278
    %s1434 = smov 12
    %v1435 = vld [vmem:[%s1433] ss:$9 sm:%s1434]
    %vm1436 = vcmask 1043458
    %v1437 = vsel %vm1436, %v1435, %v1432
    %s1438 = scalar_lea.vmem [#allocation0], 4
    %s1439 = smov 48
    %v1440 = vld [vmem:[%s1438] ss:$9 sm:%s1439]
    %vm1441 = vcmask 1045508
    %v1442 = vsel %vm1441, %v1440, %v1437
    %s1443 = scalar_lea.vmem [#allocation0], 26
    %s1444 = smov 192
    %v1445 = vld [vmem:[%s1443] ss:$9 sm:%s1444]
    %vm1446 = vcmask 1047558
    %v1447 = vsel %vm1446, %v1445, %v1442
    %1448 = vrot.lane.b32.xlu0 %v1447, 64
    %v1449 = vpop.permute.xlu0 %1448
    %vm1450 = vcmask 31744
    %s1451 = scalar_lea.vmem %s1, 1126
    %1452 = vst.msk [vmem:[%s1451] ss:$-542 sm:$0x3] %vm1450, %v1449
    %s1453 = scalar_lea.vmem %s1, 4294966034
    %1454 = vst.msk [vmem:[%s1453] ss:$642 sm:$0xc] %vm1450, %v1449
    %s1455 = scalar_lea.vmem %s1, 4294965006
    %1456 = vst.msk [vmem:[%s1455] ss:$642 sm:$0x30] %vm1450, %v1449
    %s1457 = scalar_lea.vmem %s1, 4294963978
    %1458 = vst.msk [vmem:[%s1457] ss:$642 sm:$0xc0] %vm1450, %v1449
    %s1459 = scalar_lea.vmem [#allocation0], 16
    %s1460 = smov 3
    %v1461 = vld [vmem:[%s1459] ss:$9 sm:%s1460]
    %s1462 = scalar_lea.vmem [#allocation0], 94
    %s1463 = smov 12
    %v1464 = vld [vmem:[%s1462] ss:$-31 sm:%s1463]
    %vm1465 = vcmask 1043458
    %v1466 = vsel %vm1465, %v1464, %v1461
    %s1467 = scalar_lea.vmem [#allocation0], 4294967268
    %s1468 = smov 48
    %v1469 = vld [vmem:[%s1467] ss:$9 sm:%s1468]
    %vm1470 = vcmask 1045508
    %v1471 = vsel %vm1470, %v1469, %v1466
    %s1472 = scalar_lea.vmem [#allocation0], 4294967266
    %s1473 = smov 192
    %v1474 = vld [vmem:[%s1472] ss:$9 sm:%s1473]
    %vm1475 = vcmask 1047558
    %v1476 = vsel %vm1475, %v1474, %v1471
    %1477 = vrot.lane.b32.xlu0 %v1476, 60
    %v1478 = vpop.permute.xlu0 %1477
    %vm1479 = vcmask 31744
    %s1480 = scalar_lea.vmem %s1, 129
    %1481 = vst.msk [vmem:[%s1480] ss:$642 sm:$0x3] %vm1479, %v1478
    %s1482 = scalar_lea.vmem %s1, 4294966753
    %1483 = vst.msk [vmem:[%s1482] ss:$386 sm:$0xc] %vm1479, %v1478
    %s1484 = scalar_lea.vmem %s1, 4294964777
    %1485 = vst.msk [vmem:[%s1484] ss:$648 sm:$0x30] %vm1479, %v1478
    %s1486 = scalar_lea.vmem %s1, 4294963623
    %1487 = vst.msk [vmem:[%s1486] ss:$642 sm:$0xc0] %vm1479, %v1478
    %s1488 = scalar_lea.vmem [#allocation0], 56
    %s1489 = smov 3
    %v1490 = vld [vmem:[%s1488] ss:$9 sm:%s1489]
    %s1491 = scalar_lea.vmem [#allocation0], 134
    %s1492 = smov 12
    %v1493 = vld [vmem:[%s1491] ss:$-31 sm:%s1492]
    %vm1494 = vcmask 1043458
    %v1495 = vsel %vm1494, %v1493, %v1490
    %s1496 = scalar_lea.vmem [#allocation0], 12
    %s1497 = smov 48
    %v1498 = vld [vmem:[%s1496] ss:$9 sm:%s1497]
    %vm1499 = vcmask 1045508
    %v1500 = vsel %vm1499, %v1498, %v1495
    %s1501 = scalar_lea.vmem [#allocation0], 10
    %s1502 = smov 192
    %v1503 = vld [vmem:[%s1501] ss:$9 sm:%s1502]
    %vm1504 = vcmask 1047558
    %v1505 = vsel %vm1504, %v1503, %v1500
    %1506 = vrot.lane.b32.xlu0 %v1505, 60
    %v1507 = vpop.permute.xlu0 %1506
    %vm1508 = vcmask 31744
    %s1509 = scalar_lea.vmem %s1, 385
    %1510 = vst.msk [vmem:[%s1509] ss:$642 sm:$0x3] %vm1508, %v1507
    %s1511 = scalar_lea.vmem %s1, 4294967009
    %1512 = vst.msk [vmem:[%s1511] ss:$386 sm:$0xc] %vm1508, %v1507
    %s1513 = scalar_lea.vmem %s1, 4294965033
    %1514 = vst.msk [vmem:[%s1513] ss:$648 sm:$0x30] %vm1508, %v1507
    %s1515 = scalar_lea.vmem %s1, 4294963879
    %1516 = vst.msk [vmem:[%s1515] ss:$642 sm:$0xc0] %vm1508, %v1507
    %s1517 = scalar_lea.vmem [#allocation0], 81
    %s1518 = smov 3
    %v1519 = vld [vmem:[%s1517] ss:$7 sm:%s1518]
    %s1520 = scalar_lea.vmem [#allocation0], 4294967278
    %s1521 = smov 12
    %v1522 = vld [vmem:[%s1520] ss:$9 sm:%s1521]
    %vm1523 = vcmask 1043458
    %v1524 = vsel %vm1523, %v1522, %v1519
    %s1525 = scalar_lea.vmem [#allocation0], 4
    %s1526 = smov 48
    %v1527 = vld [vmem:[%s1525] ss:$9 sm:%s1526]
    %vm1528 = vcmask 1045508
    %v1529 = vsel %vm1528, %v1527, %v1524
    %s1530 = scalar_lea.vmem [#allocation0], 26
    %s1531 = smov 192
    %v1532 = vld [vmem:[%s1530] ss:$9 sm:%s1531]
    %vm1533 = vcmask 1047558
    %v1534 = vsel %vm1533, %v1532, %v1529
    %1535 = vrot.lane.b32.xlu0 %v1534, 60
    %v1536 = vpop.permute.xlu0 %1535
    %vm1537 = vcmask 31744
    %s1538 = scalar_lea.vmem %s1, 1127
    %1539 = vst.msk [vmem:[%s1538] ss:$-542 sm:$0x3] %vm1537, %v1536
    %s1540 = scalar_lea.vmem %s1, 4294966035
    %1541 = vst.msk [vmem:[%s1540] ss:$642 sm:$0xc] %vm1537, %v1536
    %s1542 = scalar_lea.vmem %s1, 4294965007
    %1543 = vst.msk [vmem:[%s1542] ss:$642 sm:$0x30] %vm1537, %v1536
    %s1544 = scalar_lea.vmem %s1, 4294963979
    %1545 = vst.msk [vmem:[%s1544] ss:$642 sm:$0xc0] %vm1537, %v1536
    %s1546 = scalar_lea.vmem [#allocation0], 9
    %s1547 = smov 3
    %v1548 = vld [vmem:[%s1546] ss:$7 sm:%s1547]
    %s1549 = scalar_lea.vmem [#allocation0], 11
    %s1550 = smov 12
    %v1551 = vld [vmem:[%s1549] ss:$7 sm:%s1550]
    %vm1552 = vcmask 1043458
    %v1553 = vsel %vm1552, %v1551, %v1548
    %s1554 = scalar_lea.vmem [#allocation0], 4294967269
    %s1555 = smov 48
    %v1556 = vld [vmem:[%s1554] ss:$7 sm:%s1555]
    %vm1557 = vcmask 1045508
    %v1558 = vsel %vm1557, %v1556, %v1553
    %s1559 = scalar_lea.vmem [#allocation0], 4294967271
    %s1560 = smov 192
    %v1561 = vld [vmem:[%s1559] ss:$7 sm:%s1560]
    %vm1562 = vcmask 1047558
    %v1563 = vsel %vm1562, %v1561, %v1558
    %1564 = vrot.lane.b32.xlu0 %v1563, 56
    %v1565 = vpop.permute.xlu0 %1564
    %vm1566 = vcmask 31744
    %s1567 = scalar_lea.vmem %s1, 672
    %1568 = vst.msk [vmem:[%s1567] ss:$-542 sm:$0x3] %vm1566, %v1565
    %s1569 = scalar_lea.vmem %s1, 1856
    %1570 = vst.msk [vmem:[%s1569] ss:$-542 sm:$0xc] %vm1566, %v1565
    %s1571 = scalar_lea.vmem %s1, 2760
    %1572 = vst.msk [vmem:[%s1571] ss:$-536 sm:$0x30] %vm1566, %v1565
    %s1573 = scalar_lea.vmem %s1, 3974
    %1574 = vst.msk [vmem:[%s1573] ss:$-542 sm:$0xc0] %vm1566, %v1565
    %s1575 = scalar_lea.vmem [#allocation0], 49
    %s1576 = smov 3
    %v1577 = vld [vmem:[%s1575] ss:$7 sm:%s1576]
    %s1578 = scalar_lea.vmem [#allocation0], 51
    %s1579 = smov 12
    %v1580 = vld [vmem:[%s1578] ss:$7 sm:%s1579]
    %vm1581 = vcmask 1043458
    %v1582 = vsel %vm1581, %v1580, %v1577
    %s1583 = scalar_lea.vmem [#allocation0], 13
    %s1584 = smov 48
    %v1585 = vld [vmem:[%s1583] ss:$7 sm:%s1584]
    %vm1586 = vcmask 1045508
    %v1587 = vsel %vm1586, %v1585, %v1582
    %s1588 = scalar_lea.vmem [#allocation0], 15
    %s1589 = smov 192
    %v1590 = vld [vmem:[%s1588] ss:$7 sm:%s1589]
    %vm1591 = vcmask 1047558
    %v1592 = vsel %vm1591, %v1590, %v1587
    %1593 = vrot.lane.b32.xlu0 %v1592, 56
    %v1594 = vpop.permute.xlu0 %1593
    %vm1595 = vcmask 31744
    %s1596 = scalar_lea.vmem %s1, 928
    %1597 = vst.msk [vmem:[%s1596] ss:$-542 sm:$0x3] %vm1595, %v1594
    %s1598 = scalar_lea.vmem %s1, 2112
    %1599 = vst.msk [vmem:[%s1598] ss:$-542 sm:$0xc] %vm1595, %v1594
    %s1600 = scalar_lea.vmem %s1, 3016
    %1601 = vst.msk [vmem:[%s1600] ss:$-536 sm:$0x30] %vm1595, %v1594
    %s1602 = scalar_lea.vmem %s1, 4230
    %1603 = vst.msk [vmem:[%s1602] ss:$-542 sm:$0xc0] %vm1595, %v1594
    %s1604 = scalar_lea.vmem [#allocation0], 81
    %s1605 = smov 3
    %v1606 = vld [vmem:[%s1604] ss:$-48 sm:%s1605]
    %s1607 = scalar_lea.vmem [#allocation0], 4294967150
    %s1608 = smov 12
    %v1609 = vld [vmem:[%s1607] ss:$73 sm:%s1608]
    %vm1610 = vcmask 1043458
    %v1611 = vsel %vm1610, %v1609, %v1606
    %s1612 = scalar_lea.vmem [#allocation0], 4294967176
    %s1613 = smov 48
    %v1614 = vld [vmem:[%s1612] ss:$40 sm:%s1613]
    %vm1615 = vcmask 1045508
    %v1616 = vsel %vm1615, %v1614, %v1611
    %1617 = vrot.lane.b32.xlu0 %v1616, 56
    %v1618 = vpop.permute.xlu0 %1617
    %vm1619 = vcmask 31744
    %s1620 = scalar_lea.vmem %s1, 1128
    %1621 = vst.msk [vmem:[%s1620] ss:$-306 sm:$0x3] %vm1619, %v1618
    %s1622 = scalar_lea.vmem %s1, 4294965212
    %1623 = vst.msk [vmem:[%s1622] ss:$1054 sm:$0xc] %vm1619, %v1618
    %s1624 = scalar_lea.vmem %s1, 276
    %1625 = vst.msk [vmem:[%s1624] sm:$0x10] %vm1619, %v1618
    %s1626 = scalar_lea.vmem %s1, 531
    %1627 = vst.msk [vmem:[%s1626] sm:$0x20] %vm1619, %v1618
    %s1628 = scalar_lea.vmem [#allocation0], 9
    %s1629 = smov 3
    %v1630 = vld [vmem:[%s1628] ss:$7 sm:%s1629]
    %s1631 = scalar_lea.vmem [#allocation0], 11
    %s1632 = smov 12
    %v1633 = vld [vmem:[%s1631] ss:$7 sm:%s1632]
    %vm1634 = vcmask 1043458
    %v1635 = vsel %vm1634, %v1633, %v1630
    %s1636 = scalar_lea.vmem [#allocation0], 4294967269
    %s1637 = smov 48
    %v1638 = vld [vmem:[%s1636] ss:$7 sm:%s1637]
    %vm1639 = vcmask 1045508
    %v1640 = vsel %vm1639, %v1638, %v1635
    %s1641 = scalar_lea.vmem [#allocation0], 4294967271
    %s1642 = smov 192
    %v1643 = vld [vmem:[%s1641] ss:$7 sm:%s1642]
    %vm1644 = vcmask 1047558
    %v1645 = vsel %vm1644, %v1643, %v1640
    %1646 = vrot.lane.b32.xlu0 %v1645, 52
    %v1647 = vpop.permute.xlu0 %1646
    %vm1648 = vcmask 31744
    %s1649 = scalar_lea.vmem %s1, 673
    %1650 = vst.msk [vmem:[%s1649] ss:$-542 sm:$0x3] %vm1648, %v1647
    %s1651 = scalar_lea.vmem %s1, 1857
    %1652 = vst.msk [vmem:[%s1651] ss:$-542 sm:$0xc] %vm1648, %v1647
    %s1653 = scalar_lea.vmem %s1, 2761
    %1654 = vst.msk [vmem:[%s1653] ss:$-536 sm:$0x30] %vm1648, %v1647
    %s1655 = scalar_lea.vmem %s1, 3975
    %1656 = vst.msk [vmem:[%s1655] ss:$-542 sm:$0xc0] %vm1648, %v1647
    %s1657 = scalar_lea.vmem [#allocation0], 49
    %s1658 = smov 3
    %v1659 = vld [vmem:[%s1657] ss:$7 sm:%s1658]
    %s1660 = scalar_lea.vmem [#allocation0], 51
    %s1661 = smov 12
    %v1662 = vld [vmem:[%s1660] ss:$7 sm:%s1661]
    %vm1663 = vcmask 1043458
    %v1664 = vsel %vm1663, %v1662, %v1659
    %s1665 = scalar_lea.vmem [#allocation0], 13
    %s1666 = smov 48
    %v1667 = vld [vmem:[%s1665] ss:$7 sm:%s1666]
    %vm1668 = vcmask 1045508
    %v1669 = vsel %vm1668, %v1667, %v1664
    %s1670 = scalar_lea.vmem [#allocation0], 15
    %s1671 = smov 192
    %v1672 = vld [vmem:[%s1670] ss:$7 sm:%s1671]
    %vm1673 = vcmask 1047558
    %v1674 = vsel %vm1673, %v1672, %v1669
    %1675 = vrot.lane.b32.xlu0 %v1674, 52
    %v1676 = vpop.permute.xlu0 %1675
    %vm1677 = vcmask 31744
    %s1678 = scalar_lea.vmem %s1, 929
    %1679 = vst.msk [vmem:[%s1678] ss:$-542 sm:$0x3] %vm1677, %v1676
    %s1680 = scalar_lea.vmem %s1, 2113
    %1681 = vst.msk [vmem:[%s1680] ss:$-542 sm:$0xc] %vm1677, %v1676
    %s1682 = scalar_lea.vmem %s1, 3017
    %1683 = vst.msk [vmem:[%s1682] ss:$-536 sm:$0x30] %vm1677, %v1676
    %s1684 = scalar_lea.vmem %s1, 4231
    %1685 = vst.msk [vmem:[%s1684] ss:$-542 sm:$0xc0] %vm1677, %v1676
    %s1686 = scalar_lea.vmem [#allocation0], 81
    %s1687 = smov 3
    %v1688 = vld [vmem:[%s1686] ss:$-48 sm:%s1687]
    %s1689 = scalar_lea.vmem [#allocation0], 4294967150
    %s1690 = smov 12
    %v1691 = vld [vmem:[%s1689] ss:$73 sm:%s1690]
    %vm1692 = vcmask 1043458
    %v1693 = vsel %vm1692, %v1691, %v1688
    %s1694 = scalar_lea.vmem [#allocation0], 4294967176
    %s1695 = smov 48
    %v1696 = vld [vmem:[%s1694] ss:$40 sm:%s1695]
    %vm1697 = vcmask 1045508
    %v1698 = vsel %vm1697, %v1696, %v1693
    %1699 = vrot.lane.b32.xlu0 %v1698, 52
    %v1700 = vpop.permute.xlu0 %1699
    %vm1701 = vcmask 31744
    %s1702 = scalar_lea.vmem %s1, 1129
    %1703 = vst.msk [vmem:[%s1702] ss:$-306 sm:$0x3] %vm1701, %v1700
    %s1704 = scalar_lea.vmem %s1, 4294965213
    %1705 = vst.msk [vmem:[%s1704] ss:$1054 sm:$0xc] %vm1701, %v1700
    %s1706 = scalar_lea.vmem %s1, 277
    %1707 = vst.msk [vmem:[%s1706] sm:$0x10] %vm1701, %v1700
    %s1708 = scalar_lea.vmem %s1, 532
    %1709 = vst.msk [vmem:[%s1708] sm:$0x20] %vm1701, %v1700
    %s1710 = smov 3
    %v1711 = vld [vmem:[#allocation0] ss:$9 sm:%s1710]
    %s1712 = scalar_lea.vmem [#allocation0], 4294967294
    %s1713 = smov 12
    %v1714 = vld [vmem:[%s1712] ss:$9 sm:%s1713]
    %vm1715 = vcmask 1043458
    %v1716 = vsel %vm1715, %v1714, %v1711
    %s1717 = scalar_lea.vmem [#allocation0], 156
    %s1718 = smov 48
    %v1719 = vld [vmem:[%s1717] ss:$-31 sm:%s1718]
    %vm1720 = vcmask 1045508
    %v1721 = vsel %vm1720, %v1719, %v1716
    %s1722 = scalar_lea.vmem [#allocation0], 4294967250
    %s1723 = smov 192
    %v1724 = vld [vmem:[%s1722] ss:$9 sm:%s1723]
    %vm1725 = vcmask 1047558
    %v1726 = vsel %vm1725, %v1724, %v1721
    %1727 = vrot.lane.b32.xlu0 %v1726, 48
    %v1728 = vpop.permute.xlu0 %1727
    %vm1729 = vcmask 31744
    %s1730 = scalar_lea.vmem %s1, 32
    %1731 = vst.msk [vmem:[%s1730] ss:$642 sm:$0x3] %vm1729, %v1728
    %s1732 = scalar_lea.vmem %s1, 4294966144
    %1733 = vst.msk [vmem:[%s1732] ss:$642 sm:$0xc] %vm1729, %v1728
    %s1734 = scalar_lea.vmem %s1, 4294965960
    %1735 = vst.msk [vmem:[%s1734] ss:$392 sm:$0x30] %vm1729, %v1728
    %s1736 = scalar_lea.vmem %s1, 4294963526
    %1737 = vst.msk [vmem:[%s1736] ss:$642 sm:$0xc0] %vm1729, %v1728
    %s1738 = scalar_lea.vmem [#allocation0], 40
    %s1739 = smov 3
    %v1740 = vld [vmem:[%s1738] ss:$9 sm:%s1739]
    %s1741 = scalar_lea.vmem [#allocation0], 38
    %s1742 = smov 12
    %v1743 = vld [vmem:[%s1741] ss:$9 sm:%s1742]
    %vm1744 = vcmask 1043458
    %v1745 = vsel %vm1744, %v1743, %v1740
    %s1746 = scalar_lea.vmem [#allocation0], 196
    %s1747 = smov 48
    %v1748 = vld [vmem:[%s1746] ss:$-31 sm:%s1747]
    %vm1749 = vcmask 1045508
    %v1750 = vsel %vm1749, %v1748, %v1745
    %s1751 = scalar_lea.vmem [#allocation0], 4294967290
    %s1752 = smov 192
    %v1753 = vld [vmem:[%s1751] ss:$9 sm:%s1752]
    %vm1754 = vcmask 1047558
    %v1755 = vsel %vm1754, %v1753, %v1750
    %1756 = vrot.lane.b32.xlu0 %v1755, 48
    %v1757 = vpop.permute.xlu0 %1756
    %vm1758 = vcmask 31744
    %s1759 = scalar_lea.vmem %s1, 288
    %1760 = vst.msk [vmem:[%s1759] ss:$642 sm:$0x3] %vm1758, %v1757
    %s1761 = scalar_lea.vmem %s1, 4294966400
    %1762 = vst.msk [vmem:[%s1761] ss:$642 sm:$0xc] %vm1758, %v1757
    %s1763 = scalar_lea.vmem %s1, 4294966216
    %1764 = vst.msk [vmem:[%s1763] ss:$392 sm:$0x30] %vm1758, %v1757
    %s1765 = scalar_lea.vmem %s1, 4294963782
    %1766 = vst.msk [vmem:[%s1765] ss:$642 sm:$0xc0] %vm1758, %v1757
    %s1767 = scalar_lea.vmem [#allocation0], 80
    %v1768 = vld [vmem:[%s1767] sm:$0x3]
    %s1769 = scalar_lea.vmem [#allocation0], 6
    %s1770 = smov 12
    %v1771 = vld [vmem:[%s1769] ss:$9 sm:%s1770]
    %vm1772 = vcmask 1043458
    %v1773 = vsel %vm1772, %v1771, %v1768
    %s1774 = scalar_lea.vmem [#allocation0], 28
    %s1775 = smov 48
    %v1776 = vld [vmem:[%s1774] ss:$9 sm:%s1775]
    %vm1777 = vcmask 1045508
    %v1778 = vsel %vm1777, %v1776, %v1773
    %1779 = vrot.lane.b32.xlu0 %v1778, 48
    %v1780 = vpop.permute.xlu0 %1779
    %vm1781 = vcmask 31744
    %s1782 = scalar_lea.vmem %s1, 544
    %1783 = vst.msk [vmem:[%s1782] ss:$592 sm:$0x3] %vm1781, %v1780
    %s1784 = scalar_lea.vmem %s1, 4294966194
    %1785 = vst.msk [vmem:[%s1784] ss:$642 sm:$0xc] %vm1781, %v1780
    %s1786 = scalar_lea.vmem %s1, 4294965166
    %1787 = vst.msk [vmem:[%s1786] ss:$642 sm:$0x30] %vm1781, %v1780
    %s1788 = smov 3
    %v1789 = vld [vmem:[#allocation0] ss:$9 sm:%s1788]
    %s1790 = scalar_lea.vmem [#allocation0], 4294967294
    %s1791 = smov 12
    %v1792 = vld [vmem:[%s1790] ss:$9 sm:%s1791]
    %vm1793 = vcmask 1043458
    %v1794 = vsel %vm1793, %v1792, %v1789
    %s1795 = scalar_lea.vmem [#allocation0], 156
    %s1796 = smov 48
    %v1797 = vld [vmem:[%s1795] ss:$-31 sm:%s1796]
    %vm1798 = vcmask 1045508
    %v1799 = vsel %vm1798, %v1797, %v1794
    %s1800 = scalar_lea.vmem [#allocation0], 4294967250
    %s1801 = smov 192
    %v1802 = vld [vmem:[%s1800] ss:$9 sm:%s1801]
    %vm1803 = vcmask 1047558
    %v1804 = vsel %vm1803, %v1802, %v1799
    %1805 = vrot.lane.b32.xlu0 %v1804, 44
    %v1806 = vpop.permute.xlu0 %1805
    %vm1807 = vcmask 31744
    %s1808 = scalar_lea.vmem %s1, 33
    %1809 = vst.msk [vmem:[%s1808] ss:$642 sm:$0x3] %vm1807, %v1806
    %s1810 = scalar_lea.vmem %s1, 4294966145
    %1811 = vst.msk [vmem:[%s1810] ss:$642 sm:$0xc] %vm1807, %v1806
    %s1812 = scalar_lea.vmem %s1, 4294965961
    %1813 = vst.msk [vmem:[%s1812] ss:$392 sm:$0x30] %vm1807, %v1806
    %s1814 = scalar_lea.vmem %s1, 4294963527
    %1815 = vst.msk [vmem:[%s1814] ss:$642 sm:$0xc0] %vm1807, %v1806
    %s1816 = scalar_lea.vmem [#allocation0], 40
    %s1817 = smov 3
    %v1818 = vld [vmem:[%s1816] ss:$9 sm:%s1817]
    %s1819 = scalar_lea.vmem [#allocation0], 38
    %s1820 = smov 12
    %v1821 = vld [vmem:[%s1819] ss:$9 sm:%s1820]
    %vm1822 = vcmask 1043458
    %v1823 = vsel %vm1822, %v1821, %v1818
    %s1824 = scalar_lea.vmem [#allocation0], 196
    %s1825 = smov 48
    %v1826 = vld [vmem:[%s1824] ss:$-31 sm:%s1825]
    %vm1827 = vcmask 1045508
    %v1828 = vsel %vm1827, %v1826, %v1823
    %s1829 = scalar_lea.vmem [#allocation0], 4294967290
    %s1830 = smov 192
    %v1831 = vld [vmem:[%s1829] ss:$9 sm:%s1830]
    %vm1832 = vcmask 1047558
    %v1833 = vsel %vm1832, %v1831, %v1828
    %1834 = vrot.lane.b32.xlu0 %v1833, 44
    %v1835 = vpop.permute.xlu0 %1834
    %vm1836 = vcmask 31744
    %s1837 = scalar_lea.vmem %s1, 289
    %1838 = vst.msk [vmem:[%s1837] ss:$642 sm:$0x3] %vm1836, %v1835
    %s1839 = scalar_lea.vmem %s1, 4294966401
    %1840 = vst.msk [vmem:[%s1839] ss:$642 sm:$0xc] %vm1836, %v1835
    %s1841 = scalar_lea.vmem %s1, 4294966217
    %1842 = vst.msk [vmem:[%s1841] ss:$392 sm:$0x30] %vm1836, %v1835
    %s1843 = scalar_lea.vmem %s1, 4294963783
    %1844 = vst.msk [vmem:[%s1843] ss:$642 sm:$0xc0] %vm1836, %v1835
    %s1845 = scalar_lea.vmem [#allocation0], 80
    %v1846 = vld [vmem:[%s1845] sm:$0x3]
    %s1847 = scalar_lea.vmem [#allocation0], 6
    %s1848 = smov 12
    %v1849 = vld [vmem:[%s1847] ss:$9 sm:%s1848]
    %vm1850 = vcmask 1043458
    %v1851 = vsel %vm1850, %v1849, %v1846
    %s1852 = scalar_lea.vmem [#allocation0], 28
    %s1853 = smov 48
    %v1854 = vld [vmem:[%s1852] ss:$9 sm:%s1853]
    %vm1855 = vcmask 1045508
    %v1856 = vsel %vm1855, %v1854, %v1851
    %1857 = vrot.lane.b32.xlu0 %v1856, 44
    %v1858 = vpop.permute.xlu0 %1857
    %vm1859 = vcmask 31744
    %s1860 = scalar_lea.vmem %s1, 545
    %1861 = vst.msk [vmem:[%s1860] ss:$592 sm:$0x3] %vm1859, %v1858
    %s1862 = scalar_lea.vmem %s1, 4294966195
    %1863 = vst.msk [vmem:[%s1862] ss:$642 sm:$0xc] %vm1859, %v1858
    %s1864 = scalar_lea.vmem %s1, 4294965167
    %1865 = vst.msk [vmem:[%s1864] ss:$642 sm:$0x30] %vm1859, %v1858
    %s1866 = scalar_lea.vmem [#allocation0], 33
    %s1867 = smov 3
    %v1868 = vld [vmem:[%s1866] ss:$-33 sm:%s1867]
    %s1869 = scalar_lea.vmem [#allocation0], 4294967291
    %s1870 = smov 12
    %v1871 = vld [vmem:[%s1869] ss:$7 sm:%s1870]
    %vm1872 = vcmask 1043458
    %v1873 = vsel %vm1872, %v1871, %v1868
    %s1874 = scalar_lea.vmem [#allocation0], 4294967293
    %s1875 = smov 48
    %v1876 = vld [vmem:[%s1874] ss:$7 sm:%s1875]
    %vm1877 = vcmask 1045508
    %v1878 = vsel %vm1877, %v1876, %v1873
    %s1879 = scalar_lea.vmem [#allocation0], 4294967255
    %s1880 = smov 192
    %v1881 = vld [vmem:[%s1879] ss:$7 sm:%s1880]
    %vm1882 = vcmask 1047558
    %v1883 = vsel %vm1882, %v1881, %v1878
    %1884 = vrot.lane.b32.xlu0 %v1883, 40
    %v1885 = vpop.permute.xlu0 %1884
    %vm1886 = vcmask 31744
    %s1887 = scalar_lea.vmem %s1, 832
    %1888 = vst.msk [vmem:[%s1887] ss:$-798 sm:$0x3] %vm1886, %v1885
    %s1889 = scalar_lea.vmem %s1, 1760
    %1890 = vst.msk [vmem:[%s1889] ss:$-542 sm:$0xc] %vm1886, %v1885
    %s1891 = scalar_lea.vmem %s1, 2920
    %1892 = vst.msk [vmem:[%s1891] ss:$-536 sm:$0x30] %vm1886, %v1885
    %s1893 = scalar_lea.vmem %s1, 3878
    %1894 = vst.msk [vmem:[%s1893] ss:$-542 sm:$0xc0] %vm1886, %v1885
    %s1895 = scalar_lea.vmem [#allocation0], 73
    %s1896 = smov 3
    %v1897 = vld [vmem:[%s1895] ss:$-33 sm:%s1896]
    %s1898 = scalar_lea.vmem [#allocation0], 35
    %s1899 = smov 12
    %v1900 = vld [vmem:[%s1898] ss:$7 sm:%s1899]
    %vm1901 = vcmask 1043458
    %v1902 = vsel %vm1901, %v1900, %v1897
    %s1903 = scalar_lea.vmem [#allocation0], 37
    %s1904 = smov 48
    %v1905 = vld [vmem:[%s1903] ss:$7 sm:%s1904]
    %vm1906 = vcmask 1045508
    %v1907 = vsel %vm1906, %v1905, %v1902
    %s1908 = scalar_lea.vmem [#allocation0], 4294967295
    %s1909 = smov 192
    %v1910 = vld [vmem:[%s1908] ss:$7 sm:%s1909]
    %vm1911 = vcmask 1047558
    %v1912 = vsel %vm1911, %v1910, %v1907
    %1913 = vrot.lane.b32.xlu0 %v1912, 40
    %v1914 = vpop.permute.xlu0 %1913
    %vm1915 = vcmask 31744
    %s1916 = scalar_lea.vmem %s1, 1088
    %1917 = vst.msk [vmem:[%s1916] ss:$-798 sm:$0x3] %vm1915, %v1914
    %s1918 = scalar_lea.vmem %s1, 2016
    %1919 = vst.msk [vmem:[%s1918] ss:$-542 sm:$0xc] %vm1915, %v1914
    %s1920 = scalar_lea.vmem %s1, 3176
    %1921 = vst.msk [vmem:[%s1920] ss:$-536 sm:$0x30] %vm1915, %v1914
    %s1922 = scalar_lea.vmem %s1, 4134
    %1923 = vst.msk [vmem:[%s1922] ss:$-542 sm:$0xc0] %vm1915, %v1914
    %s1924 = scalar_lea.vmem [#allocation0], 80
    %v1925 = vld [vmem:[%s1924] sm:$0x3]
    %s1926 = scalar_lea.vmem [#allocation0], 3
    %s1927 = smov 12
    %v1928 = vld [vmem:[%s1926] ss:$7 sm:%s1927]
    %vm1929 = vcmask 1043458
    %v1930 = vsel %vm1929, %v1928, %v1925
    %s1931 = scalar_lea.vmem [#allocation0], 29
    %s1932 = smov 48
    %v1933 = vld [vmem:[%s1931] ss:$7 sm:%s1932]
    %vm1934 = vcmask 1045508
    %v1935 = vsel %vm1934, %v1933, %v1930
    %1936 = vrot.lane.b32.xlu0 %v1935, 40
    %v1937 = vpop.permute.xlu0 %1936
    %vm1938 = vcmask 31744
    %s1939 = scalar_lea.vmem %s1, 546
    %1940 = vst.msk [vmem:[%s1939] ss:$592 sm:$0x3] %vm1938, %v1937
    %s1941 = scalar_lea.vmem %s1, 1810
    %1942 = vst.msk [vmem:[%s1941] ss:$-542 sm:$0xc] %vm1938, %v1937
    %s1943 = scalar_lea.vmem %s1, 3150
    %1944 = vst.msk [vmem:[%s1943] ss:$-542 sm:$0x30] %vm1938, %v1937
    %s1945 = scalar_lea.vmem [#allocation0], 33
    %s1946 = smov 3
    %v1947 = vld [vmem:[%s1945] ss:$-33 sm:%s1946]
    %s1948 = scalar_lea.vmem [#allocation0], 4294967291
    %s1949 = smov 12
    %v1950 = vld [vmem:[%s1948] ss:$7 sm:%s1949]
    %vm1951 = vcmask 1043458
    %v1952 = vsel %vm1951, %v1950, %v1947
    %s1953 = scalar_lea.vmem [#allocation0], 4294967293
    %s1954 = smov 48
    %v1955 = vld [vmem:[%s1953] ss:$7 sm:%s1954]
    %vm1956 = vcmask 1045508
    %v1957 = vsel %vm1956, %v1955, %v1952
    %s1958 = scalar_lea.vmem [#allocation0], 4294967255
    %s1959 = smov 192
    %v1960 = vld [vmem:[%s1958] ss:$7 sm:%s1959]
    %vm1961 = vcmask 1047558
    %v1962 = vsel %vm1961, %v1960, %v1957
    %1963 = vrot.lane.b32.xlu0 %v1962, 36
    %v1964 = vpop.permute.xlu0 %1963
    %vm1965 = vcmask 31744
    %s1966 = scalar_lea.vmem %s1, 833
    %1967 = vst.msk [vmem:[%s1966] ss:$-798 sm:$0x3] %vm1965, %v1964
    %s1968 = scalar_lea.vmem %s1, 1761
    %1969 = vst.msk [vmem:[%s1968] ss:$-542 sm:$0xc] %vm1965, %v1964
    %s1970 = scalar_lea.vmem %s1, 2921
    %1971 = vst.msk [vmem:[%s1970] ss:$-536 sm:$0x30] %vm1965, %v1964
    %s1972 = scalar_lea.vmem %s1, 3879
    %1973 = vst.msk [vmem:[%s1972] ss:$-542 sm:$0xc0] %vm1965, %v1964
    %s1974 = scalar_lea.vmem [#allocation0], 73
    %s1975 = smov 3
    %v1976 = vld [vmem:[%s1974] ss:$-33 sm:%s1975]
    %s1977 = scalar_lea.vmem [#allocation0], 35
    %s1978 = smov 12
    %v1979 = vld [vmem:[%s1977] ss:$7 sm:%s1978]
    %vm1980 = vcmask 1043458
    %v1981 = vsel %vm1980, %v1979, %v1976
    %s1982 = scalar_lea.vmem [#allocation0], 37
    %s1983 = smov 48
    %v1984 = vld [vmem:[%s1982] ss:$7 sm:%s1983]
    %vm1985 = vcmask 1045508
    %v1986 = vsel %vm1985, %v1984, %v1981
    %s1987 = scalar_lea.vmem [#allocation0], 4294967295
    %s1988 = smov 192
    %v1989 = vld [vmem:[%s1987] ss:$7 sm:%s1988]
    %vm1990 = vcmask 1047558
    %v1991 = vsel %vm1990, %v1989, %v1986
    %1992 = vrot.lane.b32.xlu0 %v1991, 36
    %v1993 = vpop.permute.xlu0 %1992
    %vm1994 = vcmask 31744
    %s1995 = scalar_lea.vmem %s1, 1089
    %1996 = vst.msk [vmem:[%s1995] ss:$-798 sm:$0x3] %vm1994, %v1993
    %s1997 = scalar_lea.vmem %s1, 2017
    %1998 = vst.msk [vmem:[%s1997] ss:$-542 sm:$0xc] %vm1994, %v1993
    %s1999 = scalar_lea.vmem %s1, 3177
    %2000 = vst.msk [vmem:[%s1999] ss:$-536 sm:$0x30] %vm1994, %v1993
    %s2001 = scalar_lea.vmem %s1, 4135
    %2002 = vst.msk [vmem:[%s2001] ss:$-542 sm:$0xc0] %vm1994, %v1993
    %s2003 = scalar_lea.vmem [#allocation0], 80
    %v2004 = vld [vmem:[%s2003] sm:$0x3]
    %s2005 = scalar_lea.vmem [#allocation0], 3
    %s2006 = smov 12
    %v2007 = vld [vmem:[%s2005] ss:$7 sm:%s2006]
    %vm2008 = vcmask 1043458
    %v2009 = vsel %vm2008, %v2007, %v2004
    %s2010 = scalar_lea.vmem [#allocation0], 29
    %s2011 = smov 48
    %v2012 = vld [vmem:[%s2010] ss:$7 sm:%s2011]
    %vm2013 = vcmask 1045508
    %v2014 = vsel %vm2013, %v2012, %v2009
    %2015 = vrot.lane.b32.xlu0 %v2014, 36
    %v2016 = vpop.permute.xlu0 %2015
    %vm2017 = vcmask 31744
    %s2018 = scalar_lea.vmem %s1, 547
    %2019 = vst.msk [vmem:[%s2018] ss:$592 sm:$0x3] %vm2017, %v2016
    %s2020 = scalar_lea.vmem %s1, 1811
    %2021 = vst.msk [vmem:[%s2020] ss:$-542 sm:$0xc] %vm2017, %v2016
    %s2022 = scalar_lea.vmem %s1, 3151
    %2023 = vst.msk [vmem:[%s2022] ss:$-542 sm:$0x30] %vm2017, %v2016
    %s2024 = scalar_lea.vmem [#allocation0], 24
    %s2025 = smov 3
    %v2026 = vld [vmem:[%s2024] ss:$9 sm:%s2025]
    %s2027 = scalar_lea.vmem [#allocation0], 4294967278
    %s2028 = smov 12
    %v2029 = vld [vmem:[%s2027] ss:$9 sm:%s2028]
    %vm2030 = vcmask 1043458
    %v2031 = vsel %vm2030, %v2029, %v2026
    %s2032 = scalar_lea.vmem [#allocation0], 4294967276
    %s2033 = smov 48
    %v2034 = vld [vmem:[%s2032] ss:$9 sm:%s2033]
    %vm2035 = vcmask 1045508
    %v2036 = vsel %vm2035, %v2034, %v2031
    %s2037 = scalar_lea.vmem [#allocation0], 218
    %s2038 = smov 192
    %v2039 = vld [vmem:[%s2037] ss:$-31 sm:%s2038]
    %vm2040 = vcmask 1047558
    %v2041 = vsel %vm2040, %v2039, %v2036
    %2042 = vrot.lane.b32.xlu0 %v2041, 32
    %v2043 = vpop.permute.xlu0 %2042
    %vm2044 = vcmask 31744
    %s2045 = scalar_lea.vmem %s1, 192
    %2046 = vst.msk [vmem:[%s2045] ss:$642 sm:$0x3] %vm2044, %v2043
    %s2047 = scalar_lea.vmem %s1, 4294966048
    %2048 = vst.msk [vmem:[%s2047] ss:$642 sm:$0xc] %vm2044, %v2043
    %s2049 = scalar_lea.vmem %s1, 4294964840
    %2050 = vst.msk [vmem:[%s2049] ss:$648 sm:$0x30] %vm2044, %v2043
    %s2051 = scalar_lea.vmem %s1, 4294965222
    %2052 = vst.msk [vmem:[%s2051] ss:$386 sm:$0xc0] %vm2044, %v2043
    %s2053 = scalar_lea.vmem [#allocation0], 64
    %s2054 = smov 3
    %v2055 = vld [vmem:[%s2053] ss:$9 sm:%s2054]
    %s2056 = scalar_lea.vmem [#allocation0], 22
    %s2057 = smov 12
    %v2058 = vld [vmem:[%s2056] ss:$9 sm:%s2057]
    %vm2059 = vcmask 1043458
    %v2060 = vsel %vm2059, %v2058, %v2055
    %s2061 = scalar_lea.vmem [#allocation0], 20
    %s2062 = smov 48
    %v2063 = vld [vmem:[%s2061] ss:$9 sm:%s2062]
    %vm2064 = vcmask 1045508
    %v2065 = vsel %vm2064, %v2063, %v2060
    %s2066 = scalar_lea.vmem [#allocation0], 258
    %s2067 = smov 192
    %v2068 = vld [vmem:[%s2066] ss:$-31 sm:%s2067]
    %vm2069 = vcmask 1047558
    %v2070 = vsel %vm2069, %v2068, %v2065
    %2071 = vrot.lane.b32.xlu0 %v2070, 32
    %v2072 = vpop.permute.xlu0 %2071
    %vm2073 = vcmask 31744
    %s2074 = scalar_lea.vmem %s1, 448
    %2075 = vst.msk [vmem:[%s2074] ss:$642 sm:$0x3] %vm2073, %v2072
    %s2076 = scalar_lea.vmem %s1, 4294966304
    %2077 = vst.msk [vmem:[%s2076] ss:$642 sm:$0xc] %vm2073, %v2072
    %s2078 = scalar_lea.vmem %s1, 4294965096
    %2079 = vst.msk [vmem:[%s2078] ss:$648 sm:$0x30] %vm2073, %v2072
    %s2080 = scalar_lea.vmem %s1, 4294965478
    %2081 = vst.msk [vmem:[%s2080] ss:$386 sm:$0xc0] %vm2073, %v2072
    %s2082 = scalar_lea.vmem [#allocation0], 80
    %v2083 = vld [vmem:[%s2082] sm:$0x3]
    %s2084 = scalar_lea.vmem [#allocation0], 4294967286
    %s2085 = smov 12
    %v2086 = vld [vmem:[%s2084] ss:$9 sm:%s2085]
    %vm2087 = vcmask 1043458
    %v2088 = vsel %vm2087, %v2086, %v2083
    %s2089 = scalar_lea.vmem [#allocation0], 12
    %s2090 = smov 48
    %v2091 = vld [vmem:[%s2089] ss:$9 sm:%s2090]
    %vm2092 = vcmask 1045508
    %v2093 = vsel %vm2092, %v2091, %v2088
    %2094 = vrot.lane.b32.xlu0 %v2093, 32
    %v2095 = vpop.permute.xlu0 %2094
    %vm2096 = vcmask 31744
    %s2097 = scalar_lea.vmem %s1, 548
    %2098 = vst.msk [vmem:[%s2097] ss:$592 sm:$0x3] %vm2096, %v2095
    %s2099 = scalar_lea.vmem %s1, 4294966098
    %2100 = vst.msk [vmem:[%s2099] ss:$642 sm:$0xc] %vm2096, %v2095
    %s2101 = scalar_lea.vmem %s1, 4294965070
    %2102 = vst.msk [vmem:[%s2101] ss:$642 sm:$0x30] %vm2096, %v2095
    %s2103 = scalar_lea.vmem [#allocation0], 24
    %s2104 = smov 3
    %v2105 = vld [vmem:[%s2103] ss:$9 sm:%s2104]
    %s2106 = scalar_lea.vmem [#allocation0], 4294967278
    %s2107 = smov 12
    %v2108 = vld [vmem:[%s2106] ss:$9 sm:%s2107]
    %vm2109 = vcmask 1043458
    %v2110 = vsel %vm2109, %v2108, %v2105
    %s2111 = scalar_lea.vmem [#allocation0], 4294967276
    %s2112 = smov 48
    %v2113 = vld [vmem:[%s2111] ss:$9 sm:%s2112]
    %vm2114 = vcmask 1045508
    %v2115 = vsel %vm2114, %v2113, %v2110
    %s2116 = scalar_lea.vmem [#allocation0], 218
    %s2117 = smov 192
    %v2118 = vld [vmem:[%s2116] ss:$-31 sm:%s2117]
    %vm2119 = vcmask 1047558
    %v2120 = vsel %vm2119, %v2118, %v2115
    %2121 = vrot.lane.b32.xlu0 %v2120, 28
    %v2122 = vpop.permute.xlu0 %2121
    %vm2123 = vcmask 31744
    %s2124 = scalar_lea.vmem %s1, 193
    %2125 = vst.msk [vmem:[%s2124] ss:$642 sm:$0x3] %vm2123, %v2122
    %s2126 = scalar_lea.vmem %s1, 4294966049
    %2127 = vst.msk [vmem:[%s2126] ss:$642 sm:$0xc] %vm2123, %v2122
    %s2128 = scalar_lea.vmem %s1, 4294964841
    %2129 = vst.msk [vmem:[%s2128] ss:$648 sm:$0x30] %vm2123, %v2122
    %s2130 = scalar_lea.vmem %s1, 4294965223
    %2131 = vst.msk [vmem:[%s2130] ss:$386 sm:$0xc0] %vm2123, %v2122
    %s2132 = scalar_lea.vmem [#allocation0], 64
    %s2133 = smov 3
    %v2134 = vld [vmem:[%s2132] ss:$9 sm:%s2133]
    %s2135 = scalar_lea.vmem [#allocation0], 22
    %s2136 = smov 12
    %v2137 = vld [vmem:[%s2135] ss:$9 sm:%s2136]
    %vm2138 = vcmask 1043458
    %v2139 = vsel %vm2138, %v2137, %v2134
    %s2140 = scalar_lea.vmem [#allocation0], 20
    %s2141 = smov 48
    %v2142 = vld [vmem:[%s2140] ss:$9 sm:%s2141]
    %vm2143 = vcmask 1045508
    %v2144 = vsel %vm2143, %v2142, %v2139
    %s2145 = scalar_lea.vmem [#allocation0], 258
    %s2146 = smov 192
    %v2147 = vld [vmem:[%s2145] ss:$-31 sm:%s2146]
    %vm2148 = vcmask 1047558
    %v2149 = vsel %vm2148, %v2147, %v2144
    %2150 = vrot.lane.b32.xlu0 %v2149, 28
    %v2151 = vpop.permute.xlu0 %2150
    %vm2152 = vcmask 31744
    %s2153 = scalar_lea.vmem %s1, 449
    %2154 = vst.msk [vmem:[%s2153] ss:$642 sm:$0x3] %vm2152, %v2151
    %s2155 = scalar_lea.vmem %s1, 4294966305
    %2156 = vst.msk [vmem:[%s2155] ss:$642 sm:$0xc] %vm2152, %v2151
    %s2157 = scalar_lea.vmem %s1, 4294965097
    %2158 = vst.msk [vmem:[%s2157] ss:$648 sm:$0x30] %vm2152, %v2151
    %s2159 = scalar_lea.vmem %s1, 4294965479
    %2160 = vst.msk [vmem:[%s2159] ss:$386 sm:$0xc0] %vm2152, %v2151
    %s2161 = scalar_lea.vmem [#allocation0], 80
    %v2162 = vld [vmem:[%s2161] sm:$0x3]
    %s2163 = scalar_lea.vmem [#allocation0], 4294967286
    %s2164 = smov 12
    %v2165 = vld [vmem:[%s2163] ss:$9 sm:%s2164]
    %vm2166 = vcmask 1043458
    %v2167 = vsel %vm2166, %v2165, %v2162
    %s2168 = scalar_lea.vmem [#allocation0], 12
    %s2169 = smov 48
    %v2170 = vld [vmem:[%s2168] ss:$9 sm:%s2169]
    %vm2171 = vcmask 1045508
    %v2172 = vsel %vm2171, %v2170, %v2167
    %2173 = vrot.lane.b32.xlu0 %v2172, 28
    %v2174 = vpop.permute.xlu0 %2173
    %vm2175 = vcmask 31744
    %s2176 = scalar_lea.vmem %s1, 549
    %2177 = vst.msk [vmem:[%s2176] ss:$592 sm:$0x3] %vm2175, %v2174
    %s2178 = scalar_lea.vmem %s1, 4294966099
    %2179 = vst.msk [vmem:[%s2178] ss:$642 sm:$0xc] %vm2175, %v2174
    %s2180 = scalar_lea.vmem %s1, 4294965071
    %2181 = vst.msk [vmem:[%s2180] ss:$642 sm:$0x30] %vm2175, %v2174
    %s2182 = scalar_lea.vmem [#allocation0], 17
    %s2183 = smov 3
    %v2184 = vld [vmem:[%s2182] ss:$7 sm:%s2183]
    %s2185 = scalar_lea.vmem [#allocation0], 99
    %s2186 = smov 12
    %v2187 = vld [vmem:[%s2185] ss:$-33 sm:%s2186]
    %vm2188 = vcmask 1043458
    %v2189 = vsel %vm2188, %v2187, %v2184
    %s2190 = scalar_lea.vmem [#allocation0], 4294967277
    %s2191 = smov 48
    %v2192 = vld [vmem:[%s2190] ss:$7 sm:%s2191]
    %vm2193 = vcmask 1045508
    %v2194 = vsel %vm2193, %v2192, %v2189
    %s2195 = scalar_lea.vmem [#allocation0], 4294967279
    %s2196 = smov 192
    %v2197 = vld [vmem:[%s2195] ss:$7 sm:%s2196]
    %vm2198 = vcmask 1047558
    %v2199 = vsel %vm2198, %v2197, %v2194
    %2200 = vrot.lane.b32.xlu0 %v2199, 24
    %v2201 = vpop.permute.xlu0 %2200
    %vm2202 = vcmask 31744
    %s2203 = scalar_lea.vmem %s1, 736
    %2204 = vst.msk [vmem:[%s2203] ss:$-542 sm:$0x3] %vm2202, %v2201
    %s2205 = scalar_lea.vmem %s1, 2432
    %2206 = vst.msk [vmem:[%s2205] ss:$-798 sm:$0xc] %vm2202, %v2201
    %s2207 = scalar_lea.vmem %s1, 2824
    %2208 = vst.msk [vmem:[%s2207] ss:$-536 sm:$0x30] %vm2202, %v2201
    %s2209 = scalar_lea.vmem %s1, 4038
    %2210 = vst.msk [vmem:[%s2209] ss:$-542 sm:$0xc0] %vm2202, %v2201
    %s2211 = scalar_lea.vmem [#allocation0], 57
    %s2212 = smov 3
    %v2213 = vld [vmem:[%s2211] ss:$7 sm:%s2212]
    %s2214 = scalar_lea.vmem [#allocation0], 139
    %s2215 = smov 12
    %v2216 = vld [vmem:[%s2214] ss:$-33 sm:%s2215]
    %vm2217 = vcmask 1043458
    %v2218 = vsel %vm2217, %v2216, %v2213
    %s2219 = scalar_lea.vmem [#allocation0], 21
    %s2220 = smov 48
    %v2221 = vld [vmem:[%s2219] ss:$7 sm:%s2220]
    %vm2222 = vcmask 1045508
    %v2223 = vsel %vm2222, %v2221, %v2218
    %s2224 = scalar_lea.vmem [#allocation0], 23
    %s2225 = smov 192
    %v2226 = vld [vmem:[%s2224] ss:$7 sm:%s2225]
    %vm2227 = vcmask 1047558
    %v2228 = vsel %vm2227, %v2226, %v2223
    %2229 = vrot.lane.b32.xlu0 %v2228, 24
    %v2230 = vpop.permute.xlu0 %2229
    %vm2231 = vcmask 31744
    %s2232 = scalar_lea.vmem %s1, 992
    %2233 = vst.msk [vmem:[%s2232] ss:$-542 sm:$0x3] %vm2231, %v2230
    %s2234 = scalar_lea.vmem %s1, 2688
    %2235 = vst.msk [vmem:[%s2234] ss:$-798 sm:$0xc] %vm2231, %v2230
    %s2236 = scalar_lea.vmem %s1, 3080
    %2237 = vst.msk [vmem:[%s2236] ss:$-536 sm:$0x30] %vm2231, %v2230
    %s2238 = scalar_lea.vmem %s1, 4294
    %2239 = vst.msk [vmem:[%s2238] ss:$-542 sm:$0xc0] %vm2231, %v2230
    %s2240 = scalar_lea.vmem [#allocation0], 80
    %s2241 = smov 3
    %v2242 = vld [vmem:[%s2240] ss:$-79 sm:%s2241]
    %s2243 = scalar_lea.vmem [#allocation0], 4294967238
    %s2244 = smov 12
    %v2245 = vld [vmem:[%s2243] ss:$33 sm:%s2244]
    %vm2246 = vcmask 1043458
    %v2247 = vsel %vm2246, %v2245, %v2242
    %s2248 = scalar_lea.vmem [#allocation0], 4294967212
    %s2249 = smov 48
    %v2250 = vld [vmem:[%s2248] ss:$33 sm:%s2249]
    %vm2251 = vcmask 1045508
    %v2252 = vsel %vm2251, %v2250, %v2247
    %2253 = vrot.lane.b32.xlu0 %v2252, 24
    %v2254 = vpop.permute.xlu0 %2253
    %vm2255 = vcmask 31744
    %s2256 = scalar_lea.vmem %s1, 550
    %2257 = vst.msk [vmem:[%s2256] ss:$80 sm:$0x3] %vm2255, %v2254
    %s2258 = scalar_lea.vmem %s1, 4294965788
    %2259 = vst.msk [vmem:[%s2258] ss:$798 sm:$0xc] %vm2255, %v2254
    %s2260 = scalar_lea.vmem %s1, 4294964448
    %2261 = vst.msk [vmem:[%s2260] ss:$798 sm:$0x30] %vm2255, %v2254
    %s2262 = scalar_lea.vmem [#allocation0], 17
    %s2263 = smov 3
    %v2264 = vld [vmem:[%s2262] ss:$7 sm:%s2263]
    %s2265 = scalar_lea.vmem [#allocation0], 99
    %s2266 = smov 12
    %v2267 = vld [vmem:[%s2265] ss:$-33 sm:%s2266]
    %vm2268 = vcmask 1043458
    %v2269 = vsel %vm2268, %v2267, %v2264
    %s2270 = scalar_lea.vmem [#allocation0], 4294967277
    %s2271 = smov 48
    %v2272 = vld [vmem:[%s2270] ss:$7 sm:%s2271]
    %vm2273 = vcmask 1045508
    %v2274 = vsel %vm2273, %v2272, %v2269
    %s2275 = scalar_lea.vmem [#allocation0], 4294967279
    %s2276 = smov 192
    %v2277 = vld [vmem:[%s2275] ss:$7 sm:%s2276]
    %vm2278 = vcmask 1047558
    %v2279 = vsel %vm2278, %v2277, %v2274
    %2280 = vrot.lane.b32.xlu0 %v2279, 20
    %v2281 = vpop.permute.xlu0 %2280
    %vm2282 = vcmask 31744
    %s2283 = scalar_lea.vmem %s1, 737
    %2284 = vst.msk [vmem:[%s2283] ss:$-542 sm:$0x3] %vm2282, %v2281
    %s2285 = scalar_lea.vmem %s1, 2433
    %2286 = vst.msk [vmem:[%s2285] ss:$-798 sm:$0xc] %vm2282, %v2281
    %s2287 = scalar_lea.vmem %s1, 2825
    %2288 = vst.msk [vmem:[%s2287] ss:$-536 sm:$0x30] %vm2282, %v2281
    %s2289 = scalar_lea.vmem %s1, 4039
    %2290 = vst.msk [vmem:[%s2289] ss:$-542 sm:$0xc0] %vm2282, %v2281
    %s2291 = scalar_lea.vmem [#allocation0], 57
    %s2292 = smov 3
    %v2293 = vld [vmem:[%s2291] ss:$7 sm:%s2292]
    %s2294 = scalar_lea.vmem [#allocation0], 139
    %s2295 = smov 12
    %v2296 = vld [vmem:[%s2294] ss:$-33 sm:%s2295]
    %vm2297 = vcmask 1043458
    %v2298 = vsel %vm2297, %v2296, %v2293
    %s2299 = scalar_lea.vmem [#allocation0], 21
    %s2300 = smov 48
    %v2301 = vld [vmem:[%s2299] ss:$7 sm:%s2300]
    %vm2302 = vcmask 1045508
    %v2303 = vsel %vm2302, %v2301, %v2298
    %s2304 = scalar_lea.vmem [#allocation0], 23
    %s2305 = smov 192
    %v2306 = vld [vmem:[%s2304] ss:$7 sm:%s2305]
    %vm2307 = vcmask 1047558
    %v2308 = vsel %vm2307, %v2306, %v2303
    %2309 = vrot.lane.b32.xlu0 %v2308, 20
    %v2310 = vpop.permute.xlu0 %2309
    %vm2311 = vcmask 31744
    %s2312 = scalar_lea.vmem %s1, 993
    %2313 = vst.msk [vmem:[%s2312] ss:$-542 sm:$0x3] %vm2311, %v2310
    %s2314 = scalar_lea.vmem %s1, 2689
    %2315 = vst.msk [vmem:[%s2314] ss:$-798 sm:$0xc] %vm2311, %v2310
    %s2316 = scalar_lea.vmem %s1, 3081
    %2317 = vst.msk [vmem:[%s2316] ss:$-536 sm:$0x30] %vm2311, %v2310
    %s2318 = scalar_lea.vmem %s1, 4295
    %2319 = vst.msk [vmem:[%s2318] ss:$-542 sm:$0xc0] %vm2311, %v2310
    %s2320 = scalar_lea.vmem [#allocation0], 80
    %s2321 = smov 3
    %v2322 = vld [vmem:[%s2320] ss:$-79 sm:%s2321]
    %s2323 = scalar_lea.vmem [#allocation0], 4294967238
    %s2324 = smov 12
    %v2325 = vld [vmem:[%s2323] ss:$33 sm:%s2324]
    %vm2326 = vcmask 1043458
    %v2327 = vsel %vm2326, %v2325, %v2322
    %s2328 = scalar_lea.vmem [#allocation0], 4294967212
    %s2329 = smov 48
    %v2330 = vld [vmem:[%s2328] ss:$33 sm:%s2329]
    %vm2331 = vcmask 1045508
    %v2332 = vsel %vm2331, %v2330, %v2327
    %2333 = vrot.lane.b32.xlu0 %v2332, 20
    %v2334 = vpop.permute.xlu0 %2333
    %vm2335 = vcmask 31744
    %s2336 = scalar_lea.vmem %s1, 551
    %2337 = vst.msk [vmem:[%s2336] ss:$80 sm:$0x3] %vm2335, %v2334
    %s2338 = scalar_lea.vmem %s1, 4294965789
    %2339 = vst.msk [vmem:[%s2338] ss:$798 sm:$0xc] %vm2335, %v2334
    %s2340 = scalar_lea.vmem %s1, 4294964449
    %2341 = vst.msk [vmem:[%s2340] ss:$798 sm:$0x30] %vm2335, %v2334
    %s2342 = scalar_lea.vmem [#allocation0], 8
    %s2343 = smov 3
    %v2344 = vld [vmem:[%s2342] ss:$9 sm:%s2343]
    %s2345 = scalar_lea.vmem [#allocation0], 6
    %s2346 = smov 12
    %v2347 = vld [vmem:[%s2345] ss:$9 sm:%s2346]
    %vm2348 = vcmask 1043458
    %v2349 = vsel %vm2348, %v2347, %v2344
    %s2350 = scalar_lea.vmem [#allocation0], 4294967260
    %s2351 = smov 48
    %v2352 = vld [vmem:[%s2350] ss:$9 sm:%s2351]
    %vm2353 = vcmask 1045508
    %v2354 = vsel %vm2353, %v2352, %v2349
    %s2355 = scalar_lea.vmem [#allocation0], 4294967258
    %s2356 = smov 192
    %v2357 = vld [vmem:[%s2355] ss:$9 sm:%s2356]
    %vm2358 = vcmask 1047558
    %v2359 = vsel %vm2358, %v2357, %v2354
    %2360 = vrot.lane.b32.xlu0 %v2359, 16
    %v2361 = vpop.permute.xlu0 %2360
    %vm2362 = vcmask 31744
    %s2363 = scalar_lea.vmem %s1, 96
    %2364 = vst.msk [vmem:[%s2363] ss:$642 sm:$0x3] %vm2362, %v2361
    %s2365 = scalar_lea.vmem %s1, 4294966208
    %2366 = vst.msk [vmem:[%s2365] ss:$642 sm:$0xc] %vm2362, %v2361
    %s2367 = scalar_lea.vmem %s1, 4294964744
    %2368 = vst.msk [vmem:[%s2367] ss:$648 sm:$0x30] %vm2362, %v2361
    %s2369 = scalar_lea.vmem %s1, 4294963590
    %2370 = vst.msk [vmem:[%s2369] ss:$642 sm:$0xc0] %vm2362, %v2361
    %s2371 = scalar_lea.vmem [#allocation0], 48
    %s2372 = smov 3
    %v2373 = vld [vmem:[%s2371] ss:$9 sm:%s2372]
    %s2374 = scalar_lea.vmem [#allocation0], 46
    %s2375 = smov 12
    %v2376 = vld [vmem:[%s2374] ss:$9 sm:%s2375]
    %vm2377 = vcmask 1043458
    %v2378 = vsel %vm2377, %v2376, %v2373
    %s2379 = scalar_lea.vmem [#allocation0], 4
    %s2380 = smov 48
    %v2381 = vld [vmem:[%s2379] ss:$9 sm:%s2380]
    %vm2382 = vcmask 1045508
    %v2383 = vsel %vm2382, %v2381, %v2378
    %s2384 = scalar_lea.vmem [#allocation0], 2
    %s2385 = smov 192
    %v2386 = vld [vmem:[%s2384] ss:$9 sm:%s2385]
    %vm2387 = vcmask 1047558
    %v2388 = vsel %vm2387, %v2386, %v2383
    %2389 = vrot.lane.b32.xlu0 %v2388, 16
    %v2390 = vpop.permute.xlu0 %2389
    %vm2391 = vcmask 31744
    %s2392 = scalar_lea.vmem %s1, 352
    %2393 = vst.msk [vmem:[%s2392] ss:$642 sm:$0x3] %vm2391, %v2390
    %s2394 = scalar_lea.vmem %s1, 4294966464
    %2395 = vst.msk [vmem:[%s2394] ss:$642 sm:$0xc] %vm2391, %v2390
    %s2396 = scalar_lea.vmem %s1, 4294965000
    %2397 = vst.msk [vmem:[%s2396] ss:$648 sm:$0x30] %vm2391, %v2390
    %s2398 = scalar_lea.vmem %s1, 4294963846
    %2399 = vst.msk [vmem:[%s2398] ss:$642 sm:$0xc0] %vm2391, %v2390
    %s2400 = scalar_lea.vmem [#allocation0], 80
    %s2401 = smov 3
    %v2402 = vld [vmem:[%s2400] ss:$-48 sm:%s2401]
    %s2403 = scalar_lea.vmem [#allocation0], 4294967155
    %s2404 = smov 12
    %v2405 = vld [vmem:[%s2403] ss:$71 sm:%s2404]
    %vm2406 = vcmask 1043458
    %v2407 = vsel %vm2406, %v2405, %v2402
    %s2408 = scalar_lea.vmem [#allocation0], 4294967177
    %s2409 = smov 48
    %v2410 = vld [vmem:[%s2408] ss:$40 sm:%s2409]
    %vm2411 = vcmask 1045508
    %v2412 = vsel %vm2411, %v2410, %v2407
    %2413 = vrot.lane.b32.xlu0 %v2412, 16
    %v2414 = vpop.permute.xlu0 %2413
    %vm2415 = vcmask 31744
    %s2416 = scalar_lea.vmem %s1, 552
    %2417 = vst.msk [vmem:[%s2416] ss:$-306 sm:$0x3] %vm2415, %v2414
    %s2418 = scalar_lea.vmem %s1, 892
    %2419 = vst.msk [vmem:[%s2418] ss:$-130 sm:$0xc] %vm2415, %v2414
    %s2420 = scalar_lea.vmem %s1, 884
    %2421 = vst.msk [vmem:[%s2420] sm:$0x10] %vm2415, %v2414
    %s2422 = scalar_lea.vmem %s1, 1139
    %2423 = vst.msk [vmem:[%s2422] sm:$0x20] %vm2415, %v2414
    %s2424 = scalar_lea.vmem [#allocation0], 8
    %s2425 = smov 3
    %v2426 = vld [vmem:[%s2424] ss:$9 sm:%s2425]
    %s2427 = scalar_lea.vmem [#allocation0], 6
    %s2428 = smov 12
    %v2429 = vld [vmem:[%s2427] ss:$9 sm:%s2428]
    %vm2430 = vcmask 1043458
    %v2431 = vsel %vm2430, %v2429, %v2426
    %s2432 = scalar_lea.vmem [#allocation0], 4294967260
    %s2433 = smov 48
    %v2434 = vld [vmem:[%s2432] ss:$9 sm:%s2433]
    %vm2435 = vcmask 1045508
    %v2436 = vsel %vm2435, %v2434, %v2431
    %s2437 = scalar_lea.vmem [#allocation0], 4294967258
    %s2438 = smov 192
    %v2439 = vld [vmem:[%s2437] ss:$9 sm:%s2438]
    %vm2440 = vcmask 1047558
    %v2441 = vsel %vm2440, %v2439, %v2436
    %2442 = vrot.lane.b32.xlu0 %v2441, 12
    %v2443 = vpop.permute.xlu0 %2442
    %vm2444 = vcmask 31744
    %s2445 = scalar_lea.vmem %s1, 97
    %2446 = vst.msk [vmem:[%s2445] ss:$642 sm:$0x3] %vm2444, %v2443
    %s2447 = scalar_lea.vmem %s1, 4294966209
    %2448 = vst.msk [vmem:[%s2447] ss:$642 sm:$0xc] %vm2444, %v2443
    %s2449 = scalar_lea.vmem %s1, 4294964745
    %2450 = vst.msk [vmem:[%s2449] ss:$648 sm:$0x30] %vm2444, %v2443
    %s2451 = scalar_lea.vmem %s1, 4294963591
    %2452 = vst.msk [vmem:[%s2451] ss:$642 sm:$0xc0] %vm2444, %v2443
    %s2453 = scalar_lea.vmem [#allocation0], 48
    %s2454 = smov 3
    %v2455 = vld [vmem:[%s2453] ss:$9 sm:%s2454]
    %s2456 = scalar_lea.vmem [#allocation0], 46
    %s2457 = smov 12
    %v2458 = vld [vmem:[%s2456] ss:$9 sm:%s2457]
    %vm2459 = vcmask 1043458
    %v2460 = vsel %vm2459, %v2458, %v2455
    %s2461 = scalar_lea.vmem [#allocation0], 4
    %s2462 = smov 48
    %v2463 = vld [vmem:[%s2461] ss:$9 sm:%s2462]
    %vm2464 = vcmask 1045508
    %v2465 = vsel %vm2464, %v2463, %v2460
    %s2466 = scalar_lea.vmem [#allocation0], 2
    %s2467 = smov 192
    %v2468 = vld [vmem:[%s2466] ss:$9 sm:%s2467]
    %vm2469 = vcmask 1047558
    %v2470 = vsel %vm2469, %v2468, %v2465
    %2471 = vrot.lane.b32.xlu0 %v2470, 12
    %v2472 = vpop.permute.xlu0 %2471
    %vm2473 = vcmask 31744
    %s2474 = scalar_lea.vmem %s1, 353
    %2475 = vst.msk [vmem:[%s2474] ss:$642 sm:$0x3] %vm2473, %v2472
    %s2476 = scalar_lea.vmem %s1, 4294966465
    %2477 = vst.msk [vmem:[%s2476] ss:$642 sm:$0xc] %vm2473, %v2472
    %s2478 = scalar_lea.vmem %s1, 4294965001
    %2479 = vst.msk [vmem:[%s2478] ss:$648 sm:$0x30] %vm2473, %v2472
    %s2480 = scalar_lea.vmem %s1, 4294963847
    %2481 = vst.msk [vmem:[%s2480] ss:$642 sm:$0xc0] %vm2473, %v2472
    %s2482 = scalar_lea.vmem [#allocation0], 80
    %s2483 = smov 3
    %v2484 = vld [vmem:[%s2482] ss:$-48 sm:%s2483]
    %s2485 = scalar_lea.vmem [#allocation0], 4294967155
    %s2486 = smov 12
    %v2487 = vld [vmem:[%s2485] ss:$71 sm:%s2486]
    %vm2488 = vcmask 1043458
    %v2489 = vsel %vm2488, %v2487, %v2484
    %s2490 = scalar_lea.vmem [#allocation0], 4294967177
    %s2491 = smov 48
    %v2492 = vld [vmem:[%s2490] ss:$40 sm:%s2491]
    %vm2493 = vcmask 1045508
    %v2494 = vsel %vm2493, %v2492, %v2489
    %2495 = vrot.lane.b32.xlu0 %v2494, 12
    %v2496 = vpop.permute.xlu0 %2495
    %vm2497 = vcmask 31744
    %s2498 = scalar_lea.vmem %s1, 553
    %2499 = vst.msk [vmem:[%s2498] ss:$-306 sm:$0x3] %vm2497, %v2496
    %s2500 = scalar_lea.vmem %s1, 893
    %2501 = vst.msk [vmem:[%s2500] ss:$-130 sm:$0xc] %vm2497, %v2496
    %s2502 = scalar_lea.vmem %s1, 885
    %2503 = vst.msk [vmem:[%s2502] sm:$0x10] %vm2497, %v2496
    %s2504 = scalar_lea.vmem %s1, 1140
    %2505 = vst.msk [vmem:[%s2504] sm:$0x20] %vm2497, %v2496
    %s2506 = scalar_lea.vmem [#allocation0], 1
    %s2507 = smov 3
    %v2508 = vld [vmem:[%s2506] ss:$7 sm:%s2507]
    %s2509 = scalar_lea.vmem [#allocation0], 3
    %s2510 = smov 12
    %v2511 = vld [vmem:[%s2509] ss:$7 sm:%s2510]
    %vm2512 = vcmask 1043458
    %v2513 = vsel %vm2512, %v2511, %v2508
    %s2514 = scalar_lea.vmem [#allocation0], 165
    %s2515 = smov 48
    %v2516 = vld [vmem:[%s2514] ss:$-33 sm:%s2515]
    %vm2517 = vcmask 1045508
    %v2518 = vsel %vm2517, %v2516, %v2513
    %s2519 = scalar_lea.vmem [#allocation0], 4294967263
    %s2520 = smov 192
    %v2521 = vld [vmem:[%s2519] ss:$7 sm:%s2520]
    %vm2522 = vcmask 1047558
    %v2523 = vsel %vm2522, %v2521, %v2518
    %2524 = vrot.lane.b32.xlu0 %v2523, 8
    %v2525 = vpop.permute.xlu0 %2524
    %vm2526 = vcmask 31744
    %s2527 = scalar_lea.vmem %s1, 640
    %2528 = vst.msk [vmem:[%s2527] ss:$-542 sm:$0x3] %vm2526, %v2525
    %s2529 = scalar_lea.vmem %s1, 1824
    %2530 = vst.msk [vmem:[%s2529] ss:$-542 sm:$0xc] %vm2526, %v2525
    %s2531 = scalar_lea.vmem %s1, 4008
    %2532 = vst.msk [vmem:[%s2531] ss:$-792 sm:$0x30] %vm2526, %v2525
    %s2533 = scalar_lea.vmem %s1, 3942
    %2534 = vst.msk [vmem:[%s2533] ss:$-542 sm:$0xc0] %vm2526, %v2525
    %s2535 = scalar_lea.vmem [#allocation0], 41
    %s2536 = smov 3
    %v2537 = vld [vmem:[%s2535] ss:$7 sm:%s2536]
    %s2538 = scalar_lea.vmem [#allocation0], 43
    %s2539 = smov 12
    %v2540 = vld [vmem:[%s2538] ss:$7 sm:%s2539]
    %vm2541 = vcmask 1043458
    %v2542 = vsel %vm2541, %v2540, %v2537
    %s2543 = scalar_lea.vmem [#allocation0], 205
    %s2544 = smov 48
    %v2545 = vld [vmem:[%s2543] ss:$-33 sm:%s2544]
    %vm2546 = vcmask 1045508
    %v2547 = vsel %vm2546, %v2545, %v2542
    %s2548 = scalar_lea.vmem [#allocation0], 7
    %s2549 = smov 192
    %v2550 = vld [vmem:[%s2548] ss:$7 sm:%s2549]
    %vm2551 = vcmask 1047558
    %v2552 = vsel %vm2551, %v2550, %v2547
    %2553 = vrot.lane.b32.xlu0 %v2552, 8
    %v2554 = vpop.permute.xlu0 %2553
    %vm2555 = vcmask 31744
    %s2556 = scalar_lea.vmem %s1, 896
    %2557 = vst.msk [vmem:[%s2556] ss:$-542 sm:$0x3] %vm2555, %v2554
    %s2558 = scalar_lea.vmem %s1, 2080
    %2559 = vst.msk [vmem:[%s2558] ss:$-542 sm:$0xc] %vm2555, %v2554
    %s2560 = scalar_lea.vmem %s1, 4264
    %2561 = vst.msk [vmem:[%s2560] ss:$-792 sm:$0x30] %vm2555, %v2554
    %s2562 = scalar_lea.vmem %s1, 4198
    %2563 = vst.msk [vmem:[%s2562] ss:$-542 sm:$0xc0] %vm2555, %v2554
    %s2564 = scalar_lea.vmem [#allocation0], 81
    %s2565 = smov 3
    %v2566 = vld [vmem:[%s2564] ss:$-1 sm:%s2565]
    %s2567 = scalar_lea.vmem [#allocation0], 11
    %s2568 = smov 12
    %v2569 = vld [vmem:[%s2567] ss:$7 sm:%s2568]
    %vm2570 = vcmask 1043458
    %v2571 = vsel %vm2570, %v2569, %v2566
    %s2572 = scalar_lea.vmem [#allocation0], 37
    %s2573 = smov 48
    %v2574 = vld [vmem:[%s2572] ss:$7 sm:%s2573]
    %vm2575 = vcmask 1045508
    %v2576 = vsel %vm2575, %v2574, %v2571
    %2577 = vrot.lane.b32.xlu0 %v2576, 8
    %v2578 = vpop.permute.xlu0 %2577
    %vm2579 = vcmask 31744
    %s2580 = scalar_lea.vmem %s1, 1152
    %2581 = vst.msk [vmem:[%s2580] ss:$-592 sm:$0x3] %vm2579, %v2578
    %s2582 = scalar_lea.vmem %s1, 1874
    %2583 = vst.msk [vmem:[%s2582] ss:$-542 sm:$0xc] %vm2579, %v2578
    %s2584 = scalar_lea.vmem %s1, 3214
    %2585 = vst.msk [vmem:[%s2584] ss:$-542 sm:$0x30] %vm2579, %v2578
    %s2586 = scalar_lea.vmem [#allocation0], 1
    %s2587 = smov 3
    %v2588 = vld [vmem:[%s2586] ss:$7 sm:%s2587]
    %s2589 = scalar_lea.vmem [#allocation0], 3
    %s2590 = smov 12
    %v2591 = vld [vmem:[%s2589] ss:$7 sm:%s2590]
    %vm2592 = vcmask 1043458
    %v2593 = vsel %vm2592, %v2591, %v2588
    %s2594 = scalar_lea.vmem [#allocation0], 165
    %s2595 = smov 48
    %v2596 = vld [vmem:[%s2594] ss:$-33 sm:%s2595]
    %vm2597 = vcmask 1045508
    %v2598 = vsel %vm2597, %v2596, %v2593
    %s2599 = scalar_lea.vmem [#allocation0], 4294967263
    %s2600 = smov 192
    %v2601 = vld [vmem:[%s2599] ss:$7 sm:%s2600]
    %vm2602 = vcmask 1047558
    %v2603 = vsel %vm2602, %v2601, %v2598
    %2604 = vrot.lane.b32.xlu0 %v2603, 4
    %v2605 = vpop.permute.xlu0 %2604
    %vm2606 = vcmask 31744
    %s2607 = scalar_lea.vmem %s1, 641
    %2608 = vst.msk [vmem:[%s2607] ss:$-542 sm:$0x3] %vm2606, %v2605
    %s2609 = scalar_lea.vmem %s1, 1825
    %2610 = vst.msk [vmem:[%s2609] ss:$-542 sm:$0xc] %vm2606, %v2605
    %s2611 = scalar_lea.vmem %s1, 4009
    %2612 = vst.msk [vmem:[%s2611] ss:$-792 sm:$0x30] %vm2606, %v2605
    %s2613 = scalar_lea.vmem %s1, 3943
    %2614 = vst.msk [vmem:[%s2613] ss:$-542 sm:$0xc0] %vm2606, %v2605
    %s2615 = scalar_lea.vmem [#allocation0], 41
    %s2616 = smov 3
    %v2617 = vld [vmem:[%s2615] ss:$7 sm:%s2616]
    %s2618 = scalar_lea.vmem [#allocation0], 43
    %s2619 = smov 12
    %v2620 = vld [vmem:[%s2618] ss:$7 sm:%s2619]
    %vm2621 = vcmask 1043458
    %v2622 = vsel %vm2621, %v2620, %v2617
    %s2623 = scalar_lea.vmem [#allocation0], 205
    %s2624 = smov 48
    %v2625 = vld [vmem:[%s2623] ss:$-33 sm:%s2624]
    %vm2626 = vcmask 1045508
    %v2627 = vsel %vm2626, %v2625, %v2622
    %s2628 = scalar_lea.vmem [#allocation0], 7
    %s2629 = smov 192
    %v2630 = vld [vmem:[%s2628] ss:$7 sm:%s2629]
    %vm2631 = vcmask 1047558
    %v2632 = vsel %vm2631, %v2630, %v2627
    %2633 = vrot.lane.b32.xlu0 %v2632, 4
    %v2634 = vpop.permute.xlu0 %2633
    %vm2635 = vcmask 31744
    %s2636 = scalar_lea.vmem %s1, 897
    %2637 = vst.msk [vmem:[%s2636] ss:$-542 sm:$0x3] %vm2635, %v2634
    %s2638 = scalar_lea.vmem %s1, 2081
    %2639 = vst.msk [vmem:[%s2638] ss:$-542 sm:$0xc] %vm2635, %v2634
    %s2640 = scalar_lea.vmem %s1, 4265
    %2641 = vst.msk [vmem:[%s2640] ss:$-792 sm:$0x30] %vm2635, %v2634
    %s2642 = scalar_lea.vmem %s1, 4199
    %2643 = vst.msk [vmem:[%s2642] ss:$-542 sm:$0xc0] %vm2635, %v2634
    %s2644 = scalar_lea.vmem [#allocation0], 81
    %s2645 = smov 3
    %v2646 = vld [vmem:[%s2644] ss:$-1 sm:%s2645]
    %s2647 = scalar_lea.vmem [#allocation0], 11
    %s2648 = smov 12
    %v2649 = vld [vmem:[%s2647] ss:$7 sm:%s2648]
    %vm2650 = vcmask 1043458
    %v2651 = vsel %vm2650, %v2649, %v2646
    %s2652 = scalar_lea.vmem [#allocation0], 37
    %s2653 = smov 48
    %v2654 = vld [vmem:[%s2652] ss:$7 sm:%s2653]
    %vm2655 = vcmask 1045508
    %v2656 = vsel %vm2655, %v2654, %v2651
    %2657 = vrot.lane.b32.xlu0 %v2656, 4
    %v2658 = vpop.permute.xlu0 %2657
    %vm2659 = vcmask 31744
    %s2660 = scalar_lea.vmem %s1, 1153
    %2661 = vst.msk [vmem:[%s2660] ss:$-592 sm:$0x3] %vm2659, %v2658
    %s2662 = scalar_lea.vmem %s1, 1875
    %2663 = vst.msk [vmem:[%s2662] ss:$-542 sm:$0xc] %vm2659, %v2658
    %s2664 = scalar_lea.vmem %s1, 3215
    %2665 = vst.msk [vmem:[%s2664] ss:$-542 sm:$0x30] %vm2659, %v2658

// kernel: structure_aware_forward.1
$region0: #{structure_aware_forward.1}
  #allocation0 [shape = 'u32[]', space=smem, size = 0x4, offset = 0x4, fixed_abs, tag = 'smem constant byte address 0x4 - core index']
  #allocation1 [shape = 'u32[144,128]{1,0:T(1,128)}', space=vmem, size = 0x12000, scoped, tag = 'internal scratch']
  #allocation2 [shape = 'bf16[8,2,225]{2,1,0:T(2,128)(2,1)}', space=vmem, size = 0x2000, scoped, tag = 'scratch operand']
  %s0 = inlined_call_operand.vmem [shape: bf16[2,512,225], index: 0, kind: input, shape index: {}]
  %s1 = inlined_call_operand.vmem [shape: bf16[8,512], index: 1, kind: input, shape index: {}]
  %s2 = inlined_call_operand.vmem [shape: f32[8,1], index: 2, kind: input, shape index: {}]
  %s3 = inlined_call_operand.vmem [shape: s8[8,225,2048], index: 3, kind: input, shape index: {}]
  %s4 = inlined_call_operand.vmem [shape: f32[1,2048], index: 4, kind: input, shape index: {}]
  %s5 = inlined_call_operand.vmem [shape: f32[1,2048], index: 5, kind: input, shape index: {}]
  %s6 = inlined_call_operand.vmem [shape: s8[2048,1536], index: 6, kind: input, shape index: {}]
  %s7 = inlined_call_operand.vmem [shape: f32[1,1536], index: 7, kind: input, shape index: {}]
  %s8 = inlined_call_operand.vmem [shape: f32[1,1536], index: 8, kind: input, shape index: {}]
  %s9 = inlined_call_operand.vmem [shape: f32[1,2,1536], index: 9, kind: output, shape index: {}]
  %s10 = sld [smem:[#allocation0]]
  $region115: #{structure_aware_forward.1} parent=0
    _
  %s12 = ssub.s32 1, %s10
  %s13 = scalar_select 0, %s12, %s10
  $region1: #{structure_aware_forward.1} parent=0
    #allocation3 [shape = 'u8[1900544]{0}', space=vmem, size = 0x1d0000, scoped, tag = 'input window, operand 3']
    loop: start=0, step=1, limit=6
    $region2: #{structure_aware_forward.1} parent=1 // loop_pre_header
      _
    $region3: #{structure_aware_forward.1} parent=1 // loop_header
      %s15 = sphi 0, %s19
      %p16 = scmp.ge.s32.totalorder %s15, 6
      %s22 = sphi 0, %s34
      %s23 = sphi 0, %s30
      %s24 = sphi 0, %s22
      %s25 = sphi 0, %s23
      %s26 = sphi 0, %s24
      %s27 = sphi 0, %s25
      %s35 = sphi 0, %s35
      %s37 = sphi 0, %s35
      %s38 = sphi 0, %s37
      %s52 = sphi 0, %s38
      %s56 = sphi 0, %s56
      %s58 = sphi 0, %s56
      %s59 = sphi 0, %s58
      %s73 = sphi 0, %s59
      %s77 = sphi 0, %s77
      %s79 = sphi 0, %s77
      %s80 = sphi 0, %s79
      %s94 = sphi 0, %s80
      %s104 = sphi 0, %s106
      %s107 = sphi 0, %s104
      %s108 = sphi 0, %s107
      %s124 = sphi 0, %s108
      %s134 = sphi 0, %s136
      %s137 = sphi 0, %s134
      %s138 = sphi 0, %s137
      %s154 = sphi 0, %s138
      %s164 = sphi 0, %s166
      %s167 = sphi 0, %s164
      %s168 = sphi 0, %s167
      %s184 = sphi 0, %s168
      %s194 = sphi 0, %s196
      %s197 = sphi 0, %s194
      %s198 = sphi 0, %s197
      %s214 = sphi 0, %s198
      %s218 = sphi 0, %s218
      %s220 = sphi 0, %s218
      %s221 = sphi 0, %s220
      %s235 = sphi 0, %s221
      %s239 = sphi 0, %s239
      %s241 = sphi 0, %s239
      %s242 = sphi 0, %s241
      %s256 = sphi 0, %s242
      %s262 = sphi 0, %s264
      %s265 = sphi 0, %s262
      %s266 = sphi 0, %s265
      %s282 = sphi 0, %s266
    $region4: #{structure_aware_forward.1} parent=1 // loop_header_branch
      %18 = sbr.rel (%p16) target = $region8
    $region5: #{structure_aware_forward.1} parent=1 // loop_body
      %s20 = ssub.s32 %s15, 1
      %s21 = ssub.s32 %s15, 2
      %s28 = sadd.s32 1, %s23
      %p29 = scmp.ge.s32.totalorder %s28, 4
      %s30 = scalar_select %p29, 0, %s28
      %s31 = sadd.s32 1, %s22
      %s32 = scalar_select %p29, %s31, %s22
      %p33 = scmp.ge.s32.totalorder %s32, 1
      %s34 = scalar_select %p33, 0, %s32
      %s36 = sadd.s32 %s35, 1
      %p39 = scmp.eq.s32.totalorder %s15, 3
      %p40 = scmp.ne.s32.totalorder %s35, %s37
      %p41 = scmp.eq.s32.totalorder %s15, 0
      %p42 = por %p40, %p41
      %p43 = scmp.ne.s32.totalorder %s35, %s37
      %p44 = scmp.eq.s32.totalorder %s20, 3
      %p45 = por %p43, %p44
      %p46 = scmp.ne.s32.totalorder %s37, %s38
      %p47 = scmp.eq.s32.totalorder %s20, 0
      %p48 = por %p46, %p47
      %p49 = scmp.ne.s32.totalorder %s37, %s38
      %p50 = scmp.eq.s32.totalorder %s21, 3
      %p51 = por %p49, %p50
      %p53 = scmp.ne.s32.totalorder %s38, %s52
      %p54 = scmp.eq.s32.totalorder %s21, 0
      %p55 = por %p53, %p54
      %s57 = sadd.s32 %s56, 1
      %p60 = scmp.eq.s32.totalorder %s15, 3
      %p61 = scmp.ne.s32.totalorder %s56, %s58
      %p62 = scmp.eq.s32.totalorder %s15, 0
      %p63 = por %p61, %p62
      %p64 = scmp.ne.s32.totalorder %s56, %s58
      %p65 = scmp.eq.s32.totalorder %s20, 3
      %p66 = por %p64, %p65
      %p67 = scmp.ne.s32.totalorder %s58, %s59
      %p68 = scmp.eq.s32.totalorder %s20, 0
      %p69 = por %p67, %p68
      %p70 = scmp.ne.s32.totalorder %s58, %s59
      %p71 = scmp.eq.s32.totalorder %s21, 3
      %p72 = por %p70, %p71
      %p74 = scmp.ne.s32.totalorder %s59, %s73
      %p75 = scmp.eq.s32.totalorder %s21, 0
      %p76 = por %p74, %p75
      %s78 = sadd.s32 %s77, 1
      %p81 = scmp.eq.s32.totalorder %s15, 3
      %p82 = scmp.ne.s32.totalorder %s77, %s79
      %p83 = scmp.eq.s32.totalorder %s15, 0
      %p84 = por %p82, %p83
      %p85 = scmp.ne.s32.totalorder %s77, %s79
      %p86 = scmp.eq.s32.totalorder %s20, 3
      %p87 = por %p85, %p86
      %p88 = scmp.ne.s32.totalorder %s79, %s80
      %p89 = scmp.eq.s32.totalorder %s20, 0
      %p90 = por %p88, %p89
      %p91 = scmp.ne.s32.totalorder %s79, %s80
      %p92 = scmp.eq.s32.totalorder %s21, 3
      %p93 = por %p91, %p92
      %p95 = scmp.ne.s32.totalorder %s80, %s94
      %p96 = scmp.eq.s32.totalorder %s21, 0
      %p97 = por %p95, %p96
      %s98 = smul.u32 %s22, 4
      %s99 = sadd.s32 %s98, %s23
      %s100 = smul.u32 %s34, 4
      %s101 = sadd.s32 %s100, %s30
      %s102 = ssub.s32 %s99, %s101
      %p103 = scmp.eq.s32.totalorder %s102, 0
      %s105 = sadd.s32 %s104, 1
      %s106 = scalar_select %p103, %s104, %s105
      %p109 = pneg %p103
      %p110 = scmp.eq.s32.totalorder %s15, 3
      %p111 = por %p109, %p110
      %p112 = scmp.ne.s32.totalorder %s104, %s107
      %p113 = scmp.eq.s32.totalorder %s15, 0
      %p114 = por %p112, %p113
      %p115 = scmp.ne.s32.totalorder %s104, %s107
      %p116 = scmp.eq.s32.totalorder %s20, 3
      %p117 = por %p115, %p116
      %p118 = scmp.ne.s32.totalorder %s107, %s108
      %p119 = scmp.eq.s32.totalorder %s20, 0
      %p120 = por %p118, %p119
      %p121 = scmp.ne.s32.totalorder %s107, %s108
      %p122 = scmp.eq.s32.totalorder %s21, 3
      %p123 = por %p121, %p122
      %p125 = scmp.ne.s32.totalorder %s108, %s124
      %p126 = scmp.eq.s32.totalorder %s21, 0
      %p127 = por %p125, %p126
      %s128 = smul.u32 %s22, 4
      %s129 = sadd.s32 %s128, %s23
      %s130 = smul.u32 %s34, 4
      %s131 = sadd.s32 %s130, %s30
      %s132 = ssub.s32 %s129, %s131
      %p133 = scmp.eq.s32.totalorder %s132, 0
      %s135 = sadd.s32 %s134, 1
      %s136 = scalar_select %p133, %s134, %s135
      %p139 = pneg %p133
      %p140 = scmp.eq.s32.totalorder %s15, 3
      %p141 = por %p139, %p140
      %p142 = scmp.ne.s32.totalorder %s134, %s137
      %p143 = scmp.eq.s32.totalorder %s15, 0
      %p144 = por %p142, %p143
      %p145 = scmp.ne.s32.totalorder %s134, %s137
      %p146 = scmp.eq.s32.totalorder %s20, 3
      %p147 = por %p145, %p146
      %p148 = scmp.ne.s32.totalorder %s137, %s138
      %p149 = scmp.eq.s32.totalorder %s20, 0
      %p150 = por %p148, %p149
      %p151 = scmp.ne.s32.totalorder %s137, %s138
      %p152 = scmp.eq.s32.totalorder %s21, 3
      %p153 = por %p151, %p152
      %p155 = scmp.ne.s32.totalorder %s138, %s154
      %p156 = scmp.eq.s32.totalorder %s21, 0
      %p157 = por %p155, %p156
      %s158 = smul.u32 %s22, 4
      %s159 = sadd.s32 %s158, %s23
      %s160 = smul.u32 %s34, 4
      %s161 = sadd.s32 %s160, %s30
      %s162 = ssub.s32 %s159, %s161
      %p163 = scmp.eq.s32.totalorder %s162, 0
      %s165 = sadd.s32 %s164, 1
      %s166 = scalar_select %p163, %s164, %s165
      %p169 = pneg %p163
      %p170 = scmp.eq.s32.totalorder %s15, 3
      %p171 = por %p169, %p170
      %p172 = scmp.ne.s32.totalorder %s164, %s167
      %p173 = scmp.eq.s32.totalorder %s15, 0
      %p174 = por %p172, %p173
      %p175 = scmp.ne.s32.totalorder %s164, %s167
      %p176 = scmp.eq.s32.totalorder %s20, 3
      %p177 = por %p175, %p176
      %p178 = scmp.ne.s32.totalorder %s167, %s168
      %p179 = scmp.eq.s32.totalorder %s20, 0
      %p180 = por %p178, %p179
      %p181 = scmp.ne.s32.totalorder %s167, %s168
      %p182 = scmp.eq.s32.totalorder %s21, 3
      %p183 = por %p181, %p182
      %p185 = scmp.ne.s32.totalorder %s168, %s184
      %p186 = scmp.eq.s32.totalorder %s21, 0
      %p187 = por %p185, %p186
      %s188 = smul.u32 %s22, 4
      %s189 = sadd.s32 %s188, %s23
      %s190 = smul.u32 %s34, 4
      %s191 = sadd.s32 %s190, %s30
      %s192 = ssub.s32 %s189, %s191
      %p193 = scmp.eq.s32.totalorder %s192, 0
      %s195 = sadd.s32 %s194, 1
      %s196 = scalar_select %p193, %s194, %s195
      %p199 = pneg %p193
      %p200 = scmp.eq.s32.totalorder %s15, 3
      %p201 = por %p199, %p200
      %p202 = scmp.ne.s32.totalorder %s194, %s197
      %p203 = scmp.eq.s32.totalorder %s15, 0
      %p204 = por %p202, %p203
      %p205 = scmp.ne.s32.totalorder %s194, %s197
      %p206 = scmp.eq.s32.totalorder %s20, 3
      %p207 = por %p205, %p206
      %p208 = scmp.ne.s32.totalorder %s197, %s198
      %p209 = scmp.eq.s32.totalorder %s20, 0
      %p210 = por %p208, %p209
      %p211 = scmp.ne.s32.totalorder %s197, %s198
      %p212 = scmp.eq.s32.totalorder %s21, 3
      %p213 = por %p211, %p212
      %p215 = scmp.ne.s32.totalorder %s198, %s214
      %p216 = scmp.eq.s32.totalorder %s21, 0
      %p217 = por %p215, %p216
      %s219 = sadd.s32 %s218, 1
      %p222 = scmp.eq.s32.totalorder %s15, 3
      %p223 = scmp.ne.s32.totalorder %s218, %s220
      %p224 = scmp.eq.s32.totalorder %s15, 0
      %p225 = por %p223, %p224
      %p226 = scmp.ne.s32.totalorder %s218, %s220
      %p227 = scmp.eq.s32.totalorder %s20, 3
      %p228 = por %p226, %p227
      %p229 = scmp.ne.s32.totalorder %s220, %s221
      %p230 = scmp.eq.s32.totalorder %s20, 0
      %p231 = por %p229, %p230
      %p232 = scmp.ne.s32.totalorder %s220, %s221
      %p233 = scmp.eq.s32.totalorder %s21, 3
      %p234 = por %p232, %p233
      %p236 = scmp.ne.s32.totalorder %s221, %s235
      %p237 = scmp.eq.s32.totalorder %s21, 0
      %p238 = por %p236, %p237
      %s240 = sadd.s32 %s239, 1
      %p243 = scmp.eq.s32.totalorder %s15, 3
      %p244 = scmp.ne.s32.totalorder %s239, %s241
      %p245 = scmp.eq.s32.totalorder %s15, 0
      %p246 = por %p244, %p245
      %p247 = scmp.ne.s32.totalorder %s239, %s241
      %p248 = scmp.eq.s32.totalorder %s20, 3
      %p249 = por %p247, %p248
      %p250 = scmp.ne.s32.totalorder %s241, %s242
      %p251 = scmp.eq.s32.totalorder %s20, 0
      %p252 = por %p250, %p251
      %p253 = scmp.ne.s32.totalorder %s241, %s242
      %p254 = scmp.eq.s32.totalorder %s21, 3
      %p255 = por %p253, %p254
      %p257 = scmp.ne.s32.totalorder %s242, %s256
      %p258 = scmp.eq.s32.totalorder %s21, 0
      %p259 = por %p257, %p258
      %s260 = ssub.s32 %s22, %s34
      %p261 = scmp.eq.s32.totalorder %s260, 0
      %s263 = sadd.s32 %s262, 1
      %s264 = scalar_select %p261, %s262, %s263
      %p267 = pneg %p261
      %p268 = scmp.eq.s32.totalorder %s15, 3
      %p269 = por %p267, %p268
      %p270 = scmp.ne.s32.totalorder %s262, %s265
      %p271 = scmp.eq.s32.totalorder %s15, 0
      %p272 = por %p270, %p271
      %p273 = scmp.ne.s32.totalorder %s262, %s265
      %p274 = scmp.eq.s32.totalorder %s20, 3
      %p275 = por %p273, %p274
      %p276 = scmp.ne.s32.totalorder %s265, %s266
      %p277 = scmp.eq.s32.totalorder %s20, 0
      %p278 = por %p276, %p277
      %p279 = scmp.ne.s32.totalorder %s265, %s266
      %p280 = scmp.eq.s32.totalorder %s21, 3
      %p281 = por %p279, %p280
      %p283 = scmp.ne.s32.totalorder %s266, %s282
      %p284 = scmp.eq.s32.totalorder %s21, 0
      %p285 = por %p283, %p284
      %p286 = scmp.le.s32.totalorder 1, %s15
      %p287 = scmp.lt.s32.totalorder %s15, 5
      %p288 = pnand %p286, %p287
      %p289 = pneg %p288
      // Predicated region
      $region9: #{structure_aware_forward.1} parent=5 // pred_check
        _
      $region10: #{structure_aware_forward.1} parent=5 // pred_check_branch
        %291 = sbr.rel (%p288) target = $region12
      $region11: #{structure_aware_forward.1} parent=5 // pred_region
        %s292 = ssub.s32 %s15, 1
        // Predicated region
        $region13: #{structure_aware_forward.1} parent=11 // pred_check
          %p293 = pneg %p48
        $region14: #{structure_aware_forward.1} parent=11 // pred_check_branch
          %295 = sbr.rel (%p293) target = $region16
        $region15: #{structure_aware_forward.1} parent=11 // pred_region
          _
        $region16: #{structure_aware_forward.1} parent=11 // pred_fallthru
          _
        // Predicated region
        $region17: #{structure_aware_forward.1} parent=11 // pred_check
          %p296 = pneg %p69
        $region18: #{structure_aware_forward.1} parent=11 // pred_check_branch
          %298 = sbr.rel (%p296) target = $region20
        $region19: #{structure_aware_forward.1} parent=11 // pred_region
          _
        $region20: #{structure_aware_forward.1} parent=11 // pred_fallthru
          _
        // Predicated region
        $region21: #{structure_aware_forward.1} parent=11 // pred_check
          %p299 = pneg %p90
        $region22: #{structure_aware_forward.1} parent=11 // pred_check_branch
          %301 = sbr.rel (%p299) target = $region24
        $region23: #{structure_aware_forward.1} parent=11 // pred_region
          _
        $region24: #{structure_aware_forward.1} parent=11 // pred_fallthru
          _
        // Predicated region
        $region25: #{structure_aware_forward.1} parent=11 // pred_check
          %p302 = pneg %p231
        $region26: #{structure_aware_forward.1} parent=11 // pred_check_branch
          %304 = sbr.rel (%p302) target = $region28
        $region27: #{structure_aware_forward.1} parent=11 // pred_region
          _
        $region28: #{structure_aware_forward.1} parent=11 // pred_fallthru
          _
        // Predicated region
        $region29: #{structure_aware_forward.1} parent=11 // pred_check
          %p305 = pneg %p252
        $region30: #{structure_aware_forward.1} parent=11 // pred_check_branch
          %307 = sbr.rel (%p305) target = $region32
        $region31: #{structure_aware_forward.1} parent=11 // pred_region
          _
        $region32: #{structure_aware_forward.1} parent=11 // pred_fallthru
          _
      $region12: #{structure_aware_forward.1} parent=5 // pred_fallthru
        _
      %p308 = scmp.lt.s32.totalorder %s15, 4
      // Predicated region
      $region33: #{structure_aware_forward.1} parent=5 // pred_check
        %p309 = pneg %p308
      $region34: #{structure_aware_forward.1} parent=5 // pred_check_branch
        %311 = sbr.rel (%p309) target = $region36
      $region35: #{structure_aware_forward.1} parent=5 // pred_region
        // Predicated region
        $region37: #{structure_aware_forward.1} parent=35 // pred_check
          %p312 = pneg %p114
        $region38: #{structure_aware_forward.1} parent=35 // pred_check_branch
          %314 = sbr.rel (%p312) target = $region40
        $region39: #{structure_aware_forward.1} parent=35 // pred_region
          %s315 = sand.u32 %s104, 1
          %s316 = sand.u32 %s104, 1
          %s317 = smul.addr %s316, 1856
          %s318 = scalar_lea.vmem [#allocation3], %s317
          %s319 = smul.u32 %s22, 4
          %s320 = sadd.s32 %s319, %s23
          %s321 = smul.u32 4, %s320
          %s322 = smul.addr %s321, 2
          %s323 = scalar_lea.vmem %s3, %s322
          // Predicated region
          $region41: #{structure_aware_forward.1} parent=39 // pred_check
            _
          $region42: #{structure_aware_forward.1} parent=39 // pred_check_branch
            %325 = sbr.rel (0) target = $region44
          $region43: #{structure_aware_forward.1} parent=39 // pred_region
            // Predicated region
            $region45: #{structure_aware_forward.1} parent=43 // pred_check
              _
            $region46: #{structure_aware_forward.1} parent=43 // pred_check_branch
              %327 = sbr.rel (0) target = $region48
            $region47: #{structure_aware_forward.1} parent=43 // pred_region
              // Predicated region
              $region60: #{structure_aware_forward.1} parent=47 // pred_check
                _
              $region61: #{structure_aware_forward.1} parent=47 // pred_check_branch
                %804 = sbr.rel (0) target = $region63
              $region62: #{structure_aware_forward.1} parent=47 // pred_region
                loop: start=0, step=1, limit=1
                $region64: #{structure_aware_forward.1} parent=62 // loop_pre_header
                  _
                $region65: #{structure_aware_forward.1} parent=62 // loop_header
                  %s806 = sphi 0, %s810
                  %p807 = scmp.ge.s32.totalorder %s806, 1
                  %s811 = sphi %s323, %s323
                  %s812 = sphi %s318, %s318
                $region66: #{structure_aware_forward.1} parent=62 // loop_header_branch
                  %809 = sbr.rel (%p807) target = $region70
                $region67: #{structure_aware_forward.1} parent=62 // loop_body
                  %v813 = vld [vmem:[%s811] sm:$0xff]
                  %814 = vst [vmem:[%s812] sm:$0xff] %v813
                  %v815 = vld [vmem:[%s811 + $0x20] sm:$0xff]
                  %816 = vst [vmem:[%s812 + $0x8] sm:$0xff] %v815
                  %v817 = vld [vmem:[%s811 + $0x40] sm:$0xff]
                  %818 = vst [vmem:[%s812 + $0x10] sm:$0xff] %v817
                  %v819 = vld [vmem:[%s811 + $0x60] sm:$0xff]
                  %820 = vst [vmem:[%s812 + $0x18] sm:$0xff] %v819
                  %v821 = vld [vmem:[%s811 + $0x80] sm:$0xff]
                  %822 = vst [vmem:[%s812 + $0x20] sm:$0xff] %v821
                  %v823 = vld [vmem:[%s811 + $0xa0] sm:$0xff]
                  %824 = vst [vmem:[%s812 + $0x28] sm:$0xff] %v823
                  %v825 = vld [vmem:[%s811 + $0xc0] sm:$0xff]
                  %826 = vst [vmem:[%s812 + $0x30] sm:$0xff] %v825
                  %v827 = vld [vmem:[%s811 + $0xe0] sm:$0xff]
                  %828 = vst [vmem:[%s812 + $0x38] sm:$0xff] %v827
                  %v829 = vld [vmem:[%s811 + $0x100] sm:$0xff]
                  %830 = vst [vmem:[%s812 + $0x40] sm:$0xff] %v829
                  %v831 = vld [vmem:[%s811 + $0x120] sm:$0xff]
                  %832 = vst [vmem:[%s812 + $0x48] sm:$0xff] %v831
                  %v833 = vld [vmem:[%s811 + $0x140] sm:$0xff]
                  %834 = vst [vmem:[%s812 + $0x50] sm:$0xff] %v833
                  %v835 = vld [vmem:[%s811 + $0x160] sm:$0xff]
                  %836 = vst [vmem:[%s812 + $0x58] sm:$0xff] %v835
                  %v837 = vld [vmem:[%s811 + $0x180] sm:$0xff]
                  %838 = vst [vmem:[%s812 + $0x60] sm:$0xff] %v837
                  %v839 = vld [vmem:[%s811 + $0x1a0] sm:$0xff]
                  %840 = vst [vmem:[%s812 + $0x68] sm:$0xff] %v839
                  %v841 = vld [vmem:[%s811 + $0x1c0] sm:$0xff]
                  %842 = vst [vmem:[%s812 + $0x70] sm:$0xff] %v841
                  %v843 = vld [vmem:[%s811 + $0x1e0] sm:$0xff]
                  %844 = vst [vmem:[%s812 + $0x78] sm:$0xff] %v843
                  %v845 = vld [vmem:[%s811 + $0x200] sm:$0xff]
                  %846 = vst [vmem:[%s812 + $0x80] sm:$0xff] %v845
                  %v847 = vld [vmem:[%s811 + $0x220] sm:$0xff]
                  %848 = vst [vmem:[%s812 + $0x88] sm:$0xff] %v847
                  %v849 = vld [vmem:[%s811 + $0x240] sm:$0xff]
                  %850 = vst [vmem:[%s812 + $0x90] sm:$0xff] %v849
                  %v851 = vld [vmem:[%s811 + $0x260] sm:$0xff]
                  %852 = vst [vmem:[%s812 + $0x98] sm:$0xff] %v851
                  %v853 = vld [vmem:[%s811 + $0x280] sm:$0xff]
                  %854 = vst [vmem:[%s812 + $0xa0] sm:$0xff] %v853
                  %v855 = vld [vmem:[%s811 + $0x2a0] sm:$0xff]
                  %856 = vst [vmem:[%s812 + $0xa8] sm:$0xff] %v855
                  %v857 = vld [vmem:[%s811 + $0x2c0] sm:$0xff]
                  %858 = vst [vmem:[%s812 + $0xb0] sm:$0xff] %v857
                  %v859 = vld [vmem:[%s811 + $0x2e0] sm:$0xff]
                  %860 = vst [vmem:[%s812 + $0xb8] sm:$0xff] %v859
                  %v861 = vld [vmem:[%s811 + $0x300] sm:$0xff]
                  %862 = vst [vmem:[%s812 + $0xc0] sm:$0xff] %v861
                  %v863 = vld [vmem:[%s811 + $0x320] sm:$0xff]
                  %864 = vst [vmem:[%s812 + $0xc8] sm:$0xff] %v863
                  %v865 = vld [vmem:[%s811 + $0x340] sm:$0xff]
                  %866 = vst [vmem:[%s812 + $0xd0] sm:$0xff] %v865
                  %v867 = vld [vmem:[%s811 + $0x360] sm:$0xff]
                  %868 = vst [vmem:[%s812 + $0xd8] sm:$0xff] %v867
                  %v869 = vld [vmem:[%s811 + $0x380] sm:$0xff]
                  %870 = vst [vmem:[%s812 + $0xe0] sm:$0xff] %v869
                  %v871 = vld [vmem:[%s811 + $0x3a0] sm:$0xff]
                  %872 = vst [vmem:[%s812 + $0xe8] sm:$0xff] %v871
                  %v873 = vld [vmem:[%s811 + $0x3c0] sm:$0xff]
                  %874 = vst [vmem:[%s812 + $0xf0] sm:$0xff] %v873
                  %v875 = vld [vmem:[%s811 + $0x3e0] sm:$0xff]
                  %876 = vst [vmem:[%s812 + $0xf8] sm:$0xff] %v875
                  %v877 = vld [vmem:[%s811 + $0x400] sm:$0xff]
                  %878 = vst [vmem:[%s812 + $0x100] sm:$0xff] %v877
                  %v879 = vld [vmem:[%s811 + $0x420] sm:$0xff]
                  %880 = vst [vmem:[%s812 + $0x108] sm:$0xff] %v879
                  %v881 = vld [vmem:[%s811 + $0x440] sm:$0xff]
                  %882 = vst [vmem:[%s812 + $0x110] sm:$0xff] %v881
                  %v883 = vld [vmem:[%s811 + $0x460] sm:$0xff]
                  %884 = vst [vmem:[%s812 + $0x118] sm:$0xff] %v883
                  %v885 = vld [vmem:[%s811 + $0x480] sm:$0xff]
                  %886 = vst [vmem:[%s812 + $0x120] sm:$0xff] %v885
                  %v887 = vld [vmem:[%s811 + $0x4a0] sm:$0xff]
                  %888 = vst [vmem:[%s812 + $0x128] sm:$0xff] %v887
                  %v889 = vld [vmem:[%s811 + $0x4c0] sm:$0xff]
                  %890 = vst [vmem:[%s812 + $0x130] sm:$0xff] %v889
                  %v891 = vld [vmem:[%s811 + $0x4e0] sm:$0xff]
                  %892 = vst [vmem:[%s812 + $0x138] sm:$0xff] %v891
                  %v893 = vld [vmem:[%s811 + $0x500] sm:$0xff]
                  %894 = vst [vmem:[%s812 + $0x140] sm:$0xff] %v893
                  %v895 = vld [vmem:[%s811 + $0x520] sm:$0xff]
                  %896 = vst [vmem:[%s812 + $0x148] sm:$0xff] %v895
                  %v897 = vld [vmem:[%s811 + $0x540] sm:$0xff]
                  %898 = vst [vmem:[%s812 + $0x150] sm:$0xff] %v897
                  %v899 = vld [vmem:[%s811 + $0x560] sm:$0xff]
                  %900 = vst [vmem:[%s812 + $0x158] sm:$0xff] %v899
                  %v901 = vld [vmem:[%s811 + $0x580] sm:$0xff]
                  %902 = vst [vmem:[%s812 + $0x160] sm:$0xff] %v901
                  %v903 = vld [vmem:[%s811 + $0x5a0] sm:$0xff]
                  %904 = vst [vmem:[%s812 + $0x168] sm:$0xff] %v903
                  %v905 = vld [vmem:[%s811 + $0x5c0] sm:$0xff]
                  %906 = vst [vmem:[%s812 + $0x170] sm:$0xff] %v905
                  %v907 = vld [vmem:[%s811 + $0x5e0] sm:$0xff]
                  %908 = vst [vmem:[%s812 + $0x178] sm:$0xff] %v907
                  %v909 = vld [vmem:[%s811 + $0x600] sm:$0xff]
                  %910 = vst [vmem:[%s812 + $0x180] sm:$0xff] %v909
                  %v911 = vld [vmem:[%s811 + $0x620] sm:$0xff]
                  %912 = vst [vmem:[%s812 + $0x188] sm:$0xff] %v911
                  %v913 = vld [vmem:[%s811 + $0x640] sm:$0xff]
                  %914 = vst [vmem:[%s812 + $0x190] sm:$0xff] %v913
                  %v915 = vld [vmem:[%s811 + $0x660] sm:$0xff]
                  %916 = vst [vmem:[%s812 + $0x198] sm:$0xff] %v915
                  %v917 = vld [vmem:[%s811 + $0x680] sm:$0xff]
                  %918 = vst [vmem:[%s812 + $0x1a0] sm:$0xff] %v917
                  %v919 = vld [vmem:[%s811 + $0x6a0] sm:$0xff]
                  %920 = vst [vmem:[%s812 + $0x1a8] sm:$0xff] %v919
                  %v921 = vld [vmem:[%s811 + $0x6c0] sm:$0xff]
                  %922 = vst [vmem:[%s812 + $0x1b0] sm:$0xff] %v921
                  %v923 = vld [vmem:[%s811 + $0x6e0] sm:$0xff]
                  %924 = vst [vmem:[%s812 + $0x1b8] sm:$0xff] %v923
                  %v925 = vld [vmem:[%s811 + $0x700] sm:$0xff]
                  %926 = vst [vmem:[%s812 + $0x1c0] sm:$0xff] %v925
                  %v927 = vld [vmem:[%s811 + $0x720] sm:$0xff]
                  %928 = vst [vmem:[%s812 + $0x1c8] sm:$0xff] %v927
                  %v929 = vld [vmem:[%s811 + $0x740] sm:$0xff]
                  %930 = vst [vmem:[%s812 + $0x1d0] sm:$0xff] %v929
                  %v931 = vld [vmem:[%s811 + $0x760] sm:$0xff]
                  %932 = vst [vmem:[%s812 + $0x1d8] sm:$0xff] %v931
                  %v933 = vld [vmem:[%s811 + $0x780] sm:$0xff]
                  %934 = vst [vmem:[%s812 + $0x1e0] sm:$0xff] %v933
                  %v935 = vld [vmem:[%s811 + $0x7a0] sm:$0xff]
                  %936 = vst [vmem:[%s812 + $0x1e8] sm:$0xff] %v935
                  %v937 = vld [vmem:[%s811 + $0x7c0] sm:$0xff]
                  %938 = vst [vmem:[%s812 + $0x1f0] sm:$0xff] %v937
                  %v939 = vld [vmem:[%s811 + $0x7e0] sm:$0xff]
                  %940 = vst [vmem:[%s812 + $0x1f8] sm:$0xff] %v939
                  %v941 = vld [vmem:[%s811 + $0x800] sm:$0xff]
                  %942 = vst [vmem:[%s812 + $0x200] sm:$0xff] %v941
                  %v943 = vld [vmem:[%s811 + $0x820] sm:$0xff]
                  %944 = vst [vmem:[%s812 + $0x208] sm:$0xff] %v943
                  %v945 = vld [vmem:[%s811 + $0x840] sm:$0xff]
                  %946 = vst [vmem:[%s812 + $0x210] sm:$0xff] %v945
                  %v947 = vld [vmem:[%s811 + $0x860] sm:$0xff]
                  %948 = vst [vmem:[%s812 + $0x218] sm:$0xff] %v947
                  %v949 = vld [vmem:[%s811 + $0x880] sm:$0xff]
                  %950 = vst [vmem:[%s812 + $0x220] sm:$0xff] %v949
                  %v951 = vld [vmem:[%s811 + $0x8a0] sm:$0xff]
                  %952 = vst [vmem:[%s812 + $0x228] sm:$0xff] %v951
                  %v953 = vld [vmem:[%s811 + $0x8c0] sm:$0xff]
                  %954 = vst [vmem:[%s812 + $0x230] sm:$0xff] %v953
                  %v955 = vld [vmem:[%s811 + $0x8e0] sm:$0xff]
                  %956 = vst [vmem:[%s812 + $0x238] sm:$0xff] %v955
                  %v957 = vld [vmem:[%s811 + $0x900] sm:$0xff]
                  %958 = vst [vmem:[%s812 + $0x240] sm:$0xff] %v957
                  %v959 = vld [vmem:[%s811 + $0x920] sm:$0xff]
                  %960 = vst [vmem:[%s812 + $0x248] sm:$0xff] %v959
                  %v961 = vld [vmem:[%s811 + $0x940] sm:$0xff]
                  %962 = vst [vmem:[%s812 + $0x250] sm:$0xff] %v961
                  %v963 = vld [vmem:[%s811 + $0x960] sm:$0xff]
                  %964 = vst [vmem:[%s812 + $0x258] sm:$0xff] %v963
                  %v965 = vld [vmem:[%s811 + $0x980] sm:$0xff]
                  %966 = vst [vmem:[%s812 + $0x260] sm:$0xff] %v965
                  %v967 = vld [vmem:[%s811 + $0x9a0] sm:$0xff]
                  %968 = vst [vmem:[%s812 + $0x268] sm:$0xff] %v967
                  %v969 = vld [vmem:[%s811 + $0x9c0] sm:$0xff]
                  %970 = vst [vmem:[%s812 + $0x270] sm:$0xff] %v969
                  %v971 = vld [vmem:[%s811 + $0x9e0] sm:$0xff]
                  %972 = vst [vmem:[%s812 + $0x278] sm:$0xff] %v971
                  %v973 = vld [vmem:[%s811 + $0xa00] sm:$0xff]
                  %974 = vst [vmem:[%s812 + $0x280] sm:$0xff] %v973
                  %v975 = vld [vmem:[%s811 + $0xa20] sm:$0xff]
                  %976 = vst [vmem:[%s812 + $0x288] sm:$0xff] %v975
                  %v977 = vld [vmem:[%s811 + $0xa40] sm:$0xff]
                  %978 = vst [vmem:[%s812 + $0x290] sm:$0xff] %v977
                  %v979 = vld [vmem:[%s811 + $0xa60] sm:$0xff]
                  %980 = vst [vmem:[%s812 + $0x298] sm:$0xff] %v979
                  %v981 = vld [vmem:[%s811 + $0xa80] sm:$0xff]
                  %982 = vst [vmem:[%s812 + $0x2a0] sm:$0xff] %v981
                  %v983 = vld [vmem:[%s811 + $0xaa0] sm:$0xff]
                  %984 = vst [vmem:[%s812 + $0x2a8] sm:$0xff] %v983
                  %v985 = vld [vmem:[%s811 + $0xac0] sm:$0xff]
                  %986 = vst [vmem:[%s812 + $0x2b0] sm:$0xff] %v985
                  %v987 = vld [vmem:[%s811 + $0xae0] sm:$0xff]
                  %988 = vst [vmem:[%s812 + $0x2b8] sm:$0xff] %v987
                  %v989 = vld [vmem:[%s811 + $0xb00] sm:$0xff]
                  %990 = vst [vmem:[%s812 + $0x2c0] sm:$0xff] %v989
                  %v991 = vld [vmem:[%s811 + $0xb20] sm:$0xff]
                  %992 = vst [vmem:[%s812 + $0x2c8] sm:$0xff] %v991
                  %v993 = vld [vmem:[%s811 + $0xb40] sm:$0xff]
                  %994 = vst [vmem:[%s812 + $0x2d0] sm:$0xff] %v993
                  %v995 = vld [vmem:[%s811 + $0xb60] sm:$0xff]
                  %996 = vst [vmem:[%s812 + $0x2d8] sm:$0xff] %v995
                  %v997 = vld [vmem:[%s811 + $0xb80] sm:$0xff]
                  %998 = vst [vmem:[%s812 + $0x2e0] sm:$0xff] %v997
                  %v999 = vld [vmem:[%s811 + $0xba0] sm:$0xff]
                  %1000 = vst [vmem:[%s812 + $0x2e8] sm:$0xff] %v999
                  %v1001 = vld [vmem:[%s811 + $0xbc0] sm:$0xff]
                  %1002 = vst [vmem:[%s812 + $0x2f0] sm:$0xff] %v1001
                  %v1003 = vld [vmem:[%s811 + $0xbe0] sm:$0xff]
                  %1004 = vst [vmem:[%s812 + $0x2f8] sm:$0xff] %v1003
                  %v1005 = vld [vmem:[%s811 + $0xc00] sm:$0xff]
                  %1006 = vst [vmem:[%s812 + $0x300] sm:$0xff] %v1005
                  %v1007 = vld [vmem:[%s811 + $0xc20] sm:$0xff]
                  %1008 = vst [vmem:[%s812 + $0x308] sm:$0xff] %v1007
                  %v1009 = vld [vmem:[%s811 + $0xc40] sm:$0xff]
                  %1010 = vst [vmem:[%s812 + $0x310] sm:$0xff] %v1009
                  %v1011 = vld [vmem:[%s811 + $0xc60] sm:$0xff]
                  %1012 = vst [vmem:[%s812 + $0x318] sm:$0xff] %v1011
                  %v1013 = vld [vmem:[%s811 + $0xc80] sm:$0xff]
                  %1014 = vst [vmem:[%s812 + $0x320] sm:$0xff] %v1013
                  %v1015 = vld [vmem:[%s811 + $0xca0] sm:$0xff]
                  %1016 = vst [vmem:[%s812 + $0x328] sm:$0xff] %v1015
                  %v1017 = vld [vmem:[%s811 + $0xcc0] sm:$0xff]
                  %1018 = vst [vmem:[%s812 + $0x330] sm:$0xff] %v1017
                  %v1019 = vld [vmem:[%s811 + $0xce0] sm:$0xff]
                  %1020 = vst [vmem:[%s812 + $0x338] sm:$0xff] %v1019
                  %v1021 = vld [vmem:[%s811 + $0xd00] sm:$0xff]
                  %1022 = vst [vmem:[%s812 + $0x340] sm:$0xff] %v1021
                  %v1023 = vld [vmem:[%s811 + $0xd20] sm:$0xff]
                  %1024 = vst [vmem:[%s812 + $0x348] sm:$0xff] %v1023
                  %v1025 = vld [vmem:[%s811 + $0xd40] sm:$0xff]
                  %1026 = vst [vmem:[%s812 + $0x350] sm:$0xff] %v1025
                  %v1027 = vld [vmem:[%s811 + $0xd60] sm:$0xff]
                  %1028 = vst [vmem:[%s812 + $0x358] sm:$0xff] %v1027
                  %v1029 = vld [vmem:[%s811 + $0xd80] sm:$0xff]
                  %1030 = vst [vmem:[%s812 + $0x360] sm:$0xff] %v1029
                  %v1031 = vld [vmem:[%s811 + $0xda0] sm:$0xff]
                  %1032 = vst [vmem:[%s812 + $0x368] sm:$0xff] %v1031
                  %v1033 = vld [vmem:[%s811 + $0xdc0] sm:$0xff]
                  %1034 = vst [vmem:[%s812 + $0x370] sm:$0xff] %v1033
                  %v1035 = vld [vmem:[%s811 + $0xde0] sm:$0xff]
                  %1036 = vst [vmem:[%s812 + $0x378] sm:$0xff] %v1035
                  %v1037 = vld [vmem:[%s811 + $0xe00] sm:$0xff]
                  %1038 = vst [vmem:[%s812 + $0x380] sm:$0xff] %v1037
                  %v1039 = vld [vmem:[%s811 + $0xe20] sm:$0xff]
                  %1040 = vst [vmem:[%s812 + $0x388] sm:$0xff] %v1039
                  %v1041 = vld [vmem:[%s811 + $0xe40] sm:$0xff]
                  %1042 = vst [vmem:[%s812 + $0x390] sm:$0xff] %v1041
                  %v1043 = vld [vmem:[%s811 + $0xe60] sm:$0xff]
                  %1044 = vst [vmem:[%s812 + $0x398] sm:$0xff] %v1043
                  %v1045 = vld [vmem:[%s811 + $0xe80] sm:$0xff]
                  %1046 = vst [vmem:[%s812 + $0x3a0] sm:$0xff] %v1045
                  %v1047 = vld [vmem:[%s811 + $0xea0] sm:$0xff]
                  %1048 = vst [vmem:[%s812 + $0x3a8] sm:$0xff] %v1047
                  %v1049 = vld [vmem:[%s811 + $0xec0] sm:$0xff]
                  %1050 = vst [vmem:[%s812 + $0x3b0] sm:$0xff] %v1049
                  %v1051 = vld [vmem:[%s811 + $0xee0] sm:$0xff]
                  %1052 = vst [vmem:[%s812 + $0x3b8] sm:$0xff] %v1051
                  %v1053 = vld [vmem:[%s811 + $0xf00] sm:$0xff]
                  %1054 = vst [vmem:[%s812 + $0x3c0] sm:$0xff] %v1053
                  %v1055 = vld [vmem:[%s811 + $0xf20] sm:$0xff]
                  %1056 = vst [vmem:[%s812 + $0x3c8] sm:$0xff] %v1055
                  %v1057 = vld [vmem:[%s811 + $0xf40] sm:$0xff]
                  %1058 = vst [vmem:[%s812 + $0x3d0] sm:$0xff] %v1057
                  %v1059 = vld [vmem:[%s811 + $0xf60] sm:$0xff]
                  %1060 = vst [vmem:[%s812 + $0x3d8] sm:$0xff] %v1059
                  %v1061 = vld [vmem:[%s811 + $0xf80] sm:$0xff]
                  %1062 = vst [vmem:[%s812 + $0x3e0] sm:$0xff] %v1061
                  %v1063 = vld [vmem:[%s811 + $0xfa0] sm:$0xff]
                  %1064 = vst [vmem:[%s812 + $0x3e8] sm:$0xff] %v1063
                  %v1065 = vld [vmem:[%s811 + $0xfc0] sm:$0xff]
                  %1066 = vst [vmem:[%s812 + $0x3f0] sm:$0xff] %v1065
                  %v1067 = vld [vmem:[%s811 + $0xfe0] sm:$0xff]
                  %1068 = vst [vmem:[%s812 + $0x3f8] sm:$0xff] %v1067
                  %v1069 = vld [vmem:[%s811 + $0x1000] sm:$0xff]
                  %1070 = vst [vmem:[%s812 + $0x400] sm:$0xff] %v1069
                  %v1071 = vld [vmem:[%s811 + $0x1020] sm:$0xff]
                  %1072 = vst [vmem:[%s812 + $0x408] sm:$0xff] %v1071
                  %v1073 = vld [vmem:[%s811 + $0x1040] sm:$0xff]
                  %1074 = vst [vmem:[%s812 + $0x410] sm:$0xff] %v1073
                  %v1075 = vld [vmem:[%s811 + $0x1060] sm:$0xff]
                  %1076 = vst [vmem:[%s812 + $0x418] sm:$0xff] %v1075
                  %v1077 = vld [vmem:[%s811 + $0x1080] sm:$0xff]
                  %1078 = vst [vmem:[%s812 + $0x420] sm:$0xff] %v1077
                  %v1079 = vld [vmem:[%s811 + $0x10a0] sm:$0xff]
                  %1080 = vst [vmem:[%s812 + $0x428] sm:$0xff] %v1079
                  %v1081 = vld [vmem:[%s811 + $0x10c0] sm:$0xff]
                  %1082 = vst [vmem:[%s812 + $0x430] sm:$0xff] %v1081
                  %v1083 = vld [vmem:[%s811 + $0x10e0] sm:$0xff]
                  %1084 = vst [vmem:[%s812 + $0x438] sm:$0xff] %v1083
                  %v1085 = vld [vmem:[%s811 + $0x1100] sm:$0xff]
                  %1086 = vst [vmem:[%s812 + $0x440] sm:$0xff] %v1085
                  %v1087 = vld [vmem:[%s811 + $0x1120] sm:$0xff]
                  %1088 = vst [vmem:[%s812 + $0x448] sm:$0xff] %v1087
                  %v1089 = vld [vmem:[%s811 + $0x1140] sm:$0xff]
                  %1090 = vst [vmem:[%s812 + $0x450] sm:$0xff] %v1089
                  %v1091 = vld [vmem:[%s811 + $0x1160] sm:$0xff]
                  %1092 = vst [vmem:[%s812 + $0x458] sm:$0xff] %v1091
                  %v1093 = vld [vmem:[%s811 + $0x1180] sm:$0xff]
                  %1094 = vst [vmem:[%s812 + $0x460] sm:$0xff] %v1093
                  %v1095 = vld [vmem:[%s811 + $0x11a0] sm:$0xff]
                  %1096 = vst [vmem:[%s812 + $0x468] sm:$0xff] %v1095
                  %v1097 = vld [vmem:[%s811 + $0x11c0] sm:$0xff]
                  %1098 = vst [vmem:[%s812 + $0x470] sm:$0xff] %v1097
                  %v1099 = vld [vmem:[%s811 + $0x11e0] sm:$0xff]
                  %1100 = vst [vmem:[%s812 + $0x478] sm:$0xff] %v1099
                  %v1101 = vld [vmem:[%s811 + $0x1200] sm:$0xff]
                  %1102 = vst [vmem:[%s812 + $0x480] sm:$0xff] %v1101
                  %v1103 = vld [vmem:[%s811 + $0x1220] sm:$0xff]
                  %1104 = vst [vmem:[%s812 + $0x488] sm:$0xff] %v1103
                  %v1105 = vld [vmem:[%s811 + $0x1240] sm:$0xff]
                  %1106 = vst [vmem:[%s812 + $0x490] sm:$0xff] %v1105
                  %v1107 = vld [vmem:[%s811 + $0x1260] sm:$0xff]
                  %1108 = vst [vmem:[%s812 + $0x498] sm:$0xff] %v1107
                  %v1109 = vld [vmem:[%s811 + $0x1280] sm:$0xff]
                  %1110 = vst [vmem:[%s812 + $0x4a0] sm:$0xff] %v1109
                  %v1111 = vld [vmem:[%s811 + $0x12a0] sm:$0xff]
                  %1112 = vst [vmem:[%s812 + $0x4a8] sm:$0xff] %v1111
                  %v1113 = vld [vmem:[%s811 + $0x12c0] sm:$0xff]
                  %1114 = vst [vmem:[%s812 + $0x4b0] sm:$0xff] %v1113
                  %v1115 = vld [vmem:[%s811 + $0x12e0] sm:$0xff]
                  %1116 = vst [vmem:[%s812 + $0x4b8] sm:$0xff] %v1115
                  %v1117 = vld [vmem:[%s811 + $0x1300] sm:$0xff]
                  %1118 = vst [vmem:[%s812 + $0x4c0] sm:$0xff] %v1117
                  %v1119 = vld [vmem:[%s811 + $0x1320] sm:$0xff]
                  %1120 = vst [vmem:[%s812 + $0x4c8] sm:$0xff] %v1119
                  %v1121 = vld [vmem:[%s811 + $0x1340] sm:$0xff]
                  %1122 = vst [vmem:[%s812 + $0x4d0] sm:$0xff] %v1121
                  %v1123 = vld [vmem:[%s811 + $0x1360] sm:$0xff]
                  %1124 = vst [vmem:[%s812 + $0x4d8] sm:$0xff] %v1123
                  %v1125 = vld [vmem:[%s811 + $0x1380] sm:$0xff]
                  %1126 = vst [vmem:[%s812 + $0x4e0] sm:$0xff] %v1125
                  %v1127 = vld [vmem:[%s811 + $0x13a0] sm:$0xff]
                  %1128 = vst [vmem:[%s812 + $0x4e8] sm:$0xff] %v1127
                  %v1129 = vld [vmem:[%s811 + $0x13c0] sm:$0xff]
                  %1130 = vst [vmem:[%s812 + $0x4f0] sm:$0xff] %v1129
                  %v1131 = vld [vmem:[%s811 + $0x13e0] sm:$0xff]
                  %1132 = vst [vmem:[%s812 + $0x4f8] sm:$0xff] %v1131
                  %v1133 = vld [vmem:[%s811 + $0x1400] sm:$0xff]
                  %1134 = vst [vmem:[%s812 + $0x500] sm:$0xff] %v1133
                  %v1135 = vld [vmem:[%s811 + $0x1420] sm:$0xff]
                  %1136 = vst [vmem:[%s812 + $0x508] sm:$0xff] %v1135
                  %v1137 = vld [vmem:[%s811 + $0x1440] sm:$0xff]
                  %1138 = vst [vmem:[%s812 + $0x510] sm:$0xff] %v1137
                  %v1139 = vld [vmem:[%s811 + $0x1460] sm:$0xff]
                  %1140 = vst [vmem:[%s812 + $0x518] sm:$0xff] %v1139
                  %v1141 = vld [vmem:[%s811 + $0x1480] sm:$0xff]
                  %1142 = vst [vmem:[%s812 + $0x520] sm:$0xff] %v1141
                  %v1143 = vld [vmem:[%s811 + $0x14a0] sm:$0xff]
                  %1144 = vst [vmem:[%s812 + $0x528] sm:$0xff] %v1143
                  %v1145 = vld [vmem:[%s811 + $0x14c0] sm:$0xff]
                  %1146 = vst [vmem:[%s812 + $0x530] sm:$0xff] %v1145
                  %v1147 = vld [vmem:[%s811 + $0x14e0] sm:$0xff]
                  %1148 = vst [vmem:[%s812 + $0x538] sm:$0xff] %v1147
                  %v1149 = vld [vmem:[%s811 + $0x1500] sm:$0xff]
                  %1150 = vst [vmem:[%s812 + $0x540] sm:$0xff] %v1149
                  %v1151 = vld [vmem:[%s811 + $0x1520] sm:$0xff]
                  %1152 = vst [vmem:[%s812 + $0x548] sm:$0xff] %v1151
                  %v1153 = vld [vmem:[%s811 + $0x1540] sm:$0xff]
                  %1154 = vst [vmem:[%s812 + $0x550] sm:$0xff] %v1153
                  %v1155 = vld [vmem:[%s811 + $0x1560] sm:$0xff]
                  %1156 = vst [vmem:[%s812 + $0x558] sm:$0xff] %v1155
                  %v1157 = vld [vmem:[%s811 + $0x1580] sm:$0xff]
                  %1158 = vst [vmem:[%s812 + $0x560] sm:$0xff] %v1157
                  %v1159 = vld [vmem:[%s811 + $0x15a0] sm:$0xff]
                  %1160 = vst [vmem:[%s812 + $0x568] sm:$0xff] %v1159
                  %v1161 = vld [vmem:[%s811 + $0x15c0] sm:$0xff]
                  %1162 = vst [vmem:[%s812 + $0x570] sm:$0xff] %v1161
                  %v1163 = vld [vmem:[%s811 + $0x15e0] sm:$0xff]
                  %1164 = vst [vmem:[%s812 + $0x578] sm:$0xff] %v1163
                  %v1165 = vld [vmem:[%s811 + $0x1600] sm:$0xff]
                  %1166 = vst [vmem:[%s812 + $0x580] sm:$0xff] %v1165
                  %v1167 = vld [vmem:[%s811 + $0x1620] sm:$0xff]
                  %1168 = vst [vmem:[%s812 + $0x588] sm:$0xff] %v1167
                  %v1169 = vld [vmem:[%s811 + $0x1640] sm:$0xff]
                  %1170 = vst [vmem:[%s812 + $0x590] sm:$0xff] %v1169
                  %v1171 = vld [vmem:[%s811 + $0x1660] sm:$0xff]
                  %1172 = vst [vmem:[%s812 + $0x598] sm:$0xff] %v1171
                  %v1173 = vld [vmem:[%s811 + $0x1680] sm:$0xff]
                  %1174 = vst [vmem:[%s812 + $0x5a0] sm:$0xff] %v1173
                  %v1175 = vld [vmem:[%s811 + $0x16a0] sm:$0xff]
                  %1176 = vst [vmem:[%s812 + $0x5a8] sm:$0xff] %v1175
                  %v1177 = vld [vmem:[%s811 + $0x16c0] sm:$0xff]
                  %1178 = vst [vmem:[%s812 + $0x5b0] sm:$0xff] %v1177
                  %v1179 = vld [vmem:[%s811 + $0x16e0] sm:$0xff]
                  %1180 = vst [vmem:[%s812 + $0x5b8] sm:$0xff] %v1179
                  %v1181 = vld [vmem:[%s811 + $0x1700] sm:$0xff]
                  %1182 = vst [vmem:[%s812 + $0x5c0] sm:$0xff] %v1181
                  %v1183 = vld [vmem:[%s811 + $0x1720] sm:$0xff]
                  %1184 = vst [vmem:[%s812 + $0x5c8] sm:$0xff] %v1183
                  %v1185 = vld [vmem:[%s811 + $0x1740] sm:$0xff]
                  %1186 = vst [vmem:[%s812 + $0x5d0] sm:$0xff] %v1185
                  %v1187 = vld [vmem:[%s811 + $0x1760] sm:$0xff]
                  %1188 = vst [vmem:[%s812 + $0x5d8] sm:$0xff] %v1187
                  %v1189 = vld [vmem:[%s811 + $0x1780] sm:$0xff]
                  %1190 = vst [vmem:[%s812 + $0x5e0] sm:$0xff] %v1189
                  %v1191 = vld [vmem:[%s811 + $0x17a0] sm:$0xff]
                  %1192 = vst [vmem:[%s812 + $0x5e8] sm:$0xff] %v1191
                  %v1193 = vld [vmem:[%s811 + $0x17c0] sm:$0xff]
                  %1194 = vst [vmem:[%s812 + $0x5f0] sm:$0xff] %v1193
                  %v1195 = vld [vmem:[%s811 + $0x17e0] sm:$0xff]
                  %1196 = vst [vmem:[%s812 + $0x5f8] sm:$0xff] %v1195
                  %v1197 = vld [vmem:[%s811 + $0x1800] sm:$0xff]
                  %1198 = vst [vmem:[%s812 + $0x600] sm:$0xff] %v1197
                  %v1199 = vld [vmem:[%s811 + $0x1820] sm:$0xff]
                  %1200 = vst [vmem:[%s812 + $0x608] sm:$0xff] %v1199
                  %v1201 = vld [vmem:[%s811 + $0x1840] sm:$0xff]
                  %1202 = vst [vmem:[%s812 + $0x610] sm:$0xff] %v1201
                  %v1203 = vld [vmem:[%s811 + $0x1860] sm:$0xff]
                  %1204 = vst [vmem:[%s812 + $0x618] sm:$0xff] %v1203
                  %v1205 = vld [vmem:[%s811 + $0x1880] sm:$0xff]
                  %1206 = vst [vmem:[%s812 + $0x620] sm:$0xff] %v1205
                  %v1207 = vld [vmem:[%s811 + $0x18a0] sm:$0xff]
                  %1208 = vst [vmem:[%s812 + $0x628] sm:$0xff] %v1207
                  %v1209 = vld [vmem:[%s811 + $0x18c0] sm:$0xff]
                  %1210 = vst [vmem:[%s812 + $0x630] sm:$0xff] %v1209
                  %v1211 = vld [vmem:[%s811 + $0x18e0] sm:$0xff]
                  %1212 = vst [vmem:[%s812 + $0x638] sm:$0xff] %v1211
                  %v1213 = vld [vmem:[%s811 + $0x1900] sm:$0xff]
                  %1214 = vst [vmem:[%s812 + $0x640] sm:$0xff] %v1213
                  %v1215 = vld [vmem:[%s811 + $0x1920] sm:$0xff]
                  %1216 = vst [vmem:[%s812 + $0x648] sm:$0xff] %v1215
                  %v1217 = vld [vmem:[%s811 + $0x1940] sm:$0xff]
                  %1218 = vst [vmem:[%s812 + $0x650] sm:$0xff] %v1217
                  %v1219 = vld [vmem:[%s811 + $0x1960] sm:$0xff]
                  %1220 = vst [vmem:[%s812 + $0x658] sm:$0xff] %v1219
                  %v1221 = vld [vmem:[%s811 + $0x1980] sm:$0xff]
                  %1222 = vst [vmem:[%s812 + $0x660] sm:$0xff] %v1221
                  %v1223 = vld [vmem:[%s811 + $0x19a0] sm:$0xff]
                  %1224 = vst [vmem:[%s812 + $0x668] sm:$0xff] %v1223
                  %v1225 = vld [vmem:[%s811 + $0x19c0] sm:$0xff]
                  %1226 = vst [vmem:[%s812 + $0x670] sm:$0xff] %v1225
                  %v1227 = vld [vmem:[%s811 + $0x19e0] sm:$0xff]
                  %1228 = vst [vmem:[%s812 + $0x678] sm:$0xff] %v1227
                  %v1229 = vld [vmem:[%s811 + $0x1a00] sm:$0xff]
                  %1230 = vst [vmem:[%s812 + $0x680] sm:$0xff] %v1229
                  %v1231 = vld [vmem:[%s811 + $0x1a20] sm:$0xff]
                  %1232 = vst [vmem:[%s812 + $0x688] sm:$0xff] %v1231
                  %v1233 = vld [vmem:[%s811 + $0x1a40] sm:$0xff]
                  %1234 = vst [vmem:[%s812 + $0x690] sm:$0xff] %v1233
                  %v1235 = vld [vmem:[%s811 + $0x1a60] sm:$0xff]
                  %1236 = vst [vmem:[%s812 + $0x698] sm:$0xff] %v1235
                  %v1237 = vld [vmem:[%s811 + $0x1a80] sm:$0xff]
                  %1238 = vst [vmem:[%s812 + $0x6a0] sm:$0xff] %v1237
                  %v1239 = vld [vmem:[%s811 + $0x1aa0] sm:$0xff]
                  %1240 = vst [vmem:[%s812 + $0x6a8] sm:$0xff] %v1239
                  %v1241 = vld [vmem:[%s811 + $0x1ac0] sm:$0xff]
                  %1242 = vst [vmem:[%s812 + $0x6b0] sm:$0xff] %v1241
                  %v1243 = vld [vmem:[%s811 + $0x1ae0] sm:$0xff]
                  %1244 = vst [vmem:[%s812 + $0x6b8] sm:$0xff] %v1243
                  %v1245 = vld [vmem:[%s811 + $0x1b00] sm:$0xff]
                  %1246 = vst [vmem:[%s812 + $0x6c0] sm:$0xff] %v1245
                  %v1247 = vld [vmem:[%s811 + $0x1b20] sm:$0xff]
                  %1248 = vst [vmem:[%s812 + $0x6c8] sm:$0xff] %v1247
                  %v1249 = vld [vmem:[%s811 + $0x1b40] sm:$0xff]
                  %1250 = vst [vmem:[%s812 + $0x6d0] sm:$0xff] %v1249
                  %v1251 = vld [vmem:[%s811 + $0x1b60] sm:$0xff]
                  %1252 = vst [vmem:[%s812 + $0x6d8] sm:$0xff] %v1251
                  %v1253 = vld [vmem:[%s811 + $0x1b80] sm:$0xff]
                  %1254 = vst [vmem:[%s812 + $0x6e0] sm:$0xff] %v1253
                  %v1255 = vld [vmem:[%s811 + $0x1ba0] sm:$0xff]
                  %1256 = vst [vmem:[%s812 + $0x6e8] sm:$0xff] %v1255
                  %v1257 = vld [vmem:[%s811 + $0x1bc0] sm:$0xff]
                  %1258 = vst [vmem:[%s812 + $0x6f0] sm:$0xff] %v1257
                  %v1259 = vld [vmem:[%s811 + $0x1be0] sm:$0xff]
                  %1260 = vst [vmem:[%s812 + $0x6f8] sm:$0xff] %v1259
                  %v1261 = vld [vmem:[%s811 + $0x1c00] sm:$0xff]
                  %1262 = vst [vmem:[%s812 + $0x700] sm:$0xff] %v1261
                  %v1263 = vld [vmem:[%s811 + $0x1c20] sm:$0xff]
                  %1264 = vst [vmem:[%s812 + $0x708] sm:$0xff] %v1263
                  %v1265 = vld [vmem:[%s811 + $0x1c40] sm:$0xff]
                  %1266 = vst [vmem:[%s812 + $0x710] sm:$0xff] %v1265
                  %v1267 = vld [vmem:[%s811 + $0x1c60] sm:$0xff]
                  %1268 = vst [vmem:[%s812 + $0x718] sm:$0xff] %v1267
                  %v1269 = vld [vmem:[%s811 + $0x1c80] sm:$0xff]
                  %1270 = vst [vmem:[%s812 + $0x720] sm:$0xff] %v1269
                  %v1271 = vld [vmem:[%s811 + $0x1ca0] sm:$0xff]
                  %1272 = vst [vmem:[%s812 + $0x728] sm:$0xff] %v1271
                  %v1273 = vld [vmem:[%s811 + $0x1cc0] sm:$0xff]
                  %1274 = vst [vmem:[%s812 + $0x730] sm:$0xff] %v1273
                  %v1275 = vld [vmem:[%s811 + $0x1ce0] sm:$0xff]
                  %1276 = vst [vmem:[%s812 + $0x738] sm:$0xff] %v1275
                $region68: #{structure_aware_forward.1} parent=62 // loop_footer
                  %s810 = sadd.s32 1, %s806
                $region69: #{structure_aware_forward.1} parent=62 // loop_footer_branch
                  %805 = sbr.rel target = $region65
                $region70: #{structure_aware_forward.1} parent=62 // loop_exit
                  _
              $region63: #{structure_aware_forward.1} parent=47 // pred_fallthru
                _
              // Predicated region
              $region71: #{structure_aware_forward.1} parent=47 // pred_check
                _
              $region72: #{structure_aware_forward.1} parent=47 // pred_check_branch
                %1278 = sbr.rel target = $region74
              $region73: #{structure_aware_forward.1} parent=47 // pred_region
                _
              $region74: #{structure_aware_forward.1} parent=47 // pred_fallthru
                _
            $region48: #{structure_aware_forward.1} parent=43 // pred_fallthru
              _
            // Predicated region
            $region49: #{structure_aware_forward.1} parent=43 // pred_check
              _
            $region50: #{structure_aware_forward.1} parent=43 // pred_check_branch
              %329 = sbr.rel target = $region52
            $region51: #{structure_aware_forward.1} parent=43 // pred_region
              loop: start=0, step=1, limit=1
              $region53: #{structure_aware_forward.1} parent=51 // loop_pre_header
                _
              $region54: #{structure_aware_forward.1} parent=51 // loop_header
                %s332 = sphi 0, %s336
                %p333 = scmp.ge.s32.totalorder %s332, 1
                %s337 = sphi %s323, %s323
                %s338 = sphi %s318, %s318
              $region55: #{structure_aware_forward.1} parent=51 // loop_header_branch
                %335 = sbr.rel (%p333) target = $region59
              $region56: #{structure_aware_forward.1} parent=51 // loop_body
                %v339 = vld [vmem:[%s337] sm:$0xff]
                %340 = vst [vmem:[%s338] sm:$0xff] %v339
                %v341 = vld [vmem:[%s337 + $0x20] sm:$0xff]
                %342 = vst [vmem:[%s338 + $0x8] sm:$0xff] %v341
                %v343 = vld [vmem:[%s337 + $0x40] sm:$0xff]
                %344 = vst [vmem:[%s338 + $0x10] sm:$0xff] %v343
                %v345 = vld [vmem:[%s337 + $0x60] sm:$0xff]
                %346 = vst [vmem:[%s338 + $0x18] sm:$0xff] %v345
                %v347 = vld [vmem:[%s337 + $0x80] sm:$0xff]
                %348 = vst [vmem:[%s338 + $0x20] sm:$0xff] %v347
                %v349 = vld [vmem:[%s337 + $0xa0] sm:$0xff]
                %350 = vst [vmem:[%s338 + $0x28] sm:$0xff] %v349
                %v351 = vld [vmem:[%s337 + $0xc0] sm:$0xff]
                %352 = vst [vmem:[%s338 + $0x30] sm:$0xff] %v351
                %v353 = vld [vmem:[%s337 + $0xe0] sm:$0xff]
                %354 = vst [vmem:[%s338 + $0x38] sm:$0xff] %v353
                %v355 = vld [vmem:[%s337 + $0x100] sm:$0xff]
                %356 = vst [vmem:[%s338 + $0x40] sm:$0xff] %v355
                %v357 = vld [vmem:[%s337 + $0x120] sm:$0xff]
                %358 = vst [vmem:[%s338 + $0x48] sm:$0xff] %v357
                %v359 = vld [vmem:[%s337 + $0x140] sm:$0xff]
                %360 = vst [vmem:[%s338 + $0x50] sm:$0xff] %v359
                %v361 = vld [vmem:[%s337 + $0x160] sm:$0xff]
                %362 = vst [vmem:[%s338 + $0x58] sm:$0xff] %v361
                %v363 = vld [vmem:[%s337 + $0x180] sm:$0xff]
                %364 = vst [vmem:[%s338 + $0x60] sm:$0xff] %v363
                %v365 = vld [vmem:[%s337 + $0x1a0] sm:$0xff]
                %366 = vst [vmem:[%s338 + $0x68] sm:$0xff] %v365
                %v367 = vld [vmem:[%s337 + $0x1c0] sm:$0xff]
                %368 = vst [vmem:[%s338 + $0x70] sm:$0xff] %v367
                %v369 = vld [vmem:[%s337 + $0x1e0] sm:$0xff]
                %370 = vst [vmem:[%s338 + $0x78] sm:$0xff] %v369
                %v371 = vld [vmem:[%s337 + $0x200] sm:$0xff]
                %372 = vst [vmem:[%s338 + $0x80] sm:$0xff] %v371
                %v373 = vld [vmem:[%s337 + $0x220] sm:$0xff]
                %374 = vst [vmem:[%s338 + $0x88] sm:$0xff] %v373
                %v375 = vld [vmem:[%s337 + $0x240] sm:$0xff]
                %376 = vst [vmem:[%s338 + $0x90] sm:$0xff] %v375
                %v377 = vld [vmem:[%s337 + $0x260] sm:$0xff]
                %378 = vst [vmem:[%s338 + $0x98] sm:$0xff] %v377
                %v379 = vld [vmem:[%s337 + $0x280] sm:$0xff]
                %380 = vst [vmem:[%s338 + $0xa0] sm:$0xff] %v379
                %v381 = vld [vmem:[%s337 + $0x2a0] sm:$0xff]
                %382 = vst [vmem:[%s338 + $0xa8] sm:$0xff] %v381
                %v383 = vld [vmem:[%s337 + $0x2c0] sm:$0xff]
                %384 = vst [vmem:[%s338 + $0xb0] sm:$0xff] %v383
                %v385 = vld [vmem:[%s337 + $0x2e0] sm:$0xff]
                %386 = vst [vmem:[%s338 + $0xb8] sm:$0xff] %v385
                %v387 = vld [vmem:[%s337 + $0x300] sm:$0xff]
                %388 = vst [vmem:[%s338 + $0xc0] sm:$0xff] %v387
                %v389 = vld [vmem:[%s337 + $0x320] sm:$0xff]
                %390 = vst [vmem:[%s338 + $0xc8] sm:$0xff] %v389
                %v391 = vld [vmem:[%s337 + $0x340] sm:$0xff]
                %392 = vst [vmem:[%s338 + $0xd0] sm:$0xff] %v391
                %v393 = vld [vmem:[%s337 + $0x360] sm:$0xff]
                %394 = vst [vmem:[%s338 + $0xd8] sm:$0xff] %v393
                %v395 = vld [vmem:[%s337 + $0x380] sm:$0xff]
                %396 = vst [vmem:[%s338 + $0xe0] sm:$0xff] %v395
                %v397 = vld [vmem:[%s337 + $0x3a0] sm:$0xff]
                %398 = vst [vmem:[%s338 + $0xe8] sm:$0xff] %v397
                %v399 = vld [vmem:[%s337 + $0x3c0] sm:$0xff]
                %400 = vst [vmem:[%s338 + $0xf0] sm:$0xff] %v399
                %v401 = vld [vmem:[%s337 + $0x3e0] sm:$0xff]
                %402 = vst [vmem:[%s338 + $0xf8] sm:$0xff] %v401
                %v403 = vld [vmem:[%s337 + $0x400] sm:$0xff]
                %404 = vst [vmem:[%s338 + $0x100] sm:$0xff] %v403
                %v405 = vld [vmem:[%s337 + $0x420] sm:$0xff]
                %406 = vst [vmem:[%s338 + $0x108] sm:$0xff] %v405
                %v407 = vld [vmem:[%s337 + $0x440] sm:$0xff]
                %408 = vst [vmem:[%s338 + $0x110] sm:$0xff] %v407
                %v409 = vld [vmem:[%s337 + $0x460] sm:$0xff]
                %410 = vst [vmem:[%s338 + $0x118] sm:$0xff] %v409
                %v411 = vld [vmem:[%s337 + $0x480] sm:$0xff]
                %412 = vst [vmem:[%s338 + $0x120] sm:$0xff] %v411
                %v413 = vld [vmem:[%s337 + $0x4a0] sm:$0xff]
                %414 = vst [vmem:[%s338 + $0x128] sm:$0xff] %v413
                %v415 = vld [vmem:[%s337 + $0x4c0] sm:$0xff]
                %416 = vst [vmem:[%s338 + $0x130] sm:$0xff] %v415
                %v417 = vld [vmem:[%s337 + $0x4e0] sm:$0xff]
                %418 = vst [vmem:[%s338 + $0x138] sm:$0xff] %v417
                %v419 = vld [vmem:[%s337 + $0x500] sm:$0xff]
                %420 = vst [vmem:[%s338 + $0x140] sm:$0xff] %v419
                %v421 = vld [vmem:[%s337 + $0x520] sm:$0xff]
                %422 = vst [vmem:[%s338 + $0x148] sm:$0xff] %v421
                %v423 = vld [vmem:[%s337 + $0x540] sm:$0xff]
                %424 = vst [vmem:[%s338 + $0x150] sm:$0xff] %v423
                %v425 = vld [vmem:[%s337 + $0x560] sm:$0xff]
                %426 = vst [vmem:[%s338 + $0x158] sm:$0xff] %v425
                %v427 = vld [vmem:[%s337 + $0x580] sm:$0xff]
                %428 = vst [vmem:[%s338 + $0x160] sm:$0xff] %v427
                %v429 = vld [vmem:[%s337 + $0x5a0] sm:$0xff]
                %430 = vst [vmem:[%s338 + $0x168] sm:$0xff] %v429
                %v431 = vld [vmem:[%s337 + $0x5c0] sm:$0xff]
                %432 = vst [vmem:[%s338 + $0x170] sm:$0xff] %v431
                %v433 = vld [vmem:[%s337 + $0x5e0] sm:$0xff]
                %434 = vst [vmem:[%s338 + $0x178] sm:$0xff] %v433
                %v435 = vld [vmem:[%s337 + $0x600] sm:$0xff]
                %436 = vst [vmem:[%s338 + $0x180] sm:$0xff] %v435
                %v437 = vld [vmem:[%s337 + $0x620] sm:$0xff]
                %438 = vst [vmem:[%s338 + $0x188] sm:$0xff] %v437
                %v439 = vld [vmem:[%s337 + $0x640] sm:$0xff]
                %440 = vst [vmem:[%s338 + $0x190] sm:$0xff] %v439
                %v441 = vld [vmem:[%s337 + $0x660] sm:$0xff]
                %442 = vst [vmem:[%s338 + $0x198] sm:$0xff] %v441
                %v443 = vld [vmem:[%s337 + $0x680] sm:$0xff]
                %444 = vst [vmem:[%s338 + $0x1a0] sm:$0xff] %v443
                %v445 = vld [vmem:[%s337 + $0x6a0] sm:$0xff]
                %446 = vst [vmem:[%s338 + $0x1a8] sm:$0xff] %v445
                %v447 = vld [vmem:[%s337 + $0x6c0] sm:$0xff]
                %448 = vst [vmem:[%s338 + $0x1b0] sm:$0xff] %v447
                %v449 = vld [vmem:[%s337 + $0x6e0] sm:$0xff]
                %450 = vst [vmem:[%s338 + $0x1b8] sm:$0xff] %v449
                %v451 = vld [vmem:[%s337 + $0x700] sm:$0xff]
                %452 = vst [vmem:[%s338 + $0x1c0] sm:$0xff] %v451
                %v453 = vld [vmem:[%s337 + $0x720] sm:$0xff]
                %454 = vst [vmem:[%s338 + $0x1c8] sm:$0xff] %v453
                %v455 = vld [vmem:[%s337 + $0x740] sm:$0xff]
                %456 = vst [vmem:[%s338 + $0x1d0] sm:$0xff] %v455
                %v457 = vld [vmem:[%s337 + $0x760] sm:$0xff]
                %458 = vst [vmem:[%s338 + $0x1d8] sm:$0xff] %v457
                %v459 = vld [vmem:[%s337 + $0x780] sm:$0xff]
                %460 = vst [vmem:[%s338 + $0x1e0] sm:$0xff] %v459
                %v461 = vld [vmem:[%s337 + $0x7a0] sm:$0xff]
                %462 = vst [vmem:[%s338 + $0x1e8] sm:$0xff] %v461
                %v463 = vld [vmem:[%s337 + $0x7c0] sm:$0xff]
                %464 = vst [vmem:[%s338 + $0x1f0] sm:$0xff] %v463
                %v465 = vld [vmem:[%s337 + $0x7e0] sm:$0xff]
                %466 = vst [vmem:[%s338 + $0x1f8] sm:$0xff] %v465
                %v467 = vld [vmem:[%s337 + $0x800] sm:$0xff]
                %468 = vst [vmem:[%s338 + $0x200] sm:$0xff] %v467
                %v469 = vld [vmem:[%s337 + $0x820] sm:$0xff]
                %470 = vst [vmem:[%s338 + $0x208] sm:$0xff] %v469
                %v471 = vld [vmem:[%s337 + $0x840] sm:$0xff]
                %472 = vst [vmem:[%s338 + $0x210] sm:$0xff] %v471
                %v473 = vld [vmem:[%s337 + $0x860] sm:$0xff]
                %474 = vst [vmem:[%s338 + $0x218] sm:$0xff] %v473
                %v475 = vld [vmem:[%s337 + $0x880] sm:$0xff]
                %476 = vst [vmem:[%s338 + $0x220] sm:$0xff] %v475
                %v477 = vld [vmem:[%s337 + $0x8a0] sm:$0xff]
                %478 = vst [vmem:[%s338 + $0x228] sm:$0xff] %v477
                %v479 = vld [vmem:[%s337 + $0x8c0] sm:$0xff]
                %480 = vst [vmem:[%s338 + $0x230] sm:$0xff] %v479
                %v481 = vld [vmem:[%s337 + $0x8e0] sm:$0xff]
                %482 = vst [vmem:[%s338 + $0x238] sm:$0xff] %v481
                %v483 = vld [vmem:[%s337 + $0x900] sm:$0xff]
                %484 = vst [vmem:[%s338 + $0x240] sm:$0xff] %v483
                %v485 = vld [vmem:[%s337 + $0x920] sm:$0xff]
                %486 = vst [vmem:[%s338 + $0x248] sm:$0xff] %v485
                %v487 = vld [vmem:[%s337 + $0x940] sm:$0xff]
                %488 = vst [vmem:[%s338 + $0x250] sm:$0xff] %v487
                %v489 = vld [vmem:[%s337 + $0x960] sm:$0xff]
                %490 = vst [vmem:[%s338 + $0x258] sm:$0xff] %v489
                %v491 = vld [vmem:[%s337 + $0x980] sm:$0xff]
                %492 = vst [vmem:[%s338 + $0x260] sm:$0xff] %v491
                %v493 = vld [vmem:[%s337 + $0x9a0] sm:$0xff]
                %494 = vst [vmem:[%s338 + $0x268] sm:$0xff] %v493
                %v495 = vld [vmem:[%s337 + $0x9c0] sm:$0xff]
                %496 = vst [vmem:[%s338 + $0x270] sm:$0xff] %v495
                %v497 = vld [vmem:[%s337 + $0x9e0] sm:$0xff]
                %498 = vst [vmem:[%s338 + $0x278] sm:$0xff] %v497
                %v499 = vld [vmem:[%s337 + $0xa00] sm:$0xff]
                %500 = vst [vmem:[%s338 + $0x280] sm:$0xff] %v499
                %v501 = vld [vmem:[%s337 + $0xa20] sm:$0xff]
                %502 = vst [vmem:[%s338 + $0x288] sm:$0xff] %v501
                %v503 = vld [vmem:[%s337 + $0xa40] sm:$0xff]
                %504 = vst [vmem:[%s338 + $0x290] sm:$0xff] %v503
                %v505 = vld [vmem:[%s337 + $0xa60] sm:$0xff]
                %506 = vst [vmem:[%s338 + $0x298] sm:$0xff] %v505
                %v507 = vld [vmem:[%s337 + $0xa80] sm:$0xff]
                %508 = vst [vmem:[%s338 + $0x2a0] sm:$0xff] %v507
                %v509 = vld [vmem:[%s337 + $0xaa0] sm:$0xff]
                %510 = vst [vmem:[%s338 + $0x2a8] sm:$0xff] %v509
                %v511 = vld [vmem:[%s337 + $0xac0] sm:$0xff]
                %512 = vst [vmem:[%s338 + $0x2b0] sm:$0xff] %v511
                %v513 = vld [vmem:[%s337 + $0xae0] sm:$0xff]
                %514 = vst [vmem:[%s338 + $0x2b8] sm:$0xff] %v513
                %v515 = vld [vmem:[%s337 + $0xb00] sm:$0xff]
                %516 = vst [vmem:[%s338 + $0x2c0] sm:$0xff] %v515
                %v517 = vld [vmem:[%s337 + $0xb20] sm:$0xff]
                %518 = vst [vmem:[%s338 + $0x2c8] sm:$0xff] %v517
                %v519 = vld [vmem:[%s337 + $0xb40] sm:$0xff]
                %520 = vst [vmem:[%s338 + $0x2d0] sm:$0xff] %v519
                %v521 = vld [vmem:[%s337 + $0xb60] sm:$0xff]
                %522 = vst [vmem:[%s338 + $0x2d8] sm:$0xff] %v521
                %v523 = vld [vmem:[%s337 + $0xb80] sm:$0xff]
                %524 = vst [vmem:[%s338 + $0x2e0] sm:$0xff] %v523
                %v525 = vld [vmem:[%s337 + $0xba0] sm:$0xff]
                %526 = vst [vmem:[%s338 + $0x2e8] sm:$0xff] %v525
                %v527 = vld [vmem:[%s337 + $0xbc0] sm:$0xff]
                %528 = vst [vmem:[%s338 + $0x2f0] sm:$0xff] %v527
                %v529 = vld [vmem:[%s337 + $0xbe0] sm:$0xff]
                %530 = vst [vmem:[%s338 + $0x2f8] sm:$0xff] %v529
                %v531 = vld [vmem:[%s337 + $0xc00] sm:$0xff]
                %532 = vst [vmem:[%s338 + $0x300] sm:$0xff] %v531
                %v533 = vld [vmem:[%s337 + $0xc20] sm:$0xff]
                %534 = vst [vmem:[%s338 + $0x308] sm:$0xff] %v533
                %v535 = vld [vmem:[%s337 + $0xc40] sm:$0xff]
                %536 = vst [vmem:[%s338 + $0x310] sm:$0xff] %v535
                %v537 = vld [vmem:[%s337 + $0xc60] sm:$0xff]
                %538 = vst [vmem:[%s338 + $0x318] sm:$0xff] %v537
                %v539 = vld [vmem:[%s337 + $0xc80] sm:$0xff]
                %540 = vst [vmem:[%s338 + $0x320] sm:$0xff] %v539
                %v541 = vld [vmem:[%s337 + $0xca0] sm:$0xff]
                %542 = vst [vmem:[%s338 + $0x328] sm:$0xff] %v541
                %v543 = vld [vmem:[%s337 + $0xcc0] sm:$0xff]
                %544 = vst [vmem:[%s338 + $0x330] sm:$0xff] %v543
                %v545 = vld [vmem:[%s337 + $0xce0] sm:$0xff]
                %546 = vst [vmem:[%s338 + $0x338] sm:$0xff] %v545
                %v547 = vld [vmem:[%s337 + $0xd00] sm:$0xff]
                %548 = vst [vmem:[%s338 + $0x340] sm:$0xff] %v547
                %v549 = vld [vmem:[%s337 + $0xd20] sm:$0xff]
                %550 = vst [vmem:[%s338 + $0x348] sm:$0xff] %v549
                %v551 = vld [vmem:[%s337 + $0xd40] sm:$0xff]
                %552 = vst [vmem:[%s338 + $0x350] sm:$0xff] %v551
                %v553 = vld [vmem:[%s337 + $0xd60] sm:$0xff]
                %554 = vst [vmem:[%s338 + $0x358] sm:$0xff] %v553
                %v555 = vld [vmem:[%s337 + $0xd80] sm:$0xff]
                %556 = vst [vmem:[%s338 + $0x360] sm:$0xff] %v555
                %v557 = vld [vmem:[%s337 + $0xda0] sm:$0xff]
                %558 = vst [vmem:[%s338 + $0x368] sm:$0xff] %v557
                %v559 = vld [vmem:[%s337 + $0xdc0] sm:$0xff]
                %560 = vst [vmem:[%s338 + $0x370] sm:$0xff] %v559
                %v561 = vld [vmem:[%s337 + $0xde0] sm:$0xff]
                %562 = vst [vmem:[%s338 + $0x378] sm:$0xff] %v561
                %v563 = vld [vmem:[%s337 + $0xe00] sm:$0xff]
                %564 = vst [vmem:[%s338 + $0x380] sm:$0xff] %v563
                %v565 = vld [vmem:[%s337 + $0xe20] sm:$0xff]
                %566 = vst [vmem:[%s338 + $0x388] sm:$0xff] %v565
                %v567 = vld [vmem:[%s337 + $0xe40] sm:$0xff]
                %568 = vst [vmem:[%s338 + $0x390] sm:$0xff] %v567
                %v569 = vld [vmem:[%s337 + $0xe60] sm:$0xff]
                %570 = vst [vmem:[%s338 + $0x398] sm:$0xff] %v569
                %v571 = vld [vmem:[%s337 + $0xe80] sm:$0xff]
                %572 = vst [vmem:[%s338 + $0x3a0] sm:$0xff] %v571
                %v573 = vld [vmem:[%s337 + $0xea0] sm:$0xff]
                %574 = vst [vmem:[%s338 + $0x3a8] sm:$0xff] %v573
                %v575 = vld [vmem:[%s337 + $0xec0] sm:$0xff]
                %576 = vst [vmem:[%s338 + $0x3b0] sm:$0xff] %v575
                %v577 = vld [vmem:[%s337 + $0xee0] sm:$0xff]
                %578 = vst [vmem:[%s338 + $0x3b8] sm:$0xff] %v577
                %v579 = vld [vmem:[%s337 + $0xf00] sm:$0xff]
                %580 = vst [vmem:[%s338 + $0x3c0] sm:$0xff] %v579
                %v581 = vld [vmem:[%s337 + $0xf20] sm:$0xff]
                %582 = vst [vmem:[%s338 + $0x3c8] sm:$0xff] %v581
                %v583 = vld [vmem:[%s337 + $0xf40] sm:$0xff]
                %584 = vst [vmem:[%s338 + $0x3d0] sm:$0xff] %v583
                %v585 = vld [vmem:[%s337 + $0xf60] sm:$0xff]
                %586 = vst [vmem:[%s338 + $0x3d8] sm:$0xff] %v585
                %v587 = vld [vmem:[%s337 + $0xf80] sm:$0xff]
                %588 = vst [vmem:[%s338 + $0x3e0] sm:$0xff] %v587
                %v589 = vld [vmem:[%s337 + $0xfa0] sm:$0xff]
                %590 = vst [vmem:[%s338 + $0x3e8] sm:$0xff] %v589
                %v591 = vld [vmem:[%s337 + $0xfc0] sm:$0xff]
                %592 = vst [vmem:[%s338 + $0x3f0] sm:$0xff] %v591
                %v593 = vld [vmem:[%s337 + $0xfe0] sm:$0xff]
                %594 = vst [vmem:[%s338 + $0x3f8] sm:$0xff] %v593
                %v595 = vld [vmem:[%s337 + $0x1000] sm:$0xff]
                %596 = vst [vmem:[%s338 + $0x400] sm:$0xff] %v595
                %v597 = vld [vmem:[%s337 + $0x1020] sm:$0xff]
                %598 = vst [vmem:[%s338 + $0x408] sm:$0xff] %v597
                %v599 = vld [vmem:[%s337 + $0x1040] sm:$0xff]
                %600 = vst [vmem:[%s338 + $0x410] sm:$0xff] %v599
                %v601 = vld [vmem:[%s337 + $0x1060] sm:$0xff]
                %602 = vst [vmem:[%s338 + $0x418] sm:$0xff] %v601
                %v603 = vld [vmem:[%s337 + $0x1080] sm:$0xff]
                %604 = vst [vmem:[%s338 + $0x420] sm:$0xff] %v603
                %v605 = vld [vmem:[%s337 + $0x10a0] sm:$0xff]
                %606 = vst [vmem:[%s338 + $0x428] sm:$0xff] %v605
                %v607 = vld [vmem:[%s337 + $0x10c0] sm:$0xff]
                %608 = vst [vmem:[%s338 + $0x430] sm:$0xff] %v607
                %v609 = vld [vmem:[%s337 + $0x10e0] sm:$0xff]
                %610 = vst [vmem:[%s338 + $0x438] sm:$0xff] %v609
                %v611 = vld [vmem:[%s337 + $0x1100] sm:$0xff]
                %612 = vst [vmem:[%s338 + $0x440] sm:$0xff] %v611
                %v613 = vld [vmem:[%s337 + $0x1120] sm:$0xff]
                %614 = vst [vmem:[%s338 + $0x448] sm:$0xff] %v613
                %v615 = vld [vmem:[%s337 + $0x1140] sm:$0xff]
                %616 = vst [vmem:[%s338 + $0x450] sm:$0xff] %v615
                %v617 = vld [vmem:[%s337 + $0x1160] sm:$0xff]
                %618 = vst [vmem:[%s338 + $0x458] sm:$0xff] %v617
                %v619 = vld [vmem:[%s337 + $0x1180] sm:$0xff]
                %620 = vst [vmem:[%s338 + $0x460] sm:$0xff] %v619
                %v621 = vld [vmem:[%s337 + $0x11a0] sm:$0xff]
                %622 = vst [vmem:[%s338 + $0x468] sm:$0xff] %v621
                %v623 = vld [vmem:[%s337 + $0x11c0] sm:$0xff]
                %624 = vst [vmem:[%s338 + $0x470] sm:$0xff] %v623
                %v625 = vld [vmem:[%s337 + $0x11e0] sm:$0xff]
                %626 = vst [vmem:[%s338 + $0x478] sm:$0xff] %v625
                %v627 = vld [vmem:[%s337 + $0x1200] sm:$0xff]
                %628 = vst [vmem:[%s338 + $0x480] sm:$0xff] %v627
                %v629 = vld [vmem:[%s337 + $0x1220] sm:$0xff]
                %630 = vst [vmem:[%s338 + $0x488] sm:$0xff] %v629
                %v631 = vld [vmem:[%s337 + $0x1240] sm:$0xff]
                %632 = vst [vmem:[%s338 + $0x490] sm:$0xff] %v631
                %v633 = vld [vmem:[%s337 + $0x1260] sm:$0xff]
                %634 = vst [vmem:[%s338 + $0x498] sm:$0xff] %v633
                %v635 = vld [vmem:[%s337 + $0x1280] sm:$0xff]
                %636 = vst [vmem:[%s338 + $0x4a0] sm:$0xff] %v635
                %v637 = vld [vmem:[%s337 + $0x12a0] sm:$0xff]
                %638 = vst [vmem:[%s338 + $0x4a8] sm:$0xff] %v637
                %v639 = vld [vmem:[%s337 + $0x12c0] sm:$0xff]
                %640 = vst [vmem:[%s338 + $0x4b0] sm:$0xff] %v639
                %v641 = vld [vmem:[%s337 + $0x12e0] sm:$0xff]
                %642 = vst [vmem:[%s338 + $0x4b8] sm:$0xff] %v641
                %v643 = vld [vmem:[%s337 + $0x1300] sm:$0xff]
                %644 = vst [vmem:[%s338 + $0x4c0] sm:$0xff] %v643
                %v645 = vld [vmem:[%s337 + $0x1320] sm:$0xff]
                %646 = vst [vmem:[%s338 + $0x4c8] sm:$0xff] %v645
                %v647 = vld [vmem:[%s337 + $0x1340] sm:$0xff]
                %648 = vst [vmem:[%s338 + $0x4d0] sm:$0xff] %v647
                %v649 = vld [vmem:[%s337 + $0x1360] sm:$0xff]
                %650 = vst [vmem:[%s338 + $0x4d8] sm:$0xff] %v649
                %v651 = vld [vmem:[%s337 + $0x1380] sm:$0xff]
                %652 = vst [vmem:[%s338 + $0x4e0] sm:$0xff] %v651
                %v653 = vld [vmem:[%s337 + $0x13a0] sm:$0xff]
                %654 = vst [vmem:[%s338 + $0x4e8] sm:$0xff] %v653
                %v655 = vld [vmem:[%s337 + $0x13c0] sm:$0xff]
                %656 = vst [vmem:[%s338 + $0x4f0] sm:$0xff] %v655
                %v657 = vld [vmem:[%s337 + $0x13e0] sm:$0xff]
                %658 = vst [vmem:[%s338 + $0x4f8] sm:$0xff] %v657
                %v659 = vld [vmem:[%s337 + $0x1400] sm:$0xff]
                %660 = vst [vmem:[%s338 + $0x500] sm:$0xff] %v659
                %v661 = vld [vmem:[%s337 + $0x1420] sm:$0xff]
                %662 = vst [vmem:[%s338 + $0x508] sm:$0xff] %v661
                %v663 = vld [vmem:[%s337 + $0x1440] sm:$0xff]
                %664 = vst [vmem:[%s338 + $0x510] sm:$0xff] %v663
                %v665 = vld [vmem:[%s337 + $0x1460] sm:$0xff]
                %666 = vst [vmem:[%s338 + $0x518] sm:$0xff] %v665
                %v667 = vld [vmem:[%s337 + $0x1480] sm:$0xff]
                %668 = vst [vmem:[%s338 + $0x520] sm:$0xff] %v667
                %v669 = vld [vmem:[%s337 + $0x14a0] sm:$0xff]
                %670 = vst [vmem:[%s338 + $0x528] sm:$0xff] %v669
                %v671 = vld [vmem:[%s337 + $0x14c0] sm:$0xff]
                %672 = vst [vmem:[%s338 + $0x530] sm:$0xff] %v671
                %v673 = vld [vmem:[%s337 + $0x14e0] sm:$0xff]
                %674 = vst [vmem:[%s338 + $0x538] sm:$0xff] %v673
                %v675 = vld [vmem:[%s337 + $0x1500] sm:$0xff]
                %676 = vst [vmem:[%s338 + $0x540] sm:$0xff] %v675
                %v677 = vld [vmem:[%s337 + $0x1520] sm:$0xff]
                %678 = vst [vmem:[%s338 + $0x548] sm:$0xff] %v677
                %v679 = vld [vmem:[%s337 + $0x1540] sm:$0xff]
                %680 = vst [vmem:[%s338 + $0x550] sm:$0xff] %v679
                %v681 = vld [vmem:[%s337 + $0x1560] sm:$0xff]
                %682 = vst [vmem:[%s338 + $0x558] sm:$0xff] %v681
                %v683 = vld [vmem:[%s337 + $0x1580] sm:$0xff]
                %684 = vst [vmem:[%s338 + $0x560] sm:$0xff] %v683
                %v685 = vld [vmem:[%s337 + $0x15a0] sm:$0xff]
                %686 = vst [vmem:[%s338 + $0x568] sm:$0xff] %v685
                %v687 = vld [vmem:[%s337 + $0x15c0] sm:$0xff]
                %688 = vst [vmem:[%s338 + $0x570] sm:$0xff] %v687
                %v689 = vld [vmem:[%s337 + $0x15e0] sm:$0xff]
                %690 = vst [vmem:[%s338 + $0x578] sm:$0xff] %v689
                %v691 = vld [vmem:[%s337 + $0x1600] sm:$0xff]
                %692 = vst [vmem:[%s338 + $0x580] sm:$0xff] %v691
                %v693 = vld [vmem:[%s337 + $0x1620] sm:$0xff]
                %694 = vst [vmem:[%s338 + $0x588] sm:$0xff] %v693
                %v695 = vld [vmem:[%s337 + $0x1640] sm:$0xff]
                %696 = vst [vmem:[%s338 + $0x590] sm:$0xff] %v695
                %v697 = vld [vmem:[%s337 + $0x1660] sm:$0xff]
                %698 = vst [vmem:[%s338 + $0x598] sm:$0xff] %v697
                %v699 = vld [vmem:[%s337 + $0x1680] sm:$0xff]
                %700 = vst [vmem:[%s338 + $0x5a0] sm:$0xff] %v699
                %v701 = vld [vmem:[%s337 + $0x16a0] sm:$0xff]
                %702 = vst [vmem:[%s338 + $0x5a8] sm:$0xff] %v701
                %v703 = vld [vmem:[%s337 + $0x16c0] sm:$0xff]
                %704 = vst [vmem:[%s338 + $0x5b0] sm:$0xff] %v703
                %v705 = vld [vmem:[%s337 + $0x16e0] sm:$0xff]
                %706 = vst [vmem:[%s338 + $0x5b8] sm:$0xff] %v705
                %v707 = vld [vmem:[%s337 + $0x1700] sm:$0xff]
                %708 = vst [vmem:[%s338 + $0x5c0] sm:$0xff] %v707
                %v709 = vld [vmem:[%s337 + $0x1720] sm:$0xff]
                %710 = vst [vmem:[%s338 + $0x5c8] sm:$0xff] %v709
                %v711 = vld [vmem:[%s337 + $0x1740] sm:$0xff]
                %712 = vst [vmem:[%s338 + $0x5d0] sm:$0xff] %v711
                %v713 = vld [vmem:[%s337 + $0x1760] sm:$0xff]
                %714 = vst [vmem:[%s338 + $0x5d8] sm:$0xff] %v713
                %v715 = vld [vmem:[%s337 + $0x1780] sm:$0xff]
                %716 = vst [vmem:[%s338 + $0x5e0] sm:$0xff] %v715
                %v717 = vld [vmem:[%s337 + $0x17a0] sm:$0xff]
                %718 = vst [vmem:[%s338 + $0x5e8] sm:$0xff] %v717
                %v719 = vld [vmem:[%s337 + $0x17c0] sm:$0xff]
                %720 = vst [vmem:[%s338 + $0x5f0] sm:$0xff] %v719
                %v721 = vld [vmem:[%s337 + $0x17e0] sm:$0xff]
                %722 = vst [vmem:[%s338 + $0x5f8] sm:$0xff] %v721
                %v723 = vld [vmem:[%s337 + $0x1800] sm:$0xff]
                %724 = vst [vmem:[%s338 + $0x600] sm:$0xff] %v723
                %v725 = vld [vmem:[%s337 + $0x1820] sm:$0xff]
                %726 = vst [vmem:[%s338 + $0x608] sm:$0xff] %v725
                %v727 = vld [vmem:[%s337 + $0x1840] sm:$0xff]
                %728 = vst [vmem:[%s338 + $0x610] sm:$0xff] %v727
                %v729 = vld [vmem:[%s337 + $0x1860] sm:$0xff]
                %730 = vst [vmem:[%s338 + $0x618] sm:$0xff] %v729
                %v731 = vld [vmem:[%s337 + $0x1880] sm:$0xff]
                %732 = vst [vmem:[%s338 + $0x620] sm:$0xff] %v731
                %v733 = vld [vmem:[%s337 + $0x18a0] sm:$0xff]
                %734 = vst [vmem:[%s338 + $0x628] sm:$0xff] %v733
                %v735 = vld [vmem:[%s337 + $0x18c0] sm:$0xff]
                %736 = vst [vmem:[%s338 + $0x630] sm:$0xff] %v735
                %v737 = vld [vmem:[%s337 + $0x18e0] sm:$0xff]
                %738 = vst [vmem:[%s338 + $0x638] sm:$0xff] %v737
                %v739 = vld [vmem:[%s337 + $0x1900] sm:$0xff]
                %740 = vst [vmem:[%s338 + $0x640] sm:$0xff] %v739
                %v741 = vld [vmem:[%s337 + $0x1920] sm:$0xff]
                %742 = vst [vmem:[%s338 + $0x648] sm:$0xff] %v741
                %v743 = vld [vmem:[%s337 + $0x1940] sm:$0xff]
                %744 = vst [vmem:[%s338 + $0x650] sm:$0xff] %v743
                %v745 = vld [vmem:[%s337 + $0x1960] sm:$0xff]
                %746 = vst [vmem:[%s338 + $0x658] sm:$0xff] %v745
                %v747 = vld [vmem:[%s337 + $0x1980] sm:$0xff]
                %748 = vst [vmem:[%s338 + $0x660] sm:$0xff] %v747
                %v749 = vld [vmem:[%s337 + $0x19a0] sm:$0xff]
                %750 = vst [vmem:[%s338 + $0x668] sm:$0xff] %v749
                %v751 = vld [vmem:[%s337 + $0x19c0] sm:$0xff]
                %752 = vst [vmem:[%s338 + $0x670] sm:$0xff] %v751
                %v753 = vld [vmem:[%s337 + $0x19e0] sm:$0xff]
                %754 = vst [vmem:[%s338 + $0x678] sm:$0xff] %v753
                %v755 = vld [vmem:[%s337 + $0x1a00] sm:$0xff]
                %756 = vst [vmem:[%s338 + $0x680] sm:$0xff] %v755
                %v757 = vld [vmem:[%s337 + $0x1a20] sm:$0xff]
                %758 = vst [vmem:[%s338 + $0x688] sm:$0xff] %v757
                %v759 = vld [vmem:[%s337 + $0x1a40] sm:$0xff]
                %760 = vst [vmem:[%s338 + $0x690] sm:$0xff] %v759
                %v761 = vld [vmem:[%s337 + $0x1a60] sm:$0xff]
                %762 = vst [vmem:[%s338 + $0x698] sm:$0xff] %v761
                %v763 = vld [vmem:[%s337 + $0x1a80] sm:$0xff]
                %764 = vst [vmem:[%s338 + $0x6a0] sm:$0xff] %v763
                %v765 = vld [vmem:[%s337 + $0x1aa0] sm:$0xff]
                %766 = vst [vmem:[%s338 + $0x6a8] sm:$0xff] %v765
                %v767 = vld [vmem:[%s337 + $0x1ac0] sm:$0xff]
                %768 = vst [vmem:[%s338 + $0x6b0] sm:$0xff] %v767
                %v769 = vld [vmem:[%s337 + $0x1ae0] sm:$0xff]
                %770 = vst [vmem:[%s338 + $0x6b8] sm:$0xff] %v769
                %v771 = vld [vmem:[%s337 + $0x1b00] sm:$0xff]
                %772 = vst [vmem:[%s338 + $0x6c0] sm:$0xff] %v771
                %v773 = vld [vmem:[%s337 + $0x1b20] sm:$0xff]
                %774 = vst [vmem:[%s338 + $0x6c8] sm:$0xff] %v773
                %v775 = vld [vmem:[%s337 + $0x1b40] sm:$0xff]
                %776 = vst [vmem:[%s338 + $0x6d0] sm:$0xff] %v775
                %v777 = vld [vmem:[%s337 + $0x1b60] sm:$0xff]
                %778 = vst [vmem:[%s338 + $0x6d8] sm:$0xff] %v777
                %v779 = vld [vmem:[%s337 + $0x1b80] sm:$0xff]
                %780 = vst [vmem:[%s338 + $0x6e0] sm:$0xff] %v779
                %v781 = vld [vmem:[%s337 + $0x1ba0] sm:$0xff]
                %782 = vst [vmem:[%s338 + $0x6e8] sm:$0xff] %v781
                %v783 = vld [vmem:[%s337 + $0x1bc0] sm:$0xff]
                %784 = vst [vmem:[%s338 + $0x6f0] sm:$0xff] %v783
                %v785 = vld [vmem:[%s337 + $0x1be0] sm:$0xff]
                %786 = vst [vmem:[%s338 + $0x6f8] sm:$0xff] %v785
                %v787 = vld [vmem:[%s337 + $0x1c00] sm:$0xff]
                %788 = vst [vmem:[%s338 + $0x700] sm:$0xff] %v787
                %v789 = vld [vmem:[%s337 + $0x1c20] sm:$0xff]
                %790 = vst [vmem:[%s338 + $0x708] sm:$0xff] %v789
                %v791 = vld [vmem:[%s337 + $0x1c40] sm:$0xff]
                %792 = vst [vmem:[%s338 + $0x710] sm:$0xff] %v791
                %v793 = vld [vmem:[%s337 + $0x1c60] sm:$0xff]
                %794 = vst [vmem:[%s338 + $0x718] sm:$0xff] %v793
                %v795 = vld [vmem:[%s337 + $0x1c80] sm:$0xff]
                %796 = vst [vmem:[%s338 + $0x720] sm:$0xff] %v795
                %v797 = vld [vmem:[%s337 + $0x1ca0] sm:$0xff]
                %798 = vst [vmem:[%s338 + $0x728] sm:$0xff] %v797
                %v799 = vld [vmem:[%s337 + $0x1cc0] sm:$0xff]
                %800 = vst [vmem:[%s338 + $0x730] sm:$0xff] %v799
                %v801 = vld [vmem:[%s337 + $0x1ce0] sm:$0xff]
                %802 = vst [vmem:[%s338 + $0x738] sm:$0xff] %v801
              $region57: #{structure_aware_forward.1} parent=51 // loop_footer
                %s336 = sadd.s32 1, %s332
              $region58: #{structure_aware_forward.1} parent=51 // loop_footer_branch
                %331 = sbr.rel target = $region54
              $region59: #{structure_aware_forward.1} parent=51 // loop_exit
                _
            $region52: #{structure_aware_forward.1} parent=43 // pred_fallthru
              _
          $region44: #{structure_aware_forward.1} parent=39 // pred_fallthru
            _
          %1279 = vnop
        $region40: #{structure_aware_forward.1} parent=35 // pred_fallthru
          _
        // Predicated region
        $region75: #{structure_aware_forward.1} parent=35 // pred_check
          %p1280 = pneg %p144
        $region76: #{structure_aware_forward.1} parent=35 // pred_check_branch
          %1282 = sbr.rel (%p1280) target = $region78
        $region77: #{structure_aware_forward.1} parent=35 // pred_region
          %s1283 = smul.u32 %s22, 4
          %s1284 = sadd.s32 %s1283, %s23
          %s1285 = smul.u32 4, %s1284
          %p1286 = scmp.lt.s32.totalorder %s1285, 15
          %s1287 = scalar_select %p1286, %s1285, 15
          %s1288 = scalar_lea.vmem %s4, %s1287
          %s1289 = smul.u32 %s22, 4
          %s1290 = sadd.s32 %s1289, %s23
          %s1291 = smul.u32 4, %s1290
        $region78: #{structure_aware_forward.1} parent=35 // pred_fallthru
          _
        // Predicated region
        $region79: #{structure_aware_forward.1} parent=35 // pred_check
          %p1292 = pneg %p174
        $region80: #{structure_aware_forward.1} parent=35 // pred_check_branch
          %1294 = sbr.rel (%p1292) target = $region82
        $region81: #{structure_aware_forward.1} parent=35 // pred_region
          %s1295 = smul.u32 %s22, 4
          %s1296 = sadd.s32 %s1295, %s23
          %s1297 = smul.u32 4, %s1296
          %p1298 = scmp.lt.s32.totalorder %s1297, 15
          %s1299 = scalar_select %p1298, %s1297, 15
          %s1300 = scalar_lea.vmem %s5, %s1299
          %s1301 = smul.u32 %s22, 4
          %s1302 = sadd.s32 %s1301, %s23
          %s1303 = smul.u32 4, %s1302
        $region82: #{structure_aware_forward.1} parent=35 // pred_fallthru
          _
        // Predicated region
        $region83: #{structure_aware_forward.1} parent=35 // pred_check
          %p1304 = pneg %p204
        $region84: #{structure_aware_forward.1} parent=35 // pred_check_branch
          %1306 = sbr.rel (%p1304) target = $region86
        $region85: #{structure_aware_forward.1} parent=35 // pred_region
          %s1307 = smul.u32 %s22, 4
          %s1308 = sadd.s32 %s1307, %s23
          %s1309 = smul.u32 16, %s1308
          %p1310 = scmp.lt.s32.totalorder %s1309, 63
          %s1311 = scalar_select %p1310, %s1309, 63
          %s1312 = smul.addr %s1311, 12
          %s1313 = smul.addr %s1312, 8
          %s1314 = scalar_lea.vmem %s6, %s1313
          %s1315 = smul.u32 %s22, 4
          %s1316 = sadd.s32 %s1315, %s23
          %s1317 = smul.u32 16, %s1316
        $region86: #{structure_aware_forward.1} parent=35 // pred_fallthru
          _
      $region36: #{structure_aware_forward.1} parent=5 // pred_fallthru
        _
      %p1318 = scmp.le.s32.totalorder 1, %s15
      %p1319 = scmp.lt.s32.totalorder %s15, 5
      %p1320 = pnand %p1318, %p1319
      %p1321 = pneg %p1320
      // Predicated region
      $region87: #{structure_aware_forward.1} parent=5 // pred_check
        _
      $region88: #{structure_aware_forward.1} parent=5 // pred_check_branch
        %1323 = sbr.rel (%p1320) target = $region90
      $region89: #{structure_aware_forward.1} parent=5 // pred_region
        %s1324 = ssub.s32 %s15, 1
        %s1325 = sand.u32 %s107, 1
        %s1326 = sand.u32 %s107, 1
        %s1327 = smul.addr %s1326, 1856
        %s1328 = scalar_lea.vmem [#allocation3], %s1327
        // Predicated region
        $region91: #{structure_aware_forward.1} parent=89 // pred_check
          %p1329 = pneg %p120
        $region92: #{structure_aware_forward.1} parent=89 // pred_check_branch
          %1331 = sbr.rel (%p1329) target = $region94
        $region93: #{structure_aware_forward.1} parent=89 // pred_region
          _
        $region94: #{structure_aware_forward.1} parent=89 // pred_fallthru
          _
        %p1332 = pneg %p48
        %p1333 = pneg %p45
        %p1334 = pneg %p69
        %p1335 = pneg %p66
        %p1336 = pneg %p90
        %p1337 = pneg %p87
        %s1338 = sand.u32 %s107, 1
        %s1339 = sand.u32 %s107, 1
        %s1340 = smul.addr %s1339, 1856
        %s1341 = scalar_lea.vmem [#allocation3], %s1340
        %p1342 = pneg %p120
        %p1343 = pneg %p117
        %s1344 = smul.u32 %s24, 4
        %s1345 = sadd.s32 %s1344, %s25
        %s1346 = smul.u32 4, %s1345
        %p1347 = scmp.lt.s32.totalorder %s1346, 15
        %s1348 = scalar_select %p1347, %s1346, 15
        %s1349 = scalar_lea.vmem %s4, %s1348
        %p1350 = pneg %p150
        %p1351 = pneg %p147
        %s1352 = smul.u32 %s24, 4
        %s1353 = sadd.s32 %s1352, %s25
        %s1354 = smul.u32 4, %s1353
        %p1355 = scmp.lt.s32.totalorder %s1354, 15
        %s1356 = scalar_select %p1355, %s1354, 15
        %s1357 = scalar_lea.vmem %s5, %s1356
        %p1358 = pneg %p180
        %p1359 = pneg %p177
        %s1360 = smul.u32 %s24, 4
        %s1361 = sadd.s32 %s1360, %s25
        %s1362 = smul.u32 16, %s1361
        %p1363 = scmp.lt.s32.totalorder %s1362, 63
        %s1364 = scalar_select %p1363, %s1362, 63
        %s1365 = smul.addr %s1364, 12
        %s1366 = smul.addr %s1365, 8
        %s1367 = scalar_lea.vmem %s6, %s1366
        %p1368 = pneg %p210
        %p1369 = pneg %p207
        %p1370 = pneg %p231
        %p1371 = pneg %p228
        %p1372 = pneg %p252
        %p1373 = pneg %p249
        %p1374 = pneg %p278
        %p1375 = pneg %p275
        %p1376 = scmp.lt.s32.totalorder %s24, 0
        %s1377 = scalar_select %p1376, %s24, 0
        %s1378 = smul.addr %s1377, 12
        %s1379 = smul.addr %s1378, 2
        %s1380 = scalar_lea.vmem %s9, %s1379
        %s1381 = smul.u32 %s24, 4
        %s1382 = sadd.s32 %s1381, %s25
        %s1383 = smul.u32 4, %s1382
        %s1384 = smul.u32 %s24, 4
        %s1385 = sadd.s32 %s1384, %s25
        %s1386 = smul.u32 4, %s1385
        %p1387 = scmp.lt.s32.totalorder %s1386, 15
        %s1388 = scalar_select %p1387, %s1386, 15
        %s1389 = scalar_lea.vmem %s4, %s1388
        %s1390 = smul.u32 %s24, 4
        %s1391 = sadd.s32 %s1390, %s25
        %s1392 = smul.u32 4, %s1391
        %s1393 = smul.u32 %s24, 4
        %s1394 = sadd.s32 %s1393, %s25
        %s1395 = smul.u32 4, %s1394
        %p1396 = scmp.lt.s32.totalorder %s1395, 15
        %s1397 = scalar_select %p1396, %s1395, 15
        %s1398 = scalar_lea.vmem %s5, %s1397
        %s1399 = smul.u32 %s24, 4
        %s1400 = sadd.s32 %s1399, %s25
        %s1401 = smul.u32 4, %s1400
        %s1402 = smul.u32 %s24, 4
        %s1403 = sadd.s32 %s1402, %s25
        %s1404 = smul.u32 16, %s1403
        %p1405 = scmp.lt.s32.totalorder %s1404, 63
        %s1406 = scalar_select %p1405, %s1404, 63
        %s1407 = smul.addr %s1406, 12
        %s1408 = smul.addr %s1407, 8
        %s1409 = scalar_lea.vmem %s6, %s1408
        %s1410 = smul.u32 %s24, 4
        %s1411 = sadd.s32 %s1410, %s25
        %s1412 = smul.u32 16, %s1411
        %p1413 = scmp.lt.s32.totalorder %s24, 0
        %s1414 = scalar_select %p1413, %s24, 0
        %s1415 = smul.addr %s1414, 12
        %s1416 = smul.addr %s1415, 2
        %s1417 = scalar_lea.vmem %s9, %s1416
        %p1419 = scmp.eq.s32.totalorder %s25, 0
        // Predicated region
        $region95: #{structure_aware_forward.1} parent=89 // pred_check
          %p1420 = pneg %p1419
        $region96: #{structure_aware_forward.1} parent=89 // pred_check_branch
          %1422 = sbr.rel (%p1420) target = $region98
        $region97: #{structure_aware_forward.1} parent=89 // pred_region
          %1423 = vst [vmem:[%s1417] sm:$0xff] 0.0
          %1424 = vst [vmem:[%s1417 + $0x8] sm:$0xff] 0.0
          %1425 = vst [vmem:[%s1417 + $0x10] sm:$0xff] 0.0
          %v1426 = vld [vmem:[%s1] sm:$0xff]
          %v1427 = vld [vmem:[%s1 + $0x8] sm:$0xff]
          %v1428 = vld [vmem:[%s2] sm:$0xff]
          %v1429 = vld [vmem:[%s0] sm:$0xff]
          %v1430 = vld [vmem:[%s0 + $0x8] sm:$0xff]
          %v1431 = vld [vmem:[%s0 + $0x10] sm:$0xff]
          %v1432 = vld [vmem:[%s0 + $0x18] sm:$0xff]
          %v1433 = vld [vmem:[%s0 + $0x20] sm:$0xff]
          %v1434 = vld [vmem:[%s0 + $0x28] sm:$0xff]
          %v1435 = vld [vmem:[%s0 + $0x30] sm:$0xff]
          %v1436 = vld [vmem:[%s0 + $0x38] sm:$0xff]
          %v1437 = vld [vmem:[%s0 + $0x40] sm:$0xff]
          %v1438 = vld [vmem:[%s0 + $0x48] sm:$0xff]
          %v1439 = vld [vmem:[%s0 + $0x50] sm:$0xff]
          %v1440 = vld [vmem:[%s0 + $0x58] sm:$0xff]
          %v1441 = vld [vmem:[%s0 + $0x60] sm:$0xff]
          %v1442 = vld [vmem:[%s0 + $0x68] sm:$0xff]
          %v1443 = vld [vmem:[%s0 + $0x70] sm:$0xff]
          %v1444 = vld [vmem:[%s0 + $0x78] sm:$0xff]
          %v1445 = vld [vmem:[%s0 + $0x80] sm:$0xff]
          %v1446 = vld [vmem:[%s0 + $0x88] sm:$0xff]
          %v1447 = vld [vmem:[%s0 + $0x90] sm:$0xff]
          %v1448 = vld [vmem:[%s0 + $0x98] sm:$0xff]
          %v1449 = vld [vmem:[%s0 + $0xa0] sm:$0xff]
          %v1450 = vld [vmem:[%s0 + $0xa8] sm:$0xff]
          %v1451 = vld [vmem:[%s0 + $0xb0] sm:$0xff]
          %v1452 = vld [vmem:[%s0 + $0xb8] sm:$0xff]
          %v1453 = vld [vmem:[%s0 + $0xc0] sm:$0xff]
          %v1454 = vld [vmem:[%s0 + $0xc8] sm:$0xff]
          %v1455 = vld [vmem:[%s0 + $0xd0] sm:$0xff]
          %v1456 = vld [vmem:[%s0 + $0xd8] sm:$0xff]
          %v1457 = vld [vmem:[%s0 + $0xe0] sm:$0xff]
          %v1458 = vld [vmem:[%s0 + $0xe8] sm:$0xff]
          %v1459 = vld [vmem:[%s0 + $0xf0] sm:$0xff]
          %v1460 = vld [vmem:[%s0 + $0xf8] sm:$0xff]
          %v1461 = vld [vmem:[%s0 + $0x100] sm:$0xff]
          %v1462 = vld [vmem:[%s0 + $0x108] sm:$0xff]
          %v1463 = vld [vmem:[%s0 + $0x110] sm:$0xff]
          %v1464 = vld [vmem:[%s0 + $0x118] sm:$0xff]
          %v1465 = vld [vmem:[%s0 + $0x120] sm:$0xff]
          %v1466 = vld [vmem:[%s0 + $0x128] sm:$0xff]
          %v1467 = vld [vmem:[%s0 + $0x130] sm:$0xff]
          %v1468 = vld [vmem:[%s0 + $0x138] sm:$0xff]
          %v1469 = vld [vmem:[%s0 + $0x140] sm:$0xff]
          %v1470 = vld [vmem:[%s0 + $0x148] sm:$0xff]
          %v1471 = vld [vmem:[%s0 + $0x150] sm:$0xff]
          %v1472 = vld [vmem:[%s0 + $0x158] sm:$0xff]
          %v1473 = vld [vmem:[%s0 + $0x160] sm:$0xff]
          %v1474 = vld [vmem:[%s0 + $0x168] sm:$0xff]
          %v1475 = vld [vmem:[%s0 + $0x170] sm:$0xff]
          %v1476 = vld [vmem:[%s0 + $0x178] sm:$0xff]
          %v1477 = vld [vmem:[%s0 + $0x180] sm:$0xff]
          %v1478 = vld [vmem:[%s0 + $0x188] sm:$0xff]
          %v1479 = vld [vmem:[%s0 + $0x190] sm:$0xff]
          %v1480 = vld [vmem:[%s0 + $0x198] sm:$0xff]
          %v1481 = vld [vmem:[%s0 + $0x1a0] sm:$0xff]
          %v1482 = vld [vmem:[%s0 + $0x1a8] sm:$0xff]
          %v1483 = vld [vmem:[%s0 + $0x1b0] sm:$0xff]
          %v1484 = vld [vmem:[%s0 + $0x1b8] sm:$0xff]
          %v1485 = vld [vmem:[%s0 + $0x1c0] sm:$0xff]
          %v1486 = vld [vmem:[%s0 + $0x1c8] sm:$0xff]
          %v1487 = vld [vmem:[%s0 + $0x1d0] sm:$0xff]
          %v1488 = vld [vmem:[%s0 + $0x1d8] sm:$0xff]
          %v1489 = vld [vmem:[%s0 + $0x1e0] sm:$0xff]
          %v1490 = vld [vmem:[%s0 + $0x1e8] sm:$0xff]
          %v1491 = vld [vmem:[%s0 + $0x1f0] sm:$0xff]
          %v1492 = vld [vmem:[%s0 + $0x1f8] sm:$0xff]
          %1494 = vset.pattern.permute.xlu0 0
          %1495 = vperm.xlu0 %1494, %v1428
          %v1496 = vpop.permute.xlu0 %1495
          %v1500 = vunpack.c.l.b16 %v1426
          %v1501 = vunpack.c.h.b16 %v1426
          %v1502 = vunpack.c.l.b16 %v1427
          %v1503 = vunpack.c.h.b16 %v1427
          %v1504 = vpack.c.b16 %v1500, %v1500
          %v1505 = vpack.c.b16 %v1501, %v1501
          %v1506 = vpack.c.b16 %v1502, %v1502
          %v1507 = vpack.c.b16 %v1503, %v1503
          %v1576 = vunpack.c.l.b16 %v1429
          %v1577 = vunpack.c.h.b16 %v1429
          %v1578 = vunpack.c.l.b16 %v1430
          %v1579 = vunpack.c.h.b16 %v1430
          %v1580 = vunpack.c.l.b16 %v1431
          %v1581 = vunpack.c.h.b16 %v1431
          %v1582 = vunpack.c.l.b16 %v1432
          %v1583 = vunpack.c.h.b16 %v1432
          %v1584 = vunpack.c.l.b16 %v1433
          %v1585 = vunpack.c.h.b16 %v1433
          %v1586 = vunpack.c.l.b16 %v1434
          %v1587 = vunpack.c.h.b16 %v1434
          %v1588 = vunpack.c.l.b16 %v1435
          %v1589 = vunpack.c.h.b16 %v1435
          %v1590 = vunpack.c.l.b16 %v1436
          %v1591 = vunpack.c.h.b16 %v1436
          %v1592 = vunpack.c.l.b16 %v1437
          %v1593 = vunpack.c.h.b16 %v1437
          %v1594 = vunpack.c.l.b16 %v1438
          %v1595 = vunpack.c.h.b16 %v1438
          %v1596 = vunpack.c.l.b16 %v1439
          %v1597 = vunpack.c.h.b16 %v1439
          %v1598 = vunpack.c.l.b16 %v1440
          %v1599 = vunpack.c.h.b16 %v1440
          %v1600 = vunpack.c.l.b16 %v1441
          %v1601 = vunpack.c.h.b16 %v1441
          %v1602 = vunpack.c.l.b16 %v1442
          %v1603 = vunpack.c.h.b16 %v1442
          %v1604 = vunpack.c.l.b16 %v1443
          %v1605 = vunpack.c.h.b16 %v1443
          %v1606 = vunpack.c.l.b16 %v1444
          %v1607 = vunpack.c.h.b16 %v1444
          %v1608 = vunpack.c.l.b16 %v1445
          %v1609 = vunpack.c.h.b16 %v1445
          %v1610 = vunpack.c.l.b16 %v1446
          %v1611 = vunpack.c.h.b16 %v1446
          %v1612 = vunpack.c.l.b16 %v1447
          %v1613 = vunpack.c.h.b16 %v1447
          %v1614 = vunpack.c.l.b16 %v1448
          %v1615 = vunpack.c.h.b16 %v1448
          %v1616 = vunpack.c.l.b16 %v1449
          %v1617 = vunpack.c.h.b16 %v1449
          %v1618 = vunpack.c.l.b16 %v1450
          %v1619 = vunpack.c.h.b16 %v1450
          %v1620 = vunpack.c.l.b16 %v1451
          %v1621 = vunpack.c.h.b16 %v1451
          %v1622 = vunpack.c.l.b16 %v1452
          %v1623 = vunpack.c.h.b16 %v1452
          %v1624 = vunpack.c.l.b16 %v1453
          %v1625 = vunpack.c.h.b16 %v1453
          %v1626 = vunpack.c.l.b16 %v1454
          %v1627 = vunpack.c.h.b16 %v1454
          %v1628 = vunpack.c.l.b16 %v1455
          %v1629 = vunpack.c.h.b16 %v1455
          %v1630 = vunpack.c.l.b16 %v1456
          %v1631 = vunpack.c.h.b16 %v1456
          %v1632 = vunpack.c.l.b16 %v1457
          %v1633 = vunpack.c.h.b16 %v1457
          %v1634 = vunpack.c.l.b16 %v1458
          %v1635 = vunpack.c.h.b16 %v1458
          %v1636 = vunpack.c.l.b16 %v1459
          %v1637 = vunpack.c.h.b16 %v1459
          %v1638 = vunpack.c.l.b16 %v1460
          %v1639 = vunpack.c.h.b16 %v1460
          %v1640 = vunpack.c.l.b16 %v1461
          %v1641 = vunpack.c.h.b16 %v1461
          %v1642 = vunpack.c.l.b16 %v1462
          %v1643 = vunpack.c.h.b16 %v1462
          %v1644 = vunpack.c.l.b16 %v1463
          %v1645 = vunpack.c.h.b16 %v1463
          %v1646 = vunpack.c.l.b16 %v1464
          %v1647 = vunpack.c.h.b16 %v1464
          %v1648 = vunpack.c.l.b16 %v1465
          %v1649 = vunpack.c.h.b16 %v1465
          %v1650 = vunpack.c.l.b16 %v1466
          %v1651 = vunpack.c.h.b16 %v1466
          %v1652 = vunpack.c.l.b16 %v1467
          %v1653 = vunpack.c.h.b16 %v1467
          %v1654 = vunpack.c.l.b16 %v1468
          %v1655 = vunpack.c.h.b16 %v1468
          %v1656 = vunpack.c.l.b16 %v1469
          %v1657 = vunpack.c.h.b16 %v1469
          %v1658 = vunpack.c.l.b16 %v1470
          %v1659 = vunpack.c.h.b16 %v1470
          %v1660 = vunpack.c.l.b16 %v1471
          %v1661 = vunpack.c.h.b16 %v1471
          %v1662 = vunpack.c.l.b16 %v1472
          %v1663 = vunpack.c.h.b16 %v1472
          %v1664 = vunpack.c.l.b16 %v1473
          %v1665 = vunpack.c.h.b16 %v1473
          %v1666 = vunpack.c.l.b16 %v1474
          %v1667 = vunpack.c.h.b16 %v1474
          %v1668 = vunpack.c.l.b16 %v1475
          %v1669 = vunpack.c.h.b16 %v1475
          %v1670 = vunpack.c.l.b16 %v1476
          %v1671 = vunpack.c.h.b16 %v1476
          %v1672 = vunpack.c.l.b16 %v1477
          %v1673 = vunpack.c.h.b16 %v1477
          %v1674 = vunpack.c.l.b16 %v1478
          %v1675 = vunpack.c.h.b16 %v1478
          %v1676 = vunpack.c.l.b16 %v1479
          %v1677 = vunpack.c.h.b16 %v1479
          %v1678 = vunpack.c.l.b16 %v1480
          %v1679 = vunpack.c.h.b16 %v1480
          %v1680 = vunpack.c.l.b16 %v1481
          %v1681 = vunpack.c.h.b16 %v1481
          %v1682 = vunpack.c.l.b16 %v1482
          %v1683 = vunpack.c.h.b16 %v1482
          %v1684 = vunpack.c.l.b16 %v1483
          %v1685 = vunpack.c.h.b16 %v1483
          %v1686 = vunpack.c.l.b16 %v1484
          %v1687 = vunpack.c.h.b16 %v1484
          %v1688 = vunpack.c.l.b16 %v1485
          %v1689 = vunpack.c.h.b16 %v1485
          %v1690 = vunpack.c.l.b16 %v1486
          %v1691 = vunpack.c.h.b16 %v1486
          %v1692 = vunpack.c.l.b16 %v1487
          %v1693 = vunpack.c.h.b16 %v1487
          %v1694 = vunpack.c.l.b16 %v1488
          %v1695 = vunpack.c.h.b16 %v1488
          %v1696 = vunpack.c.l.b16 %v1489
          %v1697 = vunpack.c.h.b16 %v1489
          %v1698 = vunpack.c.l.b16 %v1490
          %v1699 = vunpack.c.h.b16 %v1490
          %v1700 = vunpack.c.l.b16 %v1491
          %v1701 = vunpack.c.h.b16 %v1491
          %v1702 = vunpack.c.l.b16 %v1492
          %v1703 = vunpack.c.h.b16 %v1492
          %v1704 = vpack.c.b16 %v1578, %v1576
          %v1705 = vpack.c.b16 %v1579, %v1577
          %v1706 = vpack.c.b16 %v1582, %v1580
          %v1707 = vpack.c.b16 %v1583, %v1581
          %v1708 = vpack.c.b16 %v1586, %v1584
          %v1709 = vpack.c.b16 %v1587, %v1585
          %v1710 = vpack.c.b16 %v1590, %v1588
          %v1711 = vpack.c.b16 %v1591, %v1589
          %v1712 = vpack.c.b16 %v1594, %v1592
          %v1713 = vpack.c.b16 %v1595, %v1593
          %v1714 = vpack.c.b16 %v1598, %v1596
          %v1715 = vpack.c.b16 %v1599, %v1597
          %v1716 = vpack.c.b16 %v1602, %v1600
          %v1717 = vpack.c.b16 %v1603, %v1601
          %v1718 = vpack.c.b16 %v1606, %v1604
          %v1719 = vpack.c.b16 %v1607, %v1605
          %v1720 = vpack.c.b16 %v1610, %v1608
          %v1721 = vpack.c.b16 %v1611, %v1609
          %v1722 = vpack.c.b16 %v1614, %v1612
          %v1723 = vpack.c.b16 %v1615, %v1613
          %v1724 = vpack.c.b16 %v1618, %v1616
          %v1725 = vpack.c.b16 %v1619, %v1617
          %v1726 = vpack.c.b16 %v1622, %v1620
          %v1727 = vpack.c.b16 %v1623, %v1621
          %v1728 = vpack.c.b16 %v1626, %v1624
          %v1729 = vpack.c.b16 %v1627, %v1625
          %v1730 = vpack.c.b16 %v1630, %v1628
          %v1731 = vpack.c.b16 %v1631, %v1629
          %v1732 = vpack.c.b16 %v1634, %v1632
          %v1733 = vpack.c.b16 %v1635, %v1633
          %v1734 = vpack.c.b16 %v1638, %v1636
          %v1735 = vpack.c.b16 %v1639, %v1637
          %v1736 = vpack.c.b16 %v1642, %v1640
          %v1737 = vpack.c.b16 %v1643, %v1641
          %v1738 = vpack.c.b16 %v1646, %v1644
          %v1739 = vpack.c.b16 %v1647, %v1645
          %v1740 = vpack.c.b16 %v1650, %v1648
          %v1741 = vpack.c.b16 %v1651, %v1649
          %v1742 = vpack.c.b16 %v1654, %v1652
          %v1743 = vpack.c.b16 %v1655, %v1653
          %v1744 = vpack.c.b16 %v1658, %v1656
          %v1745 = vpack.c.b16 %v1659, %v1657
          %v1746 = vpack.c.b16 %v1662, %v1660
          %v1747 = vpack.c.b16 %v1663, %v1661
          %v1748 = vpack.c.b16 %v1666, %v1664
          %v1749 = vpack.c.b16 %v1667, %v1665
          %v1750 = vpack.c.b16 %v1670, %v1668
          %v1751 = vpack.c.b16 %v1671, %v1669
          %v1752 = vpack.c.b16 %v1674, %v1672
          %v1753 = vpack.c.b16 %v1675, %v1673
          %v1754 = vpack.c.b16 %v1678, %v1676
          %v1755 = vpack.c.b16 %v1679, %v1677
          %v1756 = vpack.c.b16 %v1682, %v1680
          %v1757 = vpack.c.b16 %v1683, %v1681
          %v1758 = vpack.c.b16 %v1686, %v1684
          %v1759 = vpack.c.b16 %v1687, %v1685
          %v1760 = vpack.c.b16 %v1690, %v1688
          %v1761 = vpack.c.b16 %v1691, %v1689
          %v1762 = vpack.c.b16 %v1694, %v1692
          %v1763 = vpack.c.b16 %v1695, %v1693
          %v1764 = vpack.c.b16 %v1698, %v1696
          %v1765 = vpack.c.b16 %v1699, %v1697
          %v1766 = vpack.c.b16 %v1702, %v1700
          %v1767 = vpack.c.b16 %v1703, %v1701
          %1832 = vmatprep.subr.bf16.mxu0 %v1705
          %1833 = vmatpush1.bf16.msra.mxu0 %v1704
          %1834 = vmatprep.subr.bf16.mxu0 %v1707
          %1835 = vmatpush1.bf16.msra.mxu0 %v1706
          %1836 = vmatprep.subr.bf16.mxu0 %v1709
          %1837 = vmatpush1.bf16.msra.mxu0 %v1708
          %1838 = vmatprep.subr.bf16.mxu0 %v1711
          %1839 = vmatpush1.bf16.msra.mxu0 %v1710
          %1840 = vmatprep.subr.bf16.mxu0 %v1713
          %1841 = vmatpush1.bf16.msra.mxu0 %v1712
          %1842 = vmatprep.subr.bf16.mxu0 %v1715
          %1843 = vmatpush1.bf16.msra.mxu0 %v1714
          %1844 = vmatprep.subr.bf16.mxu0 %v1717
          %1845 = vmatpush1.bf16.msra.mxu0 %v1716
          %1846 = vmatprep.subr.bf16.mxu0 %v1719
          %1847 = vmatpush1.bf16.msra.mxu0 %v1718
          %1848 = vmatprep.subr.bf16.mxu0 %v1721
          %1849 = vmatpush1.bf16.msra.mxu0 %v1720
          %1850 = vmatprep.subr.bf16.mxu0 %v1723
          %1851 = vmatpush1.bf16.msra.mxu0 %v1722
          %1852 = vmatprep.subr.bf16.mxu0 %v1725
          %1853 = vmatpush1.bf16.msra.mxu0 %v1724
          %1854 = vmatprep.subr.bf16.mxu0 %v1727
          %1855 = vmatpush1.bf16.msra.mxu0 %v1726
          %1856 = vmatprep.subr.bf16.mxu0 %v1729
          %1857 = vmatpush1.bf16.msra.mxu0 %v1728
          %1858 = vmatprep.subr.bf16.mxu0 %v1731
          %1859 = vmatpush1.bf16.msra.mxu0 %v1730
          %1860 = vmatprep.subr.bf16.mxu0 %v1733
          %1861 = vmatpush1.bf16.msra.mxu0 %v1732
          %1862 = vmatprep.subr.bf16.mxu0 %v1735
          %1863 = vmatpush1.bf16.msra.mxu0 %v1734
          %1864 = vmatprep.mubr.bf16.mxu0 %v1505
          %1865 = vmatmul.mubr.bf16.gmra.mrb[0].mxu0 %v1504
          %v1866 = vpop.f32.mrb[0].mxu0
          %v1867 = vadd.f32 %v1496, %v1866
          %v1868 = vpop.f32.mrb[0].mxu0
          %v1869 = vadd.f32 %v1496, %v1868
          %v1870 = vpop.f32.mrb[0].mxu0
          %v1871 = vpop.f32.mrb[0].mxu0
          %1872 = vdwg.mxu0
          %1873 = vmatprep.subr.bf16.mxu0 %v1737
          %1874 = vmatpush1.bf16.msra.mxu0 %v1736
          %1875 = vmatprep.subr.bf16.mxu0 %v1739
          %1876 = vmatpush1.bf16.msra.mxu0 %v1738
          %1877 = vmatprep.subr.bf16.mxu0 %v1741
          %1878 = vmatpush1.bf16.msra.mxu0 %v1740
          %1879 = vmatprep.subr.bf16.mxu0 %v1743
          %1880 = vmatpush1.bf16.msra.mxu0 %v1742
          %1881 = vmatprep.subr.bf16.mxu0 %v1745
          %1882 = vmatpush1.bf16.msra.mxu0 %v1744
          %1883 = vmatprep.subr.bf16.mxu0 %v1747
          %1884 = vmatpush1.bf16.msra.mxu0 %v1746
          %1885 = vmatprep.subr.bf16.mxu0 %v1749
          %1886 = vmatpush1.bf16.msra.mxu0 %v1748
          %1887 = vmatprep.subr.bf16.mxu0 %v1751
          %1888 = vmatpush1.bf16.msra.mxu0 %v1750
          %1889 = vmatprep.subr.bf16.mxu0 %v1753
          %1890 = vmatpush1.bf16.msra.mxu0 %v1752
          %1891 = vmatprep.subr.bf16.mxu0 %v1755
          %1892 = vmatpush1.bf16.msra.mxu0 %v1754
          %1893 = vmatprep.subr.bf16.mxu0 %v1757
          %1894 = vmatpush1.bf16.msra.mxu0 %v1756
          %1895 = vmatprep.subr.bf16.mxu0 %v1759
          %1896 = vmatpush1.bf16.msra.mxu0 %v1758
          %1897 = vmatprep.subr.bf16.mxu0 %v1761
          %1898 = vmatpush1.bf16.msra.mxu0 %v1760
          %1899 = vmatprep.subr.bf16.mxu0 %v1763
          %1900 = vmatpush1.bf16.msra.mxu0 %v1762
          %1901 = vmatprep.subr.bf16.mxu0 %v1765
          %1902 = vmatpush1.bf16.msra.mxu0 %v1764
          %1903 = vmatprep.subr.bf16.mxu0 %v1767
          %1904 = vmatpush1.bf16.msra.mxu0 %v1766
          %1905 = vmatprep.mubr.bf16.mxu0 %v1507
          %1906 = vmatmul.mubr.bf16.gmra.mrb[0].mxu0 %v1506
          %v1907 = vpop.f32.mrb[0].mxu0
          %v1908 = vadd.f32 %v1867, %v1907
          %v1909 = vpop.f32.mrb[0].mxu0
          %v1910 = vadd.f32 %v1869, %v1909
          %v1911 = vpop.f32.mrb[0].mxu0
          %v1912 = vpop.f32.mrb[0].mxu0
          %1913 = vdwg.mxu0
          %s1914 = scalar_lea.vmem %s0, 512
          %v1915 = vld [vmem:[%s1914] sm:$0xff]
          %v1916 = vld [vmem:[%s1914 + $0x8] sm:$0xff]
          %v1917 = vld [vmem:[%s1914 + $0x10] sm:$0xff]
          %v1918 = vld [vmem:[%s1914 + $0x18] sm:$0xff]
          %v1919 = vld [vmem:[%s1914 + $0x20] sm:$0xff]
          %v1920 = vld [vmem:[%s1914 + $0x28] sm:$0xff]
          %v1921 = vld [vmem:[%s1914 + $0x30] sm:$0xff]
          %v1922 = vld [vmem:[%s1914 + $0x38] sm:$0xff]
          %v1923 = vld [vmem:[%s1914 + $0x40] sm:$0xff]
          %v1924 = vld [vmem:[%s1914 + $0x48] sm:$0xff]
          %v1925 = vld [vmem:[%s1914 + $0x50] sm:$0xff]
          %v1926 = vld [vmem:[%s1914 + $0x58] sm:$0xff]
          %v1927 = vld [vmem:[%s1914 + $0x60] sm:$0xff]
          %v1928 = vld [vmem:[%s1914 + $0x68] sm:$0xff]
          %v1929 = vld [vmem:[%s1914 + $0x70] sm:$0xff]
          %v1930 = vld [vmem:[%s1914 + $0x78] sm:$0xff]
          %v1931 = vld [vmem:[%s1914 + $0x80] sm:$0xff]
          %v1932 = vld [vmem:[%s1914 + $0x88] sm:$0xff]
          %v1933 = vld [vmem:[%s1914 + $0x90] sm:$0xff]
          %v1934 = vld [vmem:[%s1914 + $0x98] sm:$0xff]
          %v1935 = vld [vmem:[%s1914 + $0xa0] sm:$0xff]
          %v1936 = vld [vmem:[%s1914 + $0xa8] sm:$0xff]
          %v1937 = vld [vmem:[%s1914 + $0xb0] sm:$0xff]
          %v1938 = vld [vmem:[%s1914 + $0xb8] sm:$0xff]
          %v1939 = vld [vmem:[%s1914 + $0xc0] sm:$0xff]
          %v1940 = vld [vmem:[%s1914 + $0xc8] sm:$0xff]
          %v1941 = vld [vmem:[%s1914 + $0xd0] sm:$0xff]
          %v1942 = vld [vmem:[%s1914 + $0xd8] sm:$0xff]
          %v1943 = vld [vmem:[%s1914 + $0xe0] sm:$0xff]
          %v1944 = vld [vmem:[%s1914 + $0xe8] sm:$0xff]
          %v1945 = vld [vmem:[%s1914 + $0xf0] sm:$0xff]
          %v1946 = vld [vmem:[%s1914 + $0xf8] sm:$0xff]
          %v1947 = vld [vmem:[%s1914 + $0x100] sm:$0xff]
          %v1948 = vld [vmem:[%s1914 + $0x108] sm:$0xff]
          %v1949 = vld [vmem:[%s1914 + $0x110] sm:$0xff]
          %v1950 = vld [vmem:[%s1914 + $0x118] sm:$0xff]
          %v1951 = vld [vmem:[%s1914 + $0x120] sm:$0xff]
          %v1952 = vld [vmem:[%s1914 + $0x128] sm:$0xff]
          %v1953 = vld [vmem:[%s1914 + $0x130] sm:$0xff]
          %v1954 = vld [vmem:[%s1914 + $0x138] sm:$0xff]
          %v1955 = vld [vmem:[%s1914 + $0x140] sm:$0xff]
          %v1956 = vld [vmem:[%s1914 + $0x148] sm:$0xff]
          %v1957 = vld [vmem:[%s1914 + $0x150] sm:$0xff]
          %v1958 = vld [vmem:[%s1914 + $0x158] sm:$0xff]
          %v1959 = vld [vmem:[%s1914 + $0x160] sm:$0xff]
          %v1960 = vld [vmem:[%s1914 + $0x168] sm:$0xff]
          %v1961 = vld [vmem:[%s1914 + $0x170] sm:$0xff]
          %v1962 = vld [vmem:[%s1914 + $0x178] sm:$0xff]
          %v1963 = vld [vmem:[%s1914 + $0x180] sm:$0xff]
          %v1964 = vld [vmem:[%s1914 + $0x188] sm:$0xff]
          %v1965 = vld [vmem:[%s1914 + $0x190] sm:$0xff]
          %v1966 = vld [vmem:[%s1914 + $0x198] sm:$0xff]
          %v1967 = vld [vmem:[%s1914 + $0x1a0] sm:$0xff]
          %v1968 = vld [vmem:[%s1914 + $0x1a8] sm:$0xff]
          %v1969 = vld [vmem:[%s1914 + $0x1b0] sm:$0xff]
          %v1970 = vld [vmem:[%s1914 + $0x1b8] sm:$0xff]
          %v1971 = vld [vmem:[%s1914 + $0x1c0] sm:$0xff]
          %v1972 = vld [vmem:[%s1914 + $0x1c8] sm:$0xff]
          %v1973 = vld [vmem:[%s1914 + $0x1d0] sm:$0xff]
          %v1974 = vld [vmem:[%s1914 + $0x1d8] sm:$0xff]
          %v1975 = vld [vmem:[%s1914 + $0x1e0] sm:$0xff]
          %v1976 = vld [vmem:[%s1914 + $0x1e8] sm:$0xff]
          %v1977 = vld [vmem:[%s1914 + $0x1f0] sm:$0xff]
          %v1978 = vld [vmem:[%s1914 + $0x1f8] sm:$0xff]
          %v2043 = vunpack.c.l.b16 %v1915
          %v2044 = vunpack.c.h.b16 %v1915
          %v2045 = vunpack.c.l.b16 %v1916
          %v2046 = vunpack.c.h.b16 %v1916
          %v2047 = vunpack.c.l.b16 %v1917
          %v2048 = vunpack.c.h.b16 %v1917
          %v2049 = vunpack.c.l.b16 %v1918
          %v2050 = vunpack.c.h.b16 %v1918
          %v2051 = vunpack.c.l.b16 %v1919
          %v2052 = vunpack.c.h.b16 %v1919
          %v2053 = vunpack.c.l.b16 %v1920
          %v2054 = vunpack.c.h.b16 %v1920
          %v2055 = vunpack.c.l.b16 %v1921
          %v2056 = vunpack.c.h.b16 %v1921
          %v2057 = vunpack.c.l.b16 %v1922
          %v2058 = vunpack.c.h.b16 %v1922
          %v2059 = vunpack.c.l.b16 %v1923
          %v2060 = vunpack.c.h.b16 %v1923
          %v2061 = vunpack.c.l.b16 %v1924
          %v2062 = vunpack.c.h.b16 %v1924
          %v2063 = vunpack.c.l.b16 %v1925
          %v2064 = vunpack.c.h.b16 %v1925
          %v2065 = vunpack.c.l.b16 %v1926
          %v2066 = vunpack.c.h.b16 %v1926
          %v2067 = vunpack.c.l.b16 %v1927
          %v2068 = vunpack.c.h.b16 %v1927
          %v2069 = vunpack.c.l.b16 %v1928
          %v2070 = vunpack.c.h.b16 %v1928
          %v2071 = vunpack.c.l.b16 %v1929
          %v2072 = vunpack.c.h.b16 %v1929
          %v2073 = vunpack.c.l.b16 %v1930
          %v2074 = vunpack.c.h.b16 %v1930
          %v2075 = vunpack.c.l.b16 %v1931
          %v2076 = vunpack.c.h.b16 %v1931
          %v2077 = vunpack.c.l.b16 %v1932
          %v2078 = vunpack.c.h.b16 %v1932
          %v2079 = vunpack.c.l.b16 %v1933
          %v2080 = vunpack.c.h.b16 %v1933
          %v2081 = vunpack.c.l.b16 %v1934
          %v2082 = vunpack.c.h.b16 %v1934
          %v2083 = vunpack.c.l.b16 %v1935
          %v2084 = vunpack.c.h.b16 %v1935
          %v2085 = vunpack.c.l.b16 %v1936
          %v2086 = vunpack.c.h.b16 %v1936
          %v2087 = vunpack.c.l.b16 %v1937
          %v2088 = vunpack.c.h.b16 %v1937
          %v2089 = vunpack.c.l.b16 %v1938
          %v2090 = vunpack.c.h.b16 %v1938
          %v2091 = vunpack.c.l.b16 %v1939
          %v2092 = vunpack.c.h.b16 %v1939
          %v2093 = vunpack.c.l.b16 %v1940
          %v2094 = vunpack.c.h.b16 %v1940
          %v2095 = vunpack.c.l.b16 %v1941
          %v2096 = vunpack.c.h.b16 %v1941
          %v2097 = vunpack.c.l.b16 %v1942
          %v2098 = vunpack.c.h.b16 %v1942
          %v2099 = vunpack.c.l.b16 %v1943
          %v2100 = vunpack.c.h.b16 %v1943
          %v2101 = vunpack.c.l.b16 %v1944
          %v2102 = vunpack.c.h.b16 %v1944
          %v2103 = vunpack.c.l.b16 %v1945
          %v2104 = vunpack.c.h.b16 %v1945
          %v2105 = vunpack.c.l.b16 %v1946
          %v2106 = vunpack.c.h.b16 %v1946
          %v2107 = vunpack.c.l.b16 %v1947
          %v2108 = vunpack.c.h.b16 %v1947
          %v2109 = vunpack.c.l.b16 %v1948
          %v2110 = vunpack.c.h.b16 %v1948
          %v2111 = vunpack.c.l.b16 %v1949
          %v2112 = vunpack.c.h.b16 %v1949
          %v2113 = vunpack.c.l.b16 %v1950
          %v2114 = vunpack.c.h.b16 %v1950
          %v2115 = vunpack.c.l.b16 %v1951
          %v2116 = vunpack.c.h.b16 %v1951
          %v2117 = vunpack.c.l.b16 %v1952
          %v2118 = vunpack.c.h.b16 %v1952
          %v2119 = vunpack.c.l.b16 %v1953
          %v2120 = vunpack.c.h.b16 %v1953
          %v2121 = vunpack.c.l.b16 %v1954
          %v2122 = vunpack.c.h.b16 %v1954
          %v2123 = vunpack.c.l.b16 %v1955
          %v2124 = vunpack.c.h.b16 %v1955
          %v2125 = vunpack.c.l.b16 %v1956
          %v2126 = vunpack.c.h.b16 %v1956
          %v2127 = vunpack.c.l.b16 %v1957
          %v2128 = vunpack.c.h.b16 %v1957
          %v2129 = vunpack.c.l.b16 %v1958
          %v2130 = vunpack.c.h.b16 %v1958
          %v2131 = vunpack.c.l.b16 %v1959
          %v2132 = vunpack.c.h.b16 %v1959
          %v2133 = vunpack.c.l.b16 %v1960
          %v2134 = vunpack.c.h.b16 %v1960
          %v2135 = vunpack.c.l.b16 %v1961
          %v2136 = vunpack.c.h.b16 %v1961
          %v2137 = vunpack.c.l.b16 %v1962
          %v2138 = vunpack.c.h.b16 %v1962
          %v2139 = vunpack.c.l.b16 %v1963
          %v2140 = vunpack.c.h.b16 %v1963
          %v2141 = vunpack.c.l.b16 %v1964
          %v2142 = vunpack.c.h.b16 %v1964
          %v2143 = vunpack.c.l.b16 %v1965
          %v2144 = vunpack.c.h.b16 %v1965
          %v2145 = vunpack.c.l.b16 %v1966
          %v2146 = vunpack.c.h.b16 %v1966
          %v2147 = vunpack.c.l.b16 %v1967
          %v2148 = vunpack.c.h.b16 %v1967
          %v2149 = vunpack.c.l.b16 %v1968
          %v2150 = vunpack.c.h.b16 %v1968
          %v2151 = vunpack.c.l.b16 %v1969
          %v2152 = vunpack.c.h.b16 %v1969
          %v2153 = vunpack.c.l.b16 %v1970
          %v2154 = vunpack.c.h.b16 %v1970
          %v2155 = vunpack.c.l.b16 %v1971
          %v2156 = vunpack.c.h.b16 %v1971
          %v2157 = vunpack.c.l.b16 %v1972
          %v2158 = vunpack.c.h.b16 %v1972
          %v2159 = vunpack.c.l.b16 %v1973
          %v2160 = vunpack.c.h.b16 %v1973
          %v2161 = vunpack.c.l.b16 %v1974
          %v2162 = vunpack.c.h.b16 %v1974
          %v2163 = vunpack.c.l.b16 %v1975
          %v2164 = vunpack.c.h.b16 %v1975
          %v2165 = vunpack.c.l.b16 %v1976
          %v2166 = vunpack.c.h.b16 %v1976
          %v2167 = vunpack.c.l.b16 %v1977
          %v2168 = vunpack.c.h.b16 %v1977
          %v2169 = vunpack.c.l.b16 %v1978
          %v2170 = vunpack.c.h.b16 %v1978
          %v2171 = vpack.c.b16 %v2045, %v2043
          %v2172 = vpack.c.b16 %v2046, %v2044
          %v2173 = vpack.c.b16 %v2049, %v2047
          %v2174 = vpack.c.b16 %v2050, %v2048
          %v2175 = vpack.c.b16 %v2053, %v2051
          %v2176 = vpack.c.b16 %v2054, %v2052
          %v2177 = vpack.c.b16 %v2057, %v2055
          %v2178 = vpack.c.b16 %v2058, %v2056
          %v2179 = vpack.c.b16 %v2061, %v2059
          %v2180 = vpack.c.b16 %v2062, %v2060
          %v2181 = vpack.c.b16 %v2065, %v2063
          %v2182 = vpack.c.b16 %v2066, %v2064
          %v2183 = vpack.c.b16 %v2069, %v2067
          %v2184 = vpack.c.b16 %v2070, %v2068
          %v2185 = vpack.c.b16 %v2073, %v2071
          %v2186 = vpack.c.b16 %v2074, %v2072
          %v2187 = vpack.c.b16 %v2077, %v2075
          %v2188 = vpack.c.b16 %v2078, %v2076
          %v2189 = vpack.c.b16 %v2081, %v2079
          %v2190 = vpack.c.b16 %v2082, %v2080
          %v2191 = vpack.c.b16 %v2085, %v2083
          %v2192 = vpack.c.b16 %v2086, %v2084
          %v2193 = vpack.c.b16 %v2089, %v2087
          %v2194 = vpack.c.b16 %v2090, %v2088
          %v2195 = vpack.c.b16 %v2093, %v2091
          %v2196 = vpack.c.b16 %v2094, %v2092
          %v2197 = vpack.c.b16 %v2097, %v2095
          %v2198 = vpack.c.b16 %v2098, %v2096
          %v2199 = vpack.c.b16 %v2101, %v2099
          %v2200 = vpack.c.b16 %v2102, %v2100
          %v2201 = vpack.c.b16 %v2105, %v2103
          %v2202 = vpack.c.b16 %v2106, %v2104
          %v2203 = vpack.c.b16 %v2109, %v2107
          %v2204 = vpack.c.b16 %v2110, %v2108
          %v2205 = vpack.c.b16 %v2113, %v2111
          %v2206 = vpack.c.b16 %v2114, %v2112
          %v2207 = vpack.c.b16 %v2117, %v2115
          %v2208 = vpack.c.b16 %v2118, %v2116
          %v2209 = vpack.c.b16 %v2121, %v2119
          %v2210 = vpack.c.b16 %v2122, %v2120
          %v2211 = vpack.c.b16 %v2125, %v2123
          %v2212 = vpack.c.b16 %v2126, %v2124
          %v2213 = vpack.c.b16 %v2129, %v2127
          %v2214 = vpack.c.b16 %v2130, %v2128
          %v2215 = vpack.c.b16 %v2133, %v2131
          %v2216 = vpack.c.b16 %v2134, %v2132
          %v2217 = vpack.c.b16 %v2137, %v2135
          %v2218 = vpack.c.b16 %v2138, %v2136
          %v2219 = vpack.c.b16 %v2141, %v2139
          %v2220 = vpack.c.b16 %v2142, %v2140
          %v2221 = vpack.c.b16 %v2145, %v2143
          %v2222 = vpack.c.b16 %v2146, %v2144
          %v2223 = vpack.c.b16 %v2149, %v2147
          %v2224 = vpack.c.b16 %v2150, %v2148
          %v2225 = vpack.c.b16 %v2153, %v2151
          %v2226 = vpack.c.b16 %v2154, %v2152
          %v2227 = vpack.c.b16 %v2157, %v2155
          %v2228 = vpack.c.b16 %v2158, %v2156
          %v2229 = vpack.c.b16 %v2161, %v2159
          %v2230 = vpack.c.b16 %v2162, %v2160
          %v2231 = vpack.c.b16 %v2165, %v2163
          %v2232 = vpack.c.b16 %v2166, %v2164
          %v2233 = vpack.c.b16 %v2169, %v2167
          %v2234 = vpack.c.b16 %v2170, %v2168
          %2299 = vmatprep.subr.bf16.mxu0 %v2172
          %2300 = vmatpush1.bf16.msra.mxu0 %v2171
          %2301 = vmatprep.subr.bf16.mxu0 %v2174
          %2302 = vmatpush1.bf16.msra.mxu0 %v2173
          %2303 = vmatprep.subr.bf16.mxu0 %v2176
          %2304 = vmatpush1.bf16.msra.mxu0 %v2175
          %2305 = vmatprep.subr.bf16.mxu0 %v2178
          %2306 = vmatpush1.bf16.msra.mxu0 %v2177
          %2307 = vmatprep.subr.bf16.mxu0 %v2180
          %2308 = vmatpush1.bf16.msra.mxu0 %v2179
          %2309 = vmatprep.subr.bf16.mxu0 %v2182
          %2310 = vmatpush1.bf16.msra.mxu0 %v2181
          %2311 = vmatprep.subr.bf16.mxu0 %v2184
          %2312 = vmatpush1.bf16.msra.mxu0 %v2183
          %2313 = vmatprep.subr.bf16.mxu0 %v2186
          %2314 = vmatpush1.bf16.msra.mxu0 %v2185
          %2315 = vmatprep.subr.bf16.mxu0 %v2188
          %2316 = vmatpush1.bf16.msra.mxu0 %v2187
          %2317 = vmatprep.subr.bf16.mxu0 %v2190
          %2318 = vmatpush1.bf16.msra.mxu0 %v2189
          %2319 = vmatprep.subr.bf16.mxu0 %v2192
          %2320 = vmatpush1.bf16.msra.mxu0 %v2191
          %2321 = vmatprep.subr.bf16.mxu0 %v2194
          %2322 = vmatpush1.bf16.msra.mxu0 %v2193
          %2323 = vmatprep.subr.bf16.mxu0 %v2196
          %2324 = vmatpush1.bf16.msra.mxu0 %v2195
          %2325 = vmatprep.subr.bf16.mxu0 %v2198
          %2326 = vmatpush1.bf16.msra.mxu0 %v2197
          %2327 = vmatprep.subr.bf16.mxu0 %v2200
          %2328 = vmatpush1.bf16.msra.mxu0 %v2199
          %2329 = vmatprep.subr.bf16.mxu0 %v2202
          %2330 = vmatpush1.bf16.msra.mxu0 %v2201
          %2331 = vmatprep.mubr.bf16.mxu0 %v1505
          %2332 = vmatmul.mubr.bf16.gmra.mrb[0].mxu0 %v1504
          %v2333 = vpop.f32.mrb[0].mxu0
          %v2334 = vadd.f32 %v1496, %v2333
          %v2335 = vpop.f32.mrb[0].mxu0
          %v2336 = vadd.f32 %v1496, %v2335
          %v2337 = vpop.f32.mrb[0].mxu0
          %v2338 = vpop.f32.mrb[0].mxu0
          %2339 = vdwg.mxu0
          %2340 = vmatprep.subr.bf16.mxu0 %v2204
          %2341 = vmatpush1.bf16.msra.mxu0 %v2203
          %2342 = vmatprep.subr.bf16.mxu0 %v2206
          %2343 = vmatpush1.bf16.msra.mxu0 %v2205
          %2344 = vmatprep.subr.bf16.mxu0 %v2208
          %2345 = vmatpush1.bf16.msra.mxu0 %v2207
          %2346 = vmatprep.subr.bf16.mxu0 %v2210
          %2347 = vmatpush1.bf16.msra.mxu0 %v2209
          %2348 = vmatprep.subr.bf16.mxu0 %v2212
          %2349 = vmatpush1.bf16.msra.mxu0 %v2211
          %2350 = vmatprep.subr.bf16.mxu0 %v2214
          %2351 = vmatpush1.bf16.msra.mxu0 %v2213
          %2352 = vmatprep.subr.bf16.mxu0 %v2216
          %2353 = vmatpush1.bf16.msra.mxu0 %v2215
          %2354 = vmatprep.subr.bf16.mxu0 %v2218
          %2355 = vmatpush1.bf16.msra.mxu0 %v2217
          %2356 = vmatprep.subr.bf16.mxu0 %v2220
          %2357 = vmatpush1.bf16.msra.mxu0 %v2219
          %2358 = vmatprep.subr.bf16.mxu0 %v2222
          %2359 = vmatpush1.bf16.msra.mxu0 %v2221
          %2360 = vmatprep.subr.bf16.mxu0 %v2224
          %2361 = vmatpush1.bf16.msra.mxu0 %v2223
          %2362 = vmatprep.subr.bf16.mxu0 %v2226
          %2363 = vmatpush1.bf16.msra.mxu0 %v2225
          %2364 = vmatprep.subr.bf16.mxu0 %v2228
          %2365 = vmatpush1.bf16.msra.mxu0 %v2227
          %2366 = vmatprep.subr.bf16.mxu0 %v2230
          %2367 = vmatpush1.bf16.msra.mxu0 %v2229
          %2368 = vmatprep.subr.bf16.mxu0 %v2232
          %2369 = vmatpush1.bf16.msra.mxu0 %v2231
          %2370 = vmatprep.subr.bf16.mxu0 %v2234
          %2371 = vmatpush1.bf16.msra.mxu0 %v2233
          %2372 = vmatprep.mubr.bf16.mxu0 %v1507
          %2373 = vmatmul.mubr.bf16.gmra.mrb[0].mxu0 %v1506
          %v2374 = vpop.f32.mrb[0].mxu0
          %v2375 = vadd.f32 %v2334, %v2374
          %v2376 = vpop.f32.mrb[0].mxu0
          %v2377 = vadd.f32 %v2336, %v2376
          %v2378 = vpop.f32.mrb[0].mxu0
          %v2379 = vpop.f32.mrb[0].mxu0
          %2380 = vdwg.mxu0
          %v2383 = vrot.slane %v2375, 7
          %v2384 = vrot.slane %v2377, 7
          %vm2387 = vcmask 1040384
          %v2388 = vsel %vm2387, %v1908, %v2383
          %v2389 = vsel %vm2387, %v1910, %v2384
          %v2390 = vpack.c.bf16 %v2388, %v2388
          %v2391 = vpack.c.bf16 %v2389, %v2389
          %v2394 = vcombine.low %v2390, %v2391
          %v2396 = vunpack.c.l.s4 1966171168
          %v2397 = vunpack.c.0.s8 %v2396
          %v2398 = vlaneseq
          %v2399 = vshrl.u32 %v2398, 7
          %v2400 = vsub.s32 %v2397, %v2399
          %v2401 = vrot.slane %v2394, %v2400
          %v2403 = vunpack.c.l.s4 1966171168
          %v2404 = vunpack.c.0.s8 %v2403
          %v2405 = vlaneseq
          %v2406 = vshrl.u32 %v2405, 7
          %v2407 = vsub.s32 %v2404, %v2406
          %v2408 = vrot.slane %v2401, %v2407
          %vm2410 = vcmask 787457
          %vm2411 = vmor %vm2410, %vm2387
          %2412 = vst.msk [vmem:[#allocation2] sm:$0x3] %vm2411, %v2408
          %v2415 = vrot.slane %v1908, 1
          %v2416 = vrot.slane %v1910, 1
          %v2419 = vsel %vm2387, %v2415, %v2375
          %v2420 = vsel %vm2387, %v2416, %v2377
          %v2421 = vpack.c.bf16 %v2419, %v2419
          %v2422 = vpack.c.bf16 %v2420, %v2420
          %v2425 = vcombine.low %v2421, %v2422
          %v2427 = vunpack.c.l.s4 1966171168
          %v2428 = vunpack.c.0.s8 %v2427
          %v2429 = vlaneseq
          %v2430 = vshrl.u32 %v2429, 7
          %v2431 = vsub.s32 %v2428, %v2430
          %v2432 = vrot.slane %v2425, %v2431
          %v2434 = vunpack.c.l.s4 1966171168
          %v2435 = vunpack.c.0.s8 %v2434
          %v2436 = vlaneseq
          %v2437 = vshrl.u32 %v2436, 7
          %v2438 = vsub.s32 %v2435, %v2437
          %v2439 = vrot.slane %v2432, %v2438
          %s2441 = scalar_lea.vmem [#allocation2], 2
          %2442 = vst.msk [vmem:[%s2441] sm:$0x3] %vm2411, %v2439
          %v2443 = vrot.slane %v1908, 2
          %v2444 = vrot.slane %v1910, 2
          %v2447 = vrot.slane %v2375, 1
          %v2448 = vrot.slane %v2377, 1
          %v2451 = vsel %vm2387, %v2443, %v2447
          %v2452 = vsel %vm2387, %v2444, %v2448
          %v2453 = vpack.c.bf16 %v2451, %v2451
          %v2454 = vpack.c.bf16 %v2452, %v2452
          %v2457 = vcombine.low %v2453, %v2454
          %v2459 = vunpack.c.l.s4 1966171168
          %v2460 = vunpack.c.0.s8 %v2459
          %v2461 = vlaneseq
          %v2462 = vshrl.u32 %v2461, 7
          %v2463 = vsub.s32 %v2460, %v2462
          %v2464 = vrot.slane %v2457, %v2463
          %v2466 = vunpack.c.l.s4 1966171168
          %v2467 = vunpack.c.0.s8 %v2466
          %v2468 = vlaneseq
          %v2469 = vshrl.u32 %v2468, 7
          %v2470 = vsub.s32 %v2467, %v2469
          %v2471 = vrot.slane %v2464, %v2470
          %s2473 = scalar_lea.vmem [#allocation2], 4
          %2474 = vst.msk [vmem:[%s2473] sm:$0x3] %vm2411, %v2471
          %v2475 = vrot.slane %v1908, 3
          %v2476 = vrot.slane %v1910, 3
          %v2479 = vrot.slane %v2375, 2
          %v2480 = vrot.slane %v2377, 2
          %v2483 = vsel %vm2387, %v2475, %v2479
          %v2484 = vsel %vm2387, %v2476, %v2480
          %v2485 = vpack.c.bf16 %v2483, %v2483
          %v2486 = vpack.c.bf16 %v2484, %v2484
          %v2489 = vcombine.low %v2485, %v2486
          %v2491 = vunpack.c.l.s4 1966171168
          %v2492 = vunpack.c.0.s8 %v2491
          %v2493 = vlaneseq
          %v2494 = vshrl.u32 %v2493, 7
          %v2495 = vsub.s32 %v2492, %v2494
          %v2496 = vrot.slane %v2489, %v2495
          %v2498 = vunpack.c.l.s4 1966171168
          %v2499 = vunpack.c.0.s8 %v2498
          %v2500 = vlaneseq
          %v2501 = vshrl.u32 %v2500, 7
          %v2502 = vsub.s32 %v2499, %v2501
          %v2503 = vrot.slane %v2496, %v2502
          %s2505 = scalar_lea.vmem [#allocation2], 6
          %2506 = vst.msk [vmem:[%s2505] sm:$0x3] %vm2411, %v2503
          %v2507 = vrot.slane %v1908, 4
          %v2508 = vrot.slane %v1910, 4
          %v2511 = vrot.slane %v2375, 3
          %v2512 = vrot.slane %v2377, 3
          %v2515 = vsel %vm2387, %v2507, %v2511
          %v2516 = vsel %vm2387, %v2508, %v2512
          %v2517 = vpack.c.bf16 %v2515, %v2515
          %v2518 = vpack.c.bf16 %v2516, %v2516
          %v2521 = vcombine.low %v2517, %v2518
          %v2523 = vunpack.c.l.s4 1966171168
          %v2524 = vunpack.c.0.s8 %v2523
          %v2525 = vlaneseq
          %v2526 = vshrl.u32 %v2525, 7
          %v2527 = vsub.s32 %v2524, %v2526
          %v2528 = vrot.slane %v2521, %v2527
          %v2530 = vunpack.c.l.s4 1966171168
          %v2531 = vunpack.c.0.s8 %v2530
          %v2532 = vlaneseq
          %v2533 = vshrl.u32 %v2532, 7
          %v2534 = vsub.s32 %v2531, %v2533
          %v2535 = vrot.slane %v2528, %v2534
          %s2537 = scalar_lea.vmem [#allocation2], 8
          %2538 = vst.msk [vmem:[%s2537] sm:$0x3] %vm2411, %v2535
          %v2539 = vrot.slane %v1908, 5
          %v2540 = vrot.slane %v1910, 5
          %v2543 = vrot.slane %v2375, 4
          %v2544 = vrot.slane %v2377, 4
          %v2547 = vsel %vm2387, %v2539, %v2543
          %v2548 = vsel %vm2387, %v2540, %v2544
          %v2549 = vpack.c.bf16 %v2547, %v2547
          %v2550 = vpack.c.bf16 %v2548, %v2548
          %v2553 = vcombine.low %v2549, %v2550
          %v2555 = vunpack.c.l.s4 1966171168
          %v2556 = vunpack.c.0.s8 %v2555
          %v2557 = vlaneseq
          %v2558 = vshrl.u32 %v2557, 7
          %v2559 = vsub.s32 %v2556, %v2558
          %v2560 = vrot.slane %v2553, %v2559
          %v2562 = vunpack.c.l.s4 1966171168
          %v2563 = vunpack.c.0.s8 %v2562
          %v2564 = vlaneseq
          %v2565 = vshrl.u32 %v2564, 7
          %v2566 = vsub.s32 %v2563, %v2565
          %v2567 = vrot.slane %v2560, %v2566
          %s2569 = scalar_lea.vmem [#allocation2], 10
          %2570 = vst.msk [vmem:[%s2569] sm:$0x3] %vm2411, %v2567
          %v2571 = vrot.slane %v1908, 6
          %v2572 = vrot.slane %v1910, 6
          %v2575 = vrot.slane %v2375, 5
          %v2576 = vrot.slane %v2377, 5
          %v2579 = vsel %vm2387, %v2571, %v2575
          %v2580 = vsel %vm2387, %v2572, %v2576
          %v2581 = vpack.c.bf16 %v2579, %v2579
          %v2582 = vpack.c.bf16 %v2580, %v2580
          %v2585 = vcombine.low %v2581, %v2582
          %v2587 = vunpack.c.l.s4 1966171168
          %v2588 = vunpack.c.0.s8 %v2587
          %v2589 = vlaneseq
          %v2590 = vshrl.u32 %v2589, 7
          %v2591 = vsub.s32 %v2588, %v2590
          %v2592 = vrot.slane %v2585, %v2591
          %v2594 = vunpack.c.l.s4 1966171168
          %v2595 = vunpack.c.0.s8 %v2594
          %v2596 = vlaneseq
          %v2597 = vshrl.u32 %v2596, 7
          %v2598 = vsub.s32 %v2595, %v2597
          %v2599 = vrot.slane %v2592, %v2598
          %s2601 = scalar_lea.vmem [#allocation2], 12
          %2602 = vst.msk [vmem:[%s2601] sm:$0x3] %vm2411, %v2599
          %v2603 = vrot.slane %v1908, 7
          %v2604 = vrot.slane %v1910, 7
          %v2607 = vrot.slane %v2375, 6
          %v2608 = vrot.slane %v2377, 6
          %v2611 = vsel %vm2387, %v2603, %v2607
          %v2612 = vsel %vm2387, %v2604, %v2608
          %v2613 = vpack.c.bf16 %v2611, %v2611
          %v2614 = vpack.c.bf16 %v2612, %v2612
          %v2617 = vcombine.low %v2613, %v2614
          %v2619 = vunpack.c.l.s4 1966171168
          %v2620 = vunpack.c.0.s8 %v2619
          %v2621 = vlaneseq
          %v2622 = vshrl.u32 %v2621, 7
          %v2623 = vsub.s32 %v2620, %v2622
          %v2624 = vrot.slane %v2617, %v2623
          %v2626 = vunpack.c.l.s4 1966171168
          %v2627 = vunpack.c.0.s8 %v2626
          %v2628 = vlaneseq
          %v2629 = vshrl.u32 %v2628, 7
          %v2630 = vsub.s32 %v2627, %v2629
          %v2631 = vrot.slane %v2624, %v2630
          %s2633 = scalar_lea.vmem [#allocation2], 14
          %2634 = vst.msk [vmem:[%s2633] sm:$0x3] %vm2411, %v2631
        $region98: #{structure_aware_forward.1} parent=89 // pred_fallthru
          _
        %v2635 = vld [vmem:[%s1328] sm:$0xff]
        %v2636 = vld [vmem:[%s1328 + $0x8] sm:$0xff]
        %v2637 = vld [vmem:[%s1328 + $0x10] sm:$0xff]
        %v2638 = vld [vmem:[%s1328 + $0x18] sm:$0xff]
        %v2639 = vld [vmem:[%s1328 + $0x20] sm:$0xff]
        %v2640 = vld [vmem:[%s1328 + $0x28] sm:$0xff]
        %v2641 = vld [vmem:[%s1328 + $0x30] sm:$0xff]
        %v2642 = vld [vmem:[%s1328 + $0x38] sm:$0xff]
        %v2643 = vld [vmem:[%s1328 + $0x40] sm:$0xff]
        %v2644 = vld [vmem:[%s1328 + $0x48] sm:$0xff]
        %v2645 = vld [vmem:[%s1328 + $0x50] sm:$0xff]
        %v2646 = vld [vmem:[%s1328 + $0x58] sm:$0xff]
        %v2647 = vld [vmem:[%s1328 + $0x60] sm:$0xff]
        %v2648 = vld [vmem:[%s1328 + $0x68] sm:$0xff]
        %v2649 = vld [vmem:[%s1328 + $0x70] sm:$0xff]
        %v2650 = vld [vmem:[%s1328 + $0x78] sm:$0xff]
        %v2651 = vld [vmem:[%s1328 + $0x80] sm:$0xff]
        %v2652 = vld [vmem:[%s1328 + $0x88] sm:$0xff]
        %v2653 = vld [vmem:[%s1328 + $0x90] sm:$0xff]
        %v2654 = vld [vmem:[%s1328 + $0x98] sm:$0xff]
        %v2655 = vld [vmem:[%s1328 + $0xa0] sm:$0xff]
        %v2656 = vld [vmem:[%s1328 + $0xa8] sm:$0xff]
        %v2657 = vld [vmem:[%s1328 + $0xb0] sm:$0xff]
        %v2658 = vld [vmem:[%s1328 + $0xb8] sm:$0xff]
        %v2659 = vld [vmem:[%s1328 + $0xc0] sm:$0xff]
        %v2660 = vld [vmem:[%s1328 + $0xc8] sm:$0xff]
        %v2661 = vld [vmem:[%s1328 + $0xd0] sm:$0xff]
        %v2662 = vld [vmem:[%s1328 + $0xd8] sm:$0xff]
        %v2663 = vld [vmem:[%s1328 + $0xe0] sm:$0x55]
        %v2664 = vunpack.c.l.s8.bf16 %v2635
        %v2665 = vunpack.c.h.s8.bf16 %v2635
        %v2666 = vunpack.c.l.s8.bf16 %v2636
        %v2667 = vunpack.c.h.s8.bf16 %v2636
        %v2668 = vunpack.c.l.s8.bf16 %v2637
        %v2669 = vunpack.c.h.s8.bf16 %v2637
        %v2670 = vunpack.c.l.s8.bf16 %v2638
        %v2671 = vunpack.c.h.s8.bf16 %v2638
        %v2672 = vunpack.c.l.s8.bf16 %v2639
        %v2673 = vunpack.c.h.s8.bf16 %v2639
        %v2674 = vunpack.c.l.s8.bf16 %v2640
        %v2675 = vunpack.c.h.s8.bf16 %v2640
        %v2676 = vunpack.c.l.s8.bf16 %v2641
        %v2677 = vunpack.c.h.s8.bf16 %v2641
        %v2678 = vunpack.c.l.s8.bf16 %v2642
        %v2679 = vunpack.c.h.s8.bf16 %v2642
        %v2680 = vunpack.c.l.s8.bf16 %v2643
        %v2681 = vunpack.c.h.s8.bf16 %v2643
        %v2682 = vunpack.c.l.s8.bf16 %v2644
        %v2683 = vunpack.c.h.s8.bf16 %v2644
        %v2684 = vunpack.c.l.s8.bf16 %v2645
        %v2685 = vunpack.c.h.s8.bf16 %v2645
        %v2686 = vunpack.c.l.s8.bf16 %v2646
        %v2687 = vunpack.c.h.s8.bf16 %v2646
        %v2688 = vunpack.c.l.s8.bf16 %v2647
        %v2689 = vunpack.c.h.s8.bf16 %v2647
        %v2690 = vunpack.c.l.s8.bf16 %v2648
        %v2691 = vunpack.c.h.s8.bf16 %v2648
        %v2692 = vunpack.c.l.s8.bf16 %v2649
        %v2693 = vunpack.c.h.s8.bf16 %v2649
        %v2694 = vunpack.c.l.s8.bf16 %v2650
        %v2695 = vunpack.c.h.s8.bf16 %v2650
        %v2696 = vunpack.c.l.s8.bf16 %v2651
        %v2697 = vunpack.c.h.s8.bf16 %v2651
        %v2698 = vunpack.c.l.s8.bf16 %v2652
        %v2699 = vunpack.c.h.s8.bf16 %v2652
        %v2700 = vunpack.c.l.s8.bf16 %v2653
        %v2701 = vunpack.c.h.s8.bf16 %v2653
        %v2702 = vunpack.c.l.s8.bf16 %v2654
        %v2703 = vunpack.c.h.s8.bf16 %v2654
        %v2704 = vunpack.c.l.s8.bf16 %v2655
        %v2705 = vunpack.c.h.s8.bf16 %v2655
        %v2706 = vunpack.c.l.s8.bf16 %v2656
        %v2707 = vunpack.c.h.s8.bf16 %v2656
        %v2708 = vunpack.c.l.s8.bf16 %v2657
        %v2709 = vunpack.c.h.s8.bf16 %v2657
        %v2710 = vunpack.c.l.s8.bf16 %v2658
        %v2711 = vunpack.c.h.s8.bf16 %v2658
        %v2712 = vunpack.c.l.s8.bf16 %v2659
        %v2713 = vunpack.c.h.s8.bf16 %v2659
        %v2714 = vunpack.c.l.s8.bf16 %v2660
        %v2715 = vunpack.c.h.s8.bf16 %v2660
        %v2716 = vunpack.c.l.s8.bf16 %v2661
        %v2717 = vunpack.c.h.s8.bf16 %v2661
        %v2718 = vunpack.c.l.s8.bf16 %v2662
        %v2719 = vunpack.c.h.s8.bf16 %v2662
        %v2720 = vunpack.c.l.s8.bf16 %v2663
        %v2721 = vunpack.c.h.s8.bf16 %v2663
        %v2722 = vld [vmem:[#allocation2] sm:$0x3]
        %s2723 = scalar_lea.vmem %s1328, 232 [#allocation3]
        %v2724 = vld [vmem:[%s2723] sm:$0xff]
        %v2725 = vld [vmem:[%s2723 + $0x8] sm:$0xff]
        %v2726 = vld [vmem:[%s2723 + $0x10] sm:$0xff]
        %v2727 = vld [vmem:[%s2723 + $0x18] sm:$0xff]
        %v2728 = vld [vmem:[%s2723 + $0x20] sm:$0xff]
        %v2729 = vld [vmem:[%s2723 + $0x28] sm:$0xff]
        %v2730 = vld [vmem:[%s2723 + $0x30] sm:$0xff]
        %v2731 = vld [vmem:[%s2723 + $0x38] sm:$0xff]
        %v2732 = vld [vmem:[%s2723 + $0x40] sm:$0xff]
        %v2733 = vld [vmem:[%s2723 + $0x48] sm:$0xff]
        %v2734 = vld [vmem:[%s2723 + $0x50] sm:$0xff]
        %v2735 = vld [vmem:[%s2723 + $0x58] sm:$0xff]
        %v2736 = vld [vmem:[%s2723 + $0x60] sm:$0xff]
        %v2737 = vld [vmem:[%s2723 + $0x68] sm:$0xff]
        %v2738 = vld [vmem:[%s2723 + $0x70] sm:$0xff]
        %v2739 = vld [vmem:[%s2723 + $0x78] sm:$0xff]
        %v2740 = vld [vmem:[%s2723 + $0x80] sm:$0xff]
        %v2741 = vld [vmem:[%s2723 + $0x88] sm:$0xff]
        %v2742 = vld [vmem:[%s2723 + $0x90] sm:$0xff]
        %v2743 = vld [vmem:[%s2723 + $0x98] sm:$0xff]
        %v2744 = vld [vmem:[%s2723 + $0xa0] sm:$0xff]
        %v2745 = vld [vmem:[%s2723 + $0xa8] sm:$0xff]
        %v2746 = vld [vmem:[%s2723 + $0xb0] sm:$0xff]
        %v2747 = vld [vmem:[%s2723 + $0xb8] sm:$0xff]
        %v2748 = vld [vmem:[%s2723 + $0xc0] sm:$0xff]
        %v2749 = vld [vmem:[%s2723 + $0xc8] sm:$0xff]
        %v2750 = vld [vmem:[%s2723 + $0xd0] sm:$0xff]
        %v2751 = vld [vmem:[%s2723 + $0xd8] sm:$0xff]
        %v2752 = vld [vmem:[%s2723 + $0xe0] sm:$0x55]
        %v2753 = vunpack.c.l.s8.bf16 %v2724
        %v2754 = vunpack.c.h.s8.bf16 %v2724
        %v2755 = vunpack.c.l.s8.bf16 %v2725
        %v2756 = vunpack.c.h.s8.bf16 %v2725
        %v2757 = vunpack.c.l.s8.bf16 %v2726
        %v2758 = vunpack.c.h.s8.bf16 %v2726
        %v2759 = vunpack.c.l.s8.bf16 %v2727
        %v2760 = vunpack.c.h.s8.bf16 %v2727
        %v2761 = vunpack.c.l.s8.bf16 %v2728
        %v2762 = vunpack.c.h.s8.bf16 %v2728
        %v2763 = vunpack.c.l.s8.bf16 %v2729
        %v2764 = vunpack.c.h.s8.bf16 %v2729
        %v2765 = vunpack.c.l.s8.bf16 %v2730
        %v2766 = vunpack.c.h.s8.bf16 %v2730
        %v2767 = vunpack.c.l.s8.bf16 %v2731
        %v2768 = vunpack.c.h.s8.bf16 %v2731
        %v2769 = vunpack.c.l.s8.bf16 %v2732
        %v2770 = vunpack.c.h.s8.bf16 %v2732
        %v2771 = vunpack.c.l.s8.bf16 %v2733
        %v2772 = vunpack.c.h.s8.bf16 %v2733
        %v2773 = vunpack.c.l.s8.bf16 %v2734
        %v2774 = vunpack.c.h.s8.bf16 %v2734
        %v2775 = vunpack.c.l.s8.bf16 %v2735
        %v2776 = vunpack.c.h.s8.bf16 %v2735
        %v2777 = vunpack.c.l.s8.bf16 %v2736
        %v2778 = vunpack.c.h.s8.bf16 %v2736
        %v2779 = vunpack.c.l.s8.bf16 %v2737
        %v2780 = vunpack.c.h.s8.bf16 %v2737
        %v2781 = vunpack.c.l.s8.bf16 %v2738
        %v2782 = vunpack.c.h.s8.bf16 %v2738
        %v2783 = vunpack.c.l.s8.bf16 %v2739
        %v2784 = vunpack.c.h.s8.bf16 %v2739
        %v2785 = vunpack.c.l.s8.bf16 %v2740
        %v2786 = vunpack.c.h.s8.bf16 %v2740
        %v2787 = vunpack.c.l.s8.bf16 %v2741
        %v2788 = vunpack.c.h.s8.bf16 %v2741
        %v2789 = vunpack.c.l.s8.bf16 %v2742
        %v2790 = vunpack.c.h.s8.bf16 %v2742
        %v2791 = vunpack.c.l.s8.bf16 %v2743
        %v2792 = vunpack.c.h.s8.bf16 %v2743
        %v2793 = vunpack.c.l.s8.bf16 %v2744
        %v2794 = vunpack.c.h.s8.bf16 %v2744
        %v2795 = vunpack.c.l.s8.bf16 %v2745
        %v2796 = vunpack.c.h.s8.bf16 %v2745
        %v2797 = vunpack.c.l.s8.bf16 %v2746
        %v2798 = vunpack.c.h.s8.bf16 %v2746
        %v2799 = vunpack.c.l.s8.bf16 %v2747
        %v2800 = vunpack.c.h.s8.bf16 %v2747
        %v2801 = vunpack.c.l.s8.bf16 %v2748
        %v2802 = vunpack.c.h.s8.bf16 %v2748
        %v2803 = vunpack.c.l.s8.bf16 %v2749
        %v2804 = vunpack.c.h.s8.bf16 %v2749
        %v2805 = vunpack.c.l.s8.bf16 %v2750
        %v2806 = vunpack.c.h.s8.bf16 %v2750
        %v2807 = vunpack.c.l.s8.bf16 %v2751
        %v2808 = vunpack.c.h.s8.bf16 %v2751
        %v2809 = vunpack.c.l.s8.bf16 %v2752
        %v2810 = vunpack.c.h.s8.bf16 %v2752
        %s2811 = scalar_lea.vmem [#allocation2], 2
        %v2812 = vld [vmem:[%s2811] sm:$0x3]
        %v2815 = vunpack.c.l.s4 1966171168
        %v2816 = vunpack.c.0.s8 %v2815
        %v2817 = vlaneseq
        %v2818 = vshrl.u32 %v2817, 7
        %v2819 = vsub.s32 %v2816, %v2818
        %v2820 = vrot.slane %v2812, %v2819
        %v2821 = vcombine.high %v2820, %v2820
        %v2823 = vunpack.c.l.s4 1966171168
        %v2824 = vunpack.c.0.s8 %v2823
        %v2825 = vlaneseq
        %v2826 = vshrl.u32 %v2825, 7
        %v2827 = vsub.s32 %v2824, %v2826
        %v2828 = vrot.slane %v2820, %v2827
        %v2830 = vunpack.c.l.s4 1966171168
        %v2831 = vunpack.c.0.s8 %v2830
        %v2832 = vlaneseq
        %v2833 = vshrl.u32 %v2832, 7
        %v2834 = vsub.s32 %v2831, %v2833
        %v2835 = vrot.slane %v2821, %v2834
        %v2895 = vunpack.c.l.b16 %v2753
        %v2896 = vunpack.c.h.b16 %v2753
        %v2897 = vunpack.c.l.b16 %v2754
        %v2898 = vunpack.c.h.b16 %v2754
        %v2899 = vunpack.c.l.b16 %v2755
        %v2900 = vunpack.c.h.b16 %v2755
        %v2901 = vunpack.c.l.b16 %v2756
        %v2902 = vunpack.c.h.b16 %v2756
        %v2903 = vunpack.c.l.b16 %v2757
        %v2904 = vunpack.c.h.b16 %v2757
        %v2905 = vunpack.c.l.b16 %v2758
        %v2906 = vunpack.c.h.b16 %v2758
        %v2907 = vunpack.c.l.b16 %v2759
        %v2908 = vunpack.c.h.b16 %v2759
        %v2909 = vunpack.c.l.b16 %v2760
        %v2910 = vunpack.c.h.b16 %v2760
        %v2911 = vunpack.c.l.b16 %v2761
        %v2912 = vunpack.c.h.b16 %v2761
        %v2913 = vunpack.c.l.b16 %v2762
        %v2914 = vunpack.c.h.b16 %v2762
        %v2915 = vunpack.c.l.b16 %v2763
        %v2916 = vunpack.c.h.b16 %v2763
        %v2917 = vunpack.c.l.b16 %v2764
        %v2918 = vunpack.c.h.b16 %v2764
        %v2919 = vunpack.c.l.b16 %v2765
        %v2920 = vunpack.c.h.b16 %v2765
        %v2921 = vunpack.c.l.b16 %v2766
        %v2922 = vunpack.c.h.b16 %v2766
        %v2923 = vunpack.c.l.b16 %v2767
        %v2924 = vunpack.c.h.b16 %v2767
        %v2925 = vunpack.c.l.b16 %v2768
        %v2926 = vunpack.c.h.b16 %v2768
        %v2927 = vunpack.c.l.b16 %v2769
        %v2928 = vunpack.c.h.b16 %v2769
        %v2929 = vunpack.c.l.b16 %v2770
        %v2930 = vunpack.c.h.b16 %v2770
        %v2931 = vunpack.c.l.b16 %v2771
        %v2932 = vunpack.c.h.b16 %v2771
        %v2933 = vunpack.c.l.b16 %v2772
        %v2934 = vunpack.c.h.b16 %v2772
        %v2935 = vunpack.c.l.b16 %v2773
        %v2936 = vunpack.c.h.b16 %v2773
        %v2937 = vunpack.c.l.b16 %v2774
        %v2938 = vunpack.c.h.b16 %v2774
        %v2939 = vunpack.c.l.b16 %v2775
        %v2940 = vunpack.c.h.b16 %v2775
        %v2941 = vunpack.c.l.b16 %v2776
        %v2942 = vunpack.c.h.b16 %v2776
        %v2943 = vunpack.c.l.b16 %v2777
        %v2944 = vunpack.c.h.b16 %v2777
        %v2945 = vunpack.c.l.b16 %v2778
        %v2946 = vunpack.c.h.b16 %v2778
        %v2947 = vunpack.c.l.b16 %v2779
        %v2948 = vunpack.c.h.b16 %v2779
        %v2949 = vunpack.c.l.b16 %v2780
        %v2950 = vunpack.c.h.b16 %v2780
        %v2951 = vunpack.c.l.b16 %v2781
        %v2952 = vunpack.c.h.b16 %v2781
        %v2953 = vunpack.c.l.b16 %v2782
        %v2954 = vunpack.c.h.b16 %v2782
        %v2955 = vunpack.c.l.b16 %v2783
        %v2956 = vunpack.c.h.b16 %v2783
        %v2957 = vunpack.c.l.b16 %v2784
        %v2958 = vunpack.c.h.b16 %v2784
        %v2959 = vunpack.c.l.b16 %v2785
        %v2960 = vunpack.c.h.b16 %v2785
        %v2961 = vunpack.c.l.b16 %v2786
        %v2962 = vunpack.c.h.b16 %v2786
        %v2963 = vunpack.c.l.b16 %v2787
        %v2964 = vunpack.c.h.b16 %v2787
        %v2965 = vunpack.c.l.b16 %v2788
        %v2966 = vunpack.c.h.b16 %v2788
        %v2967 = vunpack.c.l.b16 %v2789
        %v2968 = vunpack.c.h.b16 %v2789
        %v2969 = vunpack.c.l.b16 %v2790
        %v2970 = vunpack.c.h.b16 %v2790
        %v2971 = vunpack.c.l.b16 %v2791
        %v2972 = vunpack.c.h.b16 %v2791
        %v2973 = vunpack.c.l.b16 %v2792
        %v2974 = vunpack.c.h.b16 %v2792
        %v2975 = vunpack.c.l.b16 %v2793
        %v2976 = vunpack.c.h.b16 %v2793
        %v2977 = vunpack.c.l.b16 %v2794
        %v2978 = vunpack.c.h.b16 %v2794
        %v2979 = vunpack.c.l.b16 %v2795
        %v2980 = vunpack.c.h.b16 %v2795
        %v2981 = vunpack.c.l.b16 %v2796
        %v2982 = vunpack.c.h.b16 %v2796
        %v2983 = vunpack.c.l.b16 %v2797
        %v2984 = vunpack.c.h.b16 %v2797
        %v2985 = vunpack.c.l.b16 %v2798
        %v2986 = vunpack.c.h.b16 %v2798
        %v2987 = vunpack.c.l.b16 %v2799
        %v2988 = vunpack.c.h.b16 %v2799
        %v2989 = vunpack.c.l.b16 %v2800
        %v2990 = vunpack.c.h.b16 %v2800
        %v2991 = vunpack.c.l.b16 %v2801
        %v2992 = vunpack.c.h.b16 %v2801
        %v2993 = vunpack.c.l.b16 %v2802
        %v2994 = vunpack.c.h.b16 %v2802
        %v2995 = vunpack.c.l.b16 %v2803
        %v2996 = vunpack.c.h.b16 %v2803
        %v2997 = vunpack.c.l.b16 %v2804
        %v2998 = vunpack.c.h.b16 %v2804
        %v2999 = vunpack.c.l.b16 %v2805
        %v3000 = vunpack.c.h.b16 %v2805
        %v3001 = vunpack.c.l.b16 %v2806
        %v3002 = vunpack.c.h.b16 %v2806
        %v3003 = vunpack.c.l.b16 %v2807
        %v3004 = vunpack.c.h.b16 %v2807
        %v3005 = vunpack.c.l.b16 %v2808
        %v3006 = vunpack.c.h.b16 %v2808
        %v3007 = vunpack.c.l.b16 %v2809
        %v3008 = vunpack.c.h.b16 %v2809
        %v3009 = vunpack.c.l.b16 %v2810
        %v3010 = vunpack.c.h.b16 %v2810
        %v3011 = vpack.c.b16 %v2899, %v2895
        %v3012 = vpack.c.b16 %v2900, %v2896
        %v3013 = vpack.c.b16 %v2901, %v2897
        %v3014 = vpack.c.b16 %v2902, %v2898
        %v3015 = vpack.c.b16 %v2907, %v2903
        %v3016 = vpack.c.b16 %v2908, %v2904
        %v3017 = vpack.c.b16 %v2909, %v2905
        %v3018 = vpack.c.b16 %v2910, %v2906
        %v3019 = vpack.c.b16 %v2915, %v2911
        %v3020 = vpack.c.b16 %v2916, %v2912
        %v3021 = vpack.c.b16 %v2917, %v2913
        %v3022 = vpack.c.b16 %v2918, %v2914
        %v3023 = vpack.c.b16 %v2923, %v2919
        %v3024 = vpack.c.b16 %v2924, %v2920
        %v3025 = vpack.c.b16 %v2925, %v2921
        %v3026 = vpack.c.b16 %v2926, %v2922
        %v3027 = vpack.c.b16 %v2931, %v2927
        %v3028 = vpack.c.b16 %v2932, %v2928
        %v3029 = vpack.c.b16 %v2933, %v2929
        %v3030 = vpack.c.b16 %v2934, %v2930
        %v3031 = vpack.c.b16 %v2939, %v2935
        %v3032 = vpack.c.b16 %v2940, %v2936
        %v3033 = vpack.c.b16 %v2941, %v2937
        %v3034 = vpack.c.b16 %v2942, %v2938
        %v3035 = vpack.c.b16 %v2947, %v2943
        %v3036 = vpack.c.b16 %v2948, %v2944
        %v3037 = vpack.c.b16 %v2949, %v2945
        %v3038 = vpack.c.b16 %v2950, %v2946
        %v3039 = vpack.c.b16 %v2955, %v2951
        %v3040 = vpack.c.b16 %v2956, %v2952
        %v3041 = vpack.c.b16 %v2957, %v2953
        %v3042 = vpack.c.b16 %v2958, %v2954
        %v3043 = vpack.c.b16 %v2963, %v2959
        %v3044 = vpack.c.b16 %v2964, %v2960
        %v3045 = vpack.c.b16 %v2965, %v2961
        %v3046 = vpack.c.b16 %v2966, %v2962
        %v3047 = vpack.c.b16 %v2971, %v2967
        %v3048 = vpack.c.b16 %v2972, %v2968
        %v3049 = vpack.c.b16 %v2973, %v2969
        %v3050 = vpack.c.b16 %v2974, %v2970
        %v3051 = vpack.c.b16 %v2979, %v2975
        %v3052 = vpack.c.b16 %v2980, %v2976
        %v3053 = vpack.c.b16 %v2981, %v2977
        %v3054 = vpack.c.b16 %v2982, %v2978
        %v3055 = vpack.c.b16 %v2987, %v2983
        %v3056 = vpack.c.b16 %v2988, %v2984
        %v3057 = vpack.c.b16 %v2989, %v2985
        %v3058 = vpack.c.b16 %v2990, %v2986
        %v3059 = vpack.c.b16 %v2995, %v2991
        %v3060 = vpack.c.b16 %v2996, %v2992
        %v3061 = vpack.c.b16 %v2997, %v2993
        %v3062 = vpack.c.b16 %v2998, %v2994
        %v3063 = vpack.c.b16 %v3003, %v2999
        %v3064 = vpack.c.b16 %v3004, %v3000
        %v3065 = vpack.c.b16 %v3005, %v3001
        %v3066 = vpack.c.b16 %v3006, %v3002
        %v3067 = vpack.c.b16 %v3007, %v3007
        %v3068 = vpack.c.b16 %v3008, %v3008
        %v3069 = vpack.c.b16 %v3009, %v3009
        %v3070 = vpack.c.b16 %v3010, %v3010
        %vm3127 = vcmask 793600
        %v3129 = vsel %vm3127, %v2835, 0
        %vm3131 = vcmask 1040384
        %v3132 = vsel 0, 4294967295, 65535
        %v3133 = vsel %vm3131, %v3132, 0
        %v3135 = vand.u32 %v3067, %v3133
        %v3138 = vand.u32 %v3068, %v3133
        %v3141 = vand.u32 %v3069, %v3133
        %v3144 = vand.u32 %v3070, %v3133
        %3146 = vmatprep.subr.bf16.mxu0 %v3012
        %3147 = vmatpush1.bf16.msra.mxu0 %v3011
        %3148 = vmatprep.subr.bf16.mxu0 %v3016
        %3149 = vmatpush1.bf16.msra.mxu0 %v3015
        %3150 = vmatprep.subr.bf16.mxu0 %v3020
        %3151 = vmatpush1.bf16.msra.mxu0 %v3019
        %3152 = vmatprep.subr.bf16.mxu0 %v3024
        %3153 = vmatpush1.bf16.msra.mxu0 %v3023
        %3154 = vmatprep.subr.bf16.mxu0 %v3028
        %3155 = vmatpush1.bf16.msra.mxu0 %v3027
        %3156 = vmatprep.subr.bf16.mxu0 %v3032
        %3157 = vmatpush1.bf16.msra.mxu0 %v3031
        %3158 = vmatprep.subr.bf16.mxu0 %v3036
        %3159 = vmatpush1.bf16.msra.mxu0 %v3035
        %3160 = vmatprep.subr.bf16.mxu0 %v3040
        %3161 = vmatpush1.bf16.msra.mxu0 %v3039
        %3162 = vmatprep.subr.bf16.mxu0 %v3044
        %3163 = vmatpush1.bf16.msra.mxu0 %v3043
        %3164 = vmatprep.subr.bf16.mxu0 %v3048
        %3165 = vmatpush1.bf16.msra.mxu0 %v3047
        %3166 = vmatprep.subr.bf16.mxu0 %v3052
        %3167 = vmatpush1.bf16.msra.mxu0 %v3051
        %3168 = vmatprep.subr.bf16.mxu0 %v3056
        %3169 = vmatpush1.bf16.msra.mxu0 %v3055
        %3170 = vmatprep.subr.bf16.mxu0 %v3060
        %3171 = vmatpush1.bf16.msra.mxu0 %v3059
        %3172 = vmatprep.subr.bf16.mxu0 %v3064
        %3173 = vmatpush1.bf16.msra.mxu0 %v3063
        %3174 = vmatprep.subr.bf16.mxu0 %v3138
        %3175 = vmatpush1.bf16.msra.mxu0 %v3135
        %3176 = vmatprep.subr.bf16.mxu0 0
        %3177 = vmatpush1.bf16.msra.mxu0 0
        %3178 = vmatprep.mubr.bf16.mxu0 %v3129
        %3179 = vmatmul.mubr.bf16.gmra.mrb[0].mxu0 %v2828
        %v3180 = vpop.f32.mrb[0].mxu0
        %v3181 = vadd.f32 0.0, %v3180
        %v3182 = vpop.f32.mrb[0].mxu0
        %v3183 = vadd.f32 0.0, %v3182
        %v3184 = vpop.f32.mrb[0].mxu0
        %v3185 = vpop.f32.mrb[0].mxu0
        %3186 = vdwg.mxu0
        %3187 = vmatprep.subr.bf16.mxu0 %v3014
        %3188 = vmatpush1.bf16.msra.mxu0 %v3013
        %3189 = vmatprep.subr.bf16.mxu0 %v3018
        %3190 = vmatpush1.bf16.msra.mxu0 %v3017
        %3191 = vmatprep.subr.bf16.mxu0 %v3022
        %3192 = vmatpush1.bf16.msra.mxu0 %v3021
        %3193 = vmatprep.subr.bf16.mxu0 %v3026
        %3194 = vmatpush1.bf16.msra.mxu0 %v3025
        %3195 = vmatprep.subr.bf16.mxu0 %v3030
        %3196 = vmatpush1.bf16.msra.mxu0 %v3029
        %3197 = vmatprep.subr.bf16.mxu0 %v3034
        %3198 = vmatpush1.bf16.msra.mxu0 %v3033
        %3199 = vmatprep.subr.bf16.mxu0 %v3038
        %3200 = vmatpush1.bf16.msra.mxu0 %v3037
        %3201 = vmatprep.subr.bf16.mxu0 %v3042
        %3202 = vmatpush1.bf16.msra.mxu0 %v3041
        %3203 = vmatprep.subr.bf16.mxu0 %v3046
        %3204 = vmatpush1.bf16.msra.mxu0 %v3045
        %3205 = vmatprep.subr.bf16.mxu0 %v3050
        %3206 = vmatpush1.bf16.msra.mxu0 %v3049
        %3207 = vmatprep.subr.bf16.mxu0 %v3054
        %3208 = vmatpush1.bf16.msra.mxu0 %v3053
        %3209 = vmatprep.subr.bf16.mxu0 %v3058
        %3210 = vmatpush1.bf16.msra.mxu0 %v3057
        %3211 = vmatprep.subr.bf16.mxu0 %v3062
        %3212 = vmatpush1.bf16.msra.mxu0 %v3061
        %3213 = vmatprep.subr.bf16.mxu0 %v3066
        %3214 = vmatpush1.bf16.msra.mxu0 %v3065
        %3215 = vmatprep.subr.bf16.mxu0 %v3144
        %3216 = vmatpush1.bf16.msra.mxu0 %v3141
        %3217 = vmatprep.subr.bf16.mxu0 0
        %3218 = vmatpush1.bf16.msra.mxu0 0
        %3219 = vmatprep.mubr.bf16.mxu0 %v3129
        %3220 = vmatmul.mubr.bf16.gmra.mrb[0].mxu0 %v2828
        %v3221 = vpop.f32.mrb[0].mxu0
        %v3222 = vadd.f32 0.0, %v3221
        %v3223 = vpop.f32.mrb[0].mxu0
        %v3224 = vadd.f32 0.0, %v3223
        %v3225 = vpop.f32.mrb[0].mxu0
        %v3226 = vpop.f32.mrb[0].mxu0
        %3227 = vdwg.mxu0
        %v3230 = vunpack.c.l.s4 1966171168
        %v3231 = vunpack.c.0.s8 %v3230
        %v3232 = vlaneseq
        %v3233 = vshrl.u32 %v3232, 7
        %v3234 = vsub.s32 %v3231, %v3233
        %v3235 = vrot.slane %v2722, %v3234
        %v3236 = vcombine.high %v3235, %v3235
        %v3238 = vunpack.c.l.s4 1966171168
        %v3239 = vunpack.c.0.s8 %v3238
        %v3240 = vlaneseq
        %v3241 = vshrl.u32 %v3240, 7
        %v3242 = vsub.s32 %v3239, %v3241
        %v3243 = vrot.slane %v3235, %v3242
        %v3245 = vunpack.c.l.s4 1966171168
        %v3246 = vunpack.c.0.s8 %v3245
        %v3247 = vlaneseq
        %v3248 = vshrl.u32 %v3247, 7
        %v3249 = vsub.s32 %v3246, %v3248
        %v3250 = vrot.slane %v3236, %v3249
        %v3310 = vunpack.c.l.b16 %v2664
        %v3311 = vunpack.c.h.b16 %v2664
        %v3312 = vunpack.c.l.b16 %v2665
        %v3313 = vunpack.c.h.b16 %v2665
        %v3314 = vunpack.c.l.b16 %v2666
        %v3315 = vunpack.c.h.b16 %v2666
        %v3316 = vunpack.c.l.b16 %v2667
        %v3317 = vunpack.c.h.b16 %v2667
        %v3318 = vunpack.c.l.b16 %v2668
        %v3319 = vunpack.c.h.b16 %v2668
        %v3320 = vunpack.c.l.b16 %v2669
        %v3321 = vunpack.c.h.b16 %v2669
        %v3322 = vunpack.c.l.b16 %v2670
        %v3323 = vunpack.c.h.b16 %v2670
        %v3324 = vunpack.c.l.b16 %v2671
        %v3325 = vunpack.c.h.b16 %v2671
        %v3326 = vunpack.c.l.b16 %v2672
        %v3327 = vunpack.c.h.b16 %v2672
        %v3328 = vunpack.c.l.b16 %v2673
        %v3329 = vunpack.c.h.b16 %v2673
        %v3330 = vunpack.c.l.b16 %v2674
        %v3331 = vunpack.c.h.b16 %v2674
        %v3332 = vunpack.c.l.b16 %v2675
        %v3333 = vunpack.c.h.b16 %v2675
        %v3334 = vunpack.c.l.b16 %v2676
        %v3335 = vunpack.c.h.b16 %v2676
        %v3336 = vunpack.c.l.b16 %v2677
        %v3337 = vunpack.c.h.b16 %v2677
        %v3338 = vunpack.c.l.b16 %v2678
        %v3339 = vunpack.c.h.b16 %v2678
        %v3340 = vunpack.c.l.b16 %v2679
        %v3341 = vunpack.c.h.b16 %v2679
        %v3342 = vunpack.c.l.b16 %v2680
        %v3343 = vunpack.c.h.b16 %v2680
        %v3344 = vunpack.c.l.b16 %v2681
        %v3345 = vunpack.c.h.b16 %v2681
        %v3346 = vunpack.c.l.b16 %v2682
        %v3347 = vunpack.c.h.b16 %v2682
        %v3348 = vunpack.c.l.b16 %v2683
        %v3349 = vunpack.c.h.b16 %v2683
        %v3350 = vunpack.c.l.b16 %v2684
        %v3351 = vunpack.c.h.b16 %v2684
        %v3352 = vunpack.c.l.b16 %v2685
        %v3353 = vunpack.c.h.b16 %v2685
        %v3354 = vunpack.c.l.b16 %v2686
        %v3355 = vunpack.c.h.b16 %v2686
        %v3356 = vunpack.c.l.b16 %v2687
        %v3357 = vunpack.c.h.b16 %v2687
        %v3358 = vunpack.c.l.b16 %v2688
        %v3359 = vunpack.c.h.b16 %v2688
        %v3360 = vunpack.c.l.b16 %v2689
        %v3361 = vunpack.c.h.b16 %v2689
        %v3362 = vunpack.c.l.b16 %v2690
        %v3363 = vunpack.c.h.b16 %v2690
        %v3364 = vunpack.c.l.b16 %v2691
        %v3365 = vunpack.c.h.b16 %v2691
        %v3366 = vunpack.c.l.b16 %v2692
        %v3367 = vunpack.c.h.b16 %v2692
        %v3368 = vunpack.c.l.b16 %v2693
        %v3369 = vunpack.c.h.b16 %v2693
        %v3370 = vunpack.c.l.b16 %v2694
        %v3371 = vunpack.c.h.b16 %v2694
        %v3372 = vunpack.c.l.b16 %v2695
        %v3373 = vunpack.c.h.b16 %v2695
        %v3374 = vunpack.c.l.b16 %v2696
        %v3375 = vunpack.c.h.b16 %v2696
        %v3376 = vunpack.c.l.b16 %v2697
        %v3377 = vunpack.c.h.b16 %v2697
        %v3378 = vunpack.c.l.b16 %v2698
        %v3379 = vunpack.c.h.b16 %v2698
        %v3380 = vunpack.c.l.b16 %v2699
        %v3381 = vunpack.c.h.b16 %v2699
        %v3382 = vunpack.c.l.b16 %v2700
        %v3383 = vunpack.c.h.b16 %v2700
        %v3384 = vunpack.c.l.b16 %v2701
        %v3385 = vunpack.c.h.b16 %v2701
        %v3386 = vunpack.c.l.b16 %v2702
        %v3387 = vunpack.c.h.b16 %v2702
        %v3388 = vunpack.c.l.b16 %v2703
        %v3389 = vunpack.c.h.b16 %v2703
        %v3390 = vunpack.c.l.b16 %v2704
        %v3391 = vunpack.c.h.b16 %v2704
        %v3392 = vunpack.c.l.b16 %v2705
        %v3393 = vunpack.c.h.b16 %v2705
        %v3394 = vunpack.c.l.b16 %v2706
        %v3395 = vunpack.c.h.b16 %v2706
        %v3396 = vunpack.c.l.b16 %v2707
        %v3397 = vunpack.c.h.b16 %v2707
        %v3398 = vunpack.c.l.b16 %v2708
        %v3399 = vunpack.c.h.b16 %v2708
        %v3400 = vunpack.c.l.b16 %v2709
        %v3401 = vunpack.c.h.b16 %v2709
        %v3402 = vunpack.c.l.b16 %v2710
        %v3403 = vunpack.c.h.b16 %v2710
        %v3404 = vunpack.c.l.b16 %v2711
        %v3405 = vunpack.c.h.b16 %v2711
        %v3406 = vunpack.c.l.b16 %v2712
        %v3407 = vunpack.c.h.b16 %v2712
        %v3408 = vunpack.c.l.b16 %v2713
        %v3409 = vunpack.c.h.b16 %v2713
        %v3410 = vunpack.c.l.b16 %v2714
        %v3411 = vunpack.c.h.b16 %v2714
        %v3412 = vunpack.c.l.b16 %v2715
        %v3413 = vunpack.c.h.b16 %v2715
        %v3414 = vunpack.c.l.b16 %v2716
        %v3415 = vunpack.c.h.b16 %v2716
        %v3416 = vunpack.c.l.b16 %v2717
        %v3417 = vunpack.c.h.b16 %v2717
        %v3418 = vunpack.c.l.b16 %v2718
        %v3419 = vunpack.c.h.b16 %v2718
        %v3420 = vunpack.c.l.b16 %v2719
        %v3421 = vunpack.c.h.b16 %v2719
        %v3422 = vunpack.c.l.b16 %v2720
        %v3423 = vunpack.c.h.b16 %v2720
        %v3424 = vunpack.c.l.b16 %v2721
        %v3425 = vunpack.c.h.b16 %v2721
        %v3426 = vpack.c.b16 %v3314, %v3310
        %v3427 = vpack.c.b16 %v3315, %v3311
        %v3428 = vpack.c.b16 %v3316, %v3312
        %v3429 = vpack.c.b16 %v3317, %v3313
        %v3430 = vpack.c.b16 %v3322, %v3318
        %v3431 = vpack.c.b16 %v3323, %v3319
        %v3432 = vpack.c.b16 %v3324, %v3320
        %v3433 = vpack.c.b16 %v3325, %v3321
        %v3434 = vpack.c.b16 %v3330, %v3326
        %v3435 = vpack.c.b16 %v3331, %v3327
        %v3436 = vpack.c.b16 %v3332, %v3328
        %v3437 = vpack.c.b16 %v3333, %v3329
        %v3438 = vpack.c.b16 %v3338, %v3334
        %v3439 = vpack.c.b16 %v3339, %v3335
        %v3440 = vpack.c.b16 %v3340, %v3336
        %v3441 = vpack.c.b16 %v3341, %v3337
        %v3442 = vpack.c.b16 %v3346, %v3342
        %v3443 = vpack.c.b16 %v3347, %v3343
        %v3444 = vpack.c.b16 %v3348, %v3344
        %v3445 = vpack.c.b16 %v3349, %v3345
        %v3446 = vpack.c.b16 %v3354, %v3350
        %v3447 = vpack.c.b16 %v3355, %v3351
        %v3448 = vpack.c.b16 %v3356, %v3352
        %v3449 = vpack.c.b16 %v3357, %v3353
        %v3450 = vpack.c.b16 %v3362, %v3358
        %v3451 = vpack.c.b16 %v3363, %v3359
        %v3452 = vpack.c.b16 %v3364, %v3360
        %v3453 = vpack.c.b16 %v3365, %v3361
        %v3454 = vpack.c.b16 %v3370, %v3366
        %v3455 = vpack.c.b16 %v3371, %v3367
        %v3456 = vpack.c.b16 %v3372, %v3368
        %v3457 = vpack.c.b16 %v3373, %v3369
        %v3458 = vpack.c.b16 %v3378, %v3374
        %v3459 = vpack.c.b16 %v3379, %v3375
        %v3460 = vpack.c.b16 %v3380, %v3376
        %v3461 = vpack.c.b16 %v3381, %v3377
        %v3462 = vpack.c.b16 %v3386, %v3382
        %v3463 = vpack.c.b16 %v3387, %v3383
        %v3464 = vpack.c.b16 %v3388, %v3384
        %v3465 = vpack.c.b16 %v3389, %v3385
        %v3466 = vpack.c.b16 %v3394, %v3390
        %v3467 = vpack.c.b16 %v3395, %v3391
        %v3468 = vpack.c.b16 %v3396, %v3392
        %v3469 = vpack.c.b16 %v3397, %v3393
        %v3470 = vpack.c.b16 %v3402, %v3398
        %v3471 = vpack.c.b16 %v3403, %v3399
        %v3472 = vpack.c.b16 %v3404, %v3400
        %v3473 = vpack.c.b16 %v3405, %v3401
        %v3474 = vpack.c.b16 %v3410, %v3406
        %v3475 = vpack.c.b16 %v3411, %v3407
        %v3476 = vpack.c.b16 %v3412, %v3408
        %v3477 = vpack.c.b16 %v3413, %v3409
        %v3478 = vpack.c.b16 %v3418, %v3414
        %v3479 = vpack.c.b16 %v3419, %v3415
        %v3480 = vpack.c.b16 %v3420, %v3416
        %v3481 = vpack.c.b16 %v3421, %v3417
        %v3482 = vpack.c.b16 %v3422, %v3422
        %v3483 = vpack.c.b16 %v3423, %v3423
        %v3484 = vpack.c.b16 %v3424, %v3424
        %v3485 = vpack.c.b16 %v3425, %v3425
        %v3543 = vsel %vm3127, %v3250, 0
        %v3546 = vand.u32 %v3482, %v3133
        %v3549 = vand.u32 %v3483, %v3133
        %v3552 = vand.u32 %v3484, %v3133
        %v3555 = vand.u32 %v3485, %v3133
        %3557 = vmatprep.subr.bf16.mxu0 %v3427
        %3558 = vmatpush1.bf16.msra.mxu0 %v3426
        %3559 = vmatprep.subr.bf16.mxu0 %v3431
        %3560 = vmatpush1.bf16.msra.mxu0 %v3430
        %3561 = vmatprep.subr.bf16.mxu0 %v3435
        %3562 = vmatpush1.bf16.msra.mxu0 %v3434
        %3563 = vmatprep.subr.bf16.mxu0 %v3439
        %3564 = vmatpush1.bf16.msra.mxu0 %v3438
        %3565 = vmatprep.subr.bf16.mxu0 %v3443
        %3566 = vmatpush1.bf16.msra.mxu0 %v3442
        %3567 = vmatprep.subr.bf16.mxu0 %v3447
        %3568 = vmatpush1.bf16.msra.mxu0 %v3446
        %3569 = vmatprep.subr.bf16.mxu0 %v3451
        %3570 = vmatpush1.bf16.msra.mxu0 %v3450
        %3571 = vmatprep.subr.bf16.mxu0 %v3455
        %3572 = vmatpush1.bf16.msra.mxu0 %v3454
        %3573 = vmatprep.subr.bf16.mxu0 %v3459
        %3574 = vmatpush1.bf16.msra.mxu0 %v3458
        %3575 = vmatprep.subr.bf16.mxu0 %v3463
        %3576 = vmatpush1.bf16.msra.mxu0 %v3462
        %3577 = vmatprep.subr.bf16.mxu0 %v3467
        %3578 = vmatpush1.bf16.msra.mxu0 %v3466
        %3579 = vmatprep.subr.bf16.mxu0 %v3471
        %3580 = vmatpush1.bf16.msra.mxu0 %v3470
        %3581 = vmatprep.subr.bf16.mxu0 %v3475
        %3582 = vmatpush1.bf16.msra.mxu0 %v3474
        %3583 = vmatprep.subr.bf16.mxu0 %v3479
        %3584 = vmatpush1.bf16.msra.mxu0 %v3478
        %3585 = vmatprep.subr.bf16.mxu0 %v3549
        %3586 = vmatpush1.bf16.msra.mxu0 %v3546
        %3587 = vmatprep.subr.bf16.mxu0 0
        %3588 = vmatpush1.bf16.msra.mxu0 0
        %3589 = vmatprep.mubr.bf16.mxu0 %v3543
        %3590 = vmatmul.mubr.bf16.gmra.mrb[0].mxu0 %v3243
        %v3591 = vpop.f32.mrb[0].mxu0
        %v3592 = vadd.f32 %v3181, %v3591
        %v3593 = vpop.f32.mrb[0].mxu0
        %v3594 = vadd.f32 %v3183, %v3593
        %v3595 = vpop.f32.mrb[0].mxu0
        %v3596 = vpop.f32.mrb[0].mxu0
        %3597 = vdwg.mxu0
        %3598 = vmatprep.subr.bf16.mxu0 %v3429
        %3599 = vmatpush1.bf16.msra.mxu0 %v3428
        %3600 = vmatprep.subr.bf16.mxu0 %v3433
        %3601 = vmatpush1.bf16.msra.mxu0 %v3432
        %3602 = vmatprep.subr.bf16.mxu0 %v3437
        %3603 = vmatpush1.bf16.msra.mxu0 %v3436
        %3604 = vmatprep.subr.bf16.mxu0 %v3441
        %3605 = vmatpush1.bf16.msra.mxu0 %v3440
        %3606 = vmatprep.subr.bf16.mxu0 %v3445
        %3607 = vmatpush1.bf16.msra.mxu0 %v3444
        %3608 = vmatprep.subr.bf16.mxu0 %v3449
        %3609 = vmatpush1.bf16.msra.mxu0 %v3448
        %3610 = vmatprep.subr.bf16.mxu0 %v3453
        %3611 = vmatpush1.bf16.msra.mxu0 %v3452
        %3612 = vmatprep.subr.bf16.mxu0 %v3457
        %3613 = vmatpush1.bf16.msra.mxu0 %v3456
        %3614 = vmatprep.subr.bf16.mxu0 %v3461
        %3615 = vmatpush1.bf16.msra.mxu0 %v3460
        %3616 = vmatprep.subr.bf16.mxu0 %v3465
        %3617 = vmatpush1.bf16.msra.mxu0 %v3464
        %3618 = vmatprep.subr.bf16.mxu0 %v3469
        %3619 = vmatpush1.bf16.msra.mxu0 %v3468
        %3620 = vmatprep.subr.bf16.mxu0 %v3473
        %3621 = vmatpush1.bf16.msra.mxu0 %v3472
        %3622 = vmatprep.subr.bf16.mxu0 %v3477
        %3623 = vmatpush1.bf16.msra.mxu0 %v3476
        %3624 = vmatprep.subr.bf16.mxu0 %v3481
        %3625 = vmatpush1.bf16.msra.mxu0 %v3480
        %3626 = vmatprep.subr.bf16.mxu0 %v3555
        %3627 = vmatpush1.bf16.msra.mxu0 %v3552
        %3628 = vmatprep.subr.bf16.mxu0 0
        %3629 = vmatpush1.bf16.msra.mxu0 0
        %3630 = vmatprep.mubr.bf16.mxu0 %v3543
        %3631 = vmatmul.mubr.bf16.gmra.mrb[0].mxu0 %v3243
        %v3632 = vpop.f32.mrb[0].mxu0
        %v3633 = vadd.f32 %v3222, %v3632
        %v3634 = vpop.f32.mrb[0].mxu0
        %v3635 = vadd.f32 %v3224, %v3634
        %v3636 = vpop.f32.mrb[0].mxu0
        %v3637 = vpop.f32.mrb[0].mxu0
        %3638 = vdwg.mxu0
        %s3639 = scalar_lea.vmem %s1328, 464 [#allocation3]
        %v3640 = vld [vmem:[%s3639] sm:$0xff]
        %v3641 = vld [vmem:[%s3639 + $0x8] sm:$0xff]
        %v3642 = vld [vmem:[%s3639 + $0x10] sm:$0xff]
        %v3643 = vld [vmem:[%s3639 + $0x18] sm:$0xff]
        %v3644 = vld [vmem:[%s3639 + $0x20] sm:$0xff]
        %v3645 = vld [vmem:[%s3639 + $0x28] sm:$0xff]
        %v3646 = vld [vmem:[%s3639 + $0x30] sm:$0xff]
        %v3647 = vld [vmem:[%s3639 + $0x38] sm:$0xff]
        %v3648 = vld [vmem:[%s3639 + $0x40] sm:$0xff]
        %v3649 = vld [vmem:[%s3639 + $0x48] sm:$0xff]
        %v3650 = vld [vmem:[%s3639 + $0x50] sm:$0xff]
        %v3651 = vld [vmem:[%s3639 + $0x58] sm:$0xff]
        %v3652 = vld [vmem:[%s3639 + $0x60] sm:$0xff]
        %v3653 = vld [vmem:[%s3639 + $0x68] sm:$0xff]
        %v3654 = vld [vmem:[%s3639 + $0x70] sm:$0xff]
        %v3655 = vld [vmem:[%s3639 + $0x78] sm:$0xff]
        %v3656 = vld [vmem:[%s3639 + $0x80] sm:$0xff]
        %v3657 = vld [vmem:[%s3639 + $0x88] sm:$0xff]
        %v3658 = vld [vmem:[%s3639 + $0x90] sm:$0xff]
        %v3659 = vld [vmem:[%s3639 + $0x98] sm:$0xff]
        %v3660 = vld [vmem:[%s3639 + $0xa0] sm:$0xff]
        %v3661 = vld [vmem:[%s3639 + $0xa8] sm:$0xff]
        %v3662 = vld [vmem:[%s3639 + $0xb0] sm:$0xff]
        %v3663 = vld [vmem:[%s3639 + $0xb8] sm:$0xff]
        %v3664 = vld [vmem:[%s3639 + $0xc0] sm:$0xff]
        %v3665 = vld [vmem:[%s3639 + $0xc8] sm:$0xff]
        %v3666 = vld [vmem:[%s3639 + $0xd0] sm:$0xff]
        %v3667 = vld [vmem:[%s3639 + $0xd8] sm:$0xff]
        %v3668 = vld [vmem:[%s3639 + $0xe0] sm:$0x55]
        %v3669 = vunpack.c.l.s8.bf16 %v3640
        %v3670 = vunpack.c.h.s8.bf16 %v3640
        %v3671 = vunpack.c.l.s8.bf16 %v3641
        %v3672 = vunpack.c.h.s8.bf16 %v3641
        %v3673 = vunpack.c.l.s8.bf16 %v3642
        %v3674 = vunpack.c.h.s8.bf16 %v3642
        %v3675 = vunpack.c.l.s8.bf16 %v3643
        %v3676 = vunpack.c.h.s8.bf16 %v3643
        %v3677 = vunpack.c.l.s8.bf16 %v3644
        %v3678 = vunpack.c.h.s8.bf16 %v3644
        %v3679 = vunpack.c.l.s8.bf16 %v3645
        %v3680 = vunpack.c.h.s8.bf16 %v3645
        %v3681 = vunpack.c.l.s8.bf16 %v3646
        %v3682 = vunpack.c.h.s8.bf16 %v3646
        %v3683 = vunpack.c.l.s8.bf16 %v3647
        %v3684 = vunpack.c.h.s8.bf16 %v3647
        %v3685 = vunpack.c.l.s8.bf16 %v3648
        %v3686 = vunpack.c.h.s8.bf16 %v3648
        %v3687 = vunpack.c.l.s8.bf16 %v3649
        %v3688 = vunpack.c.h.s8.bf16 %v3649
        %v3689 = vunpack.c.l.s8.bf16 %v3650
        %v3690 = vunpack.c.h.s8.bf16 %v3650
        %v3691 = vunpack.c.l.s8.bf16 %v3651
        %v3692 = vunpack.c.h.s8.bf16 %v3651
        %v3693 = vunpack.c.l.s8.bf16 %v3652
        %v3694 = vunpack.c.h.s8.bf16 %v3652
        %v3695 = vunpack.c.l.s8.bf16 %v3653
        %v3696 = vunpack.c.h.s8.bf16 %v3653
        %v3697 = vunpack.c.l.s8.bf16 %v3654
        %v3698 = vunpack.c.h.s8.bf16 %v3654
        %v3699 = vunpack.c.l.s8.bf16 %v3655
        %v3700 = vunpack.c.h.s8.bf16 %v3655
        %v3701 = vunpack.c.l.s8.bf16 %v3656
        %v3702 = vunpack.c.h.s8.bf16 %v3656
        %v3703 = vunpack.c.l.s8.bf16 %v3657
        %v3704 = vunpack.c.h.s8.bf16 %v3657
        %v3705 = vunpack.c.l.s8.bf16 %v3658
        %v3706 = vunpack.c.h.s8.bf16 %v3658
        %v3707 = vunpack.c.l.s8.bf16 %v3659
        %v3708 = vunpack.c.h.s8.bf16 %v3659
        %v3709 = vunpack.c.l.s8.bf16 %v3660
        %v3710 = vunpack.c.h.s8.bf16 %v3660
        %v3711 = vunpack.c.l.s8.bf16 %v3661
        %v3712 = vunpack.c.h.s8.bf16 %v3661
        %v3713 = vunpack.c.l.s8.bf16 %v3662
        %v3714 = vunpack.c.h.s8.bf16 %v3662
        %v3715 = vunpack.c.l.s8.bf16 %v3663
        %v3716 = vunpack.c.h.s8.bf16 %v3663
        %v3717 = vunpack.c.l.s8.bf16 %v3664
        %v3718 = vunpack.c.h.s8.bf16 %v3664
        %v3719 = vunpack.c.l.s8.bf16 %v3665
        %v3720 = vunpack.c.h.s8.bf16 %v3665
        %v3721 = vunpack.c.l.s8.bf16 %v3666
        %v3722 = vunpack.c.h.s8.bf16 %v3666
        %v3723 = vunpack.c.l.s8.bf16 %v3667
        %v3724 = vunpack.c.h.s8.bf16 %v3667
        %v3725 = vunpack.c.l.s8.bf16 %v3668
        %v3726 = vunpack.c.h.s8.bf16 %v3668
        %s3727 = scalar_lea.vmem [#allocation2], 4
        %v3728 = vld [vmem:[%s3727] sm:$0x3]
        %v3731 = vunpack.c.l.s4 1966171168
        %v3732 = vunpack.c.0.s8 %v3731
        %v3733 = vlaneseq
        %v3734 = vshrl.u32 %v3733, 7
        %v3735 = vsub.s32 %v3732, %v3734
        %v3736 = vrot.slane %v3728, %v3735
        %v3737 = vcombine.high %v3736, %v3736
        %v3739 = vunpack.c.l.s4 1966171168
        %v3740 = vunpack.c.0.s8 %v3739
        %v3741 = vlaneseq
        %v3742 = vshrl.u32 %v3741, 7
        %v3743 = vsub.s32 %v3740, %v3742
        %v3744 = vrot.slane %v3736, %v3743
        %v3746 = vunpack.c.l.s4 1966171168
        %v3747 = vunpack.c.0.s8 %v3746
        %v3748 = vlaneseq
        %v3749 = vshrl.u32 %v3748, 7
        %v3750 = vsub.s32 %v3747, %v3749
        %v3751 = vrot.slane %v3737, %v3750
        %v3811 = vunpack.c.l.b16 %v3669
        %v3812 = vunpack.c.h.b16 %v3669
        %v3813 = vunpack.c.l.b16 %v3670
        %v3814 = vunpack.c.h.b16 %v3670
        %v3815 = vunpack.c.l.b16 %v3671
        %v3816 = vunpack.c.h.b16 %v3671
        %v3817 = vunpack.c.l.b16 %v3672
        %v3818 = vunpack.c.h.b16 %v3672
        %v3819 = vunpack.c.l.b16 %v3673
        %v3820 = vunpack.c.h.b16 %v3673
        %v3821 = vunpack.c.l.b16 %v3674
        %v3822 = vunpack.c.h.b16 %v3674
        %v3823 = vunpack.c.l.b16 %v3675
        %v3824 = vunpack.c.h.b16 %v3675
        %v3825 = vunpack.c.l.b16 %v3676
        %v3826 = vunpack.c.h.b16 %v3676
        %v3827 = vunpack.c.l.b16 %v3677
        %v3828 = vunpack.c.h.b16 %v3677
        %v3829 = vunpack.c.l.b16 %v3678
        %v3830 = vunpack.c.h.b16 %v3678
        %v3831 = vunpack.c.l.b16 %v3679
        %v3832 = vunpack.c.h.b16 %v3679
        %v3833 = vunpack.c.l.b16 %v3680
        %v3834 = vunpack.c.h.b16 %v3680
        %v3835 = vunpack.c.l.b16 %v3681
        %v3836 = vunpack.c.h.b16 %v3681
        %v3837 = vunpack.c.l.b16 %v3682
        %v3838 = vunpack.c.h.b16 %v3682
        %v3839 = vunpack.c.l.b16 %v3683
        %v3840 = vunpack.c.h.b16 %v3683
        %v3841 = vunpack.c.l.b16 %v3684
        %v3842 = vunpack.c.h.b16 %v3684
        %v3843 = vunpack.c.l.b16 %v3685
        %v3844 = vunpack.c.h.b16 %v3685
        %v3845 = vunpack.c.l.b16 %v3686
        %v3846 = vunpack.c.h.b16 %v3686
        %v3847 = vunpack.c.l.b16 %v3687
        %v3848 = vunpack.c.h.b16 %v3687
        %v3849 = vunpack.c.l.b16 %v3688
        %v3850 = vunpack.c.h.b16 %v3688
        %v3851 = vunpack.c.l.b16 %v3689
        %v3852 = vunpack.c.h.b16 %v3689
        %v3853 = vunpack.c.l.b16 %v3690
        %v3854 = vunpack.c.h.b16 %v3690
        %v3855 = vunpack.c.l.b16 %v3691
        %v3856 = vunpack.c.h.b16 %v3691
        %v3857 = vunpack.c.l.b16 %v3692
        %v3858 = vunpack.c.h.b16 %v3692
        %v3859 = vunpack.c.l.b16 %v3693
        %v3860 = vunpack.c.h.b16 %v3693
        %v3861 = vunpack.c.l.b16 %v3694
        %v3862 = vunpack.c.h.b16 %v3694
        %v3863 = vunpack.c.l.b16 %v3695
        %v3864 = vunpack.c.h.b16 %v3695
        %v3865 = vunpack.c.l.b16 %v3696
        %v3866 = vunpack.c.h.b16 %v3696
        %v3867 = vunpack.c.l.b16 %v3697
        %v3868 = vunpack.c.h.b16 %v3697
        %v3869 = vunpack.c.l.b16 %v3698
        %v3870 = vunpack.c.h.b16 %v3698
        %v3871 = vunpack.c.l.b16 %v3699
        %v3872 = vunpack.c.h.b16 %v3699
        %v3873 = vunpack.c.l.b16 %v3700
        %v3874 = vunpack.c.h.b16 %v3700
        %v3875 = vunpack.c.l.b16 %v3701
        %v3876 = vunpack.c.h.b16 %v3701
        %v3877 = vunpack.c.l.b16 %v3702
        %v3878 = vunpack.c.h.b16 %v3702
        %v3879 = vunpack.c.l.b16 %v3703
        %v3880 = vunpack.c.h.b16 %v3703
        %v3881 = vunpack.c.l.b16 %v3704
        %v3882 = vunpack.c.h.b16 %v3704
        %v3883 = vunpack.c.l.b16 %v3705
        %v3884 = vunpack.c.h.b16 %v3705
        %v3885 = vunpack.c.l.b16 %v3706
        %v3886 = vunpack.c.h.b16 %v3706
        %v3887 = vunpack.c.l.b16 %v3707
        %v3888 = vunpack.c.h.b16 %v3707
        %v3889 = vunpack.c.l.b16 %v3708
        %v3890 = vunpack.c.h.b16 %v3708
        %v3891 = vunpack.c.l.b16 %v3709
        %v3892 = vunpack.c.h.b16 %v3709
        %v3893 = vunpack.c.l.b16 %v3710
        %v3894 = vunpack.c.h.b16 %v3710
        %v3895 = vunpack.c.l.b16 %v3711
        %v3896 = vunpack.c.h.b16 %v3711
        %v3897 = vunpack.c.l.b16 %v3712
        %v3898 = vunpack.c.h.b16 %v3712
        %v3899 = vunpack.c.l.b16 %v3713
        %v3900 = vunpack.c.h.b16 %v3713
        %v3901 = vunpack.c.l.b16 %v3714
        %v3902 = vunpack.c.h.b16 %v3714
        %v3903 = vunpack.c.l.b16 %v3715
        %v3904 = vunpack.c.h.b16 %v3715
        %v3905 = vunpack.c.l.b16 %v3716
        %v3906 = vunpack.c.h.b16 %v3716
        %v3907 = vunpack.c.l.b16 %v3717
        %v3908 = vunpack.c.h.b16 %v3717
        %v3909 = vunpack.c.l.b16 %v3718
        %v3910 = vunpack.c.h.b16 %v3718
        %v3911 = vunpack.c.l.b16 %v3719
        %v3912 = vunpack.c.h.b16 %v3719
        %v3913 = vunpack.c.l.b16 %v3720
        %v3914 = vunpack.c.h.b16 %v3720
        %v3915 = vunpack.c.l.b16 %v3721
        %v3916 = vunpack.c.h.b16 %v3721
        %v3917 = vunpack.c.l.b16 %v3722
        %v3918 = vunpack.c.h.b16 %v3722
        %v3919 = vunpack.c.l.b16 %v3723
        %v3920 = vunpack.c.h.b16 %v3723
        %v3921 = vunpack.c.l.b16 %v3724
        %v3922 = vunpack.c.h.b16 %v3724
        %v3923 = vunpack.c.l.b16 %v3725
        %v3924 = vunpack.c.h.b16 %v3725
        %v3925 = vunpack.c.l.b16 %v3726
        %v3926 = vunpack.c.h.b16 %v3726
        %v3927 = vpack.c.b16 %v3815, %v3811
        %v3928 = vpack.c.b16 %v3816, %v3812
        %v3929 = vpack.c.b16 %v3817, %v3813
        %v3930 = vpack.c.b16 %v3818, %v3814
        %v3931 = vpack.c.b16 %v3823, %v3819
        %v3932 = vpack.c.b16 %v3824, %v3820
        %v3933 = vpack.c.b16 %v3825, %v3821
        %v3934 = vpack.c.b16 %v3826, %v3822
        %v3935 = vpack.c.b16 %v3831, %v3827
        %v3936 = vpack.c.b16 %v3832, %v3828
        %v3937 = vpack.c.b16 %v3833, %v3829
        %v3938 = vpack.c.b16 %v3834, %v3830
        %v3939 = vpack.c.b16 %v3839, %v3835
        %v3940 = vpack.c.b16 %v3840, %v3836
        %v3941 = vpack.c.b16 %v3841, %v3837
        %v3942 = vpack.c.b16 %v3842, %v3838
        %v3943 = vpack.c.b16 %v3847, %v3843
        %v3944 = vpack.c.b16 %v3848, %v3844
        %v3945 = vpack.c.b16 %v3849, %v3845
        %v3946 = vpack.c.b16 %v3850, %v3846
        %v3947 = vpack.c.b16 %v3855, %v3851
        %v3948 = vpack.c.b16 %v3856, %v3852
        %v3949 = vpack.c.b16 %v3857, %v3853
        %v3950 = vpack.c.b16 %v3858, %v3854
        %v3951 = vpack.c.b16 %v3863, %v3859
        %v3952 = vpack.c.b16 %v3864, %v3860
        %v3953 = vpack.c.b16 %v3865, %v3861
        %v3954 = vpack.c.b16 %v3866, %v3862
        %v3955 = vpack.c.b16 %v3871, %v3867
        %v3956 = vpack.c.b16 %v3872, %v3868
        %v3957 = vpack.c.b16 %v3873, %v3869
        %v3958 = vpack.c.b16 %v3874, %v3870
        %v3959 = vpack.c.b16 %v3879, %v3875
        %v3960 = vpack.c.b16 %v3880, %v3876
        %v3961 = vpack.c.b16 %v3881, %v3877
        %v3962 = vpack.c.b16 %v3882, %v3878
        %v3963 = vpack.c.b16 %v3887, %v3883
        %v3964 = vpack.c.b16 %v3888, %v3884
        %v3965 = vpack.c.b16 %v3889, %v3885
        %v3966 = vpack.c.b16 %v3890, %v3886
        %v3967 = vpack.c.b16 %v3895, %v3891
        %v3968 = vpack.c.b16 %v3896, %v3892
        %v3969 = vpack.c.b16 %v3897, %v3893
        %v3970 = vpack.c.b16 %v3898, %v3894
        %v3971 = vpack.c.b16 %v3903, %v3899
        %v3972 = vpack.c.b16 %v3904, %v3900
        %v3973 = vpack.c.b16 %v3905, %v3901
        %v3974 = vpack.c.b16 %v3906, %v3902
        %v3975 = vpack.c.b16 %v3911, %v3907
        %v3976 = vpack.c.b16 %v3912, %v3908
        %v3977 = vpack.c.b16 %v3913, %v3909
        %v3978 = vpack.c.b16 %v3914, %v3910
        %v3979 = vpack.c.b16 %v3919, %v3915
        %v3980 = vpack.c.b16 %v3920, %v3916
        %v3981 = vpack.c.b16 %v3921, %v3917
        %v3982 = vpack.c.b16 %v3922, %v3918
        %v3983 = vpack.c.b16 %v3923, %v3923
        %v3984 = vpack.c.b16 %v3924, %v3924
        %v3985 = vpack.c.b16 %v3925, %v3925
        %v3986 = vpack.c.b16 %v3926, %v3926
        %v4044 = vsel %vm3127, %v3751, 0
        %v4047 = vand.u32 %v3983, %v3133
        %v4050 = vand.u32 %v3984, %v3133
        %v4053 = vand.u32 %v3985, %v3133
        %v4056 = vand.u32 %v3986, %v3133
        %4058 = vmatprep.subr.bf16.mxu0 %v3928
        %4059 = vmatpush1.bf16.msra.mxu0 %v3927
        %4060 = vmatprep.subr.bf16.mxu0 %v3932
        %4061 = vmatpush1.bf16.msra.mxu0 %v3931
        %4062 = vmatprep.subr.bf16.mxu0 %v3936
        %4063 = vmatpush1.bf16.msra.mxu0 %v3935
        %4064 = vmatprep.subr.bf16.mxu0 %v3940
        %4065 = vmatpush1.bf16.msra.mxu0 %v3939
        %4066 = vmatprep.subr.bf16.mxu0 %v3944
        %4067 = vmatpush1.bf16.msra.mxu0 %v3943
        %4068 = vmatprep.subr.bf16.mxu0 %v3948
        %4069 = vmatpush1.bf16.msra.mxu0 %v3947
        %4070 = vmatprep.subr.bf16.mxu0 %v3952
        %4071 = vmatpush1.bf16.msra.mxu0 %v3951
        %4072 = vmatprep.subr.bf16.mxu0 %v3956
        %4073 = vmatpush1.bf16.msra.mxu0 %v3955
        %4074 = vmatprep.subr.bf16.mxu0 %v3960
        %4075 = vmatpush1.bf16.msra.mxu0 %v3959
        %4076 = vmatprep.subr.bf16.mxu0 %v3964
        %4077 = vmatpush1.bf16.msra.mxu0 %v3963
        %4078 = vmatprep.subr.bf16.mxu0 %v3968
        %4079 = vmatpush1.bf16.msra.mxu0 %v3967
        %4080 = vmatprep.subr.bf16.mxu0 %v3972
        %4081 = vmatpush1.bf16.msra.mxu0 %v3971
        %4082 = vmatprep.subr.bf16.mxu0 %v3976
        %4083 = vmatpush1.bf16.msra.mxu0 %v3975
        %4084 = vmatprep.subr.bf16.mxu0 %v3980
        %4085 = vmatpush1.bf16.msra.mxu0 %v3979
        %4086 = vmatprep.subr.bf16.mxu0 %v4050
        %4087 = vmatpush1.bf16.msra.mxu0 %v4047
        %4088 = vmatprep.subr.bf16.mxu0 0
        %4089 = vmatpush1.bf16.msra.mxu0 0
        %4090 = vmatprep.mubr.bf16.mxu0 %v4044
        %4091 = vmatmul.mubr.bf16.gmra.mrb[0].mxu0 %v3744
        %v4092 = vpop.f32.mrb[0].mxu0
        %v4093 = vadd.f32 0.0, %v4092
        %v4094 = vpop.f32.mrb[0].mxu0
        %v4095 = vadd.f32 0.0, %v4094
        %v4096 = vpop.f32.mrb[0].mxu0
        %v4097 = vpop.f32.mrb[0].mxu0
        %4098 = vdwg.mxu0
        %4099 = vmatprep.subr.bf16.mxu0 %v3930
        %4100 = vmatpush1.bf16.msra.mxu0 %v3929
        %4101 = vmatprep.subr.bf16.mxu0 %v3934
        %4102 = vmatpush1.bf16.msra.mxu0 %v3933
        %4103 = vmatprep.subr.bf16.mxu0 %v3938
        %4104 = vmatpush1.bf16.msra.mxu0 %v3937
        %4105 = vmatprep.subr.bf16.mxu0 %v3942
        %4106 = vmatpush1.bf16.msra.mxu0 %v3941
        %4107 = vmatprep.subr.bf16.mxu0 %v3946
        %4108 = vmatpush1.bf16.msra.mxu0 %v3945
        %4109 = vmatprep.subr.bf16.mxu0 %v3950
        %4110 = vmatpush1.bf16.msra.mxu0 %v3949
        %4111 = vmatprep.subr.bf16.mxu0 %v3954
        %4112 = vmatpush1.bf16.msra.mxu0 %v3953
        %4113 = vmatprep.subr.bf16.mxu0 %v3958
        %4114 = vmatpush1.bf16.msra.mxu0 %v3957
        %4115 = vmatprep.subr.bf16.mxu0 %v3962
        %4116 = vmatpush1.bf16.msra.mxu0 %v3961
        %4117 = vmatprep.subr.bf16.mxu0 %v3966
        %4118 = vmatpush1.bf16.msra.mxu0 %v3965
        %4119 = vmatprep.subr.bf16.mxu0 %v3970
        %4120 = vmatpush1.bf16.msra.mxu0 %v3969
        %4121 = vmatprep.subr.bf16.mxu0 %v3974
        %4122 = vmatpush1.bf16.msra.mxu0 %v3973
        %4123 = vmatprep.subr.bf16.mxu0 %v3978
        %4124 = vmatpush1.bf16.msra.mxu0 %v3977
        %4125 = vmatprep.subr.bf16.mxu0 %v3982
        %4126 = vmatpush1.bf16.msra.mxu0 %v3981
        %4127 = vmatprep.subr.bf16.mxu0 %v4056
        %4128 = vmatpush1.bf16.msra.mxu0 %v4053
        %4129 = vmatprep.subr.bf16.mxu0 0
        %4130 = vmatpush1.bf16.msra.mxu0 0
        %4131 = vmatprep.mubr.bf16.mxu0 %v4044
        %4132 = vmatmul.mubr.bf16.gmra.mrb[0].mxu0 %v3744
        %v4133 = vpop.f32.mrb[0].mxu0
        %v4134 = vadd.f32 0.0, %v4133
        %v4135 = vpop.f32.mrb[0].mxu0
        %v4136 = vadd.f32 0.0, %v4135
        %v4137 = vpop.f32.mrb[0].mxu0
        %v4138 = vpop.f32.mrb[0].mxu0
        %4139 = vdwg.mxu0
        %v4140 = vadd.f32 %v3592, %v4093
        %v4141 = vadd.f32 %v3594, %v4095
        %v4142 = vadd.f32 %v3633, %v4134
        %v4143 = vadd.f32 %v3635, %v4136
        %s4144 = scalar_lea.vmem %s1328, 696 [#allocation3]
        %v4145 = vld [vmem:[%s4144] sm:$0xff]
        %v4146 = vld [vmem:[%s4144 + $0x8] sm:$0xff]
        %v4147 = vld [vmem:[%s4144 + $0x10] sm:$0xff]
        %v4148 = vld [vmem:[%s4144 + $0x18] sm:$0xff]
        %v4149 = vld [vmem:[%s4144 + $0x20] sm:$0xff]
        %v4150 = vld [vmem:[%s4144 + $0x28] sm:$0xff]
        %v4151 = vld [vmem:[%s4144 + $0x30] sm:$0xff]
        %v4152 = vld [vmem:[%s4144 + $0x38] sm:$0xff]
        %v4153 = vld [vmem:[%s4144 + $0x40] sm:$0xff]
        %v4154 = vld [vmem:[%s4144 + $0x48] sm:$0xff]
        %v4155 = vld [vmem:[%s4144 + $0x50] sm:$0xff]
        %v4156 = vld [vmem:[%s4144 + $0x58] sm:$0xff]
        %v4157 = vld [vmem:[%s4144 + $0x60] sm:$0xff]
        %v4158 = vld [vmem:[%s4144 + $0x68] sm:$0xff]
        %v4159 = vld [vmem:[%s4144 + $0x70] sm:$0xff]
        %v4160 = vld [vmem:[%s4144 + $0x78] sm:$0xff]
        %v4161 = vld [vmem:[%s4144 + $0x80] sm:$0xff]
        %v4162 = vld [vmem:[%s4144 + $0x88] sm:$0xff]
        %v4163 = vld [vmem:[%s4144 + $0x90] sm:$0xff]
        %v4164 = vld [vmem:[%s4144 + $0x98] sm:$0xff]
        %v4165 = vld [vmem:[%s4144 + $0xa0] sm:$0xff]
        %v4166 = vld [vmem:[%s4144 + $0xa8] sm:$0xff]
        %v4167 = vld [vmem:[%s4144 + $0xb0] sm:$0xff]
        %v4168 = vld [vmem:[%s4144 + $0xb8] sm:$0xff]
        %v4169 = vld [vmem:[%s4144 + $0xc0] sm:$0xff]
        %v4170 = vld [vmem:[%s4144 + $0xc8] sm:$0xff]
        %v4171 = vld [vmem:[%s4144 + $0xd0] sm:$0xff]
        %v4172 = vld [vmem:[%s4144 + $0xd8] sm:$0xff]
        %v4173 = vld [vmem:[%s4144 + $0xe0] sm:$0x55]
        %v4174 = vunpack.c.l.s8.bf16 %v4145
        %v4175 = vunpack.c.h.s8.bf16 %v4145
        %v4176 = vunpack.c.l.s8.bf16 %v4146
        %v4177 = vunpack.c.h.s8.bf16 %v4146
        %v4178 = vunpack.c.l.s8.bf16 %v4147
        %v4179 = vunpack.c.h.s8.bf16 %v4147
        %v4180 = vunpack.c.l.s8.bf16 %v4148
        %v4181 = vunpack.c.h.s8.bf16 %v4148
        %v4182 = vunpack.c.l.s8.bf16 %v4149
        %v4183 = vunpack.c.h.s8.bf16 %v4149
        %v4184 = vunpack.c.l.s8.bf16 %v4150
        %v4185 = vunpack.c.h.s8.bf16 %v4150
        %v4186 = vunpack.c.l.s8.bf16 %v4151
        %v4187 = vunpack.c.h.s8.bf16 %v4151
        %v4188 = vunpack.c.l.s8.bf16 %v4152
        %v4189 = vunpack.c.h.s8.bf16 %v4152
        %v4190 = vunpack.c.l.s8.bf16 %v4153
        %v4191 = vunpack.c.h.s8.bf16 %v4153
        %v4192 = vunpack.c.l.s8.bf16 %v4154
        %v4193 = vunpack.c.h.s8.bf16 %v4154
        %v4194 = vunpack.c.l.s8.bf16 %v4155
        %v4195 = vunpack.c.h.s8.bf16 %v4155
        %v4196 = vunpack.c.l.s8.bf16 %v4156
        %v4197 = vunpack.c.h.s8.bf16 %v4156
        %v4198 = vunpack.c.l.s8.bf16 %v4157
        %v4199 = vunpack.c.h.s8.bf16 %v4157
        %v4200 = vunpack.c.l.s8.bf16 %v4158
        %v4201 = vunpack.c.h.s8.bf16 %v4158
        %v4202 = vunpack.c.l.s8.bf16 %v4159
        %v4203 = vunpack.c.h.s8.bf16 %v4159
        %v4204 = vunpack.c.l.s8.bf16 %v4160
        %v4205 = vunpack.c.h.s8.bf16 %v4160
        %v4206 = vunpack.c.l.s8.bf16 %v4161
        %v4207 = vunpack.c.h.s8.bf16 %v4161
        %v4208 = vunpack.c.l.s8.bf16 %v4162
        %v4209 = vunpack.c.h.s8.bf16 %v4162
        %v4210 = vunpack.c.l.s8.bf16 %v4163
        %v4211 = vunpack.c.h.s8.bf16 %v4163
        %v4212 = vunpack.c.l.s8.bf16 %v4164
        %v4213 = vunpack.c.h.s8.bf16 %v4164
        %v4214 = vunpack.c.l.s8.bf16 %v4165
        %v4215 = vunpack.c.h.s8.bf16 %v4165
        %v4216 = vunpack.c.l.s8.bf16 %v4166
        %v4217 = vunpack.c.h.s8.bf16 %v4166
        %v4218 = vunpack.c.l.s8.bf16 %v4167
        %v4219 = vunpack.c.h.s8.bf16 %v4167
        %v4220 = vunpack.c.l.s8.bf16 %v4168
        %v4221 = vunpack.c.h.s8.bf16 %v4168
        %v4222 = vunpack.c.l.s8.bf16 %v4169
        %v4223 = vunpack.c.h.s8.bf16 %v4169
        %v4224 = vunpack.c.l.s8.bf16 %v4170
        %v4225 = vunpack.c.h.s8.bf16 %v4170
        %v4226 = vunpack.c.l.s8.bf16 %v4171
        %v4227 = vunpack.c.h.s8.bf16 %v4171
        %v4228 = vunpack.c.l.s8.bf16 %v4172
        %v4229 = vunpack.c.h.s8.bf16 %v4172
        %v4230 = vunpack.c.l.s8.bf16 %v4173
        %v4231 = vunpack.c.h.s8.bf16 %v4173
        %s4232 = scalar_lea.vmem [#allocation2], 6
        %v4233 = vld [vmem:[%s4232] sm:$0x3]
        %v4236 = vunpack.c.l.s4 1966171168
        %v4237 = vunpack.c.0.s8 %v4236
        %v4238 = vlaneseq
        %v4239 = vshrl.u32 %v4238, 7
        %v4240 = vsub.s32 %v4237, %v4239
        %v4241 = vrot.slane %v4233, %v4240
        %v4242 = vcombine.high %v4241, %v4241
        %v4244 = vunpack.c.l.s4 1966171168
        %v4245 = vunpack.c.0.s8 %v4244
        %v4246 = vlaneseq
        %v4247 = vshrl.u32 %v4246, 7
        %v4248 = vsub.s32 %v4245, %v4247
        %v4249 = vrot.slane %v4241, %v4248
        %v4251 = vunpack.c.l.s4 1966171168
        %v4252 = vunpack.c.0.s8 %v4251
        %v4253 = vlaneseq
        %v4254 = vshrl.u32 %v4253, 7
        %v4255 = vsub.s32 %v4252, %v4254
        %v4256 = vrot.slane %v4242, %v4255
        %v4316 = vunpack.c.l.b16 %v4174
        %v4317 = vunpack.c.h.b16 %v4174
        %v4318 = vunpack.c.l.b16 %v4175
        %v4319 = vunpack.c.h.b16 %v4175
        %v4320 = vunpack.c.l.b16 %v4176
        %v4321 = vunpack.c.h.b16 %v4176
        %v4322 = vunpack.c.l.b16 %v4177
        %v4323 = vunpack.c.h.b16 %v4177
        %v4324 = vunpack.c.l.b16 %v4178
        %v4325 = vunpack.c.h.b16 %v4178
        %v4326 = vunpack.c.l.b16 %v4179
        %v4327 = vunpack.c.h.b16 %v4179
        %v4328 = vunpack.c.l.b16 %v4180
        %v4329 = vunpack.c.h.b16 %v4180
        %v4330 = vunpack.c.l.b16 %v4181
        %v4331 = vunpack.c.h.b16 %v4181
        %v4332 = vunpack.c.l.b16 %v4182
        %v4333 = vunpack.c.h.b16 %v4182
        %v4334 = vunpack.c.l.b16 %v4183
        %v4335 = vunpack.c.h.b16 %v4183
        %v4336 = vunpack.c.l.b16 %v4184
        %v4337 = vunpack.c.h.b16 %v4184
        %v4338 = vunpack.c.l.b16 %v4185
        %v4339 = vunpack.c.h.b16 %v4185
        %v4340 = vunpack.c.l.b16 %v4186
        %v4341 = vunpack.c.h.b16 %v4186
        %v4342 = vunpack.c.l.b16 %v4187
        %v4343 = vunpack.c.h.b16 %v4187
        %v4344 = vunpack.c.l.b16 %v4188
        %v4345 = vunpack.c.h.b16 %v4188
        %v4346 = vunpack.c.l.b16 %v4189
        %v4347 = vunpack.c.h.b16 %v4189
        %v4348 = vunpack.c.l.b16 %v4190
        %v4349 = vunpack.c.h.b16 %v4190
        %v4350 = vunpack.c.l.b16 %v4191
        %v4351 = vunpack.c.h.b16 %v4191
        %v4352 = vunpack.c.l.b16 %v4192
        %v4353 = vunpack.c.h.b16 %v4192
        %v4354 = vunpack.c.l.b16 %v4193
        %v4355 = vunpack.c.h.b16 %v4193
        %v4356 = vunpack.c.l.b16 %v4194
        %v4357 = vunpack.c.h.b16 %v4194
        %v4358 = vunpack.c.l.b16 %v4195
        %v4359 = vunpack.c.h.b16 %v4195
        %v4360 = vunpack.c.l.b16 %v4196
        %v4361 = vunpack.c.h.b16 %v4196
        %v4362 = vunpack.c.l.b16 %v4197
        %v4363 = vunpack.c.h.b16 %v4197
        %v4364 = vunpack.c.l.b16 %v4198
        %v4365 = vunpack.c.h.b16 %v4198
        %v4366 = vunpack.c.l.b16 %v4199
        %v4367 = vunpack.c.h.b16 %v4199
        %v4368 = vunpack.c.l.b16 %v4200
        %v4369 = vunpack.c.h.b16 %v4200
        %v4370 = vunpack.c.l.b16 %v4201
        %v4371 = vunpack.c.h.b16 %v4201
        %v4372 = vunpack.c.l.b16 %v4202
        %v4373 = vunpack.c.h.b16 %v4202
        %v4374 = vunpack.c.l.b16 %v4203
        %v4375 = vunpack.c.h.b16 %v4203
        %v4376 = vunpack.c.l.b16 %v4204
        %v4377 = vunpack.c.h.b16 %v4204
        %v4378 = vunpack.c.l.b16 %v4205
        %v4379 = vunpack.c.h.b16 %v4205
        %v4380 = vunpack.c.l.b16 %v4206
        %v4381 = vunpack.c.h.b16 %v4206
        %v4382 = vunpack.c.l.b16 %v4207
        %v4383 = vunpack.c.h.b16 %v4207
        %v4384 = vunpack.c.l.b16 %v4208
        %v4385 = vunpack.c.h.b16 %v4208
        %v4386 = vunpack.c.l.b16 %v4209
        %v4387 = vunpack.c.h.b16 %v4209
        %v4388 = vunpack.c.l.b16 %v4210
        %v4389 = vunpack.c.h.b16 %v4210
        %v4390 = vunpack.c.l.b16 %v4211
        %v4391 = vunpack.c.h.b16 %v4211
        %v4392 = vunpack.c.l.b16 %v4212
        %v4393 = vunpack.c.h.b16 %v4212
        %v4394 = vunpack.c.l.b16 %v4213
        %v4395 = vunpack.c.h.b16 %v4213
        %v4396 = vunpack.c.l.b16 %v4214
        %v4397 = vunpack.c.h.b16 %v4214
        %v4398 = vunpack.c.l.b16 %v4215
        %v4399 = vunpack.c.h.b16 %v4215
        %v4400 = vunpack.c.l.b16 %v4216
        %v4401 = vunpack.c.h.b16 %v4216
        %v4402 = vunpack.c.l.b16 %v4217
        %v4403 = vunpack.c.h.b16 %v4217
        %v4404 = vunpack.c.l.b16 %v4218
        %v4405 = vunpack.c.h.b16 %v4218
        %v4406 = vunpack.c.l.b16 %v4219
        %v4407 = vunpack.c.h.b16 %v4219
        %v4408 = vunpack.c.l.b16 %v4220
        %v4409 = vunpack.c.h.b16 %v4220
        %v4410 = vunpack.c.l.b16 %v4221
        %v4411 = vunpack.c.h.b16 %v4221
        %v4412 = vunpack.c.l.b16 %v4222
        %v4413 = vunpack.c.h.b16 %v4222
        %v4414 = vunpack.c.l.b16 %v4223
        %v4415 = vunpack.c.h.b16 %v4223
        %v4416 = vunpack.c.l.b16 %v4224
        %v4417 = vunpack.c.h.b16 %v4224
        %v4418 = vunpack.c.l.b16 %v4225
        %v4419 = vunpack.c.h.b16 %v4225
        %v4420 = vunpack.c.l.b16 %v4226
        %v4421 = vunpack.c.h.b16 %v4226
        %v4422 = vunpack.c.l.b16 %v4227
        %v4423 = vunpack.c.h.b16 %v4227
        %v4424 = vunpack.c.l.b16 %v4228
        %v4425 = vunpack.c.h.b16 %v4228
        %v4426 = vunpack.c.l.b16 %v4229
        %v4427 = vunpack.c.h.b16 %v4229
        %v4428 = vunpack.c.l.b16 %v4230
        %v4429 = vunpack.c.h.b16 %v4230
        %v4430 = vunpack.c.l.b16 %v4231
        %v4431 = vunpack.c.h.b16 %v4231
        %v4432 = vpack.c.b16 %v4320, %v4316
        %v4433 = vpack.c.b16 %v4321, %v4317
        %v4434 = vpack.c.b16 %v4322, %v4318
        %v4435 = vpack.c.b16 %v4323, %v4319
        %v4436 = vpack.c.b16 %v4328, %v4324
        %v4437 = vpack.c.b16 %v4329, %v4325
        %v4438 = vpack.c.b16 %v4330, %v4326
        %v4439 = vpack.c.b16 %v4331, %v4327
        %v4440 = vpack.c.b16 %v4336, %v4332
        %v4441 = vpack.c.b16 %v4337, %v4333
        %v4442 = vpack.c.b16 %v4338, %v4334
        %v4443 = vpack.c.b16 %v4339, %v4335
        %v4444 = vpack.c.b16 %v4344, %v4340
        %v4445 = vpack.c.b16 %v4345, %v4341
        %v4446 = vpack.c.b16 %v4346, %v4342
        %v4447 = vpack.c.b16 %v4347, %v4343
        %v4448 = vpack.c.b16 %v4352, %v4348
        %v4449 = vpack.c.b16 %v4353, %v4349
        %v4450 = vpack.c.b16 %v4354, %v4350
        %v4451 = vpack.c.b16 %v4355, %v4351
        %v4452 = vpack.c.b16 %v4360, %v4356
        %v4453 = vpack.c.b16 %v4361, %v4357
        %v4454 = vpack.c.b16 %v4362, %v4358
        %v4455 = vpack.c.b16 %v4363, %v4359
        %v4456 = vpack.c.b16 %v4368, %v4364
        %v4457 = vpack.c.b16 %v4369, %v4365
        %v4458 = vpack.c.b16 %v4370, %v4366
        %v4459 = vpack.c.b16 %v4371, %v4367
        %v4460 = vpack.c.b16 %v4376, %v4372
        %v4461 = vpack.c.b16 %v4377, %v4373
        %v4462 = vpack.c.b16 %v4378, %v4374
        %v4463 = vpack.c.b16 %v4379, %v4375
        %v4464 = vpack.c.b16 %v4384, %v4380
        %v4465 = vpack.c.b16 %v4385, %v4381
        %v4466 = vpack.c.b16 %v4386, %v4382
        %v4467 = vpack.c.b16 %v4387, %v4383
        %v4468 = vpack.c.b16 %v4392, %v4388
        %v4469 = vpack.c.b16 %v4393, %v4389
        %v4470 = vpack.c.b16 %v4394, %v4390
        %v4471 = vpack.c.b16 %v4395, %v4391
        %v4472 = vpack.c.b16 %v4400, %v4396
        %v4473 = vpack.c.b16 %v4401, %v4397
        %v4474 = vpack.c.b16 %v4402, %v4398
        %v4475 = vpack.c.b16 %v4403, %v4399
        %v4476 = vpack.c.b16 %v4408, %v4404
        %v4477 = vpack.c.b16 %v4409, %v4405
        %v4478 = vpack.c.b16 %v4410, %v4406
        %v4479 = vpack.c.b16 %v4411, %v4407
        %v4480 = vpack.c.b16 %v4416, %v4412
        %v4481 = vpack.c.b16 %v4417, %v4413
        %v4482 = vpack.c.b16 %v4418, %v4414
        %v4483 = vpack.c.b16 %v4419, %v4415
        %v4484 = vpack.c.b16 %v4424, %v4420
        %v4485 = vpack.c.b16 %v4425, %v4421
        %v4486 = vpack.c.b16 %v4426, %v4422
        %v4487 = vpack.c.b16 %v4427, %v4423
        %v4488 = vpack.c.b16 %v4428, %v4428
        %v4489 = vpack.c.b16 %v4429, %v4429
        %v4490 = vpack.c.b16 %v4430, %v4430
        %v4491 = vpack.c.b16 %v4431, %v4431
        %v4549 = vsel %vm3127, %v4256, 0
        %v4552 = vand.u32 %v4488, %v3133
        %v4555 = vand.u32 %v4489, %v3133
        %v4558 = vand.u32 %v4490, %v3133
        %v4561 = vand.u32 %v4491, %v3133
        %4563 = vmatprep.subr.bf16.mxu0 %v4433
        %4564 = vmatpush1.bf16.msra.mxu0 %v4432
        %4565 = vmatprep.subr.bf16.mxu0 %v4437
        %4566 = vmatpush1.bf16.msra.mxu0 %v4436
        %4567 = vmatprep.subr.bf16.mxu0 %v4441
        %4568 = vmatpush1.bf16.msra.mxu0 %v4440
        %4569 = vmatprep.subr.bf16.mxu0 %v4445
        %4570 = vmatpush1.bf16.msra.mxu0 %v4444
        %4571 = vmatprep.subr.bf16.mxu0 %v4449
        %4572 = vmatpush1.bf16.msra.mxu0 %v4448
        %4573 = vmatprep.subr.bf16.mxu0 %v4453
        %4574 = vmatpush1.bf16.msra.mxu0 %v4452
        %4575 = vmatprep.subr.bf16.mxu0 %v4457
        %4576 = vmatpush1.bf16.msra.mxu0 %v4456
        %4577 = vmatprep.subr.bf16.mxu0 %v4461
        %4578 = vmatpush1.bf16.msra.mxu0 %v4460
        %4579 = vmatprep.subr.bf16.mxu0 %v4465
        %4580 = vmatpush1.bf16.msra.mxu0 %v4464
        %4581 = vmatprep.subr.bf16.mxu0 %v4469
        %4582 = vmatpush1.bf16.msra.mxu0 %v4468
        %4583 = vmatprep.subr.bf16.mxu0 %v4473
        %4584 = vmatpush1.bf16.msra.mxu0 %v4472
        %4585 = vmatprep.subr.bf16.mxu0 %v4477
        %4586 = vmatpush1.bf16.msra.mxu0 %v4476
        %4587 = vmatprep.subr.bf16.mxu0 %v4481
        %4588 = vmatpush1.bf16.msra.mxu0 %v4480
        %4589 = vmatprep.subr.bf16.mxu0 %v4485
        %4590 = vmatpush1.bf16.msra.mxu0 %v4484
        %4591 = vmatprep.subr.bf16.mxu0 %v4555
        %4592 = vmatpush1.bf16.msra.mxu0 %v4552
        %4593 = vmatprep.subr.bf16.mxu0 0
        %4594 = vmatpush1.bf16.msra.mxu0 0
        %4595 = vmatprep.mubr.bf16.mxu0 %v4549
        %4596 = vmatmul.mubr.bf16.gmra.mrb[0].mxu0 %v4249
        %v4597 = vpop.f32.mrb[0].mxu0
        %v4598 = vadd.f32 0.0, %v4597
        %v4599 = vpop.f32.mrb[0].mxu0
        %v4600 = vadd.f32 0.0, %v4599
        %v4601 = vpop.f32.mrb[0].mxu0
        %v4602 = vpop.f32.mrb[0].mxu0
        %4603 = vdwg.mxu0
        %4604 = vmatprep.subr.bf16.mxu0 %v4435
        %4605 = vmatpush1.bf16.msra.mxu0 %v4434
        %4606 = vmatprep.subr.bf16.mxu0 %v4439
        %4607 = vmatpush1.bf16.msra.mxu0 %v4438
        %4608 = vmatprep.subr.bf16.mxu0 %v4443
        %4609 = vmatpush1.bf16.msra.mxu0 %v4442
        %4610 = vmatprep.subr.bf16.mxu0 %v4447
        %4611 = vmatpush1.bf16.msra.mxu0 %v4446
        %4612 = vmatprep.subr.bf16.mxu0 %v4451
        %4613 = vmatpush1.bf16.msra.mxu0 %v4450
        %4614 = vmatprep.subr.bf16.mxu0 %v4455
        %4615 = vmatpush1.bf16.msra.mxu0 %v4454
        %4616 = vmatprep.subr.bf16.mxu0 %v4459
        %4617 = vmatpush1.bf16.msra.mxu0 %v4458
        %4618 = vmatprep.subr.bf16.mxu0 %v4463
        %4619 = vmatpush1.bf16.msra.mxu0 %v4462
        %4620 = vmatprep.subr.bf16.mxu0 %v4467
        %4621 = vmatpush1.bf16.msra.mxu0 %v4466
        %4622 = vmatprep.subr.bf16.mxu0 %v4471
        %4623 = vmatpush1.bf16.msra.mxu0 %v4470
        %4624 = vmatprep.subr.bf16.mxu0 %v4475
        %4625 = vmatpush1.bf16.msra.mxu0 %v4474
        %4626 = vmatprep.subr.bf16.mxu0 %v4479
        %4627 = vmatpush1.bf16.msra.mxu0 %v4478
        %4628 = vmatprep.subr.bf16.mxu0 %v4483
        %4629 = vmatpush1.bf16.msra.mxu0 %v4482
        %4630 = vmatprep.subr.bf16.mxu0 %v4487
        %4631 = vmatpush1.bf16.msra.mxu0 %v4486
        %4632 = vmatprep.subr.bf16.mxu0 %v4561
        %4633 = vmatpush1.bf16.msra.mxu0 %v4558
        %4634 = vmatprep.subr.bf16.mxu0 0
        %4635 = vmatpush1.bf16.msra.mxu0 0
        %4636 = vmatprep.mubr.bf16.mxu0 %v4549
        %4637 = vmatmul.mubr.bf16.gmra.mrb[0].mxu0 %v4249
        %v4638 = vpop.f32.mrb[0].mxu0
        %v4639 = vadd.f32 0.0, %v4638
        %v4640 = vpop.f32.mrb[0].mxu0
        %v4641 = vadd.f32 0.0, %v4640
        %v4642 = vpop.f32.mrb[0].mxu0
        %v4643 = vpop.f32.mrb[0].mxu0
        %4644 = vdwg.mxu0
        %v4645 = vadd.f32 %v4140, %v4598
        %v4646 = vadd.f32 %v4141, %v4600
        %v4647 = vadd.f32 %v4142, %v4639
        %v4648 = vadd.f32 %v4143, %v4641
        %s4649 = scalar_lea.vmem %s1328, 928 [#allocation3]
        %v4650 = vld [vmem:[%s4649] sm:$0xff]
        %v4651 = vld [vmem:[%s4649 + $0x8] sm:$0xff]
        %v4652 = vld [vmem:[%s4649 + $0x10] sm:$0xff]
        %v4653 = vld [vmem:[%s4649 + $0x18] sm:$0xff]
        %v4654 = vld [vmem:[%s4649 + $0x20] sm:$0xff]
        %v4655 = vld [vmem:[%s4649 + $0x28] sm:$0xff]
        %v4656 = vld [vmem:[%s4649 + $0x30] sm:$0xff]
        %v4657 = vld [vmem:[%s4649 + $0x38] sm:$0xff]
        %v4658 = vld [vmem:[%s4649 + $0x40] sm:$0xff]
        %v4659 = vld [vmem:[%s4649 + $0x48] sm:$0xff]
        %v4660 = vld [vmem:[%s4649 + $0x50] sm:$0xff]
        %v4661 = vld [vmem:[%s4649 + $0x58] sm:$0xff]
        %v4662 = vld [vmem:[%s4649 + $0x60] sm:$0xff]
        %v4663 = vld [vmem:[%s4649 + $0x68] sm:$0xff]
        %v4664 = vld [vmem:[%s4649 + $0x70] sm:$0xff]
        %v4665 = vld [vmem:[%s4649 + $0x78] sm:$0xff]
        %v4666 = vld [vmem:[%s4649 + $0x80] sm:$0xff]
        %v4667 = vld [vmem:[%s4649 + $0x88] sm:$0xff]
        %v4668 = vld [vmem:[%s4649 + $0x90] sm:$0xff]
        %v4669 = vld [vmem:[%s4649 + $0x98] sm:$0xff]
        %v4670 = vld [vmem:[%s4649 + $0xa0] sm:$0xff]
        %v4671 = vld [vmem:[%s4649 + $0xa8] sm:$0xff]
        %v4672 = vld [vmem:[%s4649 + $0xb0] sm:$0xff]
        %v4673 = vld [vmem:[%s4649 + $0xb8] sm:$0xff]
        %v4674 = vld [vmem:[%s4649 + $0xc0] sm:$0xff]
        %v4675 = vld [vmem:[%s4649 + $0xc8] sm:$0xff]
        %v4676 = vld [vmem:[%s4649 + $0xd0] sm:$0xff]
        %v4677 = vld [vmem:[%s4649 + $0xd8] sm:$0xff]
        %v4678 = vld [vmem:[%s4649 + $0xe0] sm:$0x55]
        %v4679 = vunpack.c.l.s8.bf16 %v4650
        %v4680 = vunpack.c.h.s8.bf16 %v4650
        %v4681 = vunpack.c.l.s8.bf16 %v4651
        %v4682 = vunpack.c.h.s8.bf16 %v4651
        %v4683 = vunpack.c.l.s8.bf16 %v4652
        %v4684 = vunpack.c.h.s8.bf16 %v4652
        %v4685 = vunpack.c.l.s8.bf16 %v4653
        %v4686 = vunpack.c.h.s8.bf16 %v4653
        %v4687 = vunpack.c.l.s8.bf16 %v4654
        %v4688 = vunpack.c.h.s8.bf16 %v4654
        %v4689 = vunpack.c.l.s8.bf16 %v4655
        %v4690 = vunpack.c.h.s8.bf16 %v4655
        %v4691 = vunpack.c.l.s8.bf16 %v4656
        %v4692 = vunpack.c.h.s8.bf16 %v4656
        %v4693 = vunpack.c.l.s8.bf16 %v4657
        %v4694 = vunpack.c.h.s8.bf16 %v4657
        %v4695 = vunpack.c.l.s8.bf16 %v4658
        %v4696 = vunpack.c.h.s8.bf16 %v4658
        %v4697 = vunpack.c.l.s8.bf16 %v4659
        %v4698 = vunpack.c.h.s8.bf16 %v4659
        %v4699 = vunpack.c.l.s8.bf16 %v4660
        %v4700 = vunpack.c.h.s8.bf16 %v4660
        %v4701 = vunpack.c.l.s8.bf16 %v4661
        %v4702 = vunpack.c.h.s8.bf16 %v4661
        %v4703 = vunpack.c.l.s8.bf16 %v4662
        %v4704 = vunpack.c.h.s8.bf16 %v4662
        %v4705 = vunpack.c.l.s8.bf16 %v4663
        %v4706 = vunpack.c.h.s8.bf16 %v4663
        %v4707 = vunpack.c.l.s8.bf16 %v4664
        %v4708 = vunpack.c.h.s8.bf16 %v4664
        %v4709 = vunpack.c.l.s8.bf16 %v4665
        %v4710 = vunpack.c.h.s8.bf16 %v4665
        %v4711 = vunpack.c.l.s8.bf16 %v4666
        %v4712 = vunpack.c.h.s8.bf16 %v4666
        %v4713 = vunpack.c.l.s8.bf16 %v4667
        %v4714 = vunpack.c.h.s8.bf16 %v4667
        %v4715 = vunpack.c.l.s8.bf16 %v4668
        %v4716 = vunpack.c.h.s8.bf16 %v4668
        %v4717 = vunpack.c.l.s8.bf16 %v4669
        %v4718 = vunpack.c.h.s8.bf16 %v4669
        %v4719 = vunpack.c.l.s8.bf16 %v4670
        %v4720 = vunpack.c.h.s8.bf16 %v4670
        %v4721 = vunpack.c.l.s8.bf16 %v4671
        %v4722 = vunpack.c.h.s8.bf16 %v4671
        %v4723 = vunpack.c.l.s8.bf16 %v4672
        %v4724 = vunpack.c.h.s8.bf16 %v4672
        %v4725 = vunpack.c.l.s8.bf16 %v4673
        %v4726 = vunpack.c.h.s8.bf16 %v4673
        %v4727 = vunpack.c.l.s8.bf16 %v4674
        %v4728 = vunpack.c.h.s8.bf16 %v4674
        %v4729 = vunpack.c.l.s8.bf16 %v4675
        %v4730 = vunpack.c.h.s8.bf16 %v4675
        %v4731 = vunpack.c.l.s8.bf16 %v4676
        %v4732 = vunpack.c.h.s8.bf16 %v4676
        %v4733 = vunpack.c.l.s8.bf16 %v4677
        %v4734 = vunpack.c.h.s8.bf16 %v4677
        %v4735 = vunpack.c.l.s8.bf16 %v4678
        %v4736 = vunpack.c.h.s8.bf16 %v4678
        %s4737 = scalar_lea.vmem [#allocation2], 8
        %v4738 = vld [vmem:[%s4737] sm:$0x3]
        %v4741 = vunpack.c.l.s4 1966171168
        %v4742 = vunpack.c.0.s8 %v4741
        %v4743 = vlaneseq
        %v4744 = vshrl.u32 %v4743, 7
        %v4745 = vsub.s32 %v4742, %v4744
        %v4746 = vrot.slane %v4738, %v4745
        %v4747 = vcombine.high %v4746, %v4746
        %v4749 = vunpack.c.l.s4 1966171168
        %v4750 = vunpack.c.0.s8 %v4749
        %v4751 = vlaneseq
        %v4752 = vshrl.u32 %v4751, 7
        %v4753 = vsub.s32 %v4750, %v4752
        %v4754 = vrot.slane %v4746, %v4753
        %v4756 = vunpack.c.l.s4 1966171168
        %v4757 = vunpack.c.0.s8 %v4756
        %v4758 = vlaneseq
        %v4759 = vshrl.u32 %v4758, 7
        %v4760 = vsub.s32 %v4757, %v4759
        %v4761 = vrot.slane %v4747, %v4760
        %v4821 = vunpack.c.l.b16 %v4679
        %v4822 = vunpack.c.h.b16 %v4679
        %v4823 = vunpack.c.l.b16 %v4680
        %v4824 = vunpack.c.h.b16 %v4680
        %v4825 = vunpack.c.l.b16 %v4681
        %v4826 = vunpack.c.h.b16 %v4681
        %v4827 = vunpack.c.l.b16 %v4682
        %v4828 = vunpack.c.h.b16 %v4682
        %v4829 = vunpack.c.l.b16 %v4683
        %v4830 = vunpack.c.h.b16 %v4683
        %v4831 = vunpack.c.l.b16 %v4684
        %v4832 = vunpack.c.h.b16 %v4684
        %v4833 = vunpack.c.l.b16 %v4685
        %v4834 = vunpack.c.h.b16 %v4685
        %v4835 = vunpack.c.l.b16 %v4686
        %v4836 = vunpack.c.h.b16 %v4686
        %v4837 = vunpack.c.l.b16 %v4687
        %v4838 = vunpack.c.h.b16 %v4687
        %v4839 = vunpack.c.l.b16 %v4688
        %v4840 = vunpack.c.h.b16 %v4688
        %v4841 = vunpack.c.l.b16 %v4689
        %v4842 = vunpack.c.h.b16 %v4689
        %v4843 = vunpack.c.l.b16 %v4690
        %v4844 = vunpack.c.h.b16 %v4690
        %v4845 = vunpack.c.l.b16 %v4691
        %v4846 = vunpack.c.h.b16 %v4691
        %v4847 = vunpack.c.l.b16 %v4692
        %v4848 = vunpack.c.h.b16 %v4692
        %v4849 = vunpack.c.l.b16 %v4693
        %v4850 = vunpack.c.h.b16 %v4693
        %v4851 = vunpack.c.l.b16 %v4694
        %v4852 = vunpack.c.h.b16 %v4694
        %v4853 = vunpack.c.l.b16 %v4695
        %v4854 = vunpack.c.h.b16 %v4695
        %v4855 = vunpack.c.l.b16 %v4696
        %v4856 = vunpack.c.h.b16 %v4696
        %v4857 = vunpack.c.l.b16 %v4697
        %v4858 = vunpack.c.h.b16 %v4697
        %v4859 = vunpack.c.l.b16 %v4698
        %v4860 = vunpack.c.h.b16 %v4698
        %v4861 = vunpack.c.l.b16 %v4699
        %v4862 = vunpack.c.h.b16 %v4699
        %v4863 = vunpack.c.l.b16 %v4700
        %v4864 = vunpack.c.h.b16 %v4700
        %v4865 = vunpack.c.l.b16 %v4701
        %v4866 = vunpack.c.h.b16 %v4701
        %v4867 = vunpack.c.l.b16 %v4702
        %v4868 = vunpack.c.h.b16 %v4702
        %v4869 = vunpack.c.l.b16 %v4703
        %v4870 = vunpack.c.h.b16 %v4703
        %v4871 = vunpack.c.l.b16 %v4704
        %v4872 = vunpack.c.h.b16 %v4704
        %v4873 = vunpack.c.l.b16 %v4705
        %v4874 = vunpack.c.h.b16 %v4705
        %v4875 = vunpack.c.l.b16 %v4706
        %v4876 = vunpack.c.h.b16 %v4706
        %v4877 = vunpack.c.l.b16 %v4707
        %v4878 = vunpack.c.h.b16 %v4707
        %v4879 = vunpack.c.l.b16 %v4708
        %v4880 = vunpack.c.h.b16 %v4708
        %v4881 = vunpack.c.l.b16 %v4709
        %v4882 = vunpack.c.h.b16 %v4709
        %v4883 = vunpack.c.l.b16 %v4710
        %v4884 = vunpack.c.h.b16 %v4710
        %v4885 = vunpack.c.l.b16 %v4711
        %v4886 = vunpack.c.h.b16 %v4711
        %v4887 = vunpack.c.l.b16 %v4712
        %v4888 = vunpack.c.h.b16 %v4712
        %v4889 = vunpack.c.l.b16 %v4713
        %v4890 = vunpack.c.h.b16 %v4713
        %v4891 = vunpack.c.l.b16 %v4714
        %v4892 = vunpack.c.h.b16 %v4714
        %v4893 = vunpack.c.l.b16 %v4715
        %v4894 = vunpack.c.h.b16 %v4715
        %v4895 = vunpack.c.l.b16 %v4716
        %v4896 = vunpack.c.h.b16 %v4716
        %v4897 = vunpack.c.l.b16 %v4717
        %v4898 = vunpack.c.h.b16 %v4717
        %v4899 = vunpack.c.l.b16 %v4718
        %v4900 = vunpack.c.h.b16 %v4718
        %v4901 = vunpack.c.l.b16 %v4719
        %v4902 = vunpack.c.h.b16 %v4719
        %v4903 = vunpack.c.l.b16 %v4720
        %v4904 = vunpack.c.h.b16 %v4720
        %v4905 = vunpack.c.l.b16 %v4721
        %v4906 = vunpack.c.h.b16 %v4721
        %v4907 = vunpack.c.l.b16 %v4722
        %v4908 = vunpack.c.h.b16 %v4722
        %v4909 = vunpack.c.l.b16 %v4723
        %v4910 = vunpack.c.h.b16 %v4723
        %v4911 = vunpack.c.l.b16 %v4724
        %v4912 = vunpack.c.h.b16 %v4724
        %v4913 = vunpack.c.l.b16 %v4725
        %v4914 = vunpack.c.h.b16 %v4725
        %v4915 = vunpack.c.l.b16 %v4726
        %v4916 = vunpack.c.h.b16 %v4726
        %v4917 = vunpack.c.l.b16 %v4727
        %v4918 = vunpack.c.h.b16 %v4727
        %v4919 = vunpack.c.l.b16 %v4728
        %v4920 = vunpack.c.h.b16 %v4728
        %v4921 = vunpack.c.l.b16 %v4729
        %v4922 = vunpack.c.h.b16 %v4729
        %v4923 = vunpack.c.l.b16 %v4730
        %v4924 = vunpack.c.h.b16 %v4730
        %v4925 = vunpack.c.l.b16 %v4731
        %v4926 = vunpack.c.h.b16 %v4731
        %v4927 = vunpack.c.l.b16 %v4732
        %v4928 = vunpack.c.h.b16 %v4732
        %v4929 = vunpack.c.l.b16 %v4733
        %v4930 = vunpack.c.h.b16 %v4733
        %v4931 = vunpack.c.l.b16 %v4734
        %v4932 = vunpack.c.h.b16 %v4734
        %v4933 = vunpack.c.l.b16 %v4735
        %v4934 = vunpack.c.h.b16 %v4735
        %v4935 = vunpack.c.l.b16 %v4736
        %v4936 = vunpack.c.h.b16 %v4736
        %v4937 = vpack.c.b16 %v4825, %v4821
        %v4938 = vpack.c.b16 %v4826, %v4822
        %v4939 = vpack.c.b16 %v4827, %v4823
        %v4940 = vpack.c.b16 %v4828, %v4824
        %v4941 = vpack.c.b16 %v4833, %v4829
        %v4942 = vpack.c.b16 %v4834, %v4830
        %v4943 = vpack.c.b16 %v4835, %v4831
        %v4944 = vpack.c.b16 %v4836, %v4832
        %v4945 = vpack.c.b16 %v4841, %v4837
        %v4946 = vpack.c.b16 %v4842, %v4838
        %v4947 = vpack.c.b16 %v4843, %v4839
        %v4948 = vpack.c.b16 %v4844, %v4840
        %v4949 = vpack.c.b16 %v4849, %v4845
        %v4950 = vpack.c.b16 %v4850, %v4846
        %v4951 = vpack.c.b16 %v4851, %v4847
        %v4952 = vpack.c.b16 %v4852, %v4848
        %v4953 = vpack.c.b16 %v4857, %v4853
        %v4954 = vpack.c.b16 %v4858, %v4854
        %v4955 = vpack.c.b16 %v4859, %v4855
        %v4956 = vpack.c.b16 %v4860, %v4856
        %v4957 = vpack.c.b16 %v4865, %v4861
        %v4958 = vpack.c.b16 %v4866, %v4862
        %v4959 = vpack.c.b16 %v4867, %v4863
        %v4960 = vpack.c.b16 %v4868, %v4864
        %v4961 = vpack.c.b16 %v4873, %v4869
        %v4962 = vpack.c.b16 %v4874, %v4870
        %v4963 = vpack.c.b16 %v4875, %v4871
        %v4964 = vpack.c.b16 %v4876, %v4872
        %v4965 = vpack.c.b16 %v4881, %v4877
        %v4966 = vpack.c.b16 %v4882, %v4878
        %v4967 = vpack.c.b16 %v4883, %v4879
        %v4968 = vpack.c.b16 %v4884, %v4880
        %v4969 = vpack.c.b16 %v4889, %v4885
        %v4970 = vpack.c.b16 %v4890, %v4886
        %v4971 = vpack.c.b16 %v4891, %v4887
        %v4972 = vpack.c.b16 %v4892, %v4888
        %v4973 = vpack.c.b16 %v4897, %v4893
        %v4974 = vpack.c.b16 %v4898, %v4894
        %v4975 = vpack.c.b16 %v4899, %v4895
        %v4976 = vpack.c.b16 %v4900, %v4896
        %v4977 = vpack.c.b16 %v4905, %v4901
        %v4978 = vpack.c.b16 %v4906, %v4902
        %v4979 = vpack.c.b16 %v4907, %v4903
        %v4980 = vpack.c.b16 %v4908, %v4904
        %v4981 = vpack.c.b16 %v4913, %v4909
        %v4982 = vpack.c.b16 %v4914, %v4910
        %v4983 = vpack.c.b16 %v4915, %v4911
        %v4984 = vpack.c.b16 %v4916, %v4912
        %v4985 = vpack.c.b16 %v4921, %v4917
        %v4986 = vpack.c.b16 %v4922, %v4918
        %v4987 = vpack.c.b16 %v4923, %v4919
        %v4988 = vpack.c.b16 %v4924, %v4920
        %v4989 = vpack.c.b16 %v4929, %v4925
        %v4990 = vpack.c.b16 %v4930, %v4926
        %v4991 = vpack.c.b16 %v4931, %v4927
        %v4992 = vpack.c.b16 %v4932, %v4928
        %v4993 = vpack.c.b16 %v4933, %v4933
        %v4994 = vpack.c.b16 %v4934, %v4934
        %v4995 = vpack.c.b16 %v4935, %v4935
        %v4996 = vpack.c.b16 %v4936, %v4936
        %v5054 = vsel %vm3127, %v4761, 0
        %v5057 = vand.u32 %v4993, %v3133
        %v5060 = vand.u32 %v4994, %v3133
        %v5063 = vand.u32 %v4995, %v3133
        %v5066 = vand.u32 %v4996, %v3133
        %5068 = vmatprep.subr.bf16.mxu0 %v4938
        %5069 = vmatpush1.bf16.msra.mxu0 %v4937
        %5070 = vmatprep.subr.bf16.mxu0 %v4942
        %5071 = vmatpush1.bf16.msra.mxu0 %v4941
        %5072 = vmatprep.subr.bf16.mxu0 %v4946
        %5073 = vmatpush1.bf16.msra.mxu0 %v4945
        %5074 = vmatprep.subr.bf16.mxu0 %v4950
        %5075 = vmatpush1.bf16.msra.mxu0 %v4949
        %5076 = vmatprep.subr.bf16.mxu0 %v4954
        %5077 = vmatpush1.bf16.msra.mxu0 %v4953
        %5078 = vmatprep.subr.bf16.mxu0 %v4958
        %5079 = vmatpush1.bf16.msra.mxu0 %v4957
        %5080 = vmatprep.subr.bf16.mxu0 %v4962
        %5081 = vmatpush1.bf16.msra.mxu0 %v4961
        %5082 = vmatprep.subr.bf16.mxu0 %v4966
        %5083 = vmatpush1.bf16.msra.mxu0 %v4965
        %5084 = vmatprep.subr.bf16.mxu0 %v4970
        %5085 = vmatpush1.bf16.msra.mxu0 %v4969
        %5086 = vmatprep.subr.bf16.mxu0 %v4974
        %5087 = vmatpush1.bf16.msra.mxu0 %v4973
        %5088 = vmatprep.subr.bf16.mxu0 %v4978
        %5089 = vmatpush1.bf16.msra.mxu0 %v4977
        %5090 = vmatprep.subr.bf16.mxu0 %v4982
        %5091 = vmatpush1.bf16.msra.mxu0 %v4981
        %5092 = vmatprep.subr.bf16.mxu0 %v4986
        %5093 = vmatpush1.bf16.msra.mxu0 %v4985
        %5094 = vmatprep.subr.bf16.mxu0 %v4990
        %5095 = vmatpush1.bf16.msra.mxu0 %v4989
        %5096 = vmatprep.subr.bf16.mxu0 %v5060
        %5097 = vmatpush1.bf16.msra.mxu0 %v5057
        %5098 = vmatprep.subr.bf16.mxu0 0
        %5099 = vmatpush1.bf16.msra.mxu0 0
        %5100 = vmatprep.mubr.bf16.mxu0 %v5054
        %5101 = vmatmul.mubr.bf16.gmra.mrb[0].mxu0 %v4754
        %v5102 = vpop.f32.mrb[0].mxu0
        %v5103 = vadd.f32 0.0, %v5102
        %v5104 = vpop.f32.mrb[0].mxu0
        %v5105 = vadd.f32 0.0, %v5104
        %v5106 = vpop.f32.mrb[0].mxu0
        %v5107 = vpop.f32.mrb[0].mxu0
        %5108 = vdwg.mxu0
        %5109 = vmatprep.subr.bf16.mxu0 %v4940
        %5110 = vmatpush1.bf16.msra.mxu0 %v4939
        %5111 = vmatprep.subr.bf16.mxu0 %v4944
        %5112 = vmatpush1.bf16.msra.mxu0 %v4943
        %5113 = vmatprep.subr.bf16.mxu0 %v4948
        %5114 = vmatpush1.bf16.msra.mxu0 %v4947
        %5115 = vmatprep.subr.bf16.mxu0 %v4952
        %5116 = vmatpush1.bf16.msra.mxu0 %v4951
        %5117 = vmatprep.subr.bf16.mxu0 %v4956
        %5118 = vmatpush1.bf16.msra.mxu0 %v4955
        %5119 = vmatprep.subr.bf16.mxu0 %v4960
        %5120 = vmatpush1.bf16.msra.mxu0 %v4959
        %5121 = vmatprep.subr.bf16.mxu0 %v4964
        %5122 = vmatpush1.bf16.msra.mxu0 %v4963
        %5123 = vmatprep.subr.bf16.mxu0 %v4968
        %5124 = vmatpush1.bf16.msra.mxu0 %v4967
        %5125 = vmatprep.subr.bf16.mxu0 %v4972
        %5126 = vmatpush1.bf16.msra.mxu0 %v4971
        %5127 = vmatprep.subr.bf16.mxu0 %v4976
        %5128 = vmatpush1.bf16.msra.mxu0 %v4975
        %5129 = vmatprep.subr.bf16.mxu0 %v4980
        %5130 = vmatpush1.bf16.msra.mxu0 %v4979
        %5131 = vmatprep.subr.bf16.mxu0 %v4984
        %5132 = vmatpush1.bf16.msra.mxu0 %v4983
        %5133 = vmatprep.subr.bf16.mxu0 %v4988
        %5134 = vmatpush1.bf16.msra.mxu0 %v4987
        %5135 = vmatprep.subr.bf16.mxu0 %v4992
        %5136 = vmatpush1.bf16.msra.mxu0 %v4991
        %5137 = vmatprep.subr.bf16.mxu0 %v5066
        %5138 = vmatpush1.bf16.msra.mxu0 %v5063
        %5139 = vmatprep.subr.bf16.mxu0 0
        %5140 = vmatpush1.bf16.msra.mxu0 0
        %5141 = vmatprep.mubr.bf16.mxu0 %v5054
        %5142 = vmatmul.mubr.bf16.gmra.mrb[0].mxu0 %v4754
        %v5143 = vpop.f32.mrb[0].mxu0
        %v5144 = vadd.f32 0.0, %v5143
        %v5145 = vpop.f32.mrb[0].mxu0
        %v5146 = vadd.f32 0.0, %v5145
        %v5147 = vpop.f32.mrb[0].mxu0
        %v5148 = vpop.f32.mrb[0].mxu0
        %5149 = vdwg.mxu0
        %v5150 = vadd.f32 %v4645, %v5103
        %v5151 = vadd.f32 %v4646, %v5105
        %v5152 = vadd.f32 %v4647, %v5144
        %v5153 = vadd.f32 %v4648, %v5146
        %s5154 = scalar_lea.vmem %s1328, 1160 [#allocation3]
        %v5155 = vld [vmem:[%s5154] sm:$0xff]
        %v5156 = vld [vmem:[%s5154 + $0x8] sm:$0xff]
        %v5157 = vld [vmem:[%s5154 + $0x10] sm:$0xff]
        %v5158 = vld [vmem:[%s5154 + $0x18] sm:$0xff]
        %v5159 = vld [vmem:[%s5154 + $0x20] sm:$0xff]
        %v5160 = vld [vmem:[%s5154 + $0x28] sm:$0xff]
        %v5161 = vld [vmem:[%s5154 + $0x30] sm:$0xff]
        %v5162 = vld [vmem:[%s5154 + $0x38] sm:$0xff]
        %v5163 = vld [vmem:[%s5154 + $0x40] sm:$0xff]
        %v5164 = vld [vmem:[%s5154 + $0x48] sm:$0xff]
        %v5165 = vld [vmem:[%s5154 + $0x50] sm:$0xff]
        %v5166 = vld [vmem:[%s5154 + $0x58] sm:$0xff]
        %v5167 = vld [vmem:[%s5154 + $0x60] sm:$0xff]
        %v5168 = vld [vmem:[%s5154 + $0x68] sm:$0xff]
        %v5169 = vld [vmem:[%s5154 + $0x70] sm:$0xff]
        %v5170 = vld [vmem:[%s5154 + $0x78] sm:$0xff]
        %v5171 = vld [vmem:[%s5154 + $0x80] sm:$0xff]
        %v5172 = vld [vmem:[%s5154 + $0x88] sm:$0xff]
        %v5173 = vld [vmem:[%s5154 + $0x90] sm:$0xff]
        %v5174 = vld [vmem:[%s5154 + $0x98] sm:$0xff]
        %v5175 = vld [vmem:[%s5154 + $0xa0] sm:$0xff]
        %v5176 = vld [vmem:[%s5154 + $0xa8] sm:$0xff]
        %v5177 = vld [vmem:[%s5154 + $0xb0] sm:$0xff]
        %v5178 = vld [vmem:[%s5154 + $0xb8] sm:$0xff]
        %v5179 = vld [vmem:[%s5154 + $0xc0] sm:$0xff]
        %v5180 = vld [vmem:[%s5154 + $0xc8] sm:$0xff]
        %v5181 = vld [vmem:[%s5154 + $0xd0] sm:$0xff]
        %v5182 = vld [vmem:[%s5154 + $0xd8] sm:$0xff]
        %v5183 = vld [vmem:[%s5154 + $0xe0] sm:$0x55]
        %v5184 = vunpack.c.l.s8.bf16 %v5155
        %v5185 = vunpack.c.h.s8.bf16 %v5155
        %v5186 = vunpack.c.l.s8.bf16 %v5156
        %v5187 = vunpack.c.h.s8.bf16 %v5156
        %v5188 = vunpack.c.l.s8.bf16 %v5157
        %v5189 = vunpack.c.h.s8.bf16 %v5157
        %v5190 = vunpack.c.l.s8.bf16 %v5158
        %v5191 = vunpack.c.h.s8.bf16 %v5158
        %v5192 = vunpack.c.l.s8.bf16 %v5159
        %v5193 = vunpack.c.h.s8.bf16 %v5159
        %v5194 = vunpack.c.l.s8.bf16 %v5160
        %v5195 = vunpack.c.h.s8.bf16 %v5160
        %v5196 = vunpack.c.l.s8.bf16 %v5161
        %v5197 = vunpack.c.h.s8.bf16 %v5161
        %v5198 = vunpack.c.l.s8.bf16 %v5162
        %v5199 = vunpack.c.h.s8.bf16 %v5162
        %v5200 = vunpack.c.l.s8.bf16 %v5163
        %v5201 = vunpack.c.h.s8.bf16 %v5163
        %v5202 = vunpack.c.l.s8.bf16 %v5164
        %v5203 = vunpack.c.h.s8.bf16 %v5164
        %v5204 = vunpack.c.l.s8.bf16 %v5165
        %v5205 = vunpack.c.h.s8.bf16 %v5165
        %v5206 = vunpack.c.l.s8.bf16 %v5166
        %v5207 = vunpack.c.h.s8.bf16 %v5166
        %v5208 = vunpack.c.l.s8.bf16 %v5167
        %v5209 = vunpack.c.h.s8.bf16 %v5167
        %v5210 = vunpack.c.l.s8.bf16 %v5168
        %v5211 = vunpack.c.h.s8.bf16 %v5168
        %v5212 = vunpack.c.l.s8.bf16 %v5169
        %v5213 = vunpack.c.h.s8.bf16 %v5169
        %v5214 = vunpack.c.l.s8.bf16 %v5170
        %v5215 = vunpack.c.h.s8.bf16 %v5170
        %v5216 = vunpack.c.l.s8.bf16 %v5171
        %v5217 = vunpack.c.h.s8.bf16 %v5171
        %v5218 = vunpack.c.l.s8.bf16 %v5172
        %v5219 = vunpack.c.h.s8.bf16 %v5172
        %v5220 = vunpack.c.l.s8.bf16 %v5173
        %v5221 = vunpack.c.h.s8.bf16 %v5173
        %v5222 = vunpack.c.l.s8.bf16 %v5174
        %v5223 = vunpack.c.h.s8.bf16 %v5174
        %v5224 = vunpack.c.l.s8.bf16 %v5175
        %v5225 = vunpack.c.h.s8.bf16 %v5175
        %v5226 = vunpack.c.l.s8.bf16 %v5176
        %v5227 = vunpack.c.h.s8.bf16 %v5176
        %v5228 = vunpack.c.l.s8.bf16 %v5177
        %v5229 = vunpack.c.h.s8.bf16 %v5177
        %v5230 = vunpack.c.l.s8.bf16 %v5178
        %v5231 = vunpack.c.h.s8.bf16 %v5178
        %v5232 = vunpack.c.l.s8.bf16 %v5179
        %v5233 = vunpack.c.h.s8.bf16 %v5179
        %v5234 = vunpack.c.l.s8.bf16 %v5180
        %v5235 = vunpack.c.h.s8.bf16 %v5180
        %v5236 = vunpack.c.l.s8.bf16 %v5181
        %v5237 = vunpack.c.h.s8.bf16 %v5181
        %v5238 = vunpack.c.l.s8.bf16 %v5182
        %v5239 = vunpack.c.h.s8.bf16 %v5182
        %v5240 = vunpack.c.l.s8.bf16 %v5183
        %v5241 = vunpack.c.h.s8.bf16 %v5183
        %s5242 = scalar_lea.vmem [#allocation2], 10
        %v5243 = vld [vmem:[%s5242] sm:$0x3]
        %v5246 = vunpack.c.l.s4 1966171168
        %v5247 = vunpack.c.0.s8 %v5246
        %v5248 = vlaneseq
        %v5249 = vshrl.u32 %v5248, 7
        %v5250 = vsub.s32 %v5247, %v5249
        %v5251 = vrot.slane %v5243, %v5250
        %v5252 = vcombine.high %v5251, %v5251
        %v5254 = vunpack.c.l.s4 1966171168
        %v5255 = vunpack.c.0.s8 %v5254
        %v5256 = vlaneseq
        %v5257 = vshrl.u32 %v5256, 7
        %v5258 = vsub.s32 %v5255, %v5257
        %v5259 = vrot.slane %v5251, %v5258
        %v5261 = vunpack.c.l.s4 1966171168
        %v5262 = vunpack.c.0.s8 %v5261
        %v5263 = vlaneseq
        %v5264 = vshrl.u32 %v5263, 7
        %v5265 = vsub.s32 %v5262, %v5264
        %v5266 = vrot.slane %v5252, %v5265
        %v5326 = vunpack.c.l.b16 %v5184
        %v5327 = vunpack.c.h.b16 %v5184
        %v5328 = vunpack.c.l.b16 %v5185
        %v5329 = vunpack.c.h.b16 %v5185
        %v5330 = vunpack.c.l.b16 %v5186
        %v5331 = vunpack.c.h.b16 %v5186
        %v5332 = vunpack.c.l.b16 %v5187
        %v5333 = vunpack.c.h.b16 %v5187
        %v5334 = vunpack.c.l.b16 %v5188
        %v5335 = vunpack.c.h.b16 %v5188
        %v5336 = vunpack.c.l.b16 %v5189
        %v5337 = vunpack.c.h.b16 %v5189
        %v5338 = vunpack.c.l.b16 %v5190
        %v5339 = vunpack.c.h.b16 %v5190
        %v5340 = vunpack.c.l.b16 %v5191
        %v5341 = vunpack.c.h.b16 %v5191
        %v5342 = vunpack.c.l.b16 %v5192
        %v5343 = vunpack.c.h.b16 %v5192
        %v5344 = vunpack.c.l.b16 %v5193
        %v5345 = vunpack.c.h.b16 %v5193
        %v5346 = vunpack.c.l.b16 %v5194
        %v5347 = vunpack.c.h.b16 %v5194
        %v5348 = vunpack.c.l.b16 %v5195
        %v5349 = vunpack.c.h.b16 %v5195
        %v5350 = vunpack.c.l.b16 %v5196
        %v5351 = vunpack.c.h.b16 %v5196
        %v5352 = vunpack.c.l.b16 %v5197
        %v5353 = vunpack.c.h.b16 %v5197
        %v5354 = vunpack.c.l.b16 %v5198
        %v5355 = vunpack.c.h.b16 %v5198
        %v5356 = vunpack.c.l.b16 %v5199
        %v5357 = vunpack.c.h.b16 %v5199
        %v5358 = vunpack.c.l.b16 %v5200
        %v5359 = vunpack.c.h.b16 %v5200
        %v5360 = vunpack.c.l.b16 %v5201
        %v5361 = vunpack.c.h.b16 %v5201
        %v5362 = vunpack.c.l.b16 %v5202
        %v5363 = vunpack.c.h.b16 %v5202
        %v5364 = vunpack.c.l.b16 %v5203
        %v5365 = vunpack.c.h.b16 %v5203
        %v5366 = vunpack.c.l.b16 %v5204
        %v5367 = vunpack.c.h.b16 %v5204
        %v5368 = vunpack.c.l.b16 %v5205
        %v5369 = vunpack.c.h.b16 %v5205
        %v5370 = vunpack.c.l.b16 %v5206
        %v5371 = vunpack.c.h.b16 %v5206
        %v5372 = vunpack.c.l.b16 %v5207
        %v5373 = vunpack.c.h.b16 %v5207
        %v5374 = vunpack.c.l.b16 %v5208
        %v5375 = vunpack.c.h.b16 %v5208
        %v5376 = vunpack.c.l.b16 %v5209
        %v5377 = vunpack.c.h.b16 %v5209
        %v5378 = vunpack.c.l.b16 %v5210
        %v5379 = vunpack.c.h.b16 %v5210
        %v5380 = vunpack.c.l.b16 %v5211
        %v5381 = vunpack.c.h.b16 %v5211
        %v5382 = vunpack.c.l.b16 %v5212
        %v5383 = vunpack.c.h.b16 %v5212
        %v5384 = vunpack.c.l.b16 %v5213
        %v5385 = vunpack.c.h.b16 %v5213
        %v5386 = vunpack.c.l.b16 %v5214
        %v5387 = vunpack.c.h.b16 %v5214
        %v5388 = vunpack.c.l.b16 %v5215
        %v5389 = vunpack.c.h.b16 %v5215
        %v5390 = vunpack.c.l.b16 %v5216
        %v5391 = vunpack.c.h.b16 %v5216
        %v5392 = vunpack.c.l.b16 %v5217
        %v5393 = vunpack.c.h.b16 %v5217
        %v5394 = vunpack.c.l.b16 %v5218
        %v5395 = vunpack.c.h.b16 %v5218
        %v5396 = vunpack.c.l.b16 %v5219
        %v5397 = vunpack.c.h.b16 %v5219
        %v5398 = vunpack.c.l.b16 %v5220
        %v5399 = vunpack.c.h.b16 %v5220
        %v5400 = vunpack.c.l.b16 %v5221
        %v5401 = vunpack.c.h.b16 %v5221
        %v5402 = vunpack.c.l.b16 %v5222
        %v5403 = vunpack.c.h.b16 %v5222
        %v5404 = vunpack.c.l.b16 %v5223
        %v5405 = vunpack.c.h.b16 %v5223
        %v5406 = vunpack.c.l.b16 %v5224
        %v5407 = vunpack.c.h.b16 %v5224
        %v5408 = vunpack.c.l.b16 %v5225
        %v5409 = vunpack.c.h.b16 %v5225
        %v5410 = vunpack.c.l.b16 %v5226
        %v5411 = vunpack.c.h.b16 %v5226
        %v5412 = vunpack.c.l.b16 %v5227
        %v5413 = vunpack.c.h.b16 %v5227
        %v5414 = vunpack.c.l.b16 %v5228
        %v5415 = vunpack.c.h.b16 %v5228
        %v5416 = vunpack.c.l.b16 %v5229
        %v5417 = vunpack.c.h.b16 %v5229
        %v5418 = vunpack.c.l.b16 %v5230
        %v5419 = vunpack.c.h.b16 %v5230
        %v5420 = vunpack.c.l.b16 %v5231
        %v5421 = vunpack.c.h.b16 %v5231
        %v5422 = vunpack.c.l.b16 %v5232
        %v5423 = vunpack.c.h.b16 %v5232
        %v5424 = vunpack.c.l.b16 %v5233
        %v5425 = vunpack.c.h.b16 %v5233
        %v5426 = vunpack.c.l.b16 %v5234
        %v5427 = vunpack.c.h.b16 %v5234
        %v5428 = vunpack.c.l.b16 %v5235
        %v5429 = vunpack.c.h.b16 %v5235
        %v5430 = vunpack.c.l.b16 %v5236
        %v5431 = vunpack.c.h.b16 %v5236
        %v5432 = vunpack.c.l.b16 %v5237
        %v5433 = vunpack.c.h.b16 %v5237
        %v5434 = vunpack.c.l.b16 %v5238
        %v5435 = vunpack.c.h.b16 %v5238
        %v5436 = vunpack.c.l.b16 %v5239
        %v5437 = vunpack.c.h.b16 %v5239
        %v5438 = vunpack.c.l.b16 %v5240
        %v5439 = vunpack.c.h.b16 %v5240
        %v5440 = vunpack.c.l.b16 %v5241
        %v5441 = vunpack.c.h.b16 %v5241
        %v5442 = vpack.c.b16 %v5330, %v5326
        %v5443 = vpack.c.b16 %v5331, %v5327
        %v5444 = vpack.c.b16 %v5332, %v5328
        %v5445 = vpack.c.b16 %v5333, %v5329
        %v5446 = vpack.c.b16 %v5338, %v5334
        %v5447 = vpack.c.b16 %v5339, %v5335
        %v5448 = vpack.c.b16 %v5340, %v5336
        %v5449 = vpack.c.b16 %v5341, %v5337
        %v5450 = vpack.c.b16 %v5346, %v5342
        %v5451 = vpack.c.b16 %v5347, %v5343
        %v5452 = vpack.c.b16 %v5348, %v5344
        %v5453 = vpack.c.b16 %v5349, %v5345
        %v5454 = vpack.c.b16 %v5354, %v5350
        %v5455 = vpack.c.b16 %v5355, %v5351
        %v5456 = vpack.c.b16 %v5356, %v5352
        %v5457 = vpack.c.b16 %v5357, %v5353
        %v5458 = vpack.c.b16 %v5362, %v5358
        %v5459 = vpack.c.b16 %v5363, %v5359
        %v5460 = vpack.c.b16 %v5364, %v5360
        %v5461 = vpack.c.b16 %v5365, %v5361
        %v5462 = vpack.c.b16 %v5370, %v5366
        %v5463 = vpack.c.b16 %v5371, %v5367
        %v5464 = vpack.c.b16 %v5372, %v5368
        %v5465 = vpack.c.b16 %v5373, %v5369
        %v5466 = vpack.c.b16 %v5378, %v5374
        %v5467 = vpack.c.b16 %v5379, %v5375
        %v5468 = vpack.c.b16 %v5380, %v5376
        %v5469 = vpack.c.b16 %v5381, %v5377
        %v5470 = vpack.c.b16 %v5386, %v5382
        %v5471 = vpack.c.b16 %v5387, %v5383
        %v5472 = vpack.c.b16 %v5388, %v5384
        %v5473 = vpack.c.b16 %v5389, %v5385
        %v5474 = vpack.c.b16 %v5394, %v5390
        %v5475 = vpack.c.b16 %v5395, %v5391
        %v5476 = vpack.c.b16 %v5396, %v5392
        %v5477 = vpack.c.b16 %v5397, %v5393
        %v5478 = vpack.c.b16 %v5402, %v5398
        %v5479 = vpack.c.b16 %v5403, %v5399
        %v5480 = vpack.c.b16 %v5404, %v5400
        %v5481 = vpack.c.b16 %v5405, %v5401
        %v5482 = vpack.c.b16 %v5410, %v5406
        %v5483 = vpack.c.b16 %v5411, %v5407
        %v5484 = vpack.c.b16 %v5412, %v5408
        %v5485 = vpack.c.b16 %v5413, %v5409
        %v5486 = vpack.c.b16 %v5418, %v5414
        %v5487 = vpack.c.b16 %v5419, %v5415
        %v5488 = vpack.c.b16 %v5420, %v5416
        %v5489 = vpack.c.b16 %v5421, %v5417
        %v5490 = vpack.c.b16 %v5426, %v5422
        %v5491 = vpack.c.b16 %v5427, %v5423
        %v5492 = vpack.c.b16 %v5428, %v5424
        %v5493 = vpack.c.b16 %v5429, %v5425
        %v5494 = vpack.c.b16 %v5434, %v5430
        %v5495 = vpack.c.b16 %v5435, %v5431
        %v5496 = vpack.c.b16 %v5436, %v5432
        %v5497 = vpack.c.b16 %v5437, %v5433
        %v5498 = vpack.c.b16 %v5438, %v5438
        %v5499 = vpack.c.b16 %v5439, %v5439
        %v5500 = vpack.c.b16 %v5440, %v5440
        %v5501 = vpack.c.b16 %v5441, %v5441
        %v5559 = vsel %vm3127, %v5266, 0
        %v5562 = vand.u32 %v5498, %v3133
        %v5565 = vand.u32 %v5499, %v3133
        %v5568 = vand.u32 %v5500, %v3133
        %v5571 = vand.u32 %v5501, %v3133
        %5573 = vmatprep.subr.bf16.mxu0 %v5443
        %5574 = vmatpush1.bf16.msra.mxu0 %v5442
        %5575 = vmatprep.subr.bf16.mxu0 %v5447
        %5576 = vmatpush1.bf16.msra.mxu0 %v5446
        %5577 = vmatprep.subr.bf16.mxu0 %v5451
        %5578 = vmatpush1.bf16.msra.mxu0 %v5450
        %5579 = vmatprep.subr.bf16.mxu0 %v5455
        %5580 = vmatpush1.bf16.msra.mxu0 %v5454
        %5581 = vmatprep.subr.bf16.mxu0 %v5459
        %5582 = vmatpush1.bf16.msra.mxu0 %v5458
        %5583 = vmatprep.subr.bf16.mxu0 %v5463
        %5584 = vmatpush1.bf16.msra.mxu0 %v5462
        %5585 = vmatprep.subr.bf16.mxu0 %v5467
        %5586 = vmatpush1.bf16.msra.mxu0 %v5466
        %5587 = vmatprep.subr.bf16.mxu0 %v5471
        %5588 = vmatpush1.bf16.msra.mxu0 %v5470
        %5589 = vmatprep.subr.bf16.mxu0 %v5475
        %5590 = vmatpush1.bf16.msra.mxu0 %v5474
        %5591 = vmatprep.subr.bf16.mxu0 %v5479
        %5592 = vmatpush1.bf16.msra.mxu0 %v5478
        %5593 = vmatprep.subr.bf16.mxu0 %v5483
        %5594 = vmatpush1.bf16.msra.mxu0 %v5482
        %5595 = vmatprep.subr.bf16.mxu0 %v5487
        %5596 = vmatpush1.bf16.msra.mxu0 %v5486
        %5597 = vmatprep.subr.bf16.mxu0 %v5491
        %5598 = vmatpush1.bf16.msra.mxu0 %v5490
        %5599 = vmatprep.subr.bf16.mxu0 %v5495
        %5600 = vmatpush1.bf16.msra.mxu0 %v5494
        %5601 = vmatprep.subr.bf16.mxu0 %v5565
        %5602 = vmatpush1.bf16.msra.mxu0 %v5562
        %5603 = vmatprep.subr.bf16.mxu0 0
        %5604 = vmatpush1.bf16.msra.mxu0 0
        %5605 = vmatprep.mubr.bf16.mxu0 %v5559
        %5606 = vmatmul.mubr.bf16.gmra.mrb[0].mxu0 %v5259
        %v5607 = vpop.f32.mrb[0].mxu0
        %v5608 = vadd.f32 0.0, %v5607
        %v5609 = vpop.f32.mrb[0].mxu0
        %v5610 = vadd.f32 0.0, %v5609
        %v5611 = vpop.f32.mrb[0].mxu0
        %v5612 = vpop.f32.mrb[0].mxu0
        %5613 = vdwg.mxu0
        %5614 = vmatprep.subr.bf16.mxu0 %v5445
        %5615 = vmatpush1.bf16.msra.mxu0 %v5444
        %5616 = vmatprep.subr.bf16.mxu0 %v5449
        %5617 = vmatpush1.bf16.msra.mxu0 %v5448
        %5618 = vmatprep.subr.bf16.mxu0 %v5453
        %5619 = vmatpush1.bf16.msra.mxu0 %v5452
        %5620 = vmatprep.subr.bf16.mxu0 %v5457
        %5621 = vmatpush1.bf16.msra.mxu0 %v5456
        %5622 = vmatprep.subr.bf16.mxu0 %v5461
        %5623 = vmatpush1.bf16.msra.mxu0 %v5460
        %5624 = vmatprep.subr.bf16.mxu0 %v5465
        %5625 = vmatpush1.bf16.msra.mxu0 %v5464
        %5626 = vmatprep.subr.bf16.mxu0 %v5469
        %5627 = vmatpush1.bf16.msra.mxu0 %v5468
        %5628 = vmatprep.subr.bf16.mxu0 %v5473
        %5629 = vmatpush1.bf16.msra.mxu0 %v5472
        %5630 = vmatprep.subr.bf16.mxu0 %v5477
        %5631 = vmatpush1.bf16.msra.mxu0 %v5476
        %5632 = vmatprep.subr.bf16.mxu0 %v5481
        %5633 = vmatpush1.bf16.msra.mxu0 %v5480
        %5634 = vmatprep.subr.bf16.mxu0 %v5485
        %5635 = vmatpush1.bf16.msra.mxu0 %v5484
        %5636 = vmatprep.subr.bf16.mxu0 %v5489
        %5637 = vmatpush1.bf16.msra.mxu0 %v5488
        %5638 = vmatprep.subr.bf16.mxu0 %v5493
        %5639 = vmatpush1.bf16.msra.mxu0 %v5492
        %5640 = vmatprep.subr.bf16.mxu0 %v5497
        %5641 = vmatpush1.bf16.msra.mxu0 %v5496
        %5642 = vmatprep.subr.bf16.mxu0 %v5571
        %5643 = vmatpush1.bf16.msra.mxu0 %v5568
        %5644 = vmatprep.subr.bf16.mxu0 0
        %5645 = vmatpush1.bf16.msra.mxu0 0
        %5646 = vmatprep.mubr.bf16.mxu0 %v5559
        %5647 = vmatmul.mubr.bf16.gmra.mrb[0].mxu0 %v5259
        %v5648 = vpop.f32.mrb[0].mxu0
        %v5649 = vadd.f32 0.0, %v5648
        %v5650 = vpop.f32.mrb[0].mxu0
        %v5651 = vadd.f32 0.0, %v5650
        %v5652 = vpop.f32.mrb[0].mxu0
        %v5653 = vpop.f32.mrb[0].mxu0
        %5654 = vdwg.mxu0
        %v5655 = vadd.f32 %v5150, %v5608
        %v5656 = vadd.f32 %v5151, %v5610
        %v5657 = vadd.f32 %v5152, %v5649
        %v5658 = vadd.f32 %v5153, %v5651
        %s5659 = scalar_lea.vmem %s1328, 1392 [#allocation3]
        %v5660 = vld [vmem:[%s5659] sm:$0xff]
        %v5661 = vld [vmem:[%s5659 + $0x8] sm:$0xff]
        %v5662 = vld [vmem:[%s5659 + $0x10] sm:$0xff]
        %v5663 = vld [vmem:[%s5659 + $0x18] sm:$0xff]
        %v5664 = vld [vmem:[%s5659 + $0x20] sm:$0xff]
        %v5665 = vld [vmem:[%s5659 + $0x28] sm:$0xff]
        %v5666 = vld [vmem:[%s5659 + $0x30] sm:$0xff]
        %v5667 = vld [vmem:[%s5659 + $0x38] sm:$0xff]
        %v5668 = vld [vmem:[%s5659 + $0x40] sm:$0xff]
        %v5669 = vld [vmem:[%s5659 + $0x48] sm:$0xff]
        %v5670 = vld [vmem:[%s5659 + $0x50] sm:$0xff]
        %v5671 = vld [vmem:[%s5659 + $0x58] sm:$0xff]
        %v5672 = vld [vmem:[%s5659 + $0x60] sm:$0xff]
        %v5673 = vld [vmem:[%s5659 + $0x68] sm:$0xff]
        %v5674 = vld [vmem:[%s5659 + $0x70] sm:$0xff]
        %v5675 = vld [vmem:[%s5659 + $0x78] sm:$0xff]
        %v5676 = vld [vmem:[%s5659 + $0x80] sm:$0xff]
        %v5677 = vld [vmem:[%s5659 + $0x88] sm:$0xff]
        %v5678 = vld [vmem:[%s5659 + $0x90] sm:$0xff]
        %v5679 = vld [vmem:[%s5659 + $0x98] sm:$0xff]
        %v5680 = vld [vmem:[%s5659 + $0xa0] sm:$0xff]
        %v5681 = vld [vmem:[%s5659 + $0xa8] sm:$0xff]
        %v5682 = vld [vmem:[%s5659 + $0xb0] sm:$0xff]
        %v5683 = vld [vmem:[%s5659 + $0xb8] sm:$0xff]
        %v5684 = vld [vmem:[%s5659 + $0xc0] sm:$0xff]
        %v5685 = vld [vmem:[%s5659 + $0xc8] sm:$0xff]
        %v5686 = vld [vmem:[%s5659 + $0xd0] sm:$0xff]
        %v5687 = vld [vmem:[%s5659 + $0xd8] sm:$0xff]
        %v5688 = vld [vmem:[%s5659 + $0xe0] sm:$0x55]
        %v5689 = vunpack.c.l.s8.bf16 %v5660
        %v5690 = vunpack.c.h.s8.bf16 %v5660
        %v5691 = vunpack.c.l.s8.bf16 %v5661
        %v5692 = vunpack.c.h.s8.bf16 %v5661
        %v5693 = vunpack.c.l.s8.bf16 %v5662
        %v5694 = vunpack.c.h.s8.bf16 %v5662
        %v5695 = vunpack.c.l.s8.bf16 %v5663
        %v5696 = vunpack.c.h.s8.bf16 %v5663
        %v5697 = vunpack.c.l.s8.bf16 %v5664
        %v5698 = vunpack.c.h.s8.bf16 %v5664
        %v5699 = vunpack.c.l.s8.bf16 %v5665
        %v5700 = vunpack.c.h.s8.bf16 %v5665
        %v5701 = vunpack.c.l.s8.bf16 %v5666
        %v5702 = vunpack.c.h.s8.bf16 %v5666
        %v5703 = vunpack.c.l.s8.bf16 %v5667
        %v5704 = vunpack.c.h.s8.bf16 %v5667
        %v5705 = vunpack.c.l.s8.bf16 %v5668
        %v5706 = vunpack.c.h.s8.bf16 %v5668
        %v5707 = vunpack.c.l.s8.bf16 %v5669
        %v5708 = vunpack.c.h.s8.bf16 %v5669
        %v5709 = vunpack.c.l.s8.bf16 %v5670
        %v5710 = vunpack.c.h.s8.bf16 %v5670
        %v5711 = vunpack.c.l.s8.bf16 %v5671
        %v5712 = vunpack.c.h.s8.bf16 %v5671
        %v5713 = vunpack.c.l.s8.bf16 %v5672
        %v5714 = vunpack.c.h.s8.bf16 %v5672
        %v5715 = vunpack.c.l.s8.bf16 %v5673
        %v5716 = vunpack.c.h.s8.bf16 %v5673
        %v5717 = vunpack.c.l.s8.bf16 %v5674
        %v5718 = vunpack.c.h.s8.bf16 %v5674
        %v5719 = vunpack.c.l.s8.bf16 %v5675
        %v5720 = vunpack.c.h.s8.bf16 %v5675
        %v5721 = vunpack.c.l.s8.bf16 %v5676
        %v5722 = vunpack.c.h.s8.bf16 %v5676
        %v5723 = vunpack.c.l.s8.bf16 %v5677
        %v5724 = vunpack.c.h.s8.bf16 %v5677
        %v5725 = vunpack.c.l.s8.bf16 %v5678
        %v5726 = vunpack.c.h.s8.bf16 %v5678
        %v5727 = vunpack.c.l.s8.bf16 %v5679
        %v5728 = vunpack.c.h.s8.bf16 %v5679
        %v5729 = vunpack.c.l.s8.bf16 %v5680
        %v5730 = vunpack.c.h.s8.bf16 %v5680
        %v5731 = vunpack.c.l.s8.bf16 %v5681
        %v5732 = vunpack.c.h.s8.bf16 %v5681
        %v5733 = vunpack.c.l.s8.bf16 %v5682
        %v5734 = vunpack.c.h.s8.bf16 %v5682
        %v5735 = vunpack.c.l.s8.bf16 %v5683
        %v5736 = vunpack.c.h.s8.bf16 %v5683
        %v5737 = vunpack.c.l.s8.bf16 %v5684
        %v5738 = vunpack.c.h.s8.bf16 %v5684
        %v5739 = vunpack.c.l.s8.bf16 %v5685
        %v5740 = vunpack.c.h.s8.bf16 %v5685
        %v5741 = vunpack.c.l.s8.bf16 %v5686
        %v5742 = vunpack.c.h.s8.bf16 %v5686
        %v5743 = vunpack.c.l.s8.bf16 %v5687
        %v5744 = vunpack.c.h.s8.bf16 %v5687
        %v5745 = vunpack.c.l.s8.bf16 %v5688
        %v5746 = vunpack.c.h.s8.bf16 %v5688
        %s5747 = scalar_lea.vmem [#allocation2], 12
        %v5748 = vld [vmem:[%s5747] sm:$0x3]
        %v5751 = vunpack.c.l.s4 1966171168
        %v5752 = vunpack.c.0.s8 %v5751
        %v5753 = vlaneseq
        %v5754 = vshrl.u32 %v5753, 7
        %v5755 = vsub.s32 %v5752, %v5754
        %v5756 = vrot.slane %v5748, %v5755
        %v5757 = vcombine.high %v5756, %v5756
        %v5759 = vunpack.c.l.s4 1966171168
        %v5760 = vunpack.c.0.s8 %v5759
        %v5761 = vlaneseq
        %v5762 = vshrl.u32 %v5761, 7
        %v5763 = vsub.s32 %v5760, %v5762
        %v5764 = vrot.slane %v5756, %v5763
        %v5766 = vunpack.c.l.s4 1966171168
        %v5767 = vunpack.c.0.s8 %v5766
        %v5768 = vlaneseq
        %v5769 = vshrl.u32 %v5768, 7
        %v5770 = vsub.s32 %v5767, %v5769
        %v5771 = vrot.slane %v5757, %v5770
        %v5831 = vunpack.c.l.b16 %v5689
        %v5832 = vunpack.c.h.b16 %v5689
        %v5833 = vunpack.c.l.b16 %v5690
        %v5834 = vunpack.c.h.b16 %v5690
        %v5835 = vunpack.c.l.b16 %v5691
        %v5836 = vunpack.c.h.b16 %v5691
        %v5837 = vunpack.c.l.b16 %v5692
        %v5838 = vunpack.c.h.b16 %v5692
        %v5839 = vunpack.c.l.b16 %v5693
        %v5840 = vunpack.c.h.b16 %v5693
        %v5841 = vunpack.c.l.b16 %v5694
        %v5842 = vunpack.c.h.b16 %v5694
        %v5843 = vunpack.c.l.b16 %v5695
        %v5844 = vunpack.c.h.b16 %v5695
        %v5845 = vunpack.c.l.b16 %v5696
        %v5846 = vunpack.c.h.b16 %v5696
        %v5847 = vunpack.c.l.b16 %v5697
        %v5848 = vunpack.c.h.b16 %v5697
        %v5849 = vunpack.c.l.b16 %v5698
        %v5850 = vunpack.c.h.b16 %v5698
        %v5851 = vunpack.c.l.b16 %v5699
        %v5852 = vunpack.c.h.b16 %v5699
        %v5853 = vunpack.c.l.b16 %v5700
        %v5854 = vunpack.c.h.b16 %v5700
        %v5855 = vunpack.c.l.b16 %v5701
        %v5856 = vunpack.c.h.b16 %v5701
        %v5857 = vunpack.c.l.b16 %v5702
        %v5858 = vunpack.c.h.b16 %v5702
        %v5859 = vunpack.c.l.b16 %v5703
        %v5860 = vunpack.c.h.b16 %v5703
        %v5861 = vunpack.c.l.b16 %v5704
        %v5862 = vunpack.c.h.b16 %v5704
        %v5863 = vunpack.c.l.b16 %v5705
        %v5864 = vunpack.c.h.b16 %v5705
        %v5865 = vunpack.c.l.b16 %v5706
        %v5866 = vunpack.c.h.b16 %v5706
        %v5867 = vunpack.c.l.b16 %v5707
        %v5868 = vunpack.c.h.b16 %v5707
        %v5869 = vunpack.c.l.b16 %v5708
        %v5870 = vunpack.c.h.b16 %v5708
        %v5871 = vunpack.c.l.b16 %v5709
        %v5872 = vunpack.c.h.b16 %v5709
        %v5873 = vunpack.c.l.b16 %v5710
        %v5874 = vunpack.c.h.b16 %v5710
        %v5875 = vunpack.c.l.b16 %v5711
        %v5876 = vunpack.c.h.b16 %v5711
        %v5877 = vunpack.c.l.b16 %v5712
        %v5878 = vunpack.c.h.b16 %v5712
        %v5879 = vunpack.c.l.b16 %v5713
        %v5880 = vunpack.c.h.b16 %v5713
        %v5881 = vunpack.c.l.b16 %v5714
        %v5882 = vunpack.c.h.b16 %v5714
        %v5883 = vunpack.c.l.b16 %v5715
        %v5884 = vunpack.c.h.b16 %v5715
        %v5885 = vunpack.c.l.b16 %v5716
        %v5886 = vunpack.c.h.b16 %v5716
        %v5887 = vunpack.c.l.b16 %v5717
        %v5888 = vunpack.c.h.b16 %v5717
        %v5889 = vunpack.c.l.b16 %v5718
        %v5890 = vunpack.c.h.b16 %v5718
        %v5891 = vunpack.c.l.b16 %v5719
        %v5892 = vunpack.c.h.b16 %v5719
        %v5893 = vunpack.c.l.b16 %v5720
        %v5894 = vunpack.c.h.b16 %v5720
        %v5895 = vunpack.c.l.b16 %v5721
        %v5896 = vunpack.c.h.b16 %v5721
        %v5897 = vunpack.c.l.b16 %v5722
        %v5898 = vunpack.c.h.b16 %v5722
        %v5899 = vunpack.c.l.b16 %v5723
        %v5900 = vunpack.c.h.b16 %v5723
        %v5901 = vunpack.c.l.b16 %v5724
        %v5902 = vunpack.c.h.b16 %v5724
        %v5903 = vunpack.c.l.b16 %v5725
        %v5904 = vunpack.c.h.b16 %v5725
        %v5905 = vunpack.c.l.b16 %v5726
        %v5906 = vunpack.c.h.b16 %v5726
        %v5907 = vunpack.c.l.b16 %v5727
        %v5908 = vunpack.c.h.b16 %v5727
        %v5909 = vunpack.c.l.b16 %v5728
        %v5910 = vunpack.c.h.b16 %v5728
        %v5911 = vunpack.c.l.b16 %v5729
        %v5912 = vunpack.c.h.b16 %v5729
        %v5913 = vunpack.c.l.b16 %v5730
        %v5914 = vunpack.c.h.b16 %v5730
        %v5915 = vunpack.c.l.b16 %v5731
        %v5916 = vunpack.c.h.b16 %v5731
        %v5917 = vunpack.c.l.b16 %v5732
        %v5918 = vunpack.c.h.b16 %v5732
        %v5919 = vunpack.c.l.b16 %v5733
        %v5920 = vunpack.c.h.b16 %v5733
        %v5921 = vunpack.c.l.b16 %v5734
        %v5922 = vunpack.c.h.b16 %v5734
        %v5923 = vunpack.c.l.b16 %v5735
        %v5924 = vunpack.c.h.b16 %v5735
        %v5925 = vunpack.c.l.b16 %v5736
        %v5926 = vunpack.c.h.b16 %v5736
        %v5927 = vunpack.c.l.b16 %v5737
        %v5928 = vunpack.c.h.b16 %v5737
        %v5929 = vunpack.c.l.b16 %v5738
        %v5930 = vunpack.c.h.b16 %v5738
        %v5931 = vunpack.c.l.b16 %v5739
        %v5932 = vunpack.c.h.b16 %v5739
        %v5933 = vunpack.c.l.b16 %v5740
        %v5934 = vunpack.c.h.b16 %v5740
        %v5935 = vunpack.c.l.b16 %v5741
        %v5936 = vunpack.c.h.b16 %v5741
        %v5937 = vunpack.c.l.b16 %v5742
        %v5938 = vunpack.c.h.b16 %v5742
        %v5939 = vunpack.c.l.b16 %v5743
        %v5940 = vunpack.c.h.b16 %v5743
        %v5941 = vunpack.c.l.b16 %v5744
        %v5942 = vunpack.c.h.b16 %v5744
        %v5943 = vunpack.c.l.b16 %v5745
        %v5944 = vunpack.c.h.b16 %v5745
        %v5945 = vunpack.c.l.b16 %v5746
        %v5946 = vunpack.c.h.b16 %v5746
        %v5947 = vpack.c.b16 %v5835, %v5831
        %v5948 = vpack.c.b16 %v5836, %v5832
        %v5949 = vpack.c.b16 %v5837, %v5833
        %v5950 = vpack.c.b16 %v5838, %v5834
        %v5951 = vpack.c.b16 %v5843, %v5839
        %v5952 = vpack.c.b16 %v5844, %v5840
        %v5953 = vpack.c.b16 %v5845, %v5841
        %v5954 = vpack.c.b16 %v5846, %v5842
        %v5955 = vpack.c.b16 %v5851, %v5847
        %v5956 = vpack.c.b16 %v5852, %v5848
        %v5957 = vpack.c.b16 %v5853, %v5849
        %v5958 = vpack.c.b16 %v5854, %v5850
        %v5959 = vpack.c.b16 %v5859, %v5855
        %v5960 = vpack.c.b16 %v5860, %v5856
        %v5961 = vpack.c.b16 %v5861, %v5857
        %v5962 = vpack.c.b16 %v5862, %v5858
        %v5963 = vpack.c.b16 %v5867, %v5863
        %v5964 = vpack.c.b16 %v5868, %v5864
        %v5965 = vpack.c.b16 %v5869, %v5865
        %v5966 = vpack.c.b16 %v5870, %v5866
        %v5967 = vpack.c.b16 %v5875, %v5871
        %v5968 = vpack.c.b16 %v5876, %v5872
        %v5969 = vpack.c.b16 %v5877, %v5873
        %v5970 = vpack.c.b16 %v5878, %v5874
        %v5971 = vpack.c.b16 %v5883, %v5879
        %v5972 = vpack.c.b16 %v5884, %v5880
        %v5973 = vpack.c.b16 %v5885, %v5881
        %v5974 = vpack.c.b16 %v5886, %v5882
        %v5975 = vpack.c.b16 %v5891, %v5887
        %v5976 = vpack.c.b16 %v5892, %v5888
        %v5977 = vpack.c.b16 %v5893, %v5889
        %v5978 = vpack.c.b16 %v5894, %v5890
        %v5979 = vpack.c.b16 %v5899, %v5895
        %v5980 = vpack.c.b16 %v5900, %v5896
        %v5981 = vpack.c.b16 %v5901, %v5897
        %v5982 = vpack.c.b16 %v5902, %v5898
        %v5983 = vpack.c.b16 %v5907, %v5903
        %v5984 = vpack.c.b16 %v5908, %v5904
        %v5985 = vpack.c.b16 %v5909, %v5905
        %v5986 = vpack.c.b16 %v5910, %v5906
        %v5987 = vpack.c.b16 %v5915, %v5911
        %v5988 = vpack.c.b16 %v5916, %v5912
        %v5989 = vpack.c.b16 %v5917, %v5913
        %v5990 = vpack.c.b16 %v5918, %v5914
        %v5991 = vpack.c.b16 %v5923, %v5919
        %v5992 = vpack.c.b16 %v5924, %v5920
        %v5993 = vpack.c.b16 %v5925, %v5921
        %v5994 = vpack.c.b16 %v5926, %v5922
        %v5995 = vpack.c.b16 %v5931, %v5927
        %v5996 = vpack.c.b16 %v5932, %v5928
        %v5997 = vpack.c.b16 %v5933, %v5929
        %v5998 = vpack.c.b16 %v5934, %v5930
        %v5999 = vpack.c.b16 %v5939, %v5935
        %v6000 = vpack.c.b16 %v5940, %v5936
        %v6001 = vpack.c.b16 %v5941, %v5937
        %v6002 = vpack.c.b16 %v5942, %v5938
        %v6003 = vpack.c.b16 %v5943, %v5943
        %v6004 = vpack.c.b16 %v5944, %v5944
        %v6005 = vpack.c.b16 %v5945, %v5945
        %v6006 = vpack.c.b16 %v5946, %v5946
        %v6064 = vsel %vm3127, %v5771, 0
        %v6067 = vand.u32 %v6003, %v3133
        %v6070 = vand.u32 %v6004, %v3133
        %v6073 = vand.u32 %v6005, %v3133
        %v6076 = vand.u32 %v6006, %v3133
        %6078 = vmatprep.subr.bf16.mxu0 %v5948
        %6079 = vmatpush1.bf16.msra.mxu0 %v5947
        %6080 = vmatprep.subr.bf16.mxu0 %v5952
        %6081 = vmatpush1.bf16.msra.mxu0 %v5951
        %6082 = vmatprep.subr.bf16.mxu0 %v5956
        %6083 = vmatpush1.bf16.msra.mxu0 %v5955
        %6084 = vmatprep.subr.bf16.mxu0 %v5960
        %6085 = vmatpush1.bf16.msra.mxu0 %v5959
        %6086 = vmatprep.subr.bf16.mxu0 %v5964
        %6087 = vmatpush1.bf16.msra.mxu0 %v5963
        %6088 = vmatprep.subr.bf16.mxu0 %v5968
        %6089 = vmatpush1.bf16.msra.mxu0 %v5967
        %6090 = vmatprep.subr.bf16.mxu0 %v5972
        %6091 = vmatpush1.bf16.msra.mxu0 %v5971
        %6092 = vmatprep.subr.bf16.mxu0 %v5976
        %6093 = vmatpush1.bf16.msra.mxu0 %v5975
        %6094 = vmatprep.subr.bf16.mxu0 %v5980
        %6095 = vmatpush1.bf16.msra.mxu0 %v5979
        %6096 = vmatprep.subr.bf16.mxu0 %v5984
        %6097 = vmatpush1.bf16.msra.mxu0 %v5983
        %6098 = vmatprep.subr.bf16.mxu0 %v5988
        %6099 = vmatpush1.bf16.msra.mxu0 %v5987
        %6100 = vmatprep.subr.bf16.mxu0 %v5992
        %6101 = vmatpush1.bf16.msra.mxu0 %v5991
        %6102 = vmatprep.subr.bf16.mxu0 %v5996
        %6103 = vmatpush1.bf16.msra.mxu0 %v5995
        %6104 = vmatprep.subr.bf16.mxu0 %v6000
        %6105 = vmatpush1.bf16.msra.mxu0 %v5999
        %6106 = vmatprep.subr.bf16.mxu0 %v6070
        %6107 = vmatpush1.bf16.msra.mxu0 %v6067
        %6108 = vmatprep.subr.bf16.mxu0 0
        %6109 = vmatpush1.bf16.msra.mxu0 0
        %6110 = vmatprep.mubr.bf16.mxu0 %v6064
        %6111 = vmatmul.mubr.bf16.gmra.mrb[0].mxu0 %v5764
        %v6112 = vpop.f32.mrb[0].mxu0
        %v6113 = vadd.f32 0.0, %v6112
        %v6114 = vpop.f32.mrb[0].mxu0
        %v6115 = vadd.f32 0.0, %v6114
        %v6116 = vpop.f32.mrb[0].mxu0
        %v6117 = vpop.f32.mrb[0].mxu0
        %6118 = vdwg.mxu0
        %6119 = vmatprep.subr.bf16.mxu0 %v5950
        %6120 = vmatpush1.bf16.msra.mxu0 %v5949
        %6121 = vmatprep.subr.bf16.mxu0 %v5954
        %6122 = vmatpush1.bf16.msra.mxu0 %v5953
        %6123 = vmatprep.subr.bf16.mxu0 %v5958
        %6124 = vmatpush1.bf16.msra.mxu0 %v5957
        %6125 = vmatprep.subr.bf16.mxu0 %v5962
        %6126 = vmatpush1.bf16.msra.mxu0 %v5961
        %6127 = vmatprep.subr.bf16.mxu0 %v5966
        %6128 = vmatpush1.bf16.msra.mxu0 %v5965
        %6129 = vmatprep.subr.bf16.mxu0 %v5970
        %6130 = vmatpush1.bf16.msra.mxu0 %v5969
        %6131 = vmatprep.subr.bf16.mxu0 %v5974
        %6132 = vmatpush1.bf16.msra.mxu0 %v5973
        %6133 = vmatprep.subr.bf16.mxu0 %v5978
        %6134 = vmatpush1.bf16.msra.mxu0 %v5977
        %6135 = vmatprep.subr.bf16.mxu0 %v5982
        %6136 = vmatpush1.bf16.msra.mxu0 %v5981
        %6137 = vmatprep.subr.bf16.mxu0 %v5986
        %6138 = vmatpush1.bf16.msra.mxu0 %v5985
        %6139 = vmatprep.subr.bf16.mxu0 %v5990
        %6140 = vmatpush1.bf16.msra.mxu0 %v5989
        %6141 = vmatprep.subr.bf16.mxu0 %v5994
        %6142 = vmatpush1.bf16.msra.mxu0 %v5993
        %6143 = vmatprep.subr.bf16.mxu0 %v5998
        %6144 = vmatpush1.bf16.msra.mxu0 %v5997
        %6145 = vmatprep.subr.bf16.mxu0 %v6002
        %6146 = vmatpush1.bf16.msra.mxu0 %v6001
        %6147 = vmatprep.subr.bf16.mxu0 %v6076
        %6148 = vmatpush1.bf16.msra.mxu0 %v6073
        %6149 = vmatprep.subr.bf16.mxu0 0
        %6150 = vmatpush1.bf16.msra.mxu0 0
        %6151 = vmatprep.mubr.bf16.mxu0 %v6064
        %6152 = vmatmul.mubr.bf16.gmra.mrb[0].mxu0 %v5764
        %v6153 = vpop.f32.mrb[0].mxu0
        %v6154 = vadd.f32 0.0, %v6153
        %v6155 = vpop.f32.mrb[0].mxu0
        %v6156 = vadd.f32 0.0, %v6155
        %v6157 = vpop.f32.mrb[0].mxu0
        %v6158 = vpop.f32.mrb[0].mxu0
        %6159 = vdwg.mxu0
        %v6160 = vadd.f32 %v5655, %v6113
        %v6161 = vadd.f32 %v5656, %v6115
        %v6162 = vadd.f32 %v5657, %v6154
        %v6163 = vadd.f32 %v5658, %v6156
        %s6164 = scalar_lea.vmem %s1328, 1624 [#allocation3]
        %v6165 = vld [vmem:[%s6164] sm:$0xff]
        %v6166 = vld [vmem:[%s6164 + $0x8] sm:$0xff]
        %v6167 = vld [vmem:[%s6164 + $0x10] sm:$0xff]
        %v6168 = vld [vmem:[%s6164 + $0x18] sm:$0xff]
        %v6169 = vld [vmem:[%s6164 + $0x20] sm:$0xff]
        %v6170 = vld [vmem:[%s6164 + $0x28] sm:$0xff]
        %v6171 = vld [vmem:[%s6164 + $0x30] sm:$0xff]
        %v6172 = vld [vmem:[%s6164 + $0x38] sm:$0xff]
        %v6173 = vld [vmem:[%s6164 + $0x40] sm:$0xff]
        %v6174 = vld [vmem:[%s6164 + $0x48] sm:$0xff]
        %v6175 = vld [vmem:[%s6164 + $0x50] sm:$0xff]
        %v6176 = vld [vmem:[%s6164 + $0x58] sm:$0xff]
        %v6177 = vld [vmem:[%s6164 + $0x60] sm:$0xff]
        %v6178 = vld [vmem:[%s6164 + $0x68] sm:$0xff]
        %v6179 = vld [vmem:[%s6164 + $0x70] sm:$0xff]
        %v6180 = vld [vmem:[%s6164 + $0x78] sm:$0xff]
        %v6181 = vld [vmem:[%s6164 + $0x80] sm:$0xff]
        %v6182 = vld [vmem:[%s6164 + $0x88] sm:$0xff]
        %v6183 = vld [vmem:[%s6164 + $0x90] sm:$0xff]
        %v6184 = vld [vmem:[%s6164 + $0x98] sm:$0xff]
        %v6185 = vld [vmem:[%s6164 + $0xa0] sm:$0xff]
        %v6186 = vld [vmem:[%s6164 + $0xa8] sm:$0xff]
        %v6187 = vld [vmem:[%s6164 + $0xb0] sm:$0xff]
        %v6188 = vld [vmem:[%s6164 + $0xb8] sm:$0xff]
        %v6189 = vld [vmem:[%s6164 + $0xc0] sm:$0xff]
        %v6190 = vld [vmem:[%s6164 + $0xc8] sm:$0xff]
        %v6191 = vld [vmem:[%s6164 + $0xd0] sm:$0xff]
        %v6192 = vld [vmem:[%s6164 + $0xd8] sm:$0xff]
        %v6193 = vld [vmem:[%s6164 + $0xe0] sm:$0x55]
        %v6194 = vunpack.c.l.s8.bf16 %v6165
        %v6195 = vunpack.c.h.s8.bf16 %v6165
        %v6196 = vunpack.c.l.s8.bf16 %v6166
        %v6197 = vunpack.c.h.s8.bf16 %v6166
        %v6198 = vunpack.c.l.s8.bf16 %v6167
        %v6199 = vunpack.c.h.s8.bf16 %v6167
        %v6200 = vunpack.c.l.s8.bf16 %v6168
        %v6201 = vunpack.c.h.s8.bf16 %v6168
        %v6202 = vunpack.c.l.s8.bf16 %v6169
        %v6203 = vunpack.c.h.s8.bf16 %v6169
        %v6204 = vunpack.c.l.s8.bf16 %v6170
        %v6205 = vunpack.c.h.s8.bf16 %v6170
        %v6206 = vunpack.c.l.s8.bf16 %v6171
        %v6207 = vunpack.c.h.s8.bf16 %v6171
        %v6208 = vunpack.c.l.s8.bf16 %v6172
        %v6209 = vunpack.c.h.s8.bf16 %v6172
        %v6210 = vunpack.c.l.s8.bf16 %v6173
        %v6211 = vunpack.c.h.s8.bf16 %v6173
        %v6212 = vunpack.c.l.s8.bf16 %v6174
        %v6213 = vunpack.c.h.s8.bf16 %v6174
        %v6214 = vunpack.c.l.s8.bf16 %v6175
        %v6215 = vunpack.c.h.s8.bf16 %v6175
        %v6216 = vunpack.c.l.s8.bf16 %v6176
        %v6217 = vunpack.c.h.s8.bf16 %v6176
        %v6218 = vunpack.c.l.s8.bf16 %v6177
        %v6219 = vunpack.c.h.s8.bf16 %v6177
        %v6220 = vunpack.c.l.s8.bf16 %v6178
        %v6221 = vunpack.c.h.s8.bf16 %v6178
        %v6222 = vunpack.c.l.s8.bf16 %v6179
        %v6223 = vunpack.c.h.s8.bf16 %v6179
        %v6224 = vunpack.c.l.s8.bf16 %v6180
        %v6225 = vunpack.c.h.s8.bf16 %v6180
        %v6226 = vunpack.c.l.s8.bf16 %v6181
        %v6227 = vunpack.c.h.s8.bf16 %v6181
        %v6228 = vunpack.c.l.s8.bf16 %v6182
        %v6229 = vunpack.c.h.s8.bf16 %v6182
        %v6230 = vunpack.c.l.s8.bf16 %v6183
        %v6231 = vunpack.c.h.s8.bf16 %v6183
        %v6232 = vunpack.c.l.s8.bf16 %v6184
        %v6233 = vunpack.c.h.s8.bf16 %v6184
        %v6234 = vunpack.c.l.s8.bf16 %v6185
        %v6235 = vunpack.c.h.s8.bf16 %v6185
        %v6236 = vunpack.c.l.s8.bf16 %v6186
        %v6237 = vunpack.c.h.s8.bf16 %v6186
        %v6238 = vunpack.c.l.s8.bf16 %v6187
        %v6239 = vunpack.c.h.s8.bf16 %v6187
        %v6240 = vunpack.c.l.s8.bf16 %v6188
        %v6241 = vunpack.c.h.s8.bf16 %v6188
        %v6242 = vunpack.c.l.s8.bf16 %v6189
        %v6243 = vunpack.c.h.s8.bf16 %v6189
        %v6244 = vunpack.c.l.s8.bf16 %v6190
        %v6245 = vunpack.c.h.s8.bf16 %v6190
        %v6246 = vunpack.c.l.s8.bf16 %v6191
        %v6247 = vunpack.c.h.s8.bf16 %v6191
        %v6248 = vunpack.c.l.s8.bf16 %v6192
        %v6249 = vunpack.c.h.s8.bf16 %v6192
        %v6250 = vunpack.c.l.s8.bf16 %v6193
        %v6251 = vunpack.c.h.s8.bf16 %v6193
        %s6252 = scalar_lea.vmem [#allocation2], 14
        %v6253 = vld [vmem:[%s6252] sm:$0x3]
        %v6256 = vunpack.c.l.s4 1966171168
        %v6257 = vunpack.c.0.s8 %v6256
        %v6258 = vlaneseq
        %v6259 = vshrl.u32 %v6258, 7
        %v6260 = vsub.s32 %v6257, %v6259
        %v6261 = vrot.slane %v6253, %v6260
        %v6262 = vcombine.high %v6261, %v6261
        %v6264 = vunpack.c.l.s4 1966171168
        %v6265 = vunpack.c.0.s8 %v6264
        %v6266 = vlaneseq
        %v6267 = vshrl.u32 %v6266, 7
        %v6268 = vsub.s32 %v6265, %v6267
        %v6269 = vrot.slane %v6261, %v6268
        %v6271 = vunpack.c.l.s4 1966171168
        %v6272 = vunpack.c.0.s8 %v6271
        %v6273 = vlaneseq
        %v6274 = vshrl.u32 %v6273, 7
        %v6275 = vsub.s32 %v6272, %v6274
        %v6276 = vrot.slane %v6262, %v6275
        %v6336 = vunpack.c.l.b16 %v6194
        %v6337 = vunpack.c.h.b16 %v6194
        %v6338 = vunpack.c.l.b16 %v6195
        %v6339 = vunpack.c.h.b16 %v6195
        %v6340 = vunpack.c.l.b16 %v6196
        %v6341 = vunpack.c.h.b16 %v6196
        %v6342 = vunpack.c.l.b16 %v6197
        %v6343 = vunpack.c.h.b16 %v6197
        %v6344 = vunpack.c.l.b16 %v6198
        %v6345 = vunpack.c.h.b16 %v6198
        %v6346 = vunpack.c.l.b16 %v6199
        %v6347 = vunpack.c.h.b16 %v6199
        %v6348 = vunpack.c.l.b16 %v6200
        %v6349 = vunpack.c.h.b16 %v6200
        %v6350 = vunpack.c.l.b16 %v6201
        %v6351 = vunpack.c.h.b16 %v6201
        %v6352 = vunpack.c.l.b16 %v6202
        %v6353 = vunpack.c.h.b16 %v6202
        %v6354 = vunpack.c.l.b16 %v6203
        %v6355 = vunpack.c.h.b16 %v6203
        %v6356 = vunpack.c.l.b16 %v6204
        %v6357 = vunpack.c.h.b16 %v6204
        %v6358 = vunpack.c.l.b16 %v6205
        %v6359 = vunpack.c.h.b16 %v6205
        %v6360 = vunpack.c.l.b16 %v6206
        %v6361 = vunpack.c.h.b16 %v6206
        %v6362 = vunpack.c.l.b16 %v6207
        %v6363 = vunpack.c.h.b16 %v6207
        %v6364 = vunpack.c.l.b16 %v6208
        %v6365 = vunpack.c.h.b16 %v6208
        %v6366 = vunpack.c.l.b16 %v6209
        %v6367 = vunpack.c.h.b16 %v6209
        %v6368 = vunpack.c.l.b16 %v6210
        %v6369 = vunpack.c.h.b16 %v6210
        %v6370 = vunpack.c.l.b16 %v6211
        %v6371 = vunpack.c.h.b16 %v6211
        %v6372 = vunpack.c.l.b16 %v6212
        %v6373 = vunpack.c.h.b16 %v6212
        %v6374 = vunpack.c.l.b16 %v6213
        %v6375 = vunpack.c.h.b16 %v6213
        %v6376 = vunpack.c.l.b16 %v6214
        %v6377 = vunpack.c.h.b16 %v6214
        %v6378 = vunpack.c.l.b16 %v6215
        %v6379 = vunpack.c.h.b16 %v6215
        %v6380 = vunpack.c.l.b16 %v6216
        %v6381 = vunpack.c.h.b16 %v6216
        %v6382 = vunpack.c.l.b16 %v6217
        %v6383 = vunpack.c.h.b16 %v6217
        %v6384 = vunpack.c.l.b16 %v6218
        %v6385 = vunpack.c.h.b16 %v6218
        %v6386 = vunpack.c.l.b16 %v6219
        %v6387 = vunpack.c.h.b16 %v6219
        %v6388 = vunpack.c.l.b16 %v6220
        %v6389 = vunpack.c.h.b16 %v6220
        %v6390 = vunpack.c.l.b16 %v6221
        %v6391 = vunpack.c.h.b16 %v6221
        %v6392 = vunpack.c.l.b16 %v6222
        %v6393 = vunpack.c.h.b16 %v6222
        %v6394 = vunpack.c.l.b16 %v6223
        %v6395 = vunpack.c.h.b16 %v6223
        %v6396 = vunpack.c.l.b16 %v6224
        %v6397 = vunpack.c.h.b16 %v6224
        %v6398 = vunpack.c.l.b16 %v6225
        %v6399 = vunpack.c.h.b16 %v6225
        %v6400 = vunpack.c.l.b16 %v6226
        %v6401 = vunpack.c.h.b16 %v6226
        %v6402 = vunpack.c.l.b16 %v6227
        %v6403 = vunpack.c.h.b16 %v6227
        %v6404 = vunpack.c.l.b16 %v6228
        %v6405 = vunpack.c.h.b16 %v6228
        %v6406 = vunpack.c.l.b16 %v6229
        %v6407 = vunpack.c.h.b16 %v6229
        %v6408 = vunpack.c.l.b16 %v6230
        %v6409 = vunpack.c.h.b16 %v6230
        %v6410 = vunpack.c.l.b16 %v6231
        %v6411 = vunpack.c.h.b16 %v6231
        %v6412 = vunpack.c.l.b16 %v6232
        %v6413 = vunpack.c.h.b16 %v6232
        %v6414 = vunpack.c.l.b16 %v6233
        %v6415 = vunpack.c.h.b16 %v6233
        %v6416 = vunpack.c.l.b16 %v6234
        %v6417 = vunpack.c.h.b16 %v6234
        %v6418 = vunpack.c.l.b16 %v6235
        %v6419 = vunpack.c.h.b16 %v6235
        %v6420 = vunpack.c.l.b16 %v6236
        %v6421 = vunpack.c.h.b16 %v6236
        %v6422 = vunpack.c.l.b16 %v6237
        %v6423 = vunpack.c.h.b16 %v6237
        %v6424 = vunpack.c.l.b16 %v6238
        %v6425 = vunpack.c.h.b16 %v6238
        %v6426 = vunpack.c.l.b16 %v6239
        %v6427 = vunpack.c.h.b16 %v6239
        %v6428 = vunpack.c.l.b16 %v6240
        %v6429 = vunpack.c.h.b16 %v6240
        %v6430 = vunpack.c.l.b16 %v6241
        %v6431 = vunpack.c.h.b16 %v6241
        %v6432 = vunpack.c.l.b16 %v6242
        %v6433 = vunpack.c.h.b16 %v6242
        %v6434 = vunpack.c.l.b16 %v6243
        %v6435 = vunpack.c.h.b16 %v6243
        %v6436 = vunpack.c.l.b16 %v6244
        %v6437 = vunpack.c.h.b16 %v6244
        %v6438 = vunpack.c.l.b16 %v6245
        %v6439 = vunpack.c.h.b16 %v6245
        %v6440 = vunpack.c.l.b16 %v6246
        %v6441 = vunpack.c.h.b16 %v6246
        %v6442 = vunpack.c.l.b16 %v6247
        %v6443 = vunpack.c.h.b16 %v6247
        %v6444 = vunpack.c.l.b16 %v6248
        %v6445 = vunpack.c.h.b16 %v6248
        %v6446 = vunpack.c.l.b16 %v6249
        %v6447 = vunpack.c.h.b16 %v6249
        %v6448 = vunpack.c.l.b16 %v6250
        %v6449 = vunpack.c.h.b16 %v6250
        %v6450 = vunpack.c.l.b16 %v6251
        %v6451 = vunpack.c.h.b16 %v6251
        %v6452 = vpack.c.b16 %v6340, %v6336
        %v6453 = vpack.c.b16 %v6341, %v6337
        %v6454 = vpack.c.b16 %v6342, %v6338
        %v6455 = vpack.c.b16 %v6343, %v6339
        %v6456 = vpack.c.b16 %v6348, %v6344
        %v6457 = vpack.c.b16 %v6349, %v6345
        %v6458 = vpack.c.b16 %v6350, %v6346
        %v6459 = vpack.c.b16 %v6351, %v6347
        %v6460 = vpack.c.b16 %v6356, %v6352
        %v6461 = vpack.c.b16 %v6357, %v6353
        %v6462 = vpack.c.b16 %v6358, %v6354
        %v6463 = vpack.c.b16 %v6359, %v6355
        %v6464 = vpack.c.b16 %v6364, %v6360
        %v6465 = vpack.c.b16 %v6365, %v6361
        %v6466 = vpack.c.b16 %v6366, %v6362
        %v6467 = vpack.c.b16 %v6367, %v6363
        %v6468 = vpack.c.b16 %v6372, %v6368
        %v6469 = vpack.c.b16 %v6373, %v6369
        %v6470 = vpack.c.b16 %v6374, %v6370
        %v6471 = vpack.c.b16 %v6375, %v6371
        %v6472 = vpack.c.b16 %v6380, %v6376
        %v6473 = vpack.c.b16 %v6381, %v6377
        %v6474 = vpack.c.b16 %v6382, %v6378
        %v6475 = vpack.c.b16 %v6383, %v6379
        %v6476 = vpack.c.b16 %v6388, %v6384
        %v6477 = vpack.c.b16 %v6389, %v6385
        %v6478 = vpack.c.b16 %v6390, %v6386
        %v6479 = vpack.c.b16 %v6391, %v6387
        %v6480 = vpack.c.b16 %v6396, %v6392
        %v6481 = vpack.c.b16 %v6397, %v6393
        %v6482 = vpack.c.b16 %v6398, %v6394
        %v6483 = vpack.c.b16 %v6399, %v6395
        %v6484 = vpack.c.b16 %v6404, %v6400
        %v6485 = vpack.c.b16 %v6405, %v6401
        %v6486 = vpack.c.b16 %v6406, %v6402
        %v6487 = vpack.c.b16 %v6407, %v6403
        %v6488 = vpack.c.b16 %v6412, %v6408
        %v6489 = vpack.c.b16 %v6413, %v6409
        %v6490 = vpack.c.b16 %v6414, %v6410
        %v6491 = vpack.c.b16 %v6415, %v6411
        %v6492 = vpack.c.b16 %v6420, %v6416
        %v6493 = vpack.c.b16 %v6421, %v6417
        %v6494 = vpack.c.b16 %v6422, %v6418
        %v6495 = vpack.c.b16 %v6423, %v6419
        %v6496 = vpack.c.b16 %v6428, %v6424
        %v6497 = vpack.c.b16 %v6429, %v6425
        %v6498 = vpack.c.b16 %v6430, %v6426
        %v6499 = vpack.c.b16 %v6431, %v6427
        %v6500 = vpack.c.b16 %v6436, %v6432
        %v6501 = vpack.c.b16 %v6437, %v6433
        %v6502 = vpack.c.b16 %v6438, %v6434
        %v6503 = vpack.c.b16 %v6439, %v6435
        %v6504 = vpack.c.b16 %v6444, %v6440
        %v6505 = vpack.c.b16 %v6445, %v6441
        %v6506 = vpack.c.b16 %v6446, %v6442
        %v6507 = vpack.c.b16 %v6447, %v6443
        %v6508 = vpack.c.b16 %v6448, %v6448
        %v6509 = vpack.c.b16 %v6449, %v6449
        %v6510 = vpack.c.b16 %v6450, %v6450
        %v6511 = vpack.c.b16 %v6451, %v6451
        %v6569 = vsel %vm3127, %v6276, 0
        %v6572 = vand.u32 %v6508, %v3133
        %v6575 = vand.u32 %v6509, %v3133
        %v6578 = vand.u32 %v6510, %v3133
        %v6581 = vand.u32 %v6511, %v3133
        %6583 = vmatprep.subr.bf16.mxu0 %v6453
        %6584 = vmatpush1.bf16.msra.mxu0 %v6452
        %6585 = vmatprep.subr.bf16.mxu0 %v6457
        %6586 = vmatpush1.bf16.msra.mxu0 %v6456
        %6587 = vmatprep.subr.bf16.mxu0 %v6461
        %6588 = vmatpush1.bf16.msra.mxu0 %v6460
        %6589 = vmatprep.subr.bf16.mxu0 %v6465
        %6590 = vmatpush1.bf16.msra.mxu0 %v6464
        %6591 = vmatprep.subr.bf16.mxu0 %v6469
        %6592 = vmatpush1.bf16.msra.mxu0 %v6468
        %6593 = vmatprep.subr.bf16.mxu0 %v6473
        %6594 = vmatpush1.bf16.msra.mxu0 %v6472
        %6595 = vmatprep.subr.bf16.mxu0 %v6477
        %6596 = vmatpush1.bf16.msra.mxu0 %v6476
        %6597 = vmatprep.subr.bf16.mxu0 %v6481
        %6598 = vmatpush1.bf16.msra.mxu0 %v6480
        %6599 = vmatprep.subr.bf16.mxu0 %v6485
        %6600 = vmatpush1.bf16.msra.mxu0 %v6484
        %6601 = vmatprep.subr.bf16.mxu0 %v6489
        %6602 = vmatpush1.bf16.msra.mxu0 %v6488
        %6603 = vmatprep.subr.bf16.mxu0 %v6493
        %6604 = vmatpush1.bf16.msra.mxu0 %v6492
        %6605 = vmatprep.subr.bf16.mxu0 %v6497
        %6606 = vmatpush1.bf16.msra.mxu0 %v6496
        %6607 = vmatprep.subr.bf16.mxu0 %v6501
        %6608 = vmatpush1.bf16.msra.mxu0 %v6500
        %6609 = vmatprep.subr.bf16.mxu0 %v6505
        %6610 = vmatpush1.bf16.msra.mxu0 %v6504
        %6611 = vmatprep.subr.bf16.mxu0 %v6575
        %6612 = vmatpush1.bf16.msra.mxu0 %v6572
        %6613 = vmatprep.subr.bf16.mxu0 0
        %6614 = vmatpush1.bf16.msra.mxu0 0
        %6615 = vmatprep.mubr.bf16.mxu0 %v6569
        %6616 = vmatmul.mubr.bf16.gmra.mrb[0].mxu0 %v6269
        %v6617 = vpop.f32.mrb[0].mxu0
        %v6618 = vadd.f32 0.0, %v6617
        %v6619 = vpop.f32.mrb[0].mxu0
        %v6620 = vadd.f32 0.0, %v6619
        %v6621 = vpop.f32.mrb[0].mxu0
        %v6622 = vpop.f32.mrb[0].mxu0
        %6623 = vdwg.mxu0
        %6624 = vmatprep.subr.bf16.mxu0 %v6455
        %6625 = vmatpush1.bf16.msra.mxu0 %v6454
        %6626 = vmatprep.subr.bf16.mxu0 %v6459
        %6627 = vmatpush1.bf16.msra.mxu0 %v6458
        %6628 = vmatprep.subr.bf16.mxu0 %v6463
        %6629 = vmatpush1.bf16.msra.mxu0 %v6462
        %6630 = vmatprep.subr.bf16.mxu0 %v6467
        %6631 = vmatpush1.bf16.msra.mxu0 %v6466
        %6632 = vmatprep.subr.bf16.mxu0 %v6471
        %6633 = vmatpush1.bf16.msra.mxu0 %v6470
        %6634 = vmatprep.subr.bf16.mxu0 %v6475
        %6635 = vmatpush1.bf16.msra.mxu0 %v6474
        %6636 = vmatprep.subr.bf16.mxu0 %v6479
        %6637 = vmatpush1.bf16.msra.mxu0 %v6478
        %6638 = vmatprep.subr.bf16.mxu0 %v6483
        %6639 = vmatpush1.bf16.msra.mxu0 %v6482
        %6640 = vmatprep.subr.bf16.mxu0 %v6487
        %6641 = vmatpush1.bf16.msra.mxu0 %v6486
        %6642 = vmatprep.subr.bf16.mxu0 %v6491
        %6643 = vmatpush1.bf16.msra.mxu0 %v6490
        %6644 = vmatprep.subr.bf16.mxu0 %v6495
        %6645 = vmatpush1.bf16.msra.mxu0 %v6494
        %6646 = vmatprep.subr.bf16.mxu0 %v6499
        %6647 = vmatpush1.bf16.msra.mxu0 %v6498
        %6648 = vmatprep.subr.bf16.mxu0 %v6503
        %6649 = vmatpush1.bf16.msra.mxu0 %v6502
        %6650 = vmatprep.subr.bf16.mxu0 %v6507
        %6651 = vmatpush1.bf16.msra.mxu0 %v6506
        %6652 = vmatprep.subr.bf16.mxu0 %v6581
        %6653 = vmatpush1.bf16.msra.mxu0 %v6578
        %6654 = vmatprep.subr.bf16.mxu0 0
        %6655 = vmatpush1.bf16.msra.mxu0 0
        %6656 = vmatprep.mubr.bf16.mxu0 %v6569
        %6657 = vmatmul.mubr.bf16.gmra.mrb[0].mxu0 %v6269
        %v6658 = vpop.f32.mrb[0].mxu0
        %v6659 = vadd.f32 0.0, %v6658
        %v6660 = vpop.f32.mrb[0].mxu0
        %v6661 = vadd.f32 0.0, %v6660
        %v6662 = vpop.f32.mrb[0].mxu0
        %v6663 = vpop.f32.mrb[0].mxu0
        %6664 = vdwg.mxu0
        %v6665 = vadd.f32 %v6160, %v6618
        %v6666 = vadd.f32 %v6161, %v6620
        %v6667 = vadd.f32 %v6162, %v6659
        %v6668 = vadd.f32 %v6163, %v6661
        %v6669 = vld [vmem:[%s1389] sm:$0xf]
        %v6671 = vlaneseq
        %v6672 = vshrl.u32 %v6671, 7
        %v6673 = vsub.s32 0, %v6672
        %v6674 = vrot.slane %v6669, %v6673
        %v6675 = vlaneseq
        %v6676 = vshrl.u32 %v6675, 7
        %v6677 = vsub.s32 1, %v6676
        %v6678 = vrot.slane %v6669, %v6677
        %v6679 = vlaneseq
        %v6680 = vshrl.u32 %v6679, 7
        %v6681 = vsub.s32 2, %v6680
        %v6682 = vrot.slane %v6669, %v6681
        %v6683 = vlaneseq
        %v6684 = vshrl.u32 %v6683, 7
        %v6685 = vsub.s32 3, %v6684
        %v6686 = vrot.slane %v6669, %v6685
        %v6691 = vmul.f32 %v6665, %v6674
        %v6692 = vmul.f32 %v6666, %v6678
        %v6693 = vmul.f32 %v6667, %v6682
        %v6694 = vmul.f32 %v6668, %v6686
        %v6695 = vld [vmem:[%s1398] sm:$0xf]
        %v6697 = vlaneseq
        %v6698 = vshrl.u32 %v6697, 7
        %v6699 = vsub.s32 0, %v6698
        %v6700 = vrot.slane %v6695, %v6699
        %v6701 = vlaneseq
        %v6702 = vshrl.u32 %v6701, 7
        %v6703 = vsub.s32 1, %v6702
        %v6704 = vrot.slane %v6695, %v6703
        %v6705 = vlaneseq
        %v6706 = vshrl.u32 %v6705, 7
        %v6707 = vsub.s32 2, %v6706
        %v6708 = vrot.slane %v6695, %v6707
        %v6709 = vlaneseq
        %v6710 = vshrl.u32 %v6709, 7
        %v6711 = vsub.s32 3, %v6710
        %v6712 = vrot.slane %v6695, %v6711
        %v6717 = vadd.f32 %v6691, %v6700
        %v6718 = vadd.f32 %v6692, %v6704
        %v6719 = vadd.f32 %v6693, %v6708
        %v6720 = vadd.f32 %v6694, %v6712
        %v6721 = vmax.f32 %v6717, 0.0
        %v6722 = vmax.f32 %v6718, 0.0
        %v6723 = vmax.f32 %v6719, 0.0
        %v6724 = vmax.f32 %v6720, 0.0
        %v6725 = vpack.c.bf16 %v6721, %v6721
        %v6726 = vpack.c.bf16 %v6722, %v6722
        %v6727 = vpack.c.bf16 %v6723, %v6723
        %v6728 = vpack.c.bf16 %v6724, %v6724
        %v6729 = vld [vmem:[%s1409] sm:$0xff]
        %v6730 = vld [vmem:[%s1409 + $0x8] sm:$0xff]
        %v6731 = vld [vmem:[%s1409 + $0x10] sm:$0xff]
        %v6732 = vld [vmem:[%s1409 + $0x18] sm:$0xff]
        %v6733 = vld [vmem:[%s1409 + $0x20] sm:$0xff]
        %v6734 = vld [vmem:[%s1409 + $0x28] sm:$0xff]
        %v6735 = vld [vmem:[%s1409 + $0x30] sm:$0xff]
        %v6736 = vld [vmem:[%s1409 + $0x38] sm:$0xff]
        %v6737 = vld [vmem:[%s1409 + $0x40] sm:$0xff]
        %v6738 = vld [vmem:[%s1409 + $0x48] sm:$0xff]
        %v6739 = vld [vmem:[%s1409 + $0x50] sm:$0xff]
        %v6740 = vld [vmem:[%s1409 + $0x58] sm:$0xff]
        %v6741 = vld [vmem:[%s1409 + $0x60] sm:$0xff]
        %v6742 = vld [vmem:[%s1409 + $0x68] sm:$0xff]
        %v6743 = vld [vmem:[%s1409 + $0x70] sm:$0xff]
        %v6744 = vld [vmem:[%s1409 + $0x78] sm:$0xff]
        %v6745 = vld [vmem:[%s1409 + $0x80] sm:$0xff]
        %v6746 = vld [vmem:[%s1409 + $0x88] sm:$0xff]
        %v6747 = vld [vmem:[%s1409 + $0x90] sm:$0xff]
        %v6748 = vld [vmem:[%s1409 + $0x98] sm:$0xff]
        %v6749 = vld [vmem:[%s1409 + $0xa0] sm:$0xff]
        %v6750 = vld [vmem:[%s1409 + $0xa8] sm:$0xff]
        %v6751 = vld [vmem:[%s1409 + $0xb0] sm:$0xff]
        %v6752 = vld [vmem:[%s1409 + $0xb8] sm:$0xff]
        %v6753 = vld [vmem:[%s1409 + $0xc0] sm:$0xff]
        %v6754 = vld [vmem:[%s1409 + $0xc8] sm:$0xff]
        %v6755 = vld [vmem:[%s1409 + $0xd0] sm:$0xff]
        %v6756 = vld [vmem:[%s1409 + $0xd8] sm:$0xff]
        %v6757 = vld [vmem:[%s1409 + $0xe0] sm:$0xff]
        %v6758 = vld [vmem:[%s1409 + $0xe8] sm:$0xff]
        %v6759 = vld [vmem:[%s1409 + $0xf0] sm:$0xff]
        %v6760 = vld [vmem:[%s1409 + $0xf8] sm:$0xff]
        %v6761 = vld [vmem:[%s1409 + $0x100] sm:$0xff]
        %v6762 = vld [vmem:[%s1409 + $0x108] sm:$0xff]
        %v6763 = vld [vmem:[%s1409 + $0x110] sm:$0xff]
        %v6764 = vld [vmem:[%s1409 + $0x118] sm:$0xff]
        %v6765 = vld [vmem:[%s1409 + $0x120] sm:$0xff]
        %v6766 = vld [vmem:[%s1409 + $0x128] sm:$0xff]
        %v6767 = vld [vmem:[%s1409 + $0x130] sm:$0xff]
        %v6768 = vld [vmem:[%s1409 + $0x138] sm:$0xff]
        %v6769 = vld [vmem:[%s1409 + $0x140] sm:$0xff]
        %v6770 = vld [vmem:[%s1409 + $0x148] sm:$0xff]
        %v6771 = vld [vmem:[%s1409 + $0x150] sm:$0xff]
        %v6772 = vld [vmem:[%s1409 + $0x158] sm:$0xff]
        %v6773 = vld [vmem:[%s1409 + $0x160] sm:$0xff]
        %v6774 = vld [vmem:[%s1409 + $0x168] sm:$0xff]
        %v6775 = vld [vmem:[%s1409 + $0x170] sm:$0xff]
        %v6776 = vld [vmem:[%s1409 + $0x178] sm:$0xff]
        %v6777 = vld [vmem:[%s1409 + $0x180] sm:$0xff]
        %v6778 = vld [vmem:[%s1409 + $0x188] sm:$0xff]
        %v6779 = vld [vmem:[%s1409 + $0x190] sm:$0xff]
        %v6780 = vld [vmem:[%s1409 + $0x198] sm:$0xff]
        %v6781 = vld [vmem:[%s1409 + $0x1a0] sm:$0xff]
        %v6782 = vld [vmem:[%s1409 + $0x1a8] sm:$0xff]
        %v6783 = vld [vmem:[%s1409 + $0x1b0] sm:$0xff]
        %v6784 = vld [vmem:[%s1409 + $0x1b8] sm:$0xff]
        %v6785 = vld [vmem:[%s1409 + $0x1c0] sm:$0xff]
        %v6786 = vld [vmem:[%s1409 + $0x1c8] sm:$0xff]
        %v6787 = vld [vmem:[%s1409 + $0x1d0] sm:$0xff]
        %v6788 = vld [vmem:[%s1409 + $0x1d8] sm:$0xff]
        %v6789 = vld [vmem:[%s1409 + $0x1e0] sm:$0xff]
        %v6790 = vld [vmem:[%s1409 + $0x1e8] sm:$0xff]
        %v6791 = vld [vmem:[%s1409 + $0x1f0] sm:$0xff]
        %v6792 = vld [vmem:[%s1409 + $0x1f8] sm:$0xff]
        %v6793 = vld [vmem:[%s1409 + $0x200] sm:$0xff]
        %v6794 = vld [vmem:[%s1409 + $0x208] sm:$0xff]
        %v6795 = vld [vmem:[%s1409 + $0x210] sm:$0xff]
        %v6796 = vld [vmem:[%s1409 + $0x218] sm:$0xff]
        %v6797 = vld [vmem:[%s1409 + $0x220] sm:$0xff]
        %v6798 = vld [vmem:[%s1409 + $0x228] sm:$0xff]
        %v6799 = vld [vmem:[%s1409 + $0x230] sm:$0xff]
        %v6800 = vld [vmem:[%s1409 + $0x238] sm:$0xff]
        %v6801 = vld [vmem:[%s1409 + $0x240] sm:$0xff]
        %v6802 = vld [vmem:[%s1409 + $0x248] sm:$0xff]
        %v6803 = vld [vmem:[%s1409 + $0x250] sm:$0xff]
        %v6804 = vld [vmem:[%s1409 + $0x258] sm:$0xff]
        %v6805 = vld [vmem:[%s1409 + $0x260] sm:$0xff]
        %v6806 = vld [vmem:[%s1409 + $0x268] sm:$0xff]
        %v6807 = vld [vmem:[%s1409 + $0x270] sm:$0xff]
        %v6808 = vld [vmem:[%s1409 + $0x278] sm:$0xff]
        %v6809 = vld [vmem:[%s1409 + $0x280] sm:$0xff]
        %v6810 = vld [vmem:[%s1409 + $0x288] sm:$0xff]
        %v6811 = vld [vmem:[%s1409 + $0x290] sm:$0xff]
        %v6812 = vld [vmem:[%s1409 + $0x298] sm:$0xff]
        %v6813 = vld [vmem:[%s1409 + $0x2a0] sm:$0xff]
        %v6814 = vld [vmem:[%s1409 + $0x2a8] sm:$0xff]
        %v6815 = vld [vmem:[%s1409 + $0x2b0] sm:$0xff]
        %v6816 = vld [vmem:[%s1409 + $0x2b8] sm:$0xff]
        %v6817 = vld [vmem:[%s1409 + $0x2c0] sm:$0xff]
        %v6818 = vld [vmem:[%s1409 + $0x2c8] sm:$0xff]
        %v6819 = vld [vmem:[%s1409 + $0x2d0] sm:$0xff]
        %v6820 = vld [vmem:[%s1409 + $0x2d8] sm:$0xff]
        %v6821 = vld [vmem:[%s1409 + $0x2e0] sm:$0xff]
        %v6822 = vld [vmem:[%s1409 + $0x2e8] sm:$0xff]
        %v6823 = vld [vmem:[%s1409 + $0x2f0] sm:$0xff]
        %v6824 = vld [vmem:[%s1409 + $0x2f8] sm:$0xff]
        %v6825 = vld [vmem:[%s1409 + $0x300] sm:$0xff]
        %v6826 = vld [vmem:[%s1409 + $0x308] sm:$0xff]
        %v6827 = vld [vmem:[%s1409 + $0x310] sm:$0xff]
        %v6828 = vld [vmem:[%s1409 + $0x318] sm:$0xff]
        %v6829 = vld [vmem:[%s1409 + $0x320] sm:$0xff]
        %v6830 = vld [vmem:[%s1409 + $0x328] sm:$0xff]
        %v6831 = vld [vmem:[%s1409 + $0x330] sm:$0xff]
        %v6832 = vld [vmem:[%s1409 + $0x338] sm:$0xff]
        %v6833 = vld [vmem:[%s1409 + $0x340] sm:$0xff]
        %v6834 = vld [vmem:[%s1409 + $0x348] sm:$0xff]
        %v6835 = vld [vmem:[%s1409 + $0x350] sm:$0xff]
        %v6836 = vld [vmem:[%s1409 + $0x358] sm:$0xff]
        %v6837 = vld [vmem:[%s1409 + $0x360] sm:$0xff]
        %v6838 = vld [vmem:[%s1409 + $0x368] sm:$0xff]
        %v6839 = vld [vmem:[%s1409 + $0x370] sm:$0xff]
        %v6840 = vld [vmem:[%s1409 + $0x378] sm:$0xff]
        %v6841 = vld [vmem:[%s1409 + $0x380] sm:$0xff]
        %v6842 = vld [vmem:[%s1409 + $0x388] sm:$0xff]
        %v6843 = vld [vmem:[%s1409 + $0x390] sm:$0xff]
        %v6844 = vld [vmem:[%s1409 + $0x398] sm:$0xff]
        %v6845 = vld [vmem:[%s1409 + $0x3a0] sm:$0xff]
        %v6846 = vld [vmem:[%s1409 + $0x3a8] sm:$0xff]
        %v6847 = vld [vmem:[%s1409 + $0x3b0] sm:$0xff]
        %v6848 = vld [vmem:[%s1409 + $0x3b8] sm:$0xff]
        %v6849 = vld [vmem:[%s1409 + $0x3c0] sm:$0xff]
        %v6850 = vld [vmem:[%s1409 + $0x3c8] sm:$0xff]
        %v6851 = vld [vmem:[%s1409 + $0x3d0] sm:$0xff]
        %v6852 = vld [vmem:[%s1409 + $0x3d8] sm:$0xff]
        %v6853 = vld [vmem:[%s1409 + $0x3e0] sm:$0xff]
        %v6854 = vld [vmem:[%s1409 + $0x3e8] sm:$0xff]
        %v6855 = vld [vmem:[%s1409 + $0x3f0] sm:$0xff]
        %v6856 = vld [vmem:[%s1409 + $0x3f8] sm:$0xff]
        %v6857 = vld [vmem:[%s1409 + $0x400] sm:$0xff]
        %v6858 = vld [vmem:[%s1409 + $0x408] sm:$0xff]
        %v6859 = vld [vmem:[%s1409 + $0x410] sm:$0xff]
        %v6860 = vld [vmem:[%s1409 + $0x418] sm:$0xff]
        %v6861 = vld [vmem:[%s1409 + $0x420] sm:$0xff]
        %v6862 = vld [vmem:[%s1409 + $0x428] sm:$0xff]
        %v6863 = vld [vmem:[%s1409 + $0x430] sm:$0xff]
        %v6864 = vld [vmem:[%s1409 + $0x438] sm:$0xff]
        %v6865 = vld [vmem:[%s1409 + $0x440] sm:$0xff]
        %v6866 = vld [vmem:[%s1409 + $0x448] sm:$0xff]
        %v6867 = vld [vmem:[%s1409 + $0x450] sm:$0xff]
        %v6868 = vld [vmem:[%s1409 + $0x458] sm:$0xff]
        %v6869 = vld [vmem:[%s1409 + $0x460] sm:$0xff]
        %v6870 = vld [vmem:[%s1409 + $0x468] sm:$0xff]
        %v6871 = vld [vmem:[%s1409 + $0x470] sm:$0xff]
        %v6872 = vld [vmem:[%s1409 + $0x478] sm:$0xff]
        %v6873 = vld [vmem:[%s1409 + $0x480] sm:$0xff]
        %v6874 = vld [vmem:[%s1409 + $0x488] sm:$0xff]
        %v6875 = vld [vmem:[%s1409 + $0x490] sm:$0xff]
        %v6876 = vld [vmem:[%s1409 + $0x498] sm:$0xff]
        %v6877 = vld [vmem:[%s1409 + $0x4a0] sm:$0xff]
        %v6878 = vld [vmem:[%s1409 + $0x4a8] sm:$0xff]
        %v6879 = vld [vmem:[%s1409 + $0x4b0] sm:$0xff]
        %v6880 = vld [vmem:[%s1409 + $0x4b8] sm:$0xff]
        %v6881 = vld [vmem:[%s1409 + $0x4c0] sm:$0xff]
        %v6882 = vld [vmem:[%s1409 + $0x4c8] sm:$0xff]
        %v6883 = vld [vmem:[%s1409 + $0x4d0] sm:$0xff]
        %v6884 = vld [vmem:[%s1409 + $0x4d8] sm:$0xff]
        %v6885 = vld [vmem:[%s1409 + $0x4e0] sm:$0xff]
        %v6886 = vld [vmem:[%s1409 + $0x4e8] sm:$0xff]
        %v6887 = vld [vmem:[%s1409 + $0x4f0] sm:$0xff]
        %v6888 = vld [vmem:[%s1409 + $0x4f8] sm:$0xff]
        %v6889 = vld [vmem:[%s1409 + $0x500] sm:$0xff]
        %v6890 = vld [vmem:[%s1409 + $0x508] sm:$0xff]
        %v6891 = vld [vmem:[%s1409 + $0x510] sm:$0xff]
        %v6892 = vld [vmem:[%s1409 + $0x518] sm:$0xff]
        %v6893 = vld [vmem:[%s1409 + $0x520] sm:$0xff]
        %v6894 = vld [vmem:[%s1409 + $0x528] sm:$0xff]
        %v6895 = vld [vmem:[%s1409 + $0x530] sm:$0xff]
        %v6896 = vld [vmem:[%s1409 + $0x538] sm:$0xff]
        %v6897 = vld [vmem:[%s1409 + $0x540] sm:$0xff]
        %v6898 = vld [vmem:[%s1409 + $0x548] sm:$0xff]
        %v6899 = vld [vmem:[%s1409 + $0x550] sm:$0xff]
        %v6900 = vld [vmem:[%s1409 + $0x558] sm:$0xff]
        %v6901 = vld [vmem:[%s1409 + $0x560] sm:$0xff]
        %v6902 = vld [vmem:[%s1409 + $0x568] sm:$0xff]
        %v6903 = vld [vmem:[%s1409 + $0x570] sm:$0xff]
        %v6904 = vld [vmem:[%s1409 + $0x578] sm:$0xff]
        %v6905 = vld [vmem:[%s1409 + $0x580] sm:$0xff]
        %v6906 = vld [vmem:[%s1409 + $0x588] sm:$0xff]
        %v6907 = vld [vmem:[%s1409 + $0x590] sm:$0xff]
        %v6908 = vld [vmem:[%s1409 + $0x598] sm:$0xff]
        %v6909 = vld [vmem:[%s1409 + $0x5a0] sm:$0xff]
        %v6910 = vld [vmem:[%s1409 + $0x5a8] sm:$0xff]
        %v6911 = vld [vmem:[%s1409 + $0x5b0] sm:$0xff]
        %v6912 = vld [vmem:[%s1409 + $0x5b8] sm:$0xff]
        %v6913 = vld [vmem:[%s1409 + $0x5c0] sm:$0xff]
        %v6914 = vld [vmem:[%s1409 + $0x5c8] sm:$0xff]
        %v6915 = vld [vmem:[%s1409 + $0x5d0] sm:$0xff]
        %v6916 = vld [vmem:[%s1409 + $0x5d8] sm:$0xff]
        %v6917 = vld [vmem:[%s1409 + $0x5e0] sm:$0xff]
        %v6918 = vld [vmem:[%s1409 + $0x5e8] sm:$0xff]
        %v6919 = vld [vmem:[%s1409 + $0x5f0] sm:$0xff]
        %v6920 = vld [vmem:[%s1409 + $0x5f8] sm:$0xff]
        %v6921 = vunpack.c.l.s8.bf16 %v6729
        %v6922 = vunpack.c.l.s8.bf16 %v6730
        %v6923 = vunpack.c.l.s8.bf16 %v6731
        %v6924 = vunpack.c.l.s8.bf16 %v6732
        %v6925 = vunpack.c.l.s8.bf16 %v6733
        %v6926 = vunpack.c.l.s8.bf16 %v6734
        %v6927 = vunpack.c.l.s8.bf16 %v6735
        %v6928 = vunpack.c.l.s8.bf16 %v6736
        %v6929 = vunpack.c.l.s8.bf16 %v6737
        %v6930 = vunpack.c.l.s8.bf16 %v6738
        %v6931 = vunpack.c.l.s8.bf16 %v6739
        %v6932 = vunpack.c.l.s8.bf16 %v6740
        %v6933 = vunpack.c.h.s8.bf16 %v6729
        %v6934 = vunpack.c.h.s8.bf16 %v6730
        %v6935 = vunpack.c.h.s8.bf16 %v6731
        %v6936 = vunpack.c.h.s8.bf16 %v6732
        %v6937 = vunpack.c.h.s8.bf16 %v6733
        %v6938 = vunpack.c.h.s8.bf16 %v6734
        %v6939 = vunpack.c.h.s8.bf16 %v6735
        %v6940 = vunpack.c.h.s8.bf16 %v6736
        %v6941 = vunpack.c.h.s8.bf16 %v6737
        %v6942 = vunpack.c.h.s8.bf16 %v6738
        %v6943 = vunpack.c.h.s8.bf16 %v6739
        %v6944 = vunpack.c.h.s8.bf16 %v6740
        %v6945 = vunpack.c.l.s8.bf16 %v6741
        %v6946 = vunpack.c.l.s8.bf16 %v6742
        %v6947 = vunpack.c.l.s8.bf16 %v6743
        %v6948 = vunpack.c.l.s8.bf16 %v6744
        %v6949 = vunpack.c.l.s8.bf16 %v6745
        %v6950 = vunpack.c.l.s8.bf16 %v6746
        %v6951 = vunpack.c.l.s8.bf16 %v6747
        %v6952 = vunpack.c.l.s8.bf16 %v6748
        %v6953 = vunpack.c.l.s8.bf16 %v6749
        %v6954 = vunpack.c.l.s8.bf16 %v6750
        %v6955 = vunpack.c.l.s8.bf16 %v6751
        %v6956 = vunpack.c.l.s8.bf16 %v6752
        %v6957 = vunpack.c.h.s8.bf16 %v6741
        %v6958 = vunpack.c.h.s8.bf16 %v6742
        %v6959 = vunpack.c.h.s8.bf16 %v6743
        %v6960 = vunpack.c.h.s8.bf16 %v6744
        %v6961 = vunpack.c.h.s8.bf16 %v6745
        %v6962 = vunpack.c.h.s8.bf16 %v6746
        %v6963 = vunpack.c.h.s8.bf16 %v6747
        %v6964 = vunpack.c.h.s8.bf16 %v6748
        %v6965 = vunpack.c.h.s8.bf16 %v6749
        %v6966 = vunpack.c.h.s8.bf16 %v6750
        %v6967 = vunpack.c.h.s8.bf16 %v6751
        %v6968 = vunpack.c.h.s8.bf16 %v6752
        %v6969 = vunpack.c.l.s8.bf16 %v6753
        %v6970 = vunpack.c.l.s8.bf16 %v6754
        %v6971 = vunpack.c.l.s8.bf16 %v6755
        %v6972 = vunpack.c.l.s8.bf16 %v6756
        %v6973 = vunpack.c.l.s8.bf16 %v6757
        %v6974 = vunpack.c.l.s8.bf16 %v6758
        %v6975 = vunpack.c.l.s8.bf16 %v6759
        %v6976 = vunpack.c.l.s8.bf16 %v6760
        %v6977 = vunpack.c.l.s8.bf16 %v6761
        %v6978 = vunpack.c.l.s8.bf16 %v6762
        %v6979 = vunpack.c.l.s8.bf16 %v6763
        %v6980 = vunpack.c.l.s8.bf16 %v6764
        %v6981 = vunpack.c.h.s8.bf16 %v6753
        %v6982 = vunpack.c.h.s8.bf16 %v6754
        %v6983 = vunpack.c.h.s8.bf16 %v6755
        %v6984 = vunpack.c.h.s8.bf16 %v6756
        %v6985 = vunpack.c.h.s8.bf16 %v6757
        %v6986 = vunpack.c.h.s8.bf16 %v6758
        %v6987 = vunpack.c.h.s8.bf16 %v6759
        %v6988 = vunpack.c.h.s8.bf16 %v6760
        %v6989 = vunpack.c.h.s8.bf16 %v6761
        %v6990 = vunpack.c.h.s8.bf16 %v6762
        %v6991 = vunpack.c.h.s8.bf16 %v6763
        %v6992 = vunpack.c.h.s8.bf16 %v6764
        %v6993 = vunpack.c.l.s8.bf16 %v6765
        %v6994 = vunpack.c.l.s8.bf16 %v6766
        %v6995 = vunpack.c.l.s8.bf16 %v6767
        %v6996 = vunpack.c.l.s8.bf16 %v6768
        %v6997 = vunpack.c.l.s8.bf16 %v6769
        %v6998 = vunpack.c.l.s8.bf16 %v6770
        %v6999 = vunpack.c.l.s8.bf16 %v6771
        %v7000 = vunpack.c.l.s8.bf16 %v6772
        %v7001 = vunpack.c.l.s8.bf16 %v6773
        %v7002 = vunpack.c.l.s8.bf16 %v6774
        %v7003 = vunpack.c.l.s8.bf16 %v6775
        %v7004 = vunpack.c.l.s8.bf16 %v6776
        %v7005 = vunpack.c.h.s8.bf16 %v6765
        %v7006 = vunpack.c.h.s8.bf16 %v6766
        %v7007 = vunpack.c.h.s8.bf16 %v6767
        %v7008 = vunpack.c.h.s8.bf16 %v6768
        %v7009 = vunpack.c.h.s8.bf16 %v6769
        %v7010 = vunpack.c.h.s8.bf16 %v6770
        %v7011 = vunpack.c.h.s8.bf16 %v6771
        %v7012 = vunpack.c.h.s8.bf16 %v6772
        %v7013 = vunpack.c.h.s8.bf16 %v6773
        %v7014 = vunpack.c.h.s8.bf16 %v6774
        %v7015 = vunpack.c.h.s8.bf16 %v6775
        %v7016 = vunpack.c.h.s8.bf16 %v6776
        %v7017 = vunpack.c.l.s8.bf16 %v6777
        %v7018 = vunpack.c.l.s8.bf16 %v6778
        %v7019 = vunpack.c.l.s8.bf16 %v6779
        %v7020 = vunpack.c.l.s8.bf16 %v6780
        %v7021 = vunpack.c.l.s8.bf16 %v6781
        %v7022 = vunpack.c.l.s8.bf16 %v6782
        %v7023 = vunpack.c.l.s8.bf16 %v6783
        %v7024 = vunpack.c.l.s8.bf16 %v6784
        %v7025 = vunpack.c.l.s8.bf16 %v6785
        %v7026 = vunpack.c.l.s8.bf16 %v6786
        %v7027 = vunpack.c.l.s8.bf16 %v6787
        %v7028 = vunpack.c.l.s8.bf16 %v6788
        %v7029 = vunpack.c.h.s8.bf16 %v6777
        %v7030 = vunpack.c.h.s8.bf16 %v6778
        %v7031 = vunpack.c.h.s8.bf16 %v6779
        %v7032 = vunpack.c.h.s8.bf16 %v6780
        %v7033 = vunpack.c.h.s8.bf16 %v6781
        %v7034 = vunpack.c.h.s8.bf16 %v6782
        %v7035 = vunpack.c.h.s8.bf16 %v6783
        %v7036 = vunpack.c.h.s8.bf16 %v6784
        %v7037 = vunpack.c.h.s8.bf16 %v6785
        %v7038 = vunpack.c.h.s8.bf16 %v6786
        %v7039 = vunpack.c.h.s8.bf16 %v6787
        %v7040 = vunpack.c.h.s8.bf16 %v6788
        %v7041 = vunpack.c.l.s8.bf16 %v6789
        %v7042 = vunpack.c.l.s8.bf16 %v6790
        %v7043 = vunpack.c.l.s8.bf16 %v6791
        %v7044 = vunpack.c.l.s8.bf16 %v6792
        %v7045 = vunpack.c.l.s8.bf16 %v6793
        %v7046 = vunpack.c.l.s8.bf16 %v6794
        %v7047 = vunpack.c.l.s8.bf16 %v6795
        %v7048 = vunpack.c.l.s8.bf16 %v6796
        %v7049 = vunpack.c.l.s8.bf16 %v6797
        %v7050 = vunpack.c.l.s8.bf16 %v6798
        %v7051 = vunpack.c.l.s8.bf16 %v6799
        %v7052 = vunpack.c.l.s8.bf16 %v6800
        %v7053 = vunpack.c.h.s8.bf16 %v6789
        %v7054 = vunpack.c.h.s8.bf16 %v6790
        %v7055 = vunpack.c.h.s8.bf16 %v6791
        %v7056 = vunpack.c.h.s8.bf16 %v6792
        %v7057 = vunpack.c.h.s8.bf16 %v6793
        %v7058 = vunpack.c.h.s8.bf16 %v6794
        %v7059 = vunpack.c.h.s8.bf16 %v6795
        %v7060 = vunpack.c.h.s8.bf16 %v6796
        %v7061 = vunpack.c.h.s8.bf16 %v6797
        %v7062 = vunpack.c.h.s8.bf16 %v6798
        %v7063 = vunpack.c.h.s8.bf16 %v6799
        %v7064 = vunpack.c.h.s8.bf16 %v6800
        %v7065 = vunpack.c.l.s8.bf16 %v6801
        %v7066 = vunpack.c.l.s8.bf16 %v6802
        %v7067 = vunpack.c.l.s8.bf16 %v6803
        %v7068 = vunpack.c.l.s8.bf16 %v6804
        %v7069 = vunpack.c.l.s8.bf16 %v6805
        %v7070 = vunpack.c.l.s8.bf16 %v6806
        %v7071 = vunpack.c.l.s8.bf16 %v6807
        %v7072 = vunpack.c.l.s8.bf16 %v6808
        %v7073 = vunpack.c.l.s8.bf16 %v6809
        %v7074 = vunpack.c.l.s8.bf16 %v6810
        %v7075 = vunpack.c.l.s8.bf16 %v6811
        %v7076 = vunpack.c.l.s8.bf16 %v6812
        %v7077 = vunpack.c.h.s8.bf16 %v6801
        %v7078 = vunpack.c.h.s8.bf16 %v6802
        %v7079 = vunpack.c.h.s8.bf16 %v6803
        %v7080 = vunpack.c.h.s8.bf16 %v6804
        %v7081 = vunpack.c.h.s8.bf16 %v6805
        %v7082 = vunpack.c.h.s8.bf16 %v6806
        %v7083 = vunpack.c.h.s8.bf16 %v6807
        %v7084 = vunpack.c.h.s8.bf16 %v6808
        %v7085 = vunpack.c.h.s8.bf16 %v6809
        %v7086 = vunpack.c.h.s8.bf16 %v6810
        %v7087 = vunpack.c.h.s8.bf16 %v6811
        %v7088 = vunpack.c.h.s8.bf16 %v6812
        %v7089 = vunpack.c.l.s8.bf16 %v6813
        %v7090 = vunpack.c.l.s8.bf16 %v6814
        %v7091 = vunpack.c.l.s8.bf16 %v6815
        %v7092 = vunpack.c.l.s8.bf16 %v6816
        %v7093 = vunpack.c.l.s8.bf16 %v6817
        %v7094 = vunpack.c.l.s8.bf16 %v6818
        %v7095 = vunpack.c.l.s8.bf16 %v6819
        %v7096 = vunpack.c.l.s8.bf16 %v6820
        %v7097 = vunpack.c.l.s8.bf16 %v6821
        %v7098 = vunpack.c.l.s8.bf16 %v6822
        %v7099 = vunpack.c.l.s8.bf16 %v6823
        %v7100 = vunpack.c.l.s8.bf16 %v6824
        %v7101 = vunpack.c.h.s8.bf16 %v6813
        %v7102 = vunpack.c.h.s8.bf16 %v6814
        %v7103 = vunpack.c.h.s8.bf16 %v6815
        %v7104 = vunpack.c.h.s8.bf16 %v6816
        %v7105 = vunpack.c.h.s8.bf16 %v6817
        %v7106 = vunpack.c.h.s8.bf16 %v6818
        %v7107 = vunpack.c.h.s8.bf16 %v6819
        %v7108 = vunpack.c.h.s8.bf16 %v6820
        %v7109 = vunpack.c.h.s8.bf16 %v6821
        %v7110 = vunpack.c.h.s8.bf16 %v6822
        %v7111 = vunpack.c.h.s8.bf16 %v6823
        %v7112 = vunpack.c.h.s8.bf16 %v6824
        %v7113 = vunpack.c.l.s8.bf16 %v6825
        %v7114 = vunpack.c.l.s8.bf16 %v6826
        %v7115 = vunpack.c.l.s8.bf16 %v6827
        %v7116 = vunpack.c.l.s8.bf16 %v6828
        %v7117 = vunpack.c.l.s8.bf16 %v6829
        %v7118 = vunpack.c.l.s8.bf16 %v6830
        %v7119 = vunpack.c.l.s8.bf16 %v6831
        %v7120 = vunpack.c.l.s8.bf16 %v6832
        %v7121 = vunpack.c.l.s8.bf16 %v6833
        %v7122 = vunpack.c.l.s8.bf16 %v6834
        %v7123 = vunpack.c.l.s8.bf16 %v6835
        %v7124 = vunpack.c.l.s8.bf16 %v6836
        %v7125 = vunpack.c.h.s8.bf16 %v6825
        %v7126 = vunpack.c.h.s8.bf16 %v6826
        %v7127 = vunpack.c.h.s8.bf16 %v6827
        %v7128 = vunpack.c.h.s8.bf16 %v6828
        %v7129 = vunpack.c.h.s8.bf16 %v6829
        %v7130 = vunpack.c.h.s8.bf16 %v6830
        %v7131 = vunpack.c.h.s8.bf16 %v6831
        %v7132 = vunpack.c.h.s8.bf16 %v6832
        %v7133 = vunpack.c.h.s8.bf16 %v6833
        %v7134 = vunpack.c.h.s8.bf16 %v6834
        %v7135 = vunpack.c.h.s8.bf16 %v6835
        %v7136 = vunpack.c.h.s8.bf16 %v6836
        %v7137 = vunpack.c.l.s8.bf16 %v6837
        %v7138 = vunpack.c.l.s8.bf16 %v6838
        %v7139 = vunpack.c.l.s8.bf16 %v6839
        %v7140 = vunpack.c.l.s8.bf16 %v6840
        %v7141 = vunpack.c.l.s8.bf16 %v6841
        %v7142 = vunpack.c.l.s8.bf16 %v6842
        %v7143 = vunpack.c.l.s8.bf16 %v6843
        %v7144 = vunpack.c.l.s8.bf16 %v6844
        %v7145 = vunpack.c.l.s8.bf16 %v6845
        %v7146 = vunpack.c.l.s8.bf16 %v6846
        %v7147 = vunpack.c.l.s8.bf16 %v6847
        %v7148 = vunpack.c.l.s8.bf16 %v6848
        %v7149 = vunpack.c.h.s8.bf16 %v6837
        %v7150 = vunpack.c.h.s8.bf16 %v6838
        %v7151 = vunpack.c.h.s8.bf16 %v6839
        %v7152 = vunpack.c.h.s8.bf16 %v6840
        %v7153 = vunpack.c.h.s8.bf16 %v6841
        %v7154 = vunpack.c.h.s8.bf16 %v6842
        %v7155 = vunpack.c.h.s8.bf16 %v6843
        %v7156 = vunpack.c.h.s8.bf16 %v6844
        %v7157 = vunpack.c.h.s8.bf16 %v6845
        %v7158 = vunpack.c.h.s8.bf16 %v6846
        %v7159 = vunpack.c.h.s8.bf16 %v6847
        %v7160 = vunpack.c.h.s8.bf16 %v6848
        %v7161 = vunpack.c.l.s8.bf16 %v6849
        %v7162 = vunpack.c.l.s8.bf16 %v6850
        %v7163 = vunpack.c.l.s8.bf16 %v6851
        %v7164 = vunpack.c.l.s8.bf16 %v6852
        %v7165 = vunpack.c.l.s8.bf16 %v6853
        %v7166 = vunpack.c.l.s8.bf16 %v6854
        %v7167 = vunpack.c.l.s8.bf16 %v6855
        %v7168 = vunpack.c.l.s8.bf16 %v6856
        %v7169 = vunpack.c.l.s8.bf16 %v6857
        %v7170 = vunpack.c.l.s8.bf16 %v6858
        %v7171 = vunpack.c.l.s8.bf16 %v6859
        %v7172 = vunpack.c.l.s8.bf16 %v6860
        %v7173 = vunpack.c.h.s8.bf16 %v6849
        %v7174 = vunpack.c.h.s8.bf16 %v6850
        %v7175 = vunpack.c.h.s8.bf16 %v6851
        %v7176 = vunpack.c.h.s8.bf16 %v6852
        %v7177 = vunpack.c.h.s8.bf16 %v6853
        %v7178 = vunpack.c.h.s8.bf16 %v6854
        %v7179 = vunpack.c.h.s8.bf16 %v6855
        %v7180 = vunpack.c.h.s8.bf16 %v6856
        %v7181 = vunpack.c.h.s8.bf16 %v6857
        %v7182 = vunpack.c.h.s8.bf16 %v6858
        %v7183 = vunpack.c.h.s8.bf16 %v6859
        %v7184 = vunpack.c.h.s8.bf16 %v6860
        %v7185 = vunpack.c.l.s8.bf16 %v6861
        %v7186 = vunpack.c.l.s8.bf16 %v6862
        %v7187 = vunpack.c.l.s8.bf16 %v6863
        %v7188 = vunpack.c.l.s8.bf16 %v6864
        %v7189 = vunpack.c.l.s8.bf16 %v6865
        %v7190 = vunpack.c.l.s8.bf16 %v6866
        %v7191 = vunpack.c.l.s8.bf16 %v6867
        %v7192 = vunpack.c.l.s8.bf16 %v6868
        %v7193 = vunpack.c.l.s8.bf16 %v6869
        %v7194 = vunpack.c.l.s8.bf16 %v6870
        %v7195 = vunpack.c.l.s8.bf16 %v6871
        %v7196 = vunpack.c.l.s8.bf16 %v6872
        %v7197 = vunpack.c.h.s8.bf16 %v6861
        %v7198 = vunpack.c.h.s8.bf16 %v6862
        %v7199 = vunpack.c.h.s8.bf16 %v6863
        %v7200 = vunpack.c.h.s8.bf16 %v6864
        %v7201 = vunpack.c.h.s8.bf16 %v6865
        %v7202 = vunpack.c.h.s8.bf16 %v6866
        %v7203 = vunpack.c.h.s8.bf16 %v6867
        %v7204 = vunpack.c.h.s8.bf16 %v6868
        %v7205 = vunpack.c.h.s8.bf16 %v6869
        %v7206 = vunpack.c.h.s8.bf16 %v6870
        %v7207 = vunpack.c.h.s8.bf16 %v6871
        %v7208 = vunpack.c.h.s8.bf16 %v6872
        %v7209 = vunpack.c.l.s8.bf16 %v6873
        %v7210 = vunpack.c.l.s8.bf16 %v6874
        %v7211 = vunpack.c.l.s8.bf16 %v6875
        %v7212 = vunpack.c.l.s8.bf16 %v6876
        %v7213 = vunpack.c.l.s8.bf16 %v6877
        %v7214 = vunpack.c.l.s8.bf16 %v6878
        %v7215 = vunpack.c.l.s8.bf16 %v6879
        %v7216 = vunpack.c.l.s8.bf16 %v6880
        %v7217 = vunpack.c.l.s8.bf16 %v6881
        %v7218 = vunpack.c.l.s8.bf16 %v6882
        %v7219 = vunpack.c.l.s8.bf16 %v6883
        %v7220 = vunpack.c.l.s8.bf16 %v6884
        %v7221 = vunpack.c.h.s8.bf16 %v6873
        %v7222 = vunpack.c.h.s8.bf16 %v6874
        %v7223 = vunpack.c.h.s8.bf16 %v6875
        %v7224 = vunpack.c.h.s8.bf16 %v6876
        %v7225 = vunpack.c.h.s8.bf16 %v6877
        %v7226 = vunpack.c.h.s8.bf16 %v6878
        %v7227 = vunpack.c.h.s8.bf16 %v6879
        %v7228 = vunpack.c.h.s8.bf16 %v6880
        %v7229 = vunpack.c.h.s8.bf16 %v6881
        %v7230 = vunpack.c.h.s8.bf16 %v6882
        %v7231 = vunpack.c.h.s8.bf16 %v6883
        %v7232 = vunpack.c.h.s8.bf16 %v6884
        %v7233 = vunpack.c.l.s8.bf16 %v6885
        %v7234 = vunpack.c.l.s8.bf16 %v6886
        %v7235 = vunpack.c.l.s8.bf16 %v6887
        %v7236 = vunpack.c.l.s8.bf16 %v6888
        %v7237 = vunpack.c.l.s8.bf16 %v6889
        %v7238 = vunpack.c.l.s8.bf16 %v6890
        %v7239 = vunpack.c.l.s8.bf16 %v6891
        %v7240 = vunpack.c.l.s8.bf16 %v6892
        %v7241 = vunpack.c.l.s8.bf16 %v6893
        %v7242 = vunpack.c.l.s8.bf16 %v6894
        %v7243 = vunpack.c.l.s8.bf16 %v6895
        %v7244 = vunpack.c.l.s8.bf16 %v6896
        %v7245 = vunpack.c.h.s8.bf16 %v6885
        %v7246 = vunpack.c.h.s8.bf16 %v6886
        %v7247 = vunpack.c.h.s8.bf16 %v6887
        %v7248 = vunpack.c.h.s8.bf16 %v6888
        %v7249 = vunpack.c.h.s8.bf16 %v6889
        %v7250 = vunpack.c.h.s8.bf16 %v6890
        %v7251 = vunpack.c.h.s8.bf16 %v6891
        %v7252 = vunpack.c.h.s8.bf16 %v6892
        %v7253 = vunpack.c.h.s8.bf16 %v6893
        %v7254 = vunpack.c.h.s8.bf16 %v6894
        %v7255 = vunpack.c.h.s8.bf16 %v6895
        %v7256 = vunpack.c.h.s8.bf16 %v6896
        %v7257 = vunpack.c.l.s8.bf16 %v6897
        %v7258 = vunpack.c.l.s8.bf16 %v6898
        %v7259 = vunpack.c.l.s8.bf16 %v6899
        %v7260 = vunpack.c.l.s8.bf16 %v6900
        %v7261 = vunpack.c.l.s8.bf16 %v6901
        %v7262 = vunpack.c.l.s8.bf16 %v6902
        %v7263 = vunpack.c.l.s8.bf16 %v6903
        %v7264 = vunpack.c.l.s8.bf16 %v6904
        %v7265 = vunpack.c.l.s8.bf16 %v6905
        %v7266 = vunpack.c.l.s8.bf16 %v6906
        %v7267 = vunpack.c.l.s8.bf16 %v6907
        %v7268 = vunpack.c.l.s8.bf16 %v6908
        %v7269 = vunpack.c.h.s8.bf16 %v6897
        %v7270 = vunpack.c.h.s8.bf16 %v6898
        %v7271 = vunpack.c.h.s8.bf16 %v6899
        %v7272 = vunpack.c.h.s8.bf16 %v6900
        %v7273 = vunpack.c.h.s8.bf16 %v6901
        %v7274 = vunpack.c.h.s8.bf16 %v6902
        %v7275 = vunpack.c.h.s8.bf16 %v6903
        %v7276 = vunpack.c.h.s8.bf16 %v6904
        %v7277 = vunpack.c.h.s8.bf16 %v6905
        %v7278 = vunpack.c.h.s8.bf16 %v6906
        %v7279 = vunpack.c.h.s8.bf16 %v6907
        %v7280 = vunpack.c.h.s8.bf16 %v6908
        %v7281 = vunpack.c.l.s8.bf16 %v6909
        %v7282 = vunpack.c.l.s8.bf16 %v6910
        %v7283 = vunpack.c.l.s8.bf16 %v6911
        %v7284 = vunpack.c.l.s8.bf16 %v6912
        %v7285 = vunpack.c.l.s8.bf16 %v6913
        %v7286 = vunpack.c.l.s8.bf16 %v6914
        %v7287 = vunpack.c.l.s8.bf16 %v6915
        %v7288 = vunpack.c.l.s8.bf16 %v6916
        %v7289 = vunpack.c.l.s8.bf16 %v6917
        %v7290 = vunpack.c.l.s8.bf16 %v6918
        %v7291 = vunpack.c.l.s8.bf16 %v6919
        %v7292 = vunpack.c.l.s8.bf16 %v6920
        %v7293 = vunpack.c.h.s8.bf16 %v6909
        %v7294 = vunpack.c.h.s8.bf16 %v6910
        %v7295 = vunpack.c.h.s8.bf16 %v6911
        %v7296 = vunpack.c.h.s8.bf16 %v6912
        %v7297 = vunpack.c.h.s8.bf16 %v6913
        %v7298 = vunpack.c.h.s8.bf16 %v6914
        %v7299 = vunpack.c.h.s8.bf16 %v6915
        %v7300 = vunpack.c.h.s8.bf16 %v6916
        %v7301 = vunpack.c.h.s8.bf16 %v6917
        %v7302 = vunpack.c.h.s8.bf16 %v6918
        %v7303 = vunpack.c.h.s8.bf16 %v6919
        %v7304 = vunpack.c.h.s8.bf16 %v6920
        %v7305 = vld [vmem:[%s1417] sm:$0xff]
        %v7306 = vld [vmem:[%s1417 + $0x8] sm:$0xff]
        %v7307 = vld [vmem:[%s1417 + $0x10] sm:$0xff]
        %7308 = vmatprep.subr.bf16.mxu0 %v6922
        %7309 = vmatpush1.bf16.msra.mxu0 %v6921
        %7310 = vmatprep.subr.bf16.mxu0 %v6934
        %7311 = vmatpush1.bf16.msra.mxu0 %v6933
        %7312 = vmatprep.subr.bf16.mxu0 %v6946
        %7313 = vmatpush1.bf16.msra.mxu0 %v6945
        %7314 = vmatprep.subr.bf16.mxu0 %v6958
        %7315 = vmatpush1.bf16.msra.mxu0 %v6957
        %7316 = vmatprep.subr.bf16.mxu0 %v6970
        %7317 = vmatpush1.bf16.msra.mxu0 %v6969
        %7318 = vmatprep.subr.bf16.mxu0 %v6982
        %7319 = vmatpush1.bf16.msra.mxu0 %v6981
        %7320 = vmatprep.subr.bf16.mxu0 %v6994
        %7321 = vmatpush1.bf16.msra.mxu0 %v6993
        %7322 = vmatprep.subr.bf16.mxu0 %v7006
        %7323 = vmatpush1.bf16.msra.mxu0 %v7005
        %7324 = vmatprep.subr.bf16.mxu0 %v7018
        %7325 = vmatpush1.bf16.msra.mxu0 %v7017
        %7326 = vmatprep.subr.bf16.mxu0 %v7030
        %7327 = vmatpush1.bf16.msra.mxu0 %v7029
        %7328 = vmatprep.subr.bf16.mxu0 %v7042
        %7329 = vmatpush1.bf16.msra.mxu0 %v7041
        %7330 = vmatprep.subr.bf16.mxu0 %v7054
        %7331 = vmatpush1.bf16.msra.mxu0 %v7053
        %7332 = vmatprep.subr.bf16.mxu0 %v7066
        %7333 = vmatpush1.bf16.msra.mxu0 %v7065
        %7334 = vmatprep.subr.bf16.mxu0 %v7078
        %7335 = vmatpush1.bf16.msra.mxu0 %v7077
        %7336 = vmatprep.subr.bf16.mxu0 %v7090
        %7337 = vmatpush1.bf16.msra.mxu0 %v7089
        %7338 = vmatprep.subr.bf16.mxu0 %v7102
        %7339 = vmatpush1.bf16.msra.mxu0 %v7101
        %7340 = vmatprep.mubr.bf16.mxu0 %v6726
        %7341 = vmatmul.mubr.bf16.gmra.mrb[0].mxu0 %v6725
        %v7342 = vpop.f32.mrb[0].mxu0
        %v7343 = vadd.f32 0.0, %v7342
        %v7344 = vpop.f32.mrb[0].mxu0
        %v7345 = vadd.f32 0.0, %v7344
        %v7346 = vpop.f32.mrb[0].mxu0
        %v7347 = vpop.f32.mrb[0].mxu0
        %7348 = vdwg.mxu0
        %7349 = vmatprep.subr.bf16.mxu0 %v7114
        %7350 = vmatpush1.bf16.msra.mxu0 %v7113
        %7351 = vmatprep.subr.bf16.mxu0 %v7126
        %7352 = vmatpush1.bf16.msra.mxu0 %v7125
        %7353 = vmatprep.subr.bf16.mxu0 %v7138
        %7354 = vmatpush1.bf16.msra.mxu0 %v7137
        %7355 = vmatprep.subr.bf16.mxu0 %v7150
        %7356 = vmatpush1.bf16.msra.mxu0 %v7149
        %7357 = vmatprep.subr.bf16.mxu0 %v7162
        %7358 = vmatpush1.bf16.msra.mxu0 %v7161
        %7359 = vmatprep.subr.bf16.mxu0 %v7174
        %7360 = vmatpush1.bf16.msra.mxu0 %v7173
        %7361 = vmatprep.subr.bf16.mxu0 %v7186
        %7362 = vmatpush1.bf16.msra.mxu0 %v7185
        %7363 = vmatprep.subr.bf16.mxu0 %v7198
        %7364 = vmatpush1.bf16.msra.mxu0 %v7197
        %7365 = vmatprep.subr.bf16.mxu0 %v7210
        %7366 = vmatpush1.bf16.msra.mxu0 %v7209
        %7367 = vmatprep.subr.bf16.mxu0 %v7222
        %7368 = vmatpush1.bf16.msra.mxu0 %v7221
        %7369 = vmatprep.subr.bf16.mxu0 %v7234
        %7370 = vmatpush1.bf16.msra.mxu0 %v7233
        %7371 = vmatprep.subr.bf16.mxu0 %v7246
        %7372 = vmatpush1.bf16.msra.mxu0 %v7245
        %7373 = vmatprep.subr.bf16.mxu0 %v7258
        %7374 = vmatpush1.bf16.msra.mxu0 %v7257
        %7375 = vmatprep.subr.bf16.mxu0 %v7270
        %7376 = vmatpush1.bf16.msra.mxu0 %v7269
        %7377 = vmatprep.subr.bf16.mxu0 %v7282
        %7378 = vmatpush1.bf16.msra.mxu0 %v7281
        %7379 = vmatprep.subr.bf16.mxu0 %v7294
        %7380 = vmatpush1.bf16.msra.mxu0 %v7293
        %7381 = vmatprep.mubr.bf16.mxu0 %v6728
        %7382 = vmatmul.mubr.bf16.gmra.mrb[0].mxu0 %v6727
        %v7383 = vpop.f32.mrb[0].mxu0
        %v7384 = vadd.f32 %v7343, %v7383
        %v7385 = vpop.f32.mrb[0].mxu0
        %v7386 = vadd.f32 %v7345, %v7385
        %v7387 = vpop.f32.mrb[0].mxu0
        %v7388 = vpop.f32.mrb[0].mxu0
        %7389 = vdwg.mxu0
        %7390 = vmatprep.subr.bf16.mxu0 %v6924
        %7391 = vmatpush1.bf16.msra.mxu0 %v6923
        %7392 = vmatprep.subr.bf16.mxu0 %v6936
        %7393 = vmatpush1.bf16.msra.mxu0 %v6935
        %7394 = vmatprep.subr.bf16.mxu0 %v6948
        %7395 = vmatpush1.bf16.msra.mxu0 %v6947
        %7396 = vmatprep.subr.bf16.mxu0 %v6960
        %7397 = vmatpush1.bf16.msra.mxu0 %v6959
        %7398 = vmatprep.subr.bf16.mxu0 %v6972
        %7399 = vmatpush1.bf16.msra.mxu0 %v6971
        %7400 = vmatprep.subr.bf16.mxu0 %v6984
        %7401 = vmatpush1.bf16.msra.mxu0 %v6983
        %7402 = vmatprep.subr.bf16.mxu0 %v6996
        %7403 = vmatpush1.bf16.msra.mxu0 %v6995
        %7404 = vmatprep.subr.bf16.mxu0 %v7008
        %7405 = vmatpush1.bf16.msra.mxu0 %v7007
        %7406 = vmatprep.subr.bf16.mxu0 %v7020
        %7407 = vmatpush1.bf16.msra.mxu0 %v7019
        %7408 = vmatprep.subr.bf16.mxu0 %v7032
        %7409 = vmatpush1.bf16.msra.mxu0 %v7031
        %7410 = vmatprep.subr.bf16.mxu0 %v7044
        %7411 = vmatpush1.bf16.msra.mxu0 %v7043
        %7412 = vmatprep.subr.bf16.mxu0 %v7056
        %7413 = vmatpush1.bf16.msra.mxu0 %v7055
        %7414 = vmatprep.subr.bf16.mxu0 %v7068
        %7415 = vmatpush1.bf16.msra.mxu0 %v7067
        %7416 = vmatprep.subr.bf16.mxu0 %v7080
        %7417 = vmatpush1.bf16.msra.mxu0 %v7079
        %7418 = vmatprep.subr.bf16.mxu0 %v7092
        %7419 = vmatpush1.bf16.msra.mxu0 %v7091
        %7420 = vmatprep.subr.bf16.mxu0 %v7104
        %7421 = vmatpush1.bf16.msra.mxu0 %v7103
        %7422 = vmatprep.mubr.bf16.mxu0 %v6726
        %7423 = vmatmul.mubr.bf16.gmra.mrb[0].mxu0 %v6725
        %v7424 = vpop.f32.mrb[0].mxu0
        %v7425 = vadd.f32 0.0, %v7424
        %v7426 = vpop.f32.mrb[0].mxu0
        %v7427 = vadd.f32 0.0, %v7426
        %v7428 = vpop.f32.mrb[0].mxu0
        %v7429 = vpop.f32.mrb[0].mxu0
        %7430 = vdwg.mxu0
        %7431 = vmatprep.subr.bf16.mxu0 %v7116
        %7432 = vmatpush1.bf16.msra.mxu0 %v7115
        %7433 = vmatprep.subr.bf16.mxu0 %v7128
        %7434 = vmatpush1.bf16.msra.mxu0 %v7127
        %7435 = vmatprep.subr.bf16.mxu0 %v7140
        %7436 = vmatpush1.bf16.msra.mxu0 %v7139
        %7437 = vmatprep.subr.bf16.mxu0 %v7152
        %7438 = vmatpush1.bf16.msra.mxu0 %v7151
        %7439 = vmatprep.subr.bf16.mxu0 %v7164
        %7440 = vmatpush1.bf16.msra.mxu0 %v7163
        %7441 = vmatprep.subr.bf16.mxu0 %v7176
        %7442 = vmatpush1.bf16.msra.mxu0 %v7175
        %7443 = vmatprep.subr.bf16.mxu0 %v7188
        %7444 = vmatpush1.bf16.msra.mxu0 %v7187
        %7445 = vmatprep.subr.bf16.mxu0 %v7200
        %7446 = vmatpush1.bf16.msra.mxu0 %v7199
        %7447 = vmatprep.subr.bf16.mxu0 %v7212
        %7448 = vmatpush1.bf16.msra.mxu0 %v7211
        %7449 = vmatprep.subr.bf16.mxu0 %v7224
        %7450 = vmatpush1.bf16.msra.mxu0 %v7223
        %7451 = vmatprep.subr.bf16.mxu0 %v7236
        %7452 = vmatpush1.bf16.msra.mxu0 %v7235
        %7453 = vmatprep.subr.bf16.mxu0 %v7248
        %7454 = vmatpush1.bf16.msra.mxu0 %v7247
        %7455 = vmatprep.subr.bf16.mxu0 %v7260
        %7456 = vmatpush1.bf16.msra.mxu0 %v7259
        %7457 = vmatprep.subr.bf16.mxu0 %v7272
        %7458 = vmatpush1.bf16.msra.mxu0 %v7271
        %7459 = vmatprep.subr.bf16.mxu0 %v7284
        %7460 = vmatpush1.bf16.msra.mxu0 %v7283
        %7461 = vmatprep.subr.bf16.mxu0 %v7296
        %7462 = vmatpush1.bf16.msra.mxu0 %v7295
        %7463 = vmatprep.mubr.bf16.mxu0 %v6728
        %7464 = vmatmul.mubr.bf16.gmra.mrb[0].mxu0 %v6727
        %v7465 = vpop.f32.mrb[0].mxu0
        %v7466 = vadd.f32 %v7425, %v7465
        %v7467 = vpop.f32.mrb[0].mxu0
        %v7468 = vadd.f32 %v7427, %v7467
        %v7469 = vpop.f32.mrb[0].mxu0
        %v7470 = vpop.f32.mrb[0].mxu0
        %7471 = vdwg.mxu0
        %7472 = vmatprep.subr.bf16.mxu0 %v6926
        %7473 = vmatpush1.bf16.msra.mxu0 %v6925
        %7474 = vmatprep.subr.bf16.mxu0 %v6938
        %7475 = vmatpush1.bf16.msra.mxu0 %v6937
        %7476 = vmatprep.subr.bf16.mxu0 %v6950
        %7477 = vmatpush1.bf16.msra.mxu0 %v6949
        %7478 = vmatprep.subr.bf16.mxu0 %v6962
        %7479 = vmatpush1.bf16.msra.mxu0 %v6961
        %7480 = vmatprep.subr.bf16.mxu0 %v6974
        %7481 = vmatpush1.bf16.msra.mxu0 %v6973
        %7482 = vmatprep.subr.bf16.mxu0 %v6986
        %7483 = vmatpush1.bf16.msra.mxu0 %v6985
        %7484 = vmatprep.subr.bf16.mxu0 %v6998
        %7485 = vmatpush1.bf16.msra.mxu0 %v6997
        %7486 = vmatprep.subr.bf16.mxu0 %v7010
        %7487 = vmatpush1.bf16.msra.mxu0 %v7009
        %7488 = vmatprep.subr.bf16.mxu0 %v7022
        %7489 = vmatpush1.bf16.msra.mxu0 %v7021
        %7490 = vmatprep.subr.bf16.mxu0 %v7034
        %7491 = vmatpush1.bf16.msra.mxu0 %v7033
        %7492 = vmatprep.subr.bf16.mxu0 %v7046
        %7493 = vmatpush1.bf16.msra.mxu0 %v7045
        %7494 = vmatprep.subr.bf16.mxu0 %v7058
        %7495 = vmatpush1.bf16.msra.mxu0 %v7057
        %7496 = vmatprep.subr.bf16.mxu0 %v7070
        %7497 = vmatpush1.bf16.msra.mxu0 %v7069
        %7498 = vmatprep.subr.bf16.mxu0 %v7082
        %7499 = vmatpush1.bf16.msra.mxu0 %v7081
        %7500 = vmatprep.subr.bf16.mxu0 %v7094
        %7501 = vmatpush1.bf16.msra.mxu0 %v7093
        %7502 = vmatprep.subr.bf16.mxu0 %v7106
        %7503 = vmatpush1.bf16.msra.mxu0 %v7105
        %7504 = vmatprep.mubr.bf16.mxu0 %v6726
        %7505 = vmatmul.mubr.bf16.gmra.mrb[0].mxu0 %v6725
        %v7506 = vpop.f32.mrb[0].mxu0
        %v7507 = vadd.f32 0.0, %v7506
        %v7508 = vpop.f32.mrb[0].mxu0
        %v7509 = vadd.f32 0.0, %v7508
        %v7510 = vpop.f32.mrb[0].mxu0
        %v7511 = vpop.f32.mrb[0].mxu0
        %7512 = vdwg.mxu0
        %7513 = vmatprep.subr.bf16.mxu0 %v7118
        %7514 = vmatpush1.bf16.msra.mxu0 %v7117
        %7515 = vmatprep.subr.bf16.mxu0 %v7130
        %7516 = vmatpush1.bf16.msra.mxu0 %v7129
        %7517 = vmatprep.subr.bf16.mxu0 %v7142
        %7518 = vmatpush1.bf16.msra.mxu0 %v7141
        %7519 = vmatprep.subr.bf16.mxu0 %v7154
        %7520 = vmatpush1.bf16.msra.mxu0 %v7153
        %7521 = vmatprep.subr.bf16.mxu0 %v7166
        %7522 = vmatpush1.bf16.msra.mxu0 %v7165
        %7523 = vmatprep.subr.bf16.mxu0 %v7178
        %7524 = vmatpush1.bf16.msra.mxu0 %v7177
        %7525 = vmatprep.subr.bf16.mxu0 %v7190
        %7526 = vmatpush1.bf16.msra.mxu0 %v7189
        %7527 = vmatprep.subr.bf16.mxu0 %v7202
        %7528 = vmatpush1.bf16.msra.mxu0 %v7201
        %7529 = vmatprep.subr.bf16.mxu0 %v7214
        %7530 = vmatpush1.bf16.msra.mxu0 %v7213
        %7531 = vmatprep.subr.bf16.mxu0 %v7226
        %7532 = vmatpush1.bf16.msra.mxu0 %v7225
        %7533 = vmatprep.subr.bf16.mxu0 %v7238
        %7534 = vmatpush1.bf16.msra.mxu0 %v7237
        %7535 = vmatprep.subr.bf16.mxu0 %v7250
        %7536 = vmatpush1.bf16.msra.mxu0 %v7249
        %7537 = vmatprep.subr.bf16.mxu0 %v7262
        %7538 = vmatpush1.bf16.msra.mxu0 %v7261
        %7539 = vmatprep.subr.bf16.mxu0 %v7274
        %7540 = vmatpush1.bf16.msra.mxu0 %v7273
        %7541 = vmatprep.subr.bf16.mxu0 %v7286
        %7542 = vmatpush1.bf16.msra.mxu0 %v7285
        %7543 = vmatprep.subr.bf16.mxu0 %v7298
        %7544 = vmatpush1.bf16.msra.mxu0 %v7297
        %7545 = vmatprep.mubr.bf16.mxu0 %v6728
        %7546 = vmatmul.mubr.bf16.gmra.mrb[0].mxu0 %v6727
        %v7547 = vpop.f32.mrb[0].mxu0
        %v7548 = vadd.f32 %v7507, %v7547
        %v7549 = vpop.f32.mrb[0].mxu0
        %v7550 = vadd.f32 %v7509, %v7549
        %v7551 = vpop.f32.mrb[0].mxu0
        %v7552 = vpop.f32.mrb[0].mxu0
        %7553 = vdwg.mxu0
        %7554 = vmatprep.subr.bf16.mxu0 %v6928
        %7555 = vmatpush1.bf16.msra.mxu0 %v6927
        %7556 = vmatprep.subr.bf16.mxu0 %v6940
        %7557 = vmatpush1.bf16.msra.mxu0 %v6939
        %7558 = vmatprep.subr.bf16.mxu0 %v6952
        %7559 = vmatpush1.bf16.msra.mxu0 %v6951
        %7560 = vmatprep.subr.bf16.mxu0 %v6964
        %7561 = vmatpush1.bf16.msra.mxu0 %v6963
        %7562 = vmatprep.subr.bf16.mxu0 %v6976
        %7563 = vmatpush1.bf16.msra.mxu0 %v6975
        %7564 = vmatprep.subr.bf16.mxu0 %v6988
        %7565 = vmatpush1.bf16.msra.mxu0 %v6987
        %7566 = vmatprep.subr.bf16.mxu0 %v7000
        %7567 = vmatpush1.bf16.msra.mxu0 %v6999
        %7568 = vmatprep.subr.bf16.mxu0 %v7012
        %7569 = vmatpush1.bf16.msra.mxu0 %v7011
        %7570 = vmatprep.subr.bf16.mxu0 %v7024
        %7571 = vmatpush1.bf16.msra.mxu0 %v7023
        %7572 = vmatprep.subr.bf16.mxu0 %v7036
        %7573 = vmatpush1.bf16.msra.mxu0 %v7035
        %7574 = vmatprep.subr.bf16.mxu0 %v7048
        %7575 = vmatpush1.bf16.msra.mxu0 %v7047
        %7576 = vmatprep.subr.bf16.mxu0 %v7060
        %7577 = vmatpush1.bf16.msra.mxu0 %v7059
        %7578 = vmatprep.subr.bf16.mxu0 %v7072
        %7579 = vmatpush1.bf16.msra.mxu0 %v7071
        %7580 = vmatprep.subr.bf16.mxu0 %v7084
        %7581 = vmatpush1.bf16.msra.mxu0 %v7083
        %7582 = vmatprep.subr.bf16.mxu0 %v7096
        %7583 = vmatpush1.bf16.msra.mxu0 %v7095
        %7584 = vmatprep.subr.bf16.mxu0 %v7108
        %7585 = vmatpush1.bf16.msra.mxu0 %v7107
        %7586 = vmatprep.mubr.bf16.mxu0 %v6726
        %7587 = vmatmul.mubr.bf16.gmra.mrb[0].mxu0 %v6725
        %v7588 = vpop.f32.mrb[0].mxu0
        %v7589 = vadd.f32 0.0, %v7588
        %v7590 = vpop.f32.mrb[0].mxu0
        %v7591 = vadd.f32 0.0, %v7590
        %v7592 = vpop.f32.mrb[0].mxu0
        %v7593 = vpop.f32.mrb[0].mxu0
        %7594 = vdwg.mxu0
        %7595 = vmatprep.subr.bf16.mxu0 %v7120
        %7596 = vmatpush1.bf16.msra.mxu0 %v7119
        %7597 = vmatprep.subr.bf16.mxu0 %v7132
        %7598 = vmatpush1.bf16.msra.mxu0 %v7131
        %7599 = vmatprep.subr.bf16.mxu0 %v7144
        %7600 = vmatpush1.bf16.msra.mxu0 %v7143
        %7601 = vmatprep.subr.bf16.mxu0 %v7156
        %7602 = vmatpush1.bf16.msra.mxu0 %v7155
        %7603 = vmatprep.subr.bf16.mxu0 %v7168
        %7604 = vmatpush1.bf16.msra.mxu0 %v7167
        %7605 = vmatprep.subr.bf16.mxu0 %v7180
        %7606 = vmatpush1.bf16.msra.mxu0 %v7179
        %7607 = vmatprep.subr.bf16.mxu0 %v7192
        %7608 = vmatpush1.bf16.msra.mxu0 %v7191
        %7609 = vmatprep.subr.bf16.mxu0 %v7204
        %7610 = vmatpush1.bf16.msra.mxu0 %v7203
        %7611 = vmatprep.subr.bf16.mxu0 %v7216
        %7612 = vmatpush1.bf16.msra.mxu0 %v7215
        %7613 = vmatprep.subr.bf16.mxu0 %v7228
        %7614 = vmatpush1.bf16.msra.mxu0 %v7227
        %7615 = vmatprep.subr.bf16.mxu0 %v7240
        %7616 = vmatpush1.bf16.msra.mxu0 %v7239
        %7617 = vmatprep.subr.bf16.mxu0 %v7252
        %7618 = vmatpush1.bf16.msra.mxu0 %v7251
        %7619 = vmatprep.subr.bf16.mxu0 %v7264
        %7620 = vmatpush1.bf16.msra.mxu0 %v7263
        %7621 = vmatprep.subr.bf16.mxu0 %v7276
        %7622 = vmatpush1.bf16.msra.mxu0 %v7275
        %7623 = vmatprep.subr.bf16.mxu0 %v7288
        %7624 = vmatpush1.bf16.msra.mxu0 %v7287
        %7625 = vmatprep.subr.bf16.mxu0 %v7300
        %7626 = vmatpush1.bf16.msra.mxu0 %v7299
        %7627 = vmatprep.mubr.bf16.mxu0 %v6728
        %7628 = vmatmul.mubr.bf16.gmra.mrb[0].mxu0 %v6727
        %v7629 = vpop.f32.mrb[0].mxu0
        %v7630 = vadd.f32 %v7589, %v7629
        %v7631 = vpop.f32.mrb[0].mxu0
        %v7632 = vadd.f32 %v7591, %v7631
        %v7633 = vpop.f32.mrb[0].mxu0
        %v7634 = vpop.f32.mrb[0].mxu0
        %7635 = vdwg.mxu0
        %7636 = vmatprep.subr.bf16.mxu0 %v6930
        %7637 = vmatpush1.bf16.msra.mxu0 %v6929
        %7638 = vmatprep.subr.bf16.mxu0 %v6942
        %7639 = vmatpush1.bf16.msra.mxu0 %v6941
        %7640 = vmatprep.subr.bf16.mxu0 %v6954
        %7641 = vmatpush1.bf16.msra.mxu0 %v6953
        %7642 = vmatprep.subr.bf16.mxu0 %v6966
        %7643 = vmatpush1.bf16.msra.mxu0 %v6965
        %7644 = vmatprep.subr.bf16.mxu0 %v6978
        %7645 = vmatpush1.bf16.msra.mxu0 %v6977
        %7646 = vmatprep.subr.bf16.mxu0 %v6990
        %7647 = vmatpush1.bf16.msra.mxu0 %v6989
        %7648 = vmatprep.subr.bf16.mxu0 %v7002
        %7649 = vmatpush1.bf16.msra.mxu0 %v7001
        %7650 = vmatprep.subr.bf16.mxu0 %v7014
        %7651 = vmatpush1.bf16.msra.mxu0 %v7013
        %7652 = vmatprep.subr.bf16.mxu0 %v7026
        %7653 = vmatpush1.bf16.msra.mxu0 %v7025
        %7654 = vmatprep.subr.bf16.mxu0 %v7038
        %7655 = vmatpush1.bf16.msra.mxu0 %v7037
        %7656 = vmatprep.subr.bf16.mxu0 %v7050
        %7657 = vmatpush1.bf16.msra.mxu0 %v7049
        %7658 = vmatprep.subr.bf16.mxu0 %v7062
        %7659 = vmatpush1.bf16.msra.mxu0 %v7061
        %7660 = vmatprep.subr.bf16.mxu0 %v7074
        %7661 = vmatpush1.bf16.msra.mxu0 %v7073
        %7662 = vmatprep.subr.bf16.mxu0 %v7086
        %7663 = vmatpush1.bf16.msra.mxu0 %v7085
        %7664 = vmatprep.subr.bf16.mxu0 %v7098
        %7665 = vmatpush1.bf16.msra.mxu0 %v7097
        %7666 = vmatprep.subr.bf16.mxu0 %v7110
        %7667 = vmatpush1.bf16.msra.mxu0 %v7109
        %7668 = vmatprep.mubr.bf16.mxu0 %v6726
        %7669 = vmatmul.mubr.bf16.gmra.mrb[0].mxu0 %v6725
        %v7670 = vpop.f32.mrb[0].mxu0
        %v7671 = vadd.f32 0.0, %v7670
        %v7672 = vpop.f32.mrb[0].mxu0
        %v7673 = vadd.f32 0.0, %v7672
        %v7674 = vpop.f32.mrb[0].mxu0
        %v7675 = vpop.f32.mrb[0].mxu0
        %7676 = vdwg.mxu0
        %7677 = vmatprep.subr.bf16.mxu0 %v7122
        %7678 = vmatpush1.bf16.msra.mxu0 %v7121
        %7679 = vmatprep.subr.bf16.mxu0 %v7134
        %7680 = vmatpush1.bf16.msra.mxu0 %v7133
        %7681 = vmatprep.subr.bf16.mxu0 %v7146
        %7682 = vmatpush1.bf16.msra.mxu0 %v7145
        %7683 = vmatprep.subr.bf16.mxu0 %v7158
        %7684 = vmatpush1.bf16.msra.mxu0 %v7157
        %7685 = vmatprep.subr.bf16.mxu0 %v7170
        %7686 = vmatpush1.bf16.msra.mxu0 %v7169
        %7687 = vmatprep.subr.bf16.mxu0 %v7182
        %7688 = vmatpush1.bf16.msra.mxu0 %v7181
        %7689 = vmatprep.subr.bf16.mxu0 %v7194
        %7690 = vmatpush1.bf16.msra.mxu0 %v7193
        %7691 = vmatprep.subr.bf16.mxu0 %v7206
        %7692 = vmatpush1.bf16.msra.mxu0 %v7205
        %7693 = vmatprep.subr.bf16.mxu0 %v7218
        %7694 = vmatpush1.bf16.msra.mxu0 %v7217
        %7695 = vmatprep.subr.bf16.mxu0 %v7230
        %7696 = vmatpush1.bf16.msra.mxu0 %v7229
        %7697 = vmatprep.subr.bf16.mxu0 %v7242
        %7698 = vmatpush1.bf16.msra.mxu0 %v7241
        %7699 = vmatprep.subr.bf16.mxu0 %v7254
        %7700 = vmatpush1.bf16.msra.mxu0 %v7253
        %7701 = vmatprep.subr.bf16.mxu0 %v7266
        %7702 = vmatpush1.bf16.msra.mxu0 %v7265
        %7703 = vmatprep.subr.bf16.mxu0 %v7278
        %7704 = vmatpush1.bf16.msra.mxu0 %v7277
        %7705 = vmatprep.subr.bf16.mxu0 %v7290
        %7706 = vmatpush1.bf16.msra.mxu0 %v7289
        %7707 = vmatprep.subr.bf16.mxu0 %v7302
        %7708 = vmatpush1.bf16.msra.mxu0 %v7301
        %7709 = vmatprep.mubr.bf16.mxu0 %v6728
        %7710 = vmatmul.mubr.bf16.gmra.mrb[0].mxu0 %v6727
        %v7711 = vpop.f32.mrb[0].mxu0
        %v7712 = vadd.f32 %v7671, %v7711
        %v7713 = vpop.f32.mrb[0].mxu0
        %v7714 = vadd.f32 %v7673, %v7713
        %v7715 = vpop.f32.mrb[0].mxu0
        %v7716 = vpop.f32.mrb[0].mxu0
        %7717 = vdwg.mxu0
        %7718 = vmatprep.subr.bf16.mxu0 %v6932
        %7719 = vmatpush1.bf16.msra.mxu0 %v6931
        %7720 = vmatprep.subr.bf16.mxu0 %v6944
        %7721 = vmatpush1.bf16.msra.mxu0 %v6943
        %7722 = vmatprep.subr.bf16.mxu0 %v6956
        %7723 = vmatpush1.bf16.msra.mxu0 %v6955
        %7724 = vmatprep.subr.bf16.mxu0 %v6968
        %7725 = vmatpush1.bf16.msra.mxu0 %v6967
        %7726 = vmatprep.subr.bf16.mxu0 %v6980
        %7727 = vmatpush1.bf16.msra.mxu0 %v6979
        %7728 = vmatprep.subr.bf16.mxu0 %v6992
        %7729 = vmatpush1.bf16.msra.mxu0 %v6991
        %7730 = vmatprep.subr.bf16.mxu0 %v7004
        %7731 = vmatpush1.bf16.msra.mxu0 %v7003
        %7732 = vmatprep.subr.bf16.mxu0 %v7016
        %7733 = vmatpush1.bf16.msra.mxu0 %v7015
        %7734 = vmatprep.subr.bf16.mxu0 %v7028
        %7735 = vmatpush1.bf16.msra.mxu0 %v7027
        %7736 = vmatprep.subr.bf16.mxu0 %v7040
        %7737 = vmatpush1.bf16.msra.mxu0 %v7039
        %7738 = vmatprep.subr.bf16.mxu0 %v7052
        %7739 = vmatpush1.bf16.msra.mxu0 %v7051
        %7740 = vmatprep.subr.bf16.mxu0 %v7064
        %7741 = vmatpush1.bf16.msra.mxu0 %v7063
        %7742 = vmatprep.subr.bf16.mxu0 %v7076
        %7743 = vmatpush1.bf16.msra.mxu0 %v7075
        %7744 = vmatprep.subr.bf16.mxu0 %v7088
        %7745 = vmatpush1.bf16.msra.mxu0 %v7087
        %7746 = vmatprep.subr.bf16.mxu0 %v7100
        %7747 = vmatpush1.bf16.msra.mxu0 %v7099
        %7748 = vmatprep.subr.bf16.mxu0 %v7112
        %7749 = vmatpush1.bf16.msra.mxu0 %v7111
        %7750 = vmatprep.mubr.bf16.mxu0 %v6726
        %7751 = vmatmul.mubr.bf16.gmra.mrb[0].mxu0 %v6725
        %v7752 = vpop.f32.mrb[0].mxu0
        %v7753 = vadd.f32 0.0, %v7752
        %v7754 = vpop.f32.mrb[0].mxu0
        %v7755 = vadd.f32 0.0, %v7754
        %v7756 = vpop.f32.mrb[0].mxu0
        %v7757 = vpop.f32.mrb[0].mxu0
        %7758 = vdwg.mxu0
        %7759 = vmatprep.subr.bf16.mxu0 %v7124
        %7760 = vmatpush1.bf16.msra.mxu0 %v7123
        %7761 = vmatprep.subr.bf16.mxu0 %v7136
        %7762 = vmatpush1.bf16.msra.mxu0 %v7135
        %7763 = vmatprep.subr.bf16.mxu0 %v7148
        %7764 = vmatpush1.bf16.msra.mxu0 %v7147
        %7765 = vmatprep.subr.bf16.mxu0 %v7160
        %7766 = vmatpush1.bf16.msra.mxu0 %v7159
        %7767 = vmatprep.subr.bf16.mxu0 %v7172
        %7768 = vmatpush1.bf16.msra.mxu0 %v7171
        %7769 = vmatprep.subr.bf16.mxu0 %v7184
        %7770 = vmatpush1.bf16.msra.mxu0 %v7183
        %7771 = vmatprep.subr.bf16.mxu0 %v7196
        %7772 = vmatpush1.bf16.msra.mxu0 %v7195
        %7773 = vmatprep.subr.bf16.mxu0 %v7208
        %7774 = vmatpush1.bf16.msra.mxu0 %v7207
        %7775 = vmatprep.subr.bf16.mxu0 %v7220
        %7776 = vmatpush1.bf16.msra.mxu0 %v7219
        %7777 = vmatprep.subr.bf16.mxu0 %v7232
        %7778 = vmatpush1.bf16.msra.mxu0 %v7231
        %7779 = vmatprep.subr.bf16.mxu0 %v7244
        %7780 = vmatpush1.bf16.msra.mxu0 %v7243
        %7781 = vmatprep.subr.bf16.mxu0 %v7256
        %7782 = vmatpush1.bf16.msra.mxu0 %v7255
        %7783 = vmatprep.subr.bf16.mxu0 %v7268
        %7784 = vmatpush1.bf16.msra.mxu0 %v7267
        %7785 = vmatprep.subr.bf16.mxu0 %v7280
        %7786 = vmatpush1.bf16.msra.mxu0 %v7279
        %7787 = vmatprep.subr.bf16.mxu0 %v7292
        %7788 = vmatpush1.bf16.msra.mxu0 %v7291
        %7789 = vmatprep.subr.bf16.mxu0 %v7304
        %7790 = vmatpush1.bf16.msra.mxu0 %v7303
        %7791 = vmatprep.mubr.bf16.mxu0 %v6728
        %7792 = vmatmul.mubr.bf16.gmra.mrb[0].mxu0 %v6727
        %v7793 = vpop.f32.mrb[0].mxu0
        %v7794 = vadd.f32 %v7753, %v7793
        %v7795 = vpop.f32.mrb[0].mxu0
        %v7796 = vadd.f32 %v7755, %v7795
        %v7797 = vpop.f32.mrb[0].mxu0
        %v7798 = vpop.f32.mrb[0].mxu0
        %7799 = vdwg.mxu0
        %v7800 = vld [vmem:[%s7] sm:$0xff]
        %v7801 = vld [vmem:[%s7 + $0x8] sm:$0xf]
        %v7804 = vlaneseq
        %v7805 = vshrl.u32 %v7804, 7
        %v7806 = vsub.s32 0, %v7805
        %v7807 = vrot.slane %v7800, %v7806
        %v7808 = vlaneseq
        %v7809 = vshrl.u32 %v7808, 7
        %v7810 = vsub.s32 1, %v7809
        %v7811 = vrot.slane %v7800, %v7810
        %v7812 = vlaneseq
        %v7813 = vshrl.u32 %v7812, 7
        %v7814 = vsub.s32 2, %v7813
        %v7815 = vrot.slane %v7800, %v7814
        %v7816 = vlaneseq
        %v7817 = vshrl.u32 %v7816, 7
        %v7818 = vsub.s32 3, %v7817
        %v7819 = vrot.slane %v7800, %v7818
        %v7820 = vlaneseq
        %v7821 = vshrl.u32 %v7820, 7
        %v7822 = vsub.s32 4, %v7821
        %v7823 = vrot.slane %v7800, %v7822
        %v7824 = vlaneseq
        %v7825 = vshrl.u32 %v7824, 7
        %v7826 = vsub.s32 5, %v7825
        %v7827 = vrot.slane %v7800, %v7826
        %v7828 = vlaneseq
        %v7829 = vshrl.u32 %v7828, 7
        %v7830 = vsub.s32 6, %v7829
        %v7831 = vrot.slane %v7800, %v7830
        %v7832 = vlaneseq
        %v7833 = vshrl.u32 %v7832, 7
        %v7834 = vsub.s32 7, %v7833
        %v7835 = vrot.slane %v7800, %v7834
        %v7836 = vlaneseq
        %v7837 = vshrl.u32 %v7836, 7
        %v7838 = vsub.s32 0, %v7837
        %v7839 = vrot.slane %v7801, %v7838
        %v7840 = vlaneseq
        %v7841 = vshrl.u32 %v7840, 7
        %v7842 = vsub.s32 1, %v7841
        %v7843 = vrot.slane %v7801, %v7842
        %v7844 = vlaneseq
        %v7845 = vshrl.u32 %v7844, 7
        %v7846 = vsub.s32 2, %v7845
        %v7847 = vrot.slane %v7801, %v7846
        %v7848 = vlaneseq
        %v7849 = vshrl.u32 %v7848, 7
        %v7850 = vsub.s32 3, %v7849
        %v7851 = vrot.slane %v7801, %v7850
        %v7864 = vmul.f32 %v7384, %v7807
        %v7865 = vmul.f32 %v7386, %v7811
        %v7866 = vmul.f32 %v7466, %v7815
        %v7867 = vmul.f32 %v7468, %v7819
        %v7868 = vmul.f32 %v7548, %v7823
        %v7869 = vmul.f32 %v7550, %v7827
        %v7870 = vmul.f32 %v7630, %v7831
        %v7871 = vmul.f32 %v7632, %v7835
        %v7872 = vmul.f32 %v7712, %v7839
        %v7873 = vmul.f32 %v7714, %v7843
        %v7874 = vmul.f32 %v7794, %v7847
        %v7875 = vmul.f32 %v7796, %v7851
        %v7888 = vcombine.low %v7864, %v7865
        %v7889 = vcombine.low %v7866, %v7867
        %v7891 = vunpack.c.l.s4 1983009808
        %v7892 = vunpack.c.0.s8 %v7891
        %v7893 = vlaneseq
        %v7894 = vshrl.u32 %v7893, 7
        %v7895 = vsub.s32 %v7892, %v7894
        %v7896 = vrot.slane %v7888, %v7895
        %v7898 = vunpack.c.l.s4 1983009808
        %v7899 = vunpack.c.0.s8 %v7898
        %v7900 = vlaneseq
        %v7901 = vshrl.u32 %v7900, 7
        %v7902 = vsub.s32 %v7899, %v7901
        %v7903 = vrot.slane %v7889, %v7902
        %v7904 = vcombine.low %v7896, %v7903
        %v7905 = vcombine.low %v7868, %v7869
        %v7906 = vcombine.low %v7870, %v7871
        %v7908 = vunpack.c.l.s4 1983009808
        %v7909 = vunpack.c.0.s8 %v7908
        %v7910 = vlaneseq
        %v7911 = vshrl.u32 %v7910, 7
        %v7912 = vsub.s32 %v7909, %v7911
        %v7913 = vrot.slane %v7905, %v7912
        %v7915 = vunpack.c.l.s4 1983009808
        %v7916 = vunpack.c.0.s8 %v7915
        %v7917 = vlaneseq
        %v7918 = vshrl.u32 %v7917, 7
        %v7919 = vsub.s32 %v7916, %v7918
        %v7920 = vrot.slane %v7906, %v7919
        %v7921 = vcombine.low %v7913, %v7920
        %v7922 = vcombine.low %v7872, %v7873
        %v7923 = vcombine.low %v7874, %v7875
        %v7925 = vunpack.c.l.s4 1983009808
        %v7926 = vunpack.c.0.s8 %v7925
        %v7927 = vlaneseq
        %v7928 = vshrl.u32 %v7927, 7
        %v7929 = vsub.s32 %v7926, %v7928
        %v7930 = vrot.slane %v7922, %v7929
        %v7932 = vunpack.c.l.s4 1983009808
        %v7933 = vunpack.c.0.s8 %v7932
        %v7934 = vlaneseq
        %v7935 = vshrl.u32 %v7934, 7
        %v7936 = vsub.s32 %v7933, %v7935
        %v7937 = vrot.slane %v7923, %v7936
        %v7938 = vcombine.low %v7930, %v7937
        %v7942 = vadd.f32 %v7305, %v7904
        %v7943 = vadd.f32 %v7306, %v7921
        %v7944 = vadd.f32 %v7307, %v7938
        %7945 = vst [vmem:[%s1417] sm:$0xff] %v7942
        %7946 = vst [vmem:[%s1417 + $0x8] sm:$0xff] %v7943
        %7947 = vst [vmem:[%s1417 + $0x10] sm:$0xff] %v7944
        %p7948 = scmp.eq.s32.totalorder %s25, 3
        %p7949 = scmp.eq.s32.totalorder %s24, 0
        %p7950 = pnand %p7948, %p7949
        %p7951 = pneg %p7950
        // Predicated region
        $region99: #{structure_aware_forward.1} parent=89 // pred_check
          _
        $region100: #{structure_aware_forward.1} parent=89 // pred_check_branch
          %7953 = sbr.rel (%p7950) target = $region102
        $region101: #{structure_aware_forward.1} parent=89 // pred_region
          %v7954 = vld [vmem:[%s1417] sm:$0xff]
          %v7955 = vld [vmem:[%s1417 + $0x8] sm:$0xff]
          %v7956 = vld [vmem:[%s1417 + $0x10] sm:$0xff]
          %v7957 = vld [vmem:[%s8] sm:$0xff]
          %v7958 = vld [vmem:[%s8 + $0x8] sm:$0xf]
          %v7961 = vlaneseq
          %v7962 = vshrl.u32 %v7961, 7
          %v7963 = vsub.s32 0, %v7962
          %v7964 = vrot.slane %v7957, %v7963
          %v7965 = vlaneseq
          %v7966 = vshrl.u32 %v7965, 7
          %v7967 = vsub.s32 1, %v7966
          %v7968 = vrot.slane %v7957, %v7967
          %v7969 = vlaneseq
          %v7970 = vshrl.u32 %v7969, 7
          %v7971 = vsub.s32 2, %v7970
          %v7972 = vrot.slane %v7957, %v7971
          %v7973 = vlaneseq
          %v7974 = vshrl.u32 %v7973, 7
          %v7975 = vsub.s32 3, %v7974
          %v7976 = vrot.slane %v7957, %v7975
          %v7977 = vlaneseq
          %v7978 = vshrl.u32 %v7977, 7
          %v7979 = vsub.s32 4, %v7978
          %v7980 = vrot.slane %v7957, %v7979
          %v7981 = vlaneseq
          %v7982 = vshrl.u32 %v7981, 7
          %v7983 = vsub.s32 5, %v7982
          %v7984 = vrot.slane %v7957, %v7983
          %v7985 = vlaneseq
          %v7986 = vshrl.u32 %v7985, 7
          %v7987 = vsub.s32 6, %v7986
          %v7988 = vrot.slane %v7957, %v7987
          %v7989 = vlaneseq
          %v7990 = vshrl.u32 %v7989, 7
          %v7991 = vsub.s32 7, %v7990
          %v7992 = vrot.slane %v7957, %v7991
          %v7993 = vlaneseq
          %v7994 = vshrl.u32 %v7993, 7
          %v7995 = vsub.s32 0, %v7994
          %v7996 = vrot.slane %v7958, %v7995
          %v7997 = vlaneseq
          %v7998 = vshrl.u32 %v7997, 7
          %v7999 = vsub.s32 1, %v7998
          %v8000 = vrot.slane %v7958, %v7999
          %v8001 = vlaneseq
          %v8002 = vshrl.u32 %v8001, 7
          %v8003 = vsub.s32 2, %v8002
          %v8004 = vrot.slane %v7958, %v8003
          %v8005 = vlaneseq
          %v8006 = vshrl.u32 %v8005, 7
          %v8007 = vsub.s32 3, %v8006
          %v8008 = vrot.slane %v7958, %v8007
          %v8009 = vcombine.low %v7964, %v7968
          %v8010 = vcombine.low %v7972, %v7976
          %v8012 = vunpack.c.l.s4 1983009808
          %v8013 = vunpack.c.0.s8 %v8012
          %v8014 = vlaneseq
          %v8015 = vshrl.u32 %v8014, 7
          %v8016 = vsub.s32 %v8013, %v8015
          %v8017 = vrot.slane %v8009, %v8016
          %v8019 = vunpack.c.l.s4 1983009808
          %v8020 = vunpack.c.0.s8 %v8019
          %v8021 = vlaneseq
          %v8022 = vshrl.u32 %v8021, 7
          %v8023 = vsub.s32 %v8020, %v8022
          %v8024 = vrot.slane %v8010, %v8023
          %v8025 = vcombine.low %v8017, %v8024
          %v8026 = vcombine.low %v7980, %v7984
          %v8027 = vcombine.low %v7988, %v7992
          %v8029 = vunpack.c.l.s4 1983009808
          %v8030 = vunpack.c.0.s8 %v8029
          %v8031 = vlaneseq
          %v8032 = vshrl.u32 %v8031, 7
          %v8033 = vsub.s32 %v8030, %v8032
          %v8034 = vrot.slane %v8026, %v8033
          %v8036 = vunpack.c.l.s4 1983009808
          %v8037 = vunpack.c.0.s8 %v8036
          %v8038 = vlaneseq
          %v8039 = vshrl.u32 %v8038, 7
          %v8040 = vsub.s32 %v8037, %v8039
          %v8041 = vrot.slane %v8027, %v8040
          %v8042 = vcombine.low %v8034, %v8041
          %v8043 = vcombine.low %v7996, %v8000
          %v8044 = vcombine.low %v8004, %v8008
          %v8046 = vunpack.c.l.s4 1983009808
          %v8047 = vunpack.c.0.s8 %v8046
          %v8048 = vlaneseq
          %v8049 = vshrl.u32 %v8048, 7
          %v8050 = vsub.s32 %v8047, %v8049
          %v8051 = vrot.slane %v8043, %v8050
          %v8053 = vunpack.c.l.s4 1983009808
          %v8054 = vunpack.c.0.s8 %v8053
          %v8055 = vlaneseq
          %v8056 = vshrl.u32 %v8055, 7
          %v8057 = vsub.s32 %v8054, %v8056
          %v8058 = vrot.slane %v8044, %v8057
          %v8059 = vcombine.low %v8051, %v8058
          %v8063 = vadd.f32 %v7954, %v8025
          %v8064 = vadd.f32 %v7955, %v8042
          %v8065 = vadd.f32 %v7956, %v8059
          %8066 = vst [vmem:[%s1417] sm:$0xff] %v8063
          %8067 = vst [vmem:[%s1417 + $0x8] sm:$0xff] %v8064
          %8068 = vst [vmem:[%s1417 + $0x10] sm:$0xff] %v8065
        $region102: #{structure_aware_forward.1} parent=89 // pred_fallthru
          _
        %p8069 = scmp.lt.s32.totalorder %s24, 0
        %s8070 = scalar_select %p8069, %s24, 0
        %s8071 = smul.addr %s8070, 12
        %s8072 = smul.addr %s8071, 2
        %s8073 = scalar_lea.vmem %s9, %s8072
        // Predicated region
        $region103: #{structure_aware_forward.1} parent=89 // pred_check
          %p8074 = pneg %p275
        $region104: #{structure_aware_forward.1} parent=89 // pred_check_branch
          %8076 = sbr.rel (%p8074) target = $region106
        $region105: #{structure_aware_forward.1} parent=89 // pred_region
          _
        $region106: #{structure_aware_forward.1} parent=89 // pred_fallthru
          _
        // Predicated region
        $region107: #{structure_aware_forward.1} parent=89 // pred_check
          %p8077 = pneg %p275
        $region108: #{structure_aware_forward.1} parent=89 // pred_check_branch
          %8079 = sbr.rel (%p8077) target = $region110
        $region109: #{structure_aware_forward.1} parent=89 // pred_region
          %p8080 = scmp.lt.s32.totalorder %s24, 0
          %s8081 = scalar_select %p8080, %s24, 0
          %s8082 = smul.addr %s8081, 12
          %s8083 = smul.addr %s8082, 2
          %s8084 = scalar_lea.vmem %s9, %s8083
        $region110: #{structure_aware_forward.1} parent=89 // pred_fallthru
          _
      $region90: #{structure_aware_forward.1} parent=5 // pred_fallthru
        _
      %p8085 = scmp.le.s32.totalorder 2, %s15
      // Predicated region
      $region111: #{structure_aware_forward.1} parent=5 // pred_check
        %p8086 = pneg %p8085
      $region112: #{structure_aware_forward.1} parent=5 // pred_check_branch
        %8088 = sbr.rel (%p8086) target = $region114
      $region113: #{structure_aware_forward.1} parent=5 // pred_region
        %s8089 = ssub.s32 %s15, 2
      $region114: #{structure_aware_forward.1} parent=5 // pred_fallthru
        _
    $region6: #{structure_aware_forward.1} parent=1 // loop_footer
      %s19 = sadd.s32 1, %s15
    $region7: #{structure_aware_forward.1} parent=1 // loop_footer_branch
      %14 = sbr.rel target = $region3
    $region8: #{structure_aware_forward.1} parent=1 // loop_exit
      _

</llo_original>
